<compile_context>
chip_gen: v5e
topology: v5e:2x2
jax: 0.10.0
libtpu: 0.0.40
codegen_flags: <defaults>
</compile_context>

<pallas_src>
import functools

import jax
import jax.numpy as jnp
from jax.experimental import pallas as pl
from jax.experimental.pallas import tpu as pltpu

TILE_M = 512        # node-row tile (output rows per grid step)
MAX_TILE_K = 2048   # neighbor / reduction tile upper bound
LANE = 128          # feature dims are zero-padded to multiples of this


def _round_up(x, m):
    return (x + m - 1) // m * m


def _pad2(x, rows, cols):
    return jnp.pad(x, ((0, rows - x.shape[0]), (0, cols - x.shape[1])))


def _pick_tile_k(n_pad):
    for tk in (MAX_TILE_K, 1024, 512):
        if n_pad % tk == 0:
            return tk
    return TILE_M   # n_pad is always a multiple of TILE_M


def _sage_layer_kernel(a_ref, h_nbr_ref, h_self_ref, scale_ref, w_ref, b_ref,
                       o_ref, acc_ref, *, apply_relu, apply_norm):
    k = pl.program_id(1)             # neighbor / reduction tile ("arbitrary", last)
    nk = pl.num_programs(1)

    @pl.when(k == 0)
    def _():
        acc_ref[...] = jnp.zeros_like(acc_ref)

    # int8 {0,1} adjacency tile -> bf16 for the MXU (exact values); accumulate f32.
    a_blk = a_ref[...].astype(jnp.bfloat16)
    acc_ref[...] += jnp.dot(a_blk, h_nbr_ref[...],
                            preferred_element_type=jnp.float32)

    @pl.when(k == nk - 1)
    def _():
        # Mean reducer: apply the per-row 1/deg scale once, in f32.
        neigh = (acc_ref[...] * scale_ref[...]).astype(jnp.bfloat16)
        # Fused self + neighbor matmul via stacked weights.
        z = jnp.concatenate([h_self_ref[...], neigh], axis=1)
        out = jnp.dot(z, w_ref[...],
                      preferred_element_type=jnp.float32) + b_ref[...]
        if apply_relu:
            out = jnp.maximum(out, 0.0)
        if apply_norm:
            # F.normalize(p=2, dim=1): x / max(||x||, 1e-12)
            #                        == x * rsqrt(max(sum(x^2), 1e-24))
            sumsq = jnp.sum(out * out, axis=1, keepdims=True)
            out = out * jax.lax.rsqrt(jnp.maximum(sumsq, 1e-24))
        o_ref[...] = out.astype(o_ref.dtype)


def sage_layer(a_i8, h, scale, w_stack, bias, *, apply_relu, apply_norm,
               out_dtype):
    """a_i8:   (Np, Np) int8 {0,1} adjacency (padded).
       h:      (Np, F_in_pad) bf16 node features (padded); streamed twice.
       scale:  (Np, 1) f32, 1/deg per row (DGL mean with deg clamped at 1).
       w_stack:(2*F_in_pad, F_out_pad) bf16 = [[W_self],[W_neigh]].
       bias:   (1, F_out_pad) f32."""
    n_pad, f_in_pad = h.shape
    f_out_pad = w_stack.shape[1]
    tile_k = _pick_tile_k(n_pad)
    assert n_pad % TILE_M == 0 and n_pad % tile_k == 0
    assert f_in_pad % LANE == 0 and f_out_pad % LANE == 0

    kernel = functools.partial(_sage_layer_kernel, apply_relu=apply_relu,
                               apply_norm=apply_norm)
    return pl.pallas_call(
        kernel,
        out_shape=jax.ShapeDtypeStruct((n_pad, f_out_pad), out_dtype),
        grid_spec=pltpu.PrefetchScalarGridSpec(
            num_scalar_prefetch=0,
            grid=(n_pad // TILE_M, n_pad // tile_k),
            in_specs=[
                pl.BlockSpec((TILE_M, tile_k), lambda i, k: (i, k)),      # A blk
                pl.BlockSpec((tile_k, f_in_pad), lambda i, k: (k, 0)),    # H K-blk
                pl.BlockSpec((TILE_M, f_in_pad), lambda i, k: (i, 0)),    # H self
                pl.BlockSpec((TILE_M, 1), lambda i, k: (i, 0)),           # 1/deg
                pl.BlockSpec((2 * f_in_pad, f_out_pad), lambda i, k: (0, 0)),  # W
                pl.BlockSpec((1, f_out_pad), lambda i, k: (0, 0)),        # bias
            ],
            out_specs=pl.BlockSpec((TILE_M, f_out_pad), lambda i, k: (i, 0)),
            scratch_shapes=[pltpu.VMEM((TILE_M, f_in_pad), jnp.float32)],
        ),
        compiler_params=pltpu.CompilerParams(
            dimension_semantics=("parallel", "arbitrary"),
            # Actual footprint is a few MiB; 48 MiB keeps headroom for larger
            # tiles while staying inside v7x's 64 MiB physical VMEM.
            vmem_limit_bytes=48 * 1024 * 1024,
        ),
    )(a_i8, h, h, scale, w_stack, bias)


def graphsage_forward(adj, features, params):
    """adj: (N, N) dense {0,1} adjacency (float).  params: list of
    (w_self, w_neigh, bias).  Hidden layers use relu + L2 norm; the final layer
    has activation=None and no norm (matches GraphSAGE.__init__)."""
    n = features.shape[0]
    n_pad = _round_up(n, TILE_M)
    f_out_final = params[-1][0].shape[1]

    adj_pad = jnp.pad(adj, ((0, n_pad - n), (0, n_pad - n)))
    a_i8 = (adj_pad > 0).astype(jnp.int8)
    deg = jnp.maximum(adj_pad.sum(axis=1, keepdims=True), 1.0)   # DGL clamp(min=1)
    scale = (1.0 / deg).astype(jnp.float32)                      # (n_pad, 1)

    f_in_pad = _round_up(features.shape[1], LANE)
    h = jnp.pad(features, ((0, n_pad - n),
                           (0, f_in_pad - features.shape[1]))).astype(jnp.bfloat16)

    n_total = len(params)
    for li, (ws, wn, b) in enumerate(params):
        f_in, f_out = ws.shape
        f_in_p = _round_up(f_in, LANE)
        f_out_p = _round_up(f_out, LANE)
        assert h.shape[1] == f_in_p
        # Stacked weights: [h_self | neigh] @ [[W_self],[W_neigh]]
        w_stack = jnp.concatenate(
            [_pad2(ws, f_in_p, f_out_p), _pad2(wn, f_in_p, f_out_p)],
            axis=0).astype(jnp.bfloat16)
        b_pad = _pad2(b, 1, f_out_p).astype(jnp.float32)
        last = li == n_total - 1
        h = sage_layer(a_i8, h, scale, w_stack, b_pad,
                       apply_relu=not last, apply_norm=not last,
                       out_dtype=jnp.float32 if last else jnp.bfloat16)
    return h[:n, :f_out_final]


def graphsage_reference(adj, features, params):
    deg = jnp.maximum(adj.sum(axis=1, keepdims=True), 1.0)
    a_mean = adj / deg
    h = features
    for li, (ws, wn, b) in enumerate(params):
        neigh = a_mean @ h
        out = h @ ws + neigh @ wn + b
        if li < len(params) - 1:
            out = jnp.maximum(out, 0.0)
            nrm = jnp.sqrt(jnp.sum(out * out, axis=1, keepdims=True))
            out = out / jnp.maximum(nrm, 1e-12)
        h = out
    return h


def _init_linear(key, f_in, f_out):
    kw, kb = jax.random.split(key)
    limit = (6.0 / (f_in + f_out)) ** 0.5
    w = jax.random.uniform(kw, (f_in, f_out), jnp.float32, -limit, limit)
    b = jax.random.uniform(kb, (1, f_out), jnp.float32, -limit, limit)
    return w, b


def make_params(key, in_feats, n_hidden, n_classes, n_layers):
    dims = [in_feats] + [n_hidden] * n_layers + [n_classes]
    params = []
    for i in range(len(dims) - 1):
        key, k1, k2 = jax.random.split(key, 3)
        w_self, bias = _init_linear(k1, dims[i], dims[i + 1])
        w_neigh, _ = _init_linear(k2, dims[i], dims[i + 1])
        params.append((w_self, w_neigh, bias))
    return params


if __name__ == "__main__":
    key = jax.random.PRNGKey(0)

    # small synthetic graph + features
    N = 128          # nodes (padded internally to a multiple of TILE_M)
    in_feats = 16
    n_hidden = 32
    n_classes = 8
    n_layers = 2     # -> layers: in->hidden, hidden->hidden, hidden->classes

    key, k_adj, k_feat, k_par = jax.random.split(key, 4)

    # random sparse-ish {0,1} graph, no self-loops (mean aggregator)
    adj = (jax.random.uniform(k_adj, (N, N)) < 0.1).astype(jnp.float32)
    adj = adj * (1.0 - jnp.eye(N, dtype=jnp.float32))

    features = jax.random.normal(k_feat, (N, in_feats), jnp.float32)
    params = make_params(k_par, in_feats, n_hidden, n_classes, n_layers)

    out = jax.jit(graphsage_forward)(adj, features, params)
    out = jax.block_until_ready(out)
    assert out.shape == (N, n_classes) and out.dtype == jnp.float32

    # loose check vs. f32 pure-JAX reference (bf16 MXU inputs drift slightly)
    ref = graphsage_reference(adj, features, params)
    err = float(jnp.max(jnp.abs(out - ref)))
    assert err < 1e-1, f"max abs error {err}"
    print("KERNEL_OK")
</pallas_src>

<mosaic_0001>
module attributes {stable_mosaic.version = 11 : i64} {
  func.func @_sage_layer_kernel(%arg0: i32, %arg1: i32, %arg2: memref<512x512xi8, #tpu.memory_space<vmem>>, %arg3: memref<512x128xbf16, #tpu.memory_space<vmem>>, %arg4: memref<512x128xbf16, #tpu.memory_space<vmem>>, %arg5: memref<512x1xf32, #tpu.memory_space<vmem>>, %arg6: memref<256x128xbf16, #tpu.memory_space<vmem>>, %arg7: memref<1x128xf32, #tpu.memory_space<vmem>>, %arg8: memref<512x128xf32, #tpu.memory_space<vmem>>, %arg9: memref<512x128xf32, #tpu.memory_space<vmem>>) attributes {dimension_semantics = [#tpu.dimension_semantics<parallel>, #tpu.dimension_semantics<arbitrary>], iteration_bounds = array<i64: 1, 1>, scalar_prefetch = 0 : i64, scratch_operands = 1 : i64, tpu.core_type = #tpu.core_type<tc>, window_params = [{transform_indices = @transform_0, window_bounds = array<i64: 512, 512>}, {transform_indices = @transform_1, window_bounds = array<i64: 512, 128>}, {transform_indices = @transform_2, window_bounds = array<i64: 512, 128>}, {transform_indices = @transform_3, window_bounds = array<i64: 512, 1>}, {pipeline_mode = #tpu.pipeline_mode<synchronous>, transform_indices = @transform_4, window_bounds = array<i64: 256, 128>}, {pipeline_mode = #tpu.pipeline_mode<synchronous>, transform_indices = @transform_5, window_bounds = array<i64: 1, 128>}, {transform_indices = @transform_6, window_bounds = array<i64: 512, 128>}]} {
    %c0_i32 = arith.constant 0 : i32
    %0 = arith.cmpi eq, %arg1, %c0_i32 : i32
    %1 = arith.extui %0 : i1 to i32
    %c0_i32_0 = arith.constant 0 : i32
    %2 = arith.cmpi ne, %1, %c0_i32_0 : i32
    scf.if %2 {
      %cst_10 = arith.constant 0.000000e+00 : f32
      %13 = vector.broadcast %cst_10 : f32 to vector<512x128xf32>
      %c0_11 = arith.constant 0 : index
      %c0_12 = arith.constant 0 : index
      %14 = vector.load %arg9[%c0_11, %c0_12] : memref<512x128xf32, #tpu.memory_space<vmem>>, vector<512x128xf32>
      tpu.vector_store %arg9[%c0_11, %c0_12], %13 {strides = array<i32>} : memref<512x128xf32, #tpu.memory_space<vmem>>, vector<512x128xf32>,
    } else {
    }
    %c0 = arith.constant 0 : index
    %c0_1 = arith.constant 0 : index
    %3 = vector.load %arg2[%c0, %c0_1] : memref<512x512xi8, #tpu.memory_space<vmem>>, vector<512x512xi8>
    %4 = arith.sitofp %3 : vector<512x512xi8> to vector<512x512xbf16>
    %c0_2 = arith.constant 0 : index
    %c0_3 = arith.constant 0 : index
    %5 = vector.load %arg9[%c0_2, %c0_3] : memref<512x128xf32, #tpu.memory_space<vmem>>, vector<512x128xf32>
    %c0_4 = arith.constant 0 : index
    %c0_5 = arith.constant 0 : index
    %6 = vector.load %arg3[%c0_4, %c0_5] : memref<512x128xbf16, #tpu.memory_space<vmem>>, vector<512x128xbf16>
    %cst = arith.constant dense<0.000000e+00> : vector<512x128xf32>
    %7 = tpu.matmul %4, %6, %cst {dimension_numbers = #tpu.dot_dimension_numbers<[1], [0], [0], [1], [0, 0, 1, 1], [], []>} : vector<512x512xbf16>, vector<512x128xbf16>, vector<512x128xf32> -> vector<512x128xf32>
    %8 = arith.addf %5, %7 : vector<512x128xf32>
    %c0_6 = arith.constant 0 : index
    %c0_7 = arith.constant 0 : index
    %9 = vector.load %arg9[%c0_6, %c0_7] : memref<512x128xf32, #tpu.memory_space<vmem>>, vector<512x128xf32>
    tpu.vector_store %arg9[%c0_6, %c0_7], %8 {strides = array<i32>} : memref<512x128xf32, #tpu.memory_space<vmem>>, vector<512x128xf32>,
    %c0_i32_8 = arith.constant 0 : i32
    %10 = arith.cmpi eq, %arg1, %c0_i32_8 : i32
    %11 = arith.extui %10 : i1 to i32
    %c0_i32_9 = arith.constant 0 : i32
    %12 = arith.cmpi ne, %11, %c0_i32_9 : i32
    scf.if %12 {
      %c0_10 = arith.constant 0 : index
      %c0_11 = arith.constant 0 : index
      %13 = vector.load %arg9[%c0_10, %c0_11] : memref<512x128xf32, #tpu.memory_space<vmem>>, vector<512x128xf32>
      %c0_12 = arith.constant 0 : index
      %c0_13 = arith.constant 0 : index
      %14 = vector.load %arg5[%c0_12, %c0_13] : memref<512x1xf32, #tpu.memory_space<vmem>>, vector<512x1xf32>
      %15 = vector.broadcast %14 : vector<512x1xf32> to vector<512x128xf32>
      %16 = arith.mulf %13, %15 : vector<512x128xf32>
      %17 = arith.truncf %16 : vector<512x128xf32> to vector<512x128xbf16>
      %c0_14 = arith.constant 0 : index
      %c0_15 = arith.constant 0 : index
      %18 = vector.load %arg4[%c0_14, %c0_15] : memref<512x128xbf16, #tpu.memory_space<vmem>>, vector<512x128xbf16>
      %19 = tpu.concatenate %18, %17 in 1 : vector<512x128xbf16>, vector<512x128xbf16> -> vector<512x256xbf16>
      %c0_16 = arith.constant 0 : index
      %c0_17 = arith.constant 0 : index
      %20 = vector.load %arg6[%c0_16, %c0_17] : memref<256x128xbf16, #tpu.memory_space<vmem>>, vector<256x128xbf16>
      %cst_18 = arith.constant dense<0.000000e+00> : vector<512x128xf32>
      %21 = tpu.matmul %19, %20, %cst_18 {dimension_numbers = #tpu.dot_dimension_numbers<[1], [0], [0], [1], [0, 0, 1, 1], [], []>} : vector<512x256xbf16>, vector<256x128xbf16>, vector<512x128xf32> -> vector<512x128xf32>
      %c0_19 = arith.constant 0 : index
      %c0_20 = arith.constant 0 : index
      %22 = vector.load %arg7[%c0_19, %c0_20] : memref<1x128xf32, #tpu.memory_space<vmem>>, vector<1x128xf32>
      %23 = vector.broadcast %22 : vector<1x128xf32> to vector<512x128xf32>
      %24 = arith.addf %21, %23 : vector<512x128xf32>
      %c0_21 = arith.constant 0 : index
      %c0_22 = arith.constant 0 : index
      %25 = vector.load %arg8[%c0_21, %c0_22] : memref<512x128xf32, #tpu.memory_space<vmem>>, vector<512x128xf32>
      tpu.vector_store %arg8[%c0_21, %c0_22], %24 {strides = array<i32>} : memref<512x128xf32, #tpu.memory_space<vmem>>, vector<512x128xf32>,
    } else {
    }
    return
  }
  func.func @transform_0(%arg0: i32, %arg1: i32) -> (i32, i32) {
    %c0_i32 = arith.constant 0 : i32
    return %arg0, %arg1 : i32, i32
  }
  func.func @transform_1(%arg0: i32, %arg1: i32) -> (i32, i32) {
    %c0_i32 = arith.constant 0 : i32
    %c0_i32_0 = arith.constant 0 : i32
    return %arg1, %c0_i32 : i32, i32
  }
  func.func @transform_2(%arg0: i32, %arg1: i32) -> (i32, i32) {
    %c0_i32 = arith.constant 0 : i32
    %c0_i32_0 = arith.constant 0 : i32
    return %arg0, %c0_i32 : i32, i32
  }
  func.func @transform_3(%arg0: i32, %arg1: i32) -> (i32, i32) {
    %c0_i32 = arith.constant 0 : i32
    %c0_i32_0 = arith.constant 0 : i32
    return %arg0, %c0_i32 : i32, i32
  }
  func.func @transform_4(%arg0: i32, %arg1: i32) -> (i32, i32) {
    %c0_i32 = arith.constant 0 : i32
    %c0_i32_0 = arith.constant 0 : i32
    %c0_i32_1 = arith.constant 0 : i32
    return %c0_i32, %c0_i32_0 : i32, i32
  }
  func.func @transform_5(%arg0: i32, %arg1: i32) -> (i32, i32) {
    %c0_i32 = arith.constant 0 : i32
    %c0_i32_0 = arith.constant 0 : i32
    %c0_i32_1 = arith.constant 0 : i32
    return %c0_i32, %c0_i32_0 : i32, i32
  }
  func.func @transform_6(%arg0: i32, %arg1: i32) -> (i32, i32) {
    %c0_i32 = arith.constant 0 : i32
    %c0_i32_0 = arith.constant 0 : i32
    return %arg0, %c0_i32 : i32, i32
  }
}

module attributes {stable_mosaic.version = 11 : i64} {
  func.func @_sage_layer_kernel(%arg0: i32, %arg1: i32, %arg2: memref<512x512xi8, #tpu.memory_space<vmem>>, %arg3: memref<512x128xbf16, #tpu.memory_space<vmem>>, %arg4: memref<512x128xbf16, #tpu.memory_space<vmem>>, %arg5: memref<512x1xf32, #tpu.memory_space<vmem>>, %arg6: memref<256x128xbf16, #tpu.memory_space<vmem>>, %arg7: memref<1x128xf32, #tpu.memory_space<vmem>>, %arg8: memref<512x128xbf16, #tpu.memory_space<vmem>>, %arg9: memref<512x128xf32, #tpu.memory_space<vmem>>) attributes {dimension_semantics = [#tpu.dimension_semantics<parallel>, #tpu.dimension_semantics<arbitrary>], iteration_bounds = array<i64: 1, 1>, scalar_prefetch = 0 : i64, scratch_operands = 1 : i64, tpu.core_type = #tpu.core_type<tc>, window_params = [{transform_indices = @transform_0, window_bounds = array<i64: 512, 512>}, {transform_indices = @transform_1, window_bounds = array<i64: 512, 128>}, {transform_indices = @transform_2, window_bounds = array<i64: 512, 128>}, {transform_indices = @transform_3, window_bounds = array<i64: 512, 1>}, {pipeline_mode = #tpu.pipeline_mode<synchronous>, transform_indices = @transform_4, window_bounds = array<i64: 256, 128>}, {pipeline_mode = #tpu.pipeline_mode<synchronous>, transform_indices = @transform_5, window_bounds = array<i64: 1, 128>}, {transform_indices = @transform_6, window_bounds = array<i64: 512, 128>}]} {
    %c0_i32 = arith.constant 0 : i32
    %0 = arith.cmpi eq, %arg1, %c0_i32 : i32
    %1 = arith.extui %0 : i1 to i32
    %c0_i32_0 = arith.constant 0 : i32
    %2 = arith.cmpi ne, %1, %c0_i32_0 : i32
    scf.if %2 {
      %cst_10 = arith.constant 0.000000e+00 : f32
      %13 = vector.broadcast %cst_10 : f32 to vector<512x128xf32>
      %c0_11 = arith.constant 0 : index
      %c0_12 = arith.constant 0 : index
      %14 = vector.load %arg9[%c0_11, %c0_12] : memref<512x128xf32, #tpu.memory_space<vmem>>, vector<512x128xf32>
      tpu.vector_store %arg9[%c0_11, %c0_12], %13 {strides = array<i32>} : memref<512x128xf32, #tpu.memory_space<vmem>>, vector<512x128xf32>,
    } else {
    }
    %c0 = arith.constant 0 : index
    %c0_1 = arith.constant 0 : index
    %3 = vector.load %arg2[%c0, %c0_1] : memref<512x512xi8, #tpu.memory_space<vmem>>, vector<512x512xi8>
    %4 = arith.sitofp %3 : vector<512x512xi8> to vector<512x512xbf16>
    %c0_2 = arith.constant 0 : index
    %c0_3 = arith.constant 0 : index
    %5 = vector.load %arg9[%c0_2, %c0_3] : memref<512x128xf32, #tpu.memory_space<vmem>>, vector<512x128xf32>
    %c0_4 = arith.constant 0 : index
    %c0_5 = arith.constant 0 : index
    %6 = vector.load %arg3[%c0_4, %c0_5] : memref<512x128xbf16, #tpu.memory_space<vmem>>, vector<512x128xbf16>
    %cst = arith.constant dense<0.000000e+00> : vector<512x128xf32>
    %7 = tpu.matmul %4, %6, %cst {dimension_numbers = #tpu.dot_dimension_numbers<[1], [0], [0], [1], [0, 0, 1, 1], [], []>} : vector<512x512xbf16>, vector<512x128xbf16>, vector<512x128xf32> -> vector<512x128xf32>
    %8 = arith.addf %5, %7 : vector<512x128xf32>
    %c0_6 = arith.constant 0 : index
    %c0_7 = arith.constant 0 : index
    %9 = vector.load %arg9[%c0_6, %c0_7] : memref<512x128xf32, #tpu.memory_space<vmem>>, vector<512x128xf32>
    tpu.vector_store %arg9[%c0_6, %c0_7], %8 {strides = array<i32>} : memref<512x128xf32, #tpu.memory_space<vmem>>, vector<512x128xf32>,
    %c0_i32_8 = arith.constant 0 : i32
    %10 = arith.cmpi eq, %arg1, %c0_i32_8 : i32
    %11 = arith.extui %10 : i1 to i32
    %c0_i32_9 = arith.constant 0 : i32
    %12 = arith.cmpi ne, %11, %c0_i32_9 : i32
    scf.if %12 {
      %c0_10 = arith.constant 0 : index
      %c0_11 = arith.constant 0 : index
      %13 = vector.load %arg9[%c0_10, %c0_11] : memref<512x128xf32, #tpu.memory_space<vmem>>, vector<512x128xf32>
      %c0_12 = arith.constant 0 : index
      %c0_13 = arith.constant 0 : index
      %14 = vector.load %arg5[%c0_12, %c0_13] : memref<512x1xf32, #tpu.memory_space<vmem>>, vector<512x1xf32>
      %15 = vector.broadcast %14 : vector<512x1xf32> to vector<512x128xf32>
      %16 = arith.mulf %13, %15 : vector<512x128xf32>
      %17 = arith.truncf %16 : vector<512x128xf32> to vector<512x128xbf16>
      %c0_14 = arith.constant 0 : index
      %c0_15 = arith.constant 0 : index
      %18 = vector.load %arg4[%c0_14, %c0_15] : memref<512x128xbf16, #tpu.memory_space<vmem>>, vector<512x128xbf16>
      %19 = tpu.concatenate %18, %17 in 1 : vector<512x128xbf16>, vector<512x128xbf16> -> vector<512x256xbf16>
      %c0_16 = arith.constant 0 : index
      %c0_17 = arith.constant 0 : index
      %20 = vector.load %arg6[%c0_16, %c0_17] : memref<256x128xbf16, #tpu.memory_space<vmem>>, vector<256x128xbf16>
      %cst_18 = arith.constant dense<0.000000e+00> : vector<512x128xf32>
      %21 = tpu.matmul %19, %20, %cst_18 {dimension_numbers = #tpu.dot_dimension_numbers<[1], [0], [0], [1], [0, 0, 1, 1], [], []>} : vector<512x256xbf16>, vector<256x128xbf16>, vector<512x128xf32> -> vector<512x128xf32>
      %c0_19 = arith.constant 0 : index
      %c0_20 = arith.constant 0 : index
      %22 = vector.load %arg7[%c0_19, %c0_20] : memref<1x128xf32, #tpu.memory_space<vmem>>, vector<1x128xf32>
      %23 = vector.broadcast %22 : vector<1x128xf32> to vector<512x128xf32>
      %24 = arith.addf %21, %23 : vector<512x128xf32>
      %cst_21 = arith.constant 0.000000e+00 : f32
      %25 = vector.broadcast %cst_21 : f32 to vector<512x128xf32>
      %26 = arith.maximumf %24, %25 : vector<512x128xf32>
      %27 = arith.mulf %26, %26 : vector<512x128xf32>
      %cst_22 = arith.constant dense<0.000000e+00> : vector<512xf32>
      %28 = vector.multi_reduction <add>, %27, %cst_22 [1] : vector<512x128xf32> to vector<512xf32>
      %29 = vector.shape_cast %28 : vector<512xf32> to vector<512x1xf32>
      %cst_23 = arith.constant 1.000000e-24 : f32
      %30 = vector.broadcast %cst_23 : f32 to vector<512x1xf32>
      %31 = arith.maximumf %29, %30 : vector<512x1xf32>
      %32 = math.rsqrt %31 : vector<512x1xf32>
      %33 = vector.broadcast %32 : vector<512x1xf32> to vector<512x128xf32>
      %34 = arith.mulf %26, %33 : vector<512x128xf32>
      %35 = arith.truncf %34 : vector<512x128xf32> to vector<512x128xbf16>
      %c0_24 = arith.constant 0 : index
      %c0_25 = arith.constant 0 : index
      %36 = vector.load %arg8[%c0_24, %c0_25] : memref<512x128xbf16, #tpu.memory_space<vmem>>, vector<512x128xbf16>
      tpu.vector_store %arg8[%c0_24, %c0_25], %35 {strides = array<i32>} : memref<512x128xbf16, #tpu.memory_space<vmem>>, vector<512x128xbf16>,
    } else {
    }
    return
  }
  func.func @transform_0(%arg0: i32, %arg1: i32) -> (i32, i32) {
    %c0_i32 = arith.constant 0 : i32
    return %arg0, %arg1 : i32, i32
  }
  func.func @transform_1(%arg0: i32, %arg1: i32) -> (i32, i32) {
    %c0_i32 = arith.constant 0 : i32
    %c0_i32_0 = arith.constant 0 : i32
    return %arg1, %c0_i32 : i32, i32
  }
  func.func @transform_2(%arg0: i32, %arg1: i32) -> (i32, i32) {
    %c0_i32 = arith.constant 0 : i32
    %c0_i32_0 = arith.constant 0 : i32
    return %arg0, %c0_i32 : i32, i32
  }
  func.func @transform_3(%arg0: i32, %arg1: i32) -> (i32, i32) {
    %c0_i32 = arith.constant 0 : i32
    %c0_i32_0 = arith.constant 0 : i32
    return %arg0, %c0_i32 : i32, i32
  }
  func.func @transform_4(%arg0: i32, %arg1: i32) -> (i32, i32) {
    %c0_i32 = arith.constant 0 : i32
    %c0_i32_0 = arith.constant 0 : i32
    %c0_i32_1 = arith.constant 0 : i32
    return %c0_i32, %c0_i32_0 : i32, i32
  }
  func.func @transform_5(%arg0: i32, %arg1: i32) -> (i32, i32) {
    %c0_i32 = arith.constant 0 : i32
    %c0_i32_0 = arith.constant 0 : i32
    %c0_i32_1 = arith.constant 0 : i32
    return %c0_i32, %c0_i32_0 : i32, i32
  }
  func.func @transform_6(%arg0: i32, %arg1: i32) -> (i32, i32) {
    %c0_i32 = arith.constant 0 : i32
    %c0_i32_0 = arith.constant 0 : i32
    return %arg0, %c0_i32 : i32, i32
  }
}

</mosaic_0001>

<llo_original>
// kernel: graphsage_forward.5
$region0: #{graphsage_forward.5}
  #allocation0 [shape = 'u32[]', space=smem, size = 0x4, offset = 0x4, fixed_abs, tag = 'smem constant byte address 0x4 - core index']
  #allocation1 [shape = 'u32[72,128]{1,0:T(1,128)}', space=vmem, size = 0x9000, scoped, tag = 'internal scratch']
  #allocation2 [shape = 'f32[512,128]{1,0:T(8,128)}', space=vmem, size = 0x40000, scoped, tag = 'scratch operand']
  %s0 = inlined_call_operand.vmem [shape: s8[512,512], index: 0, kind: input, shape index: {}]
  %s1 = inlined_call_operand.vmem [shape: bf16[512,128], index: 1, kind: input, shape index: {}, may-alias: {1,2}]
  %s2 = inlined_call_operand.vmem [shape: bf16[512,128], index: 2, kind: input, shape index: {}, may-alias: {1,2}]
  %s3 = inlined_call_operand.vmem [shape: f32[512,1], index: 3, kind: input, shape index: {}]
  %s4 = inlined_call_operand.vmem [shape: bf16[256,128], index: 4, kind: input, shape index: {}]
  %s5 = inlined_call_operand.vmem [shape: f32[1,128], index: 5, kind: input, shape index: {}]
  %s6 = inlined_call_operand.vmem [shape: f32[512,128], index: 6, kind: output, shape index: {}]
  %s7 = sld [smem:[#allocation0]]
  $region42: #{graphsage_forward.5} parent=0
    _
  %s9 = ssub.s32 1, %s7
  %s10 = scalar_select 0, %s9, %s7
  // Predicated region
  $region2: #{graphsage_forward.5} parent=0 // pred_check
    _
  $region3: #{graphsage_forward.5} parent=0 // pred_check_branch
    %12 = sbr.rel (0) target = $region5
  $region4: #{graphsage_forward.5} parent=0 // pred_region
    _
  $region5: #{graphsage_forward.5} parent=0 // pred_fallthru
    _
  // Predicated region
  $region6: #{graphsage_forward.5} parent=0 // pred_check
    _
  $region7: #{graphsage_forward.5} parent=0 // pred_check_branch
    %14 = sbr.rel (0) target = $region9
  $region8: #{graphsage_forward.5} parent=0 // pred_region
    _
  $region9: #{graphsage_forward.5} parent=0 // pred_fallthru
    _
  // Predicated region
  $region10: #{graphsage_forward.5} parent=0 // pred_check
    _
  $region11: #{graphsage_forward.5} parent=0 // pred_check_branch
    %16 = sbr.rel (0) target = $region13
  $region12: #{graphsage_forward.5} parent=0 // pred_region
    _
  $region13: #{graphsage_forward.5} parent=0 // pred_fallthru
    _
  // Predicated region
  $region14: #{graphsage_forward.5} parent=0 // pred_check
    _
  $region15: #{graphsage_forward.5} parent=0 // pred_check_branch
    %18 = sbr.rel (0) target = $region17
  $region16: #{graphsage_forward.5} parent=0 // pred_region
    _
  $region17: #{graphsage_forward.5} parent=0 // pred_fallthru
    _
  // Predicated region
  $region18: #{graphsage_forward.5} parent=0 // pred_check
    _
  $region19: #{graphsage_forward.5} parent=0 // pred_check_branch
    %20 = sbr.rel (0) target = $region21
  $region20: #{graphsage_forward.5} parent=0 // pred_region
    _
  $region21: #{graphsage_forward.5} parent=0 // pred_fallthru
    _
  // Predicated region
  $region22: #{graphsage_forward.5} parent=0 // pred_check
    _
  $region23: #{graphsage_forward.5} parent=0 // pred_check_branch
    %22 = sbr.rel (0) target = $region25
  $region24: #{graphsage_forward.5} parent=0 // pred_region
    _
  $region25: #{graphsage_forward.5} parent=0 // pred_fallthru
    _
  %p23 = scmp.eq.s32.totalorder 0, 0
  // Predicated region
  $region26: #{graphsage_forward.5} parent=0 // pred_check
    %p24 = pneg %p23
  $region27: #{graphsage_forward.5} parent=0 // pred_check_branch
    %26 = sbr.rel (%p24) target = $region29
  $region28: #{graphsage_forward.5} parent=0 // pred_region
    %27 = vst [vmem:[#allocation2] sm:$0xff] 0.0
    %28 = vst [vmem:[#allocation2 + $0x8] sm:$0xff] 0.0
    %29 = vst [vmem:[#allocation2 + $0x10] sm:$0xff] 0.0
    %30 = vst [vmem:[#allocation2 + $0x18] sm:$0xff] 0.0
    %31 = vst [vmem:[#allocation2 + $0x20] sm:$0xff] 0.0
    %32 = vst [vmem:[#allocation2 + $0x28] sm:$0xff] 0.0
    %33 = vst [vmem:[#allocation2 + $0x30] sm:$0xff] 0.0
    %34 = vst [vmem:[#allocation2 + $0x38] sm:$0xff] 0.0
    %35 = vst [vmem:[#allocation2 + $0x40] sm:$0xff] 0.0
    %36 = vst [vmem:[#allocation2 + $0x48] sm:$0xff] 0.0
    %37 = vst [vmem:[#allocation2 + $0x50] sm:$0xff] 0.0
    %38 = vst [vmem:[#allocation2 + $0x58] sm:$0xff] 0.0
    %39 = vst [vmem:[#allocation2 + $0x60] sm:$0xff] 0.0
    %40 = vst [vmem:[#allocation2 + $0x68] sm:$0xff] 0.0
    %41 = vst [vmem:[#allocation2 + $0x70] sm:$0xff] 0.0
    %42 = vst [vmem:[#allocation2 + $0x78] sm:$0xff] 0.0
    %43 = vst [vmem:[#allocation2 + $0x80] sm:$0xff] 0.0
    %44 = vst [vmem:[#allocation2 + $0x88] sm:$0xff] 0.0
    %45 = vst [vmem:[#allocation2 + $0x90] sm:$0xff] 0.0
    %46 = vst [vmem:[#allocation2 + $0x98] sm:$0xff] 0.0
    %47 = vst [vmem:[#allocation2 + $0xa0] sm:$0xff] 0.0
    %48 = vst [vmem:[#allocation2 + $0xa8] sm:$0xff] 0.0
    %49 = vst [vmem:[#allocation2 + $0xb0] sm:$0xff] 0.0
    %50 = vst [vmem:[#allocation2 + $0xb8] sm:$0xff] 0.0
    %51 = vst [vmem:[#allocation2 + $0xc0] sm:$0xff] 0.0
    %52 = vst [vmem:[#allocation2 + $0xc8] sm:$0xff] 0.0
    %53 = vst [vmem:[#allocation2 + $0xd0] sm:$0xff] 0.0
    %54 = vst [vmem:[#allocation2 + $0xd8] sm:$0xff] 0.0
    %55 = vst [vmem:[#allocation2 + $0xe0] sm:$0xff] 0.0
    %56 = vst [vmem:[#allocation2 + $0xe8] sm:$0xff] 0.0
    %57 = vst [vmem:[#allocation2 + $0xf0] sm:$0xff] 0.0
    %58 = vst [vmem:[#allocation2 + $0xf8] sm:$0xff] 0.0
    %59 = vst [vmem:[#allocation2 + $0x100] sm:$0xff] 0.0
    %60 = vst [vmem:[#allocation2 + $0x108] sm:$0xff] 0.0
    %61 = vst [vmem:[#allocation2 + $0x110] sm:$0xff] 0.0
    %62 = vst [vmem:[#allocation2 + $0x118] sm:$0xff] 0.0
    %63 = vst [vmem:[#allocation2 + $0x120] sm:$0xff] 0.0
    %64 = vst [vmem:[#allocation2 + $0x128] sm:$0xff] 0.0
    %65 = vst [vmem:[#allocation2 + $0x130] sm:$0xff] 0.0
    %66 = vst [vmem:[#allocation2 + $0x138] sm:$0xff] 0.0
    %67 = vst [vmem:[#allocation2 + $0x140] sm:$0xff] 0.0
    %68 = vst [vmem:[#allocation2 + $0x148] sm:$0xff] 0.0
    %69 = vst [vmem:[#allocation2 + $0x150] sm:$0xff] 0.0
    %70 = vst [vmem:[#allocation2 + $0x158] sm:$0xff] 0.0
    %71 = vst [vmem:[#allocation2 + $0x160] sm:$0xff] 0.0
    %72 = vst [vmem:[#allocation2 + $0x168] sm:$0xff] 0.0
    %73 = vst [vmem:[#allocation2 + $0x170] sm:$0xff] 0.0
    %74 = vst [vmem:[#allocation2 + $0x178] sm:$0xff] 0.0
    %75 = vst [vmem:[#allocation2 + $0x180] sm:$0xff] 0.0
    %76 = vst [vmem:[#allocation2 + $0x188] sm:$0xff] 0.0
    %77 = vst [vmem:[#allocation2 + $0x190] sm:$0xff] 0.0
    %78 = vst [vmem:[#allocation2 + $0x198] sm:$0xff] 0.0
    %79 = vst [vmem:[#allocation2 + $0x1a0] sm:$0xff] 0.0
    %80 = vst [vmem:[#allocation2 + $0x1a8] sm:$0xff] 0.0
    %81 = vst [vmem:[#allocation2 + $0x1b0] sm:$0xff] 0.0
    %82 = vst [vmem:[#allocation2 + $0x1b8] sm:$0xff] 0.0
    %83 = vst [vmem:[#allocation2 + $0x1c0] sm:$0xff] 0.0
    %84 = vst [vmem:[#allocation2 + $0x1c8] sm:$0xff] 0.0
    %85 = vst [vmem:[#allocation2 + $0x1d0] sm:$0xff] 0.0
    %86 = vst [vmem:[#allocation2 + $0x1d8] sm:$0xff] 0.0
    %87 = vst [vmem:[#allocation2 + $0x1e0] sm:$0xff] 0.0
    %88 = vst [vmem:[#allocation2 + $0x1e8] sm:$0xff] 0.0
    %89 = vst [vmem:[#allocation2 + $0x1f0] sm:$0xff] 0.0
    %90 = vst [vmem:[#allocation2 + $0x1f8] sm:$0xff] 0.0
  $region29: #{graphsage_forward.5} parent=0 // pred_fallthru
    _
  %v91 = vld [vmem:[%s0] sm:$0xff]
  %v92 = vld [vmem:[%s0 + $0x8] sm:$0xff]
  %v93 = vld [vmem:[%s0 + $0x10] sm:$0xff]
  %v94 = vld [vmem:[%s0 + $0x18] sm:$0xff]
  %v95 = vld [vmem:[%s0 + $0x20] sm:$0xff]
  %v96 = vld [vmem:[%s0 + $0x28] sm:$0xff]
  %v97 = vld [vmem:[%s0 + $0x30] sm:$0xff]
  %v98 = vld [vmem:[%s0 + $0x38] sm:$0xff]
  %v99 = vld [vmem:[%s0 + $0x40] sm:$0xff]
  %v100 = vld [vmem:[%s0 + $0x48] sm:$0xff]
  %v101 = vld [vmem:[%s0 + $0x50] sm:$0xff]
  %v102 = vld [vmem:[%s0 + $0x58] sm:$0xff]
  %v103 = vld [vmem:[%s0 + $0x60] sm:$0xff]
  %v104 = vld [vmem:[%s0 + $0x68] sm:$0xff]
  %v105 = vld [vmem:[%s0 + $0x70] sm:$0xff]
  %v106 = vld [vmem:[%s0 + $0x78] sm:$0xff]
  %v107 = vld [vmem:[%s0 + $0x80] sm:$0xff]
  %v108 = vld [vmem:[%s0 + $0x88] sm:$0xff]
  %v109 = vld [vmem:[%s0 + $0x90] sm:$0xff]
  %v110 = vld [vmem:[%s0 + $0x98] sm:$0xff]
  %v111 = vld [vmem:[%s0 + $0xa0] sm:$0xff]
  %v112 = vld [vmem:[%s0 + $0xa8] sm:$0xff]
  %v113 = vld [vmem:[%s0 + $0xb0] sm:$0xff]
  %v114 = vld [vmem:[%s0 + $0xb8] sm:$0xff]
  %v115 = vld [vmem:[%s0 + $0xc0] sm:$0xff]
  %v116 = vld [vmem:[%s0 + $0xc8] sm:$0xff]
  %v117 = vld [vmem:[%s0 + $0xd0] sm:$0xff]
  %v118 = vld [vmem:[%s0 + $0xd8] sm:$0xff]
  %v119 = vld [vmem:[%s0 + $0xe0] sm:$0xff]
  %v120 = vld [vmem:[%s0 + $0xe8] sm:$0xff]
  %v121 = vld [vmem:[%s0 + $0xf0] sm:$0xff]
  %v122 = vld [vmem:[%s0 + $0xf8] sm:$0xff]
  %v123 = vld [vmem:[%s0 + $0x100] sm:$0xff]
  %v124 = vld [vmem:[%s0 + $0x108] sm:$0xff]
  %v125 = vld [vmem:[%s0 + $0x110] sm:$0xff]
  %v126 = vld [vmem:[%s0 + $0x118] sm:$0xff]
  %v127 = vld [vmem:[%s0 + $0x120] sm:$0xff]
  %v128 = vld [vmem:[%s0 + $0x128] sm:$0xff]
  %v129 = vld [vmem:[%s0 + $0x130] sm:$0xff]
  %v130 = vld [vmem:[%s0 + $0x138] sm:$0xff]
  %v131 = vld [vmem:[%s0 + $0x140] sm:$0xff]
  %v132 = vld [vmem:[%s0 + $0x148] sm:$0xff]
  %v133 = vld [vmem:[%s0 + $0x150] sm:$0xff]
  %v134 = vld [vmem:[%s0 + $0x158] sm:$0xff]
  %v135 = vld [vmem:[%s0 + $0x160] sm:$0xff]
  %v136 = vld [vmem:[%s0 + $0x168] sm:$0xff]
  %v137 = vld [vmem:[%s0 + $0x170] sm:$0xff]
  %v138 = vld [vmem:[%s0 + $0x178] sm:$0xff]
  %v139 = vld [vmem:[%s0 + $0x180] sm:$0xff]
  %v140 = vld [vmem:[%s0 + $0x188] sm:$0xff]
  %v141 = vld [vmem:[%s0 + $0x190] sm:$0xff]
  %v142 = vld [vmem:[%s0 + $0x198] sm:$0xff]
  %v143 = vld [vmem:[%s0 + $0x1a0] sm:$0xff]
  %v144 = vld [vmem:[%s0 + $0x1a8] sm:$0xff]
  %v145 = vld [vmem:[%s0 + $0x1b0] sm:$0xff]
  %v146 = vld [vmem:[%s0 + $0x1b8] sm:$0xff]
  %v147 = vld [vmem:[%s0 + $0x1c0] sm:$0xff]
  %v148 = vld [vmem:[%s0 + $0x1c8] sm:$0xff]
  %v149 = vld [vmem:[%s0 + $0x1d0] sm:$0xff]
  %v150 = vld [vmem:[%s0 + $0x1d8] sm:$0xff]
  %v151 = vld [vmem:[%s0 + $0x1e0] sm:$0xff]
  %v152 = vld [vmem:[%s0 + $0x1e8] sm:$0xff]
  %v153 = vld [vmem:[%s0 + $0x1f0] sm:$0xff]
  %v154 = vld [vmem:[%s0 + $0x1f8] sm:$0xff]
  %v155 = vunpack.c.0.s8 %v91
  %v156 = vunpack.c.0.s8 %v92
  %v157 = vunpack.c.0.s8 %v93
  %v158 = vunpack.c.0.s8 %v94
  %v159 = vunpack.c.1.s8 %v91
  %v160 = vunpack.c.1.s8 %v92
  %v161 = vunpack.c.1.s8 %v93
  %v162 = vunpack.c.1.s8 %v94
  %v163 = vunpack.c.2.s8 %v91
  %v164 = vunpack.c.2.s8 %v92
  %v165 = vunpack.c.2.s8 %v93
  %v166 = vunpack.c.2.s8 %v94
  %v167 = vunpack.c.3.s8 %v91
  %v168 = vunpack.c.3.s8 %v92
  %v169 = vunpack.c.3.s8 %v93
  %v170 = vunpack.c.3.s8 %v94
  %v171 = vunpack.c.0.s8 %v95
  %v172 = vunpack.c.0.s8 %v96
  %v173 = vunpack.c.0.s8 %v97
  %v174 = vunpack.c.0.s8 %v98
  %v175 = vunpack.c.1.s8 %v95
  %v176 = vunpack.c.1.s8 %v96
  %v177 = vunpack.c.1.s8 %v97
  %v178 = vunpack.c.1.s8 %v98
  %v179 = vunpack.c.2.s8 %v95
  %v180 = vunpack.c.2.s8 %v96
  %v181 = vunpack.c.2.s8 %v97
  %v182 = vunpack.c.2.s8 %v98
  %v183 = vunpack.c.3.s8 %v95
  %v184 = vunpack.c.3.s8 %v96
  %v185 = vunpack.c.3.s8 %v97
  %v186 = vunpack.c.3.s8 %v98
  %v187 = vunpack.c.0.s8 %v99
  %v188 = vunpack.c.0.s8 %v100
  %v189 = vunpack.c.0.s8 %v101
  %v190 = vunpack.c.0.s8 %v102
  %v191 = vunpack.c.1.s8 %v99
  %v192 = vunpack.c.1.s8 %v100
  %v193 = vunpack.c.1.s8 %v101
  %v194 = vunpack.c.1.s8 %v102
  %v195 = vunpack.c.2.s8 %v99
  %v196 = vunpack.c.2.s8 %v100
  %v197 = vunpack.c.2.s8 %v101
  %v198 = vunpack.c.2.s8 %v102
  %v199 = vunpack.c.3.s8 %v99
  %v200 = vunpack.c.3.s8 %v100
  %v201 = vunpack.c.3.s8 %v101
  %v202 = vunpack.c.3.s8 %v102
  %v203 = vunpack.c.0.s8 %v103
  %v204 = vunpack.c.0.s8 %v104
  %v205 = vunpack.c.0.s8 %v105
  %v206 = vunpack.c.0.s8 %v106
  %v207 = vunpack.c.1.s8 %v103
  %v208 = vunpack.c.1.s8 %v104
  %v209 = vunpack.c.1.s8 %v105
  %v210 = vunpack.c.1.s8 %v106
  %v211 = vunpack.c.2.s8 %v103
  %v212 = vunpack.c.2.s8 %v104
  %v213 = vunpack.c.2.s8 %v105
  %v214 = vunpack.c.2.s8 %v106
  %v215 = vunpack.c.3.s8 %v103
  %v216 = vunpack.c.3.s8 %v104
  %v217 = vunpack.c.3.s8 %v105
  %v218 = vunpack.c.3.s8 %v106
  %v219 = vunpack.c.0.s8 %v107
  %v220 = vunpack.c.0.s8 %v108
  %v221 = vunpack.c.0.s8 %v109
  %v222 = vunpack.c.0.s8 %v110
  %v223 = vunpack.c.1.s8 %v107
  %v224 = vunpack.c.1.s8 %v108
  %v225 = vunpack.c.1.s8 %v109
  %v226 = vunpack.c.1.s8 %v110
  %v227 = vunpack.c.2.s8 %v107
  %v228 = vunpack.c.2.s8 %v108
  %v229 = vunpack.c.2.s8 %v109
  %v230 = vunpack.c.2.s8 %v110
  %v231 = vunpack.c.3.s8 %v107
  %v232 = vunpack.c.3.s8 %v108
  %v233 = vunpack.c.3.s8 %v109
  %v234 = vunpack.c.3.s8 %v110
  %v235 = vunpack.c.0.s8 %v111
  %v236 = vunpack.c.0.s8 %v112
  %v237 = vunpack.c.0.s8 %v113
  %v238 = vunpack.c.0.s8 %v114
  %v239 = vunpack.c.1.s8 %v111
  %v240 = vunpack.c.1.s8 %v112
  %v241 = vunpack.c.1.s8 %v113
  %v242 = vunpack.c.1.s8 %v114
  %v243 = vunpack.c.2.s8 %v111
  %v244 = vunpack.c.2.s8 %v112
  %v245 = vunpack.c.2.s8 %v113
  %v246 = vunpack.c.2.s8 %v114
  %v247 = vunpack.c.3.s8 %v111
  %v248 = vunpack.c.3.s8 %v112
  %v249 = vunpack.c.3.s8 %v113
  %v250 = vunpack.c.3.s8 %v114
  %v251 = vunpack.c.0.s8 %v115
  %v252 = vunpack.c.0.s8 %v116
  %v253 = vunpack.c.0.s8 %v117
  %v254 = vunpack.c.0.s8 %v118
  %v255 = vunpack.c.1.s8 %v115
  %v256 = vunpack.c.1.s8 %v116
  %v257 = vunpack.c.1.s8 %v117
  %v258 = vunpack.c.1.s8 %v118
  %v259 = vunpack.c.2.s8 %v115
  %v260 = vunpack.c.2.s8 %v116
  %v261 = vunpack.c.2.s8 %v117
  %v262 = vunpack.c.2.s8 %v118
  %v263 = vunpack.c.3.s8 %v115
  %v264 = vunpack.c.3.s8 %v116
  %v265 = vunpack.c.3.s8 %v117
  %v266 = vunpack.c.3.s8 %v118
  %v267 = vunpack.c.0.s8 %v119
  %v268 = vunpack.c.0.s8 %v120
  %v269 = vunpack.c.0.s8 %v121
  %v270 = vunpack.c.0.s8 %v122
  %v271 = vunpack.c.1.s8 %v119
  %v272 = vunpack.c.1.s8 %v120
  %v273 = vunpack.c.1.s8 %v121
  %v274 = vunpack.c.1.s8 %v122
  %v275 = vunpack.c.2.s8 %v119
  %v276 = vunpack.c.2.s8 %v120
  %v277 = vunpack.c.2.s8 %v121
  %v278 = vunpack.c.2.s8 %v122
  %v279 = vunpack.c.3.s8 %v119
  %v280 = vunpack.c.3.s8 %v120
  %v281 = vunpack.c.3.s8 %v121
  %v282 = vunpack.c.3.s8 %v122
  %v283 = vunpack.c.0.s8 %v123
  %v284 = vunpack.c.0.s8 %v124
  %v285 = vunpack.c.0.s8 %v125
  %v286 = vunpack.c.0.s8 %v126
  %v287 = vunpack.c.1.s8 %v123
  %v288 = vunpack.c.1.s8 %v124
  %v289 = vunpack.c.1.s8 %v125
  %v290 = vunpack.c.1.s8 %v126
  %v291 = vunpack.c.2.s8 %v123
  %v292 = vunpack.c.2.s8 %v124
  %v293 = vunpack.c.2.s8 %v125
  %v294 = vunpack.c.2.s8 %v126
  %v295 = vunpack.c.3.s8 %v123
  %v296 = vunpack.c.3.s8 %v124
  %v297 = vunpack.c.3.s8 %v125
  %v298 = vunpack.c.3.s8 %v126
  %v299 = vunpack.c.0.s8 %v127
  %v300 = vunpack.c.0.s8 %v128
  %v301 = vunpack.c.0.s8 %v129
  %v302 = vunpack.c.0.s8 %v130
  %v303 = vunpack.c.1.s8 %v127
  %v304 = vunpack.c.1.s8 %v128
  %v305 = vunpack.c.1.s8 %v129
  %v306 = vunpack.c.1.s8 %v130
  %v307 = vunpack.c.2.s8 %v127
  %v308 = vunpack.c.2.s8 %v128
  %v309 = vunpack.c.2.s8 %v129
  %v310 = vunpack.c.2.s8 %v130
  %v311 = vunpack.c.3.s8 %v127
  %v312 = vunpack.c.3.s8 %v128
  %v313 = vunpack.c.3.s8 %v129
  %v314 = vunpack.c.3.s8 %v130
  %v315 = vunpack.c.0.s8 %v131
  %v316 = vunpack.c.0.s8 %v132
  %v317 = vunpack.c.0.s8 %v133
  %v318 = vunpack.c.0.s8 %v134
  %v319 = vunpack.c.1.s8 %v131
  %v320 = vunpack.c.1.s8 %v132
  %v321 = vunpack.c.1.s8 %v133
  %v322 = vunpack.c.1.s8 %v134
  %v323 = vunpack.c.2.s8 %v131
  %v324 = vunpack.c.2.s8 %v132
  %v325 = vunpack.c.2.s8 %v133
  %v326 = vunpack.c.2.s8 %v134
  %v327 = vunpack.c.3.s8 %v131
  %v328 = vunpack.c.3.s8 %v132
  %v329 = vunpack.c.3.s8 %v133
  %v330 = vunpack.c.3.s8 %v134
  %v331 = vunpack.c.0.s8 %v135
  %v332 = vunpack.c.0.s8 %v136
  %v333 = vunpack.c.0.s8 %v137
  %v334 = vunpack.c.0.s8 %v138
  %v335 = vunpack.c.1.s8 %v135
  %v336 = vunpack.c.1.s8 %v136
  %v337 = vunpack.c.1.s8 %v137
  %v338 = vunpack.c.1.s8 %v138
  %v339 = vunpack.c.2.s8 %v135
  %v340 = vunpack.c.2.s8 %v136
  %v341 = vunpack.c.2.s8 %v137
  %v342 = vunpack.c.2.s8 %v138
  %v343 = vunpack.c.3.s8 %v135
  %v344 = vunpack.c.3.s8 %v136
  %v345 = vunpack.c.3.s8 %v137
  %v346 = vunpack.c.3.s8 %v138
  %v347 = vunpack.c.0.s8 %v139
  %v348 = vunpack.c.0.s8 %v140
  %v349 = vunpack.c.0.s8 %v141
  %v350 = vunpack.c.0.s8 %v142
  %v351 = vunpack.c.1.s8 %v139
  %v352 = vunpack.c.1.s8 %v140
  %v353 = vunpack.c.1.s8 %v141
  %v354 = vunpack.c.1.s8 %v142
  %v355 = vunpack.c.2.s8 %v139
  %v356 = vunpack.c.2.s8 %v140
  %v357 = vunpack.c.2.s8 %v141
  %v358 = vunpack.c.2.s8 %v142
  %v359 = vunpack.c.3.s8 %v139
  %v360 = vunpack.c.3.s8 %v140
  %v361 = vunpack.c.3.s8 %v141
  %v362 = vunpack.c.3.s8 %v142
  %v363 = vunpack.c.0.s8 %v143
  %v364 = vunpack.c.0.s8 %v144
  %v365 = vunpack.c.0.s8 %v145
  %v366 = vunpack.c.0.s8 %v146
  %v367 = vunpack.c.1.s8 %v143
  %v368 = vunpack.c.1.s8 %v144
  %v369 = vunpack.c.1.s8 %v145
  %v370 = vunpack.c.1.s8 %v146
  %v371 = vunpack.c.2.s8 %v143
  %v372 = vunpack.c.2.s8 %v144
  %v373 = vunpack.c.2.s8 %v145
  %v374 = vunpack.c.2.s8 %v146
  %v375 = vunpack.c.3.s8 %v143
  %v376 = vunpack.c.3.s8 %v144
  %v377 = vunpack.c.3.s8 %v145
  %v378 = vunpack.c.3.s8 %v146
  %v379 = vunpack.c.0.s8 %v147
  %v380 = vunpack.c.0.s8 %v148
  %v381 = vunpack.c.0.s8 %v149
  %v382 = vunpack.c.0.s8 %v150
  %v383 = vunpack.c.1.s8 %v147
  %v384 = vunpack.c.1.s8 %v148
  %v385 = vunpack.c.1.s8 %v149
  %v386 = vunpack.c.1.s8 %v150
  %v387 = vunpack.c.2.s8 %v147
  %v388 = vunpack.c.2.s8 %v148
  %v389 = vunpack.c.2.s8 %v149
  %v390 = vunpack.c.2.s8 %v150
  %v391 = vunpack.c.3.s8 %v147
  %v392 = vunpack.c.3.s8 %v148
  %v393 = vunpack.c.3.s8 %v149
  %v394 = vunpack.c.3.s8 %v150
  %v395 = vunpack.c.0.s8 %v151
  %v396 = vunpack.c.0.s8 %v152
  %v397 = vunpack.c.0.s8 %v153
  %v398 = vunpack.c.0.s8 %v154
  %v399 = vunpack.c.1.s8 %v151
  %v400 = vunpack.c.1.s8 %v152
  %v401 = vunpack.c.1.s8 %v153
  %v402 = vunpack.c.1.s8 %v154
  %v403 = vunpack.c.2.s8 %v151
  %v404 = vunpack.c.2.s8 %v152
  %v405 = vunpack.c.2.s8 %v153
  %v406 = vunpack.c.2.s8 %v154
  %v407 = vunpack.c.3.s8 %v151
  %v408 = vunpack.c.3.s8 %v152
  %v409 = vunpack.c.3.s8 %v153
  %v410 = vunpack.c.3.s8 %v154
  %v411 = vcvt.s32.f32 %v155
  %v412 = vcvt.s32.f32 %v156
  %v413 = vcvt.s32.f32 %v157
  %v414 = vcvt.s32.f32 %v158
  %v415 = vcvt.s32.f32 %v159
  %v416 = vcvt.s32.f32 %v160
  %v417 = vcvt.s32.f32 %v161
  %v418 = vcvt.s32.f32 %v162
  %v419 = vcvt.s32.f32 %v163
  %v420 = vcvt.s32.f32 %v164
  %v421 = vcvt.s32.f32 %v165
  %v422 = vcvt.s32.f32 %v166
  %v423 = vcvt.s32.f32 %v167
  %v424 = vcvt.s32.f32 %v168
  %v425 = vcvt.s32.f32 %v169
  %v426 = vcvt.s32.f32 %v170
  %v427 = vcvt.s32.f32 %v171
  %v428 = vcvt.s32.f32 %v172
  %v429 = vcvt.s32.f32 %v173
  %v430 = vcvt.s32.f32 %v174
  %v431 = vcvt.s32.f32 %v175
  %v432 = vcvt.s32.f32 %v176
  %v433 = vcvt.s32.f32 %v177
  %v434 = vcvt.s32.f32 %v178
  %v435 = vcvt.s32.f32 %v179
  %v436 = vcvt.s32.f32 %v180
  %v437 = vcvt.s32.f32 %v181
  %v438 = vcvt.s32.f32 %v182
  %v439 = vcvt.s32.f32 %v183
  %v440 = vcvt.s32.f32 %v184
  %v441 = vcvt.s32.f32 %v185
  %v442 = vcvt.s32.f32 %v186
  %v443 = vcvt.s32.f32 %v187
  %v444 = vcvt.s32.f32 %v188
  %v445 = vcvt.s32.f32 %v189
  %v446 = vcvt.s32.f32 %v190
  %v447 = vcvt.s32.f32 %v191
  %v448 = vcvt.s32.f32 %v192
  %v449 = vcvt.s32.f32 %v193
  %v450 = vcvt.s32.f32 %v194
  %v451 = vcvt.s32.f32 %v195
  %v452 = vcvt.s32.f32 %v196
  %v453 = vcvt.s32.f32 %v197
  %v454 = vcvt.s32.f32 %v198
  %v455 = vcvt.s32.f32 %v199
  %v456 = vcvt.s32.f32 %v200
  %v457 = vcvt.s32.f32 %v201
  %v458 = vcvt.s32.f32 %v202
  %v459 = vcvt.s32.f32 %v203
  %v460 = vcvt.s32.f32 %v204
  %v461 = vcvt.s32.f32 %v205
  %v462 = vcvt.s32.f32 %v206
  %v463 = vcvt.s32.f32 %v207
  %v464 = vcvt.s32.f32 %v208
  %v465 = vcvt.s32.f32 %v209
  %v466 = vcvt.s32.f32 %v210
  %v467 = vcvt.s32.f32 %v211
  %v468 = vcvt.s32.f32 %v212
  %v469 = vcvt.s32.f32 %v213
  %v470 = vcvt.s32.f32 %v214
  %v471 = vcvt.s32.f32 %v215
  %v472 = vcvt.s32.f32 %v216
  %v473 = vcvt.s32.f32 %v217
  %v474 = vcvt.s32.f32 %v218
  %v475 = vcvt.s32.f32 %v219
  %v476 = vcvt.s32.f32 %v220
  %v477 = vcvt.s32.f32 %v221
  %v478 = vcvt.s32.f32 %v222
  %v479 = vcvt.s32.f32 %v223
  %v480 = vcvt.s32.f32 %v224
  %v481 = vcvt.s32.f32 %v225
  %v482 = vcvt.s32.f32 %v226
  %v483 = vcvt.s32.f32 %v227
  %v484 = vcvt.s32.f32 %v228
  %v485 = vcvt.s32.f32 %v229
  %v486 = vcvt.s32.f32 %v230
  %v487 = vcvt.s32.f32 %v231
  %v488 = vcvt.s32.f32 %v232
  %v489 = vcvt.s32.f32 %v233
  %v490 = vcvt.s32.f32 %v234
  %v491 = vcvt.s32.f32 %v235
  %v492 = vcvt.s32.f32 %v236
  %v493 = vcvt.s32.f32 %v237
  %v494 = vcvt.s32.f32 %v238
  %v495 = vcvt.s32.f32 %v239
  %v496 = vcvt.s32.f32 %v240
  %v497 = vcvt.s32.f32 %v241
  %v498 = vcvt.s32.f32 %v242
  %v499 = vcvt.s32.f32 %v243
  %v500 = vcvt.s32.f32 %v244
  %v501 = vcvt.s32.f32 %v245
  %v502 = vcvt.s32.f32 %v246
  %v503 = vcvt.s32.f32 %v247
  %v504 = vcvt.s32.f32 %v248
  %v505 = vcvt.s32.f32 %v249
  %v506 = vcvt.s32.f32 %v250
  %v507 = vcvt.s32.f32 %v251
  %v508 = vcvt.s32.f32 %v252
  %v509 = vcvt.s32.f32 %v253
  %v510 = vcvt.s32.f32 %v254
  %v511 = vcvt.s32.f32 %v255
  %v512 = vcvt.s32.f32 %v256
  %v513 = vcvt.s32.f32 %v257
  %v514 = vcvt.s32.f32 %v258
  %v515 = vcvt.s32.f32 %v259
  %v516 = vcvt.s32.f32 %v260
  %v517 = vcvt.s32.f32 %v261
  %v518 = vcvt.s32.f32 %v262
  %v519 = vcvt.s32.f32 %v263
  %v520 = vcvt.s32.f32 %v264
  %v521 = vcvt.s32.f32 %v265
  %v522 = vcvt.s32.f32 %v266
  %v523 = vcvt.s32.f32 %v267
  %v524 = vcvt.s32.f32 %v268
  %v525 = vcvt.s32.f32 %v269
  %v526 = vcvt.s32.f32 %v270
  %v527 = vcvt.s32.f32 %v271
  %v528 = vcvt.s32.f32 %v272
  %v529 = vcvt.s32.f32 %v273
  %v530 = vcvt.s32.f32 %v274
  %v531 = vcvt.s32.f32 %v275
  %v532 = vcvt.s32.f32 %v276
  %v533 = vcvt.s32.f32 %v277
  %v534 = vcvt.s32.f32 %v278
  %v535 = vcvt.s32.f32 %v279
  %v536 = vcvt.s32.f32 %v280
  %v537 = vcvt.s32.f32 %v281
  %v538 = vcvt.s32.f32 %v282
  %v539 = vcvt.s32.f32 %v283
  %v540 = vcvt.s32.f32 %v284
  %v541 = vcvt.s32.f32 %v285
  %v542 = vcvt.s32.f32 %v286
  %v543 = vcvt.s32.f32 %v287
  %v544 = vcvt.s32.f32 %v288
  %v545 = vcvt.s32.f32 %v289
  %v546 = vcvt.s32.f32 %v290
  %v547 = vcvt.s32.f32 %v291
  %v548 = vcvt.s32.f32 %v292
  %v549 = vcvt.s32.f32 %v293
  %v550 = vcvt.s32.f32 %v294
  %v551 = vcvt.s32.f32 %v295
  %v552 = vcvt.s32.f32 %v296
  %v553 = vcvt.s32.f32 %v297
  %v554 = vcvt.s32.f32 %v298
  %v555 = vcvt.s32.f32 %v299
  %v556 = vcvt.s32.f32 %v300
  %v557 = vcvt.s32.f32 %v301
  %v558 = vcvt.s32.f32 %v302
  %v559 = vcvt.s32.f32 %v303
  %v560 = vcvt.s32.f32 %v304
  %v561 = vcvt.s32.f32 %v305
  %v562 = vcvt.s32.f32 %v306
  %v563 = vcvt.s32.f32 %v307
  %v564 = vcvt.s32.f32 %v308
  %v565 = vcvt.s32.f32 %v309
  %v566 = vcvt.s32.f32 %v310
  %v567 = vcvt.s32.f32 %v311
  %v568 = vcvt.s32.f32 %v312
  %v569 = vcvt.s32.f32 %v313
  %v570 = vcvt.s32.f32 %v314
  %v571 = vcvt.s32.f32 %v315
  %v572 = vcvt.s32.f32 %v316
  %v573 = vcvt.s32.f32 %v317
  %v574 = vcvt.s32.f32 %v318
  %v575 = vcvt.s32.f32 %v319
  %v576 = vcvt.s32.f32 %v320
  %v577 = vcvt.s32.f32 %v321
  %v578 = vcvt.s32.f32 %v322
  %v579 = vcvt.s32.f32 %v323
  %v580 = vcvt.s32.f32 %v324
  %v581 = vcvt.s32.f32 %v325
  %v582 = vcvt.s32.f32 %v326
  %v583 = vcvt.s32.f32 %v327
  %v584 = vcvt.s32.f32 %v328
  %v585 = vcvt.s32.f32 %v329
  %v586 = vcvt.s32.f32 %v330
  %v587 = vcvt.s32.f32 %v331
  %v588 = vcvt.s32.f32 %v332
  %v589 = vcvt.s32.f32 %v333
  %v590 = vcvt.s32.f32 %v334
  %v591 = vcvt.s32.f32 %v335
  %v592 = vcvt.s32.f32 %v336
  %v593 = vcvt.s32.f32 %v337
  %v594 = vcvt.s32.f32 %v338
  %v595 = vcvt.s32.f32 %v339
  %v596 = vcvt.s32.f32 %v340
  %v597 = vcvt.s32.f32 %v341
  %v598 = vcvt.s32.f32 %v342
  %v599 = vcvt.s32.f32 %v343
  %v600 = vcvt.s32.f32 %v344
  %v601 = vcvt.s32.f32 %v345
  %v602 = vcvt.s32.f32 %v346
  %v603 = vcvt.s32.f32 %v347
  %v604 = vcvt.s32.f32 %v348
  %v605 = vcvt.s32.f32 %v349
  %v606 = vcvt.s32.f32 %v350
  %v607 = vcvt.s32.f32 %v351
  %v608 = vcvt.s32.f32 %v352
  %v609 = vcvt.s32.f32 %v353
  %v610 = vcvt.s32.f32 %v354
  %v611 = vcvt.s32.f32 %v355
  %v612 = vcvt.s32.f32 %v356
  %v613 = vcvt.s32.f32 %v357
  %v614 = vcvt.s32.f32 %v358
  %v615 = vcvt.s32.f32 %v359
  %v616 = vcvt.s32.f32 %v360
  %v617 = vcvt.s32.f32 %v361
  %v618 = vcvt.s32.f32 %v362
  %v619 = vcvt.s32.f32 %v363
  %v620 = vcvt.s32.f32 %v364
  %v621 = vcvt.s32.f32 %v365
  %v622 = vcvt.s32.f32 %v366
  %v623 = vcvt.s32.f32 %v367
  %v624 = vcvt.s32.f32 %v368
  %v625 = vcvt.s32.f32 %v369
  %v626 = vcvt.s32.f32 %v370
  %v627 = vcvt.s32.f32 %v371
  %v628 = vcvt.s32.f32 %v372
  %v629 = vcvt.s32.f32 %v373
  %v630 = vcvt.s32.f32 %v374
  %v631 = vcvt.s32.f32 %v375
  %v632 = vcvt.s32.f32 %v376
  %v633 = vcvt.s32.f32 %v377
  %v634 = vcvt.s32.f32 %v378
  %v635 = vcvt.s32.f32 %v379
  %v636 = vcvt.s32.f32 %v380
  %v637 = vcvt.s32.f32 %v381
  %v638 = vcvt.s32.f32 %v382
  %v639 = vcvt.s32.f32 %v383
  %v640 = vcvt.s32.f32 %v384
  %v641 = vcvt.s32.f32 %v385
  %v642 = vcvt.s32.f32 %v386
  %v643 = vcvt.s32.f32 %v387
  %v644 = vcvt.s32.f32 %v388
  %v645 = vcvt.s32.f32 %v389
  %v646 = vcvt.s32.f32 %v390
  %v647 = vcvt.s32.f32 %v391
  %v648 = vcvt.s32.f32 %v392
  %v649 = vcvt.s32.f32 %v393
  %v650 = vcvt.s32.f32 %v394
  %v651 = vcvt.s32.f32 %v395
  %v652 = vcvt.s32.f32 %v396
  %v653 = vcvt.s32.f32 %v397
  %v654 = vcvt.s32.f32 %v398
  %v655 = vcvt.s32.f32 %v399
  %v656 = vcvt.s32.f32 %v400
  %v657 = vcvt.s32.f32 %v401
  %v658 = vcvt.s32.f32 %v402
  %v659 = vcvt.s32.f32 %v403
  %v660 = vcvt.s32.f32 %v404
  %v661 = vcvt.s32.f32 %v405
  %v662 = vcvt.s32.f32 %v406
  %v663 = vcvt.s32.f32 %v407
  %v664 = vcvt.s32.f32 %v408
  %v665 = vcvt.s32.f32 %v409
  %v666 = vcvt.s32.f32 %v410
  %v667 = vpack.c.bf16 %v415, %v411
  %v668 = vpack.c.bf16 %v416, %v412
  %v669 = vpack.c.bf16 %v417, %v413
  %v670 = vpack.c.bf16 %v418, %v414
  %v671 = vpack.c.bf16 %v423, %v419
  %v672 = vpack.c.bf16 %v424, %v420
  %v673 = vpack.c.bf16 %v425, %v421
  %v674 = vpack.c.bf16 %v426, %v422
  %v675 = vpack.c.bf16 %v431, %v427
  %v676 = vpack.c.bf16 %v432, %v428
  %v677 = vpack.c.bf16 %v433, %v429
  %v678 = vpack.c.bf16 %v434, %v430
  %v679 = vpack.c.bf16 %v439, %v435
  %v680 = vpack.c.bf16 %v440, %v436
  %v681 = vpack.c.bf16 %v441, %v437
  %v682 = vpack.c.bf16 %v442, %v438
  %v683 = vpack.c.bf16 %v447, %v443
  %v684 = vpack.c.bf16 %v448, %v444
  %v685 = vpack.c.bf16 %v449, %v445
  %v686 = vpack.c.bf16 %v450, %v446
  %v687 = vpack.c.bf16 %v455, %v451
  %v688 = vpack.c.bf16 %v456, %v452
  %v689 = vpack.c.bf16 %v457, %v453
  %v690 = vpack.c.bf16 %v458, %v454
  %v691 = vpack.c.bf16 %v463, %v459
  %v692 = vpack.c.bf16 %v464, %v460
  %v693 = vpack.c.bf16 %v465, %v461
  %v694 = vpack.c.bf16 %v466, %v462
  %v695 = vpack.c.bf16 %v471, %v467
  %v696 = vpack.c.bf16 %v472, %v468
  %v697 = vpack.c.bf16 %v473, %v469
  %v698 = vpack.c.bf16 %v474, %v470
  %v699 = vpack.c.bf16 %v479, %v475
  %v700 = vpack.c.bf16 %v480, %v476
  %v701 = vpack.c.bf16 %v481, %v477
  %v702 = vpack.c.bf16 %v482, %v478
  %v703 = vpack.c.bf16 %v487, %v483
  %v704 = vpack.c.bf16 %v488, %v484
  %v705 = vpack.c.bf16 %v489, %v485
  %v706 = vpack.c.bf16 %v490, %v486
  %v707 = vpack.c.bf16 %v495, %v491
  %v708 = vpack.c.bf16 %v496, %v492
  %v709 = vpack.c.bf16 %v497, %v493
  %v710 = vpack.c.bf16 %v498, %v494
  %v711 = vpack.c.bf16 %v503, %v499
  %v712 = vpack.c.bf16 %v504, %v500
  %v713 = vpack.c.bf16 %v505, %v501
  %v714 = vpack.c.bf16 %v506, %v502
  %v715 = vpack.c.bf16 %v511, %v507
  %v716 = vpack.c.bf16 %v512, %v508
  %v717 = vpack.c.bf16 %v513, %v509
  %v718 = vpack.c.bf16 %v514, %v510
  %v719 = vpack.c.bf16 %v519, %v515
  %v720 = vpack.c.bf16 %v520, %v516
  %v721 = vpack.c.bf16 %v521, %v517
  %v722 = vpack.c.bf16 %v522, %v518
  %v723 = vpack.c.bf16 %v527, %v523
  %v724 = vpack.c.bf16 %v528, %v524
  %v725 = vpack.c.bf16 %v529, %v525
  %v726 = vpack.c.bf16 %v530, %v526
  %v727 = vpack.c.bf16 %v535, %v531
  %v728 = vpack.c.bf16 %v536, %v532
  %v729 = vpack.c.bf16 %v537, %v533
  %v730 = vpack.c.bf16 %v538, %v534
  %v731 = vpack.c.bf16 %v543, %v539
  %v732 = vpack.c.bf16 %v544, %v540
  %v733 = vpack.c.bf16 %v545, %v541
  %v734 = vpack.c.bf16 %v546, %v542
  %v735 = vpack.c.bf16 %v551, %v547
  %v736 = vpack.c.bf16 %v552, %v548
  %v737 = vpack.c.bf16 %v553, %v549
  %v738 = vpack.c.bf16 %v554, %v550
  %v739 = vpack.c.bf16 %v559, %v555
  %v740 = vpack.c.bf16 %v560, %v556
  %v741 = vpack.c.bf16 %v561, %v557
  %v742 = vpack.c.bf16 %v562, %v558
  %v743 = vpack.c.bf16 %v567, %v563
  %v744 = vpack.c.bf16 %v568, %v564
  %v745 = vpack.c.bf16 %v569, %v565
  %v746 = vpack.c.bf16 %v570, %v566
  %v747 = vpack.c.bf16 %v575, %v571
  %v748 = vpack.c.bf16 %v576, %v572
  %v749 = vpack.c.bf16 %v577, %v573
  %v750 = vpack.c.bf16 %v578, %v574
  %v751 = vpack.c.bf16 %v583, %v579
  %v752 = vpack.c.bf16 %v584, %v580
  %v753 = vpack.c.bf16 %v585, %v581
  %v754 = vpack.c.bf16 %v586, %v582
  %v755 = vpack.c.bf16 %v591, %v587
  %v756 = vpack.c.bf16 %v592, %v588
  %v757 = vpack.c.bf16 %v593, %v589
  %v758 = vpack.c.bf16 %v594, %v590
  %v759 = vpack.c.bf16 %v599, %v595
  %v760 = vpack.c.bf16 %v600, %v596
  %v761 = vpack.c.bf16 %v601, %v597
  %v762 = vpack.c.bf16 %v602, %v598
  %v763 = vpack.c.bf16 %v607, %v603
  %v764 = vpack.c.bf16 %v608, %v604
  %v765 = vpack.c.bf16 %v609, %v605
  %v766 = vpack.c.bf16 %v610, %v606
  %v767 = vpack.c.bf16 %v615, %v611
  %v768 = vpack.c.bf16 %v616, %v612
  %v769 = vpack.c.bf16 %v617, %v613
  %v770 = vpack.c.bf16 %v618, %v614
  %v771 = vpack.c.bf16 %v623, %v619
  %v772 = vpack.c.bf16 %v624, %v620
  %v773 = vpack.c.bf16 %v625, %v621
  %v774 = vpack.c.bf16 %v626, %v622
  %v775 = vpack.c.bf16 %v631, %v627
  %v776 = vpack.c.bf16 %v632, %v628
  %v777 = vpack.c.bf16 %v633, %v629
  %v778 = vpack.c.bf16 %v634, %v630
  %v779 = vpack.c.bf16 %v639, %v635
  %v780 = vpack.c.bf16 %v640, %v636
  %v781 = vpack.c.bf16 %v641, %v637
  %v782 = vpack.c.bf16 %v642, %v638
  %v783 = vpack.c.bf16 %v647, %v643
  %v784 = vpack.c.bf16 %v648, %v644
  %v785 = vpack.c.bf16 %v649, %v645
  %v786 = vpack.c.bf16 %v650, %v646
  %v787 = vpack.c.bf16 %v655, %v651
  %v788 = vpack.c.bf16 %v656, %v652
  %v789 = vpack.c.bf16 %v657, %v653
  %v790 = vpack.c.bf16 %v658, %v654
  %v791 = vpack.c.bf16 %v663, %v659
  %v792 = vpack.c.bf16 %v664, %v660
  %v793 = vpack.c.bf16 %v665, %v661
  %v794 = vpack.c.bf16 %v666, %v662
  %v795 = vld [vmem:[#allocation2] sm:$0xff]
  %v796 = vld [vmem:[#allocation2 + $0x8] sm:$0xff]
  %v797 = vld [vmem:[#allocation2 + $0x10] sm:$0xff]
  %v798 = vld [vmem:[#allocation2 + $0x18] sm:$0xff]
  %v799 = vld [vmem:[#allocation2 + $0x20] sm:$0xff]
  %v800 = vld [vmem:[#allocation2 + $0x28] sm:$0xff]
  %v801 = vld [vmem:[#allocation2 + $0x30] sm:$0xff]
  %v802 = vld [vmem:[#allocation2 + $0x38] sm:$0xff]
  %v803 = vld [vmem:[#allocation2 + $0x40] sm:$0xff]
  %v804 = vld [vmem:[#allocation2 + $0x48] sm:$0xff]
  %v805 = vld [vmem:[#allocation2 + $0x50] sm:$0xff]
  %v806 = vld [vmem:[#allocation2 + $0x58] sm:$0xff]
  %v807 = vld [vmem:[#allocation2 + $0x60] sm:$0xff]
  %v808 = vld [vmem:[#allocation2 + $0x68] sm:$0xff]
  %v809 = vld [vmem:[#allocation2 + $0x70] sm:$0xff]
  %v810 = vld [vmem:[#allocation2 + $0x78] sm:$0xff]
  %v811 = vld [vmem:[#allocation2 + $0x80] sm:$0xff]
  %v812 = vld [vmem:[#allocation2 + $0x88] sm:$0xff]
  %v813 = vld [vmem:[#allocation2 + $0x90] sm:$0xff]
  %v814 = vld [vmem:[#allocation2 + $0x98] sm:$0xff]
  %v815 = vld [vmem:[#allocation2 + $0xa0] sm:$0xff]
  %v816 = vld [vmem:[#allocation2 + $0xa8] sm:$0xff]
  %v817 = vld [vmem:[#allocation2 + $0xb0] sm:$0xff]
  %v818 = vld [vmem:[#allocation2 + $0xb8] sm:$0xff]
  %v819 = vld [vmem:[#allocation2 + $0xc0] sm:$0xff]
  %v820 = vld [vmem:[#allocation2 + $0xc8] sm:$0xff]
  %v821 = vld [vmem:[#allocation2 + $0xd0] sm:$0xff]
  %v822 = vld [vmem:[#allocation2 + $0xd8] sm:$0xff]
  %v823 = vld [vmem:[#allocation2 + $0xe0] sm:$0xff]
  %v824 = vld [vmem:[#allocation2 + $0xe8] sm:$0xff]
  %v825 = vld [vmem:[#allocation2 + $0xf0] sm:$0xff]
  %v826 = vld [vmem:[#allocation2 + $0xf8] sm:$0xff]
  %v827 = vld [vmem:[#allocation2 + $0x100] sm:$0xff]
  %v828 = vld [vmem:[#allocation2 + $0x108] sm:$0xff]
  %v829 = vld [vmem:[#allocation2 + $0x110] sm:$0xff]
  %v830 = vld [vmem:[#allocation2 + $0x118] sm:$0xff]
  %v831 = vld [vmem:[#allocation2 + $0x120] sm:$0xff]
  %v832 = vld [vmem:[#allocation2 + $0x128] sm:$0xff]
  %v833 = vld [vmem:[#allocation2 + $0x130] sm:$0xff]
  %v834 = vld [vmem:[#allocation2 + $0x138] sm:$0xff]
  %v835 = vld [vmem:[#allocation2 + $0x140] sm:$0xff]
  %v836 = vld [vmem:[#allocation2 + $0x148] sm:$0xff]
  %v837 = vld [vmem:[#allocation2 + $0x150] sm:$0xff]
  %v838 = vld [vmem:[#allocation2 + $0x158] sm:$0xff]
  %v839 = vld [vmem:[#allocation2 + $0x160] sm:$0xff]
  %v840 = vld [vmem:[#allocation2 + $0x168] sm:$0xff]
  %v841 = vld [vmem:[#allocation2 + $0x170] sm:$0xff]
  %v842 = vld [vmem:[#allocation2 + $0x178] sm:$0xff]
  %v843 = vld [vmem:[#allocation2 + $0x180] sm:$0xff]
  %v844 = vld [vmem:[#allocation2 + $0x188] sm:$0xff]
  %v845 = vld [vmem:[#allocation2 + $0x190] sm:$0xff]
  %v846 = vld [vmem:[#allocation2 + $0x198] sm:$0xff]
  %v847 = vld [vmem:[#allocation2 + $0x1a0] sm:$0xff]
  %v848 = vld [vmem:[#allocation2 + $0x1a8] sm:$0xff]
  %v849 = vld [vmem:[#allocation2 + $0x1b0] sm:$0xff]
  %v850 = vld [vmem:[#allocation2 + $0x1b8] sm:$0xff]
  %v851 = vld [vmem:[#allocation2 + $0x1c0] sm:$0xff]
  %v852 = vld [vmem:[#allocation2 + $0x1c8] sm:$0xff]
  %v853 = vld [vmem:[#allocation2 + $0x1d0] sm:$0xff]
  %v854 = vld [vmem:[#allocation2 + $0x1d8] sm:$0xff]
  %v855 = vld [vmem:[#allocation2 + $0x1e0] sm:$0xff]
  %v856 = vld [vmem:[#allocation2 + $0x1e8] sm:$0xff]
  %v857 = vld [vmem:[#allocation2 + $0x1f0] sm:$0xff]
  %v858 = vld [vmem:[#allocation2 + $0x1f8] sm:$0xff]
  %v859 = vld [vmem:[%s1] sm:$0xf]
  %v860 = vld [vmem:[%s1 + $0x4] sm:$0xf]
  %v861 = vld [vmem:[%s1 + $0x8] sm:$0xf]
  %v862 = vld [vmem:[%s1 + $0xc] sm:$0xf]
  %v863 = vld [vmem:[%s1 + $0x10] sm:$0xf]
  %v864 = vld [vmem:[%s1 + $0x14] sm:$0xf]
  %v865 = vld [vmem:[%s1 + $0x18] sm:$0xf]
  %v866 = vld [vmem:[%s1 + $0x1c] sm:$0xf]
  %v867 = vld [vmem:[%s1 + $0x20] sm:$0xf]
  %v868 = vld [vmem:[%s1 + $0x24] sm:$0xf]
  %v869 = vld [vmem:[%s1 + $0x28] sm:$0xf]
  %v870 = vld [vmem:[%s1 + $0x2c] sm:$0xf]
  %v871 = vld [vmem:[%s1 + $0x30] sm:$0xf]
  %v872 = vld [vmem:[%s1 + $0x34] sm:$0xf]
  %v873 = vld [vmem:[%s1 + $0x38] sm:$0xf]
  %v874 = vld [vmem:[%s1 + $0x3c] sm:$0xf]
  %v875 = vld [vmem:[%s1 + $0x40] sm:$0xf]
  %v876 = vld [vmem:[%s1 + $0x44] sm:$0xf]
  %v877 = vld [vmem:[%s1 + $0x48] sm:$0xf]
  %v878 = vld [vmem:[%s1 + $0x4c] sm:$0xf]
  %v879 = vld [vmem:[%s1 + $0x50] sm:$0xf]
  %v880 = vld [vmem:[%s1 + $0x54] sm:$0xf]
  %v881 = vld [vmem:[%s1 + $0x58] sm:$0xf]
  %v882 = vld [vmem:[%s1 + $0x5c] sm:$0xf]
  %v883 = vld [vmem:[%s1 + $0x60] sm:$0xf]
  %v884 = vld [vmem:[%s1 + $0x64] sm:$0xf]
  %v885 = vld [vmem:[%s1 + $0x68] sm:$0xf]
  %v886 = vld [vmem:[%s1 + $0x6c] sm:$0xf]
  %v887 = vld [vmem:[%s1 + $0x70] sm:$0xf]
  %v888 = vld [vmem:[%s1 + $0x74] sm:$0xf]
  %v889 = vld [vmem:[%s1 + $0x78] sm:$0xf]
  %v890 = vld [vmem:[%s1 + $0x7c] sm:$0xf]
  %v891 = vld [vmem:[%s1 + $0x80] sm:$0xf]
  %v892 = vld [vmem:[%s1 + $0x84] sm:$0xf]
  %v893 = vld [vmem:[%s1 + $0x88] sm:$0xf]
  %v894 = vld [vmem:[%s1 + $0x8c] sm:$0xf]
  %v895 = vld [vmem:[%s1 + $0x90] sm:$0xf]
  %v896 = vld [vmem:[%s1 + $0x94] sm:$0xf]
  %v897 = vld [vmem:[%s1 + $0x98] sm:$0xf]
  %v898 = vld [vmem:[%s1 + $0x9c] sm:$0xf]
  %v899 = vld [vmem:[%s1 + $0xa0] sm:$0xf]
  %v900 = vld [vmem:[%s1 + $0xa4] sm:$0xf]
  %v901 = vld [vmem:[%s1 + $0xa8] sm:$0xf]
  %v902 = vld [vmem:[%s1 + $0xac] sm:$0xf]
  %v903 = vld [vmem:[%s1 + $0xb0] sm:$0xf]
  %v904 = vld [vmem:[%s1 + $0xb4] sm:$0xf]
  %v905 = vld [vmem:[%s1 + $0xb8] sm:$0xf]
  %v906 = vld [vmem:[%s1 + $0xbc] sm:$0xf]
  %v907 = vld [vmem:[%s1 + $0xc0] sm:$0xf]
  %v908 = vld [vmem:[%s1 + $0xc4] sm:$0xf]
  %v909 = vld [vmem:[%s1 + $0xc8] sm:$0xf]
  %v910 = vld [vmem:[%s1 + $0xcc] sm:$0xf]
  %v911 = vld [vmem:[%s1 + $0xd0] sm:$0xf]
  %v912 = vld [vmem:[%s1 + $0xd4] sm:$0xf]
  %v913 = vld [vmem:[%s1 + $0xd8] sm:$0xf]
  %v914 = vld [vmem:[%s1 + $0xdc] sm:$0xf]
  %v915 = vld [vmem:[%s1 + $0xe0] sm:$0xf]
  %v916 = vld [vmem:[%s1 + $0xe4] sm:$0xf]
  %v917 = vld [vmem:[%s1 + $0xe8] sm:$0xf]
  %v918 = vld [vmem:[%s1 + $0xec] sm:$0xf]
  %v919 = vld [vmem:[%s1 + $0xf0] sm:$0xf]
  %v920 = vld [vmem:[%s1 + $0xf4] sm:$0xf]
  %v921 = vld [vmem:[%s1 + $0xf8] sm:$0xf]
  %v922 = vld [vmem:[%s1 + $0xfc] sm:$0xf]
  %v987 = vunpack.c.l.b16 %v859
  %v988 = vunpack.c.l.b16 %v860
  %v989 = vunpack.c.l.b16 %v861
  %v990 = vunpack.c.l.b16 %v862
  %v991 = vunpack.c.l.b16 %v863
  %v992 = vunpack.c.l.b16 %v864
  %v993 = vunpack.c.l.b16 %v865
  %v994 = vunpack.c.l.b16 %v866
  %v995 = vunpack.c.l.b16 %v867
  %v996 = vunpack.c.l.b16 %v868
  %v997 = vunpack.c.l.b16 %v869
  %v998 = vunpack.c.l.b16 %v870
  %v999 = vunpack.c.l.b16 %v871
  %v1000 = vunpack.c.l.b16 %v872
  %v1001 = vunpack.c.l.b16 %v873
  %v1002 = vunpack.c.l.b16 %v874
  %v1003 = vunpack.c.l.b16 %v875
  %v1004 = vunpack.c.l.b16 %v876
  %v1005 = vunpack.c.l.b16 %v877
  %v1006 = vunpack.c.l.b16 %v878
  %v1007 = vunpack.c.l.b16 %v879
  %v1008 = vunpack.c.l.b16 %v880
  %v1009 = vunpack.c.l.b16 %v881
  %v1010 = vunpack.c.l.b16 %v882
  %v1011 = vunpack.c.l.b16 %v883
  %v1012 = vunpack.c.l.b16 %v884
  %v1013 = vunpack.c.l.b16 %v885
  %v1014 = vunpack.c.l.b16 %v886
  %v1015 = vunpack.c.l.b16 %v887
  %v1016 = vunpack.c.l.b16 %v888
  %v1017 = vunpack.c.l.b16 %v889
  %v1018 = vunpack.c.l.b16 %v890
  %v1019 = vunpack.c.l.b16 %v891
  %v1020 = vunpack.c.l.b16 %v892
  %v1021 = vunpack.c.l.b16 %v893
  %v1022 = vunpack.c.l.b16 %v894
  %v1023 = vunpack.c.l.b16 %v895
  %v1024 = vunpack.c.l.b16 %v896
  %v1025 = vunpack.c.l.b16 %v897
  %v1026 = vunpack.c.l.b16 %v898
  %v1027 = vunpack.c.l.b16 %v899
  %v1028 = vunpack.c.l.b16 %v900
  %v1029 = vunpack.c.l.b16 %v901
  %v1030 = vunpack.c.l.b16 %v902
  %v1031 = vunpack.c.l.b16 %v903
  %v1032 = vunpack.c.l.b16 %v904
  %v1033 = vunpack.c.l.b16 %v905
  %v1034 = vunpack.c.l.b16 %v906
  %v1035 = vunpack.c.l.b16 %v907
  %v1036 = vunpack.c.l.b16 %v908
  %v1037 = vunpack.c.l.b16 %v909
  %v1038 = vunpack.c.l.b16 %v910
  %v1039 = vunpack.c.l.b16 %v911
  %v1040 = vunpack.c.l.b16 %v912
  %v1041 = vunpack.c.l.b16 %v913
  %v1042 = vunpack.c.l.b16 %v914
  %v1043 = vunpack.c.l.b16 %v915
  %v1044 = vunpack.c.l.b16 %v916
  %v1045 = vunpack.c.l.b16 %v917
  %v1046 = vunpack.c.l.b16 %v918
  %v1047 = vunpack.c.l.b16 %v919
  %v1048 = vunpack.c.l.b16 %v920
  %v1049 = vunpack.c.l.b16 %v921
  %v1050 = vunpack.c.l.b16 %v922
  %v1051 = vpack.c.b16 %v988, %v987
  %v1052 = vpack.c.b16 %v990, %v989
  %v1053 = vpack.c.b16 %v992, %v991
  %v1054 = vpack.c.b16 %v994, %v993
  %v1055 = vpack.c.b16 %v996, %v995
  %v1056 = vpack.c.b16 %v998, %v997
  %v1057 = vpack.c.b16 %v1000, %v999
  %v1058 = vpack.c.b16 %v1002, %v1001
  %v1059 = vpack.c.b16 %v1004, %v1003
  %v1060 = vpack.c.b16 %v1006, %v1005
  %v1061 = vpack.c.b16 %v1008, %v1007
  %v1062 = vpack.c.b16 %v1010, %v1009
  %v1063 = vpack.c.b16 %v1012, %v1011
  %v1064 = vpack.c.b16 %v1014, %v1013
  %v1065 = vpack.c.b16 %v1016, %v1015
  %v1066 = vpack.c.b16 %v1018, %v1017
  %v1067 = vpack.c.b16 %v1020, %v1019
  %v1068 = vpack.c.b16 %v1022, %v1021
  %v1069 = vpack.c.b16 %v1024, %v1023
  %v1070 = vpack.c.b16 %v1026, %v1025
  %v1071 = vpack.c.b16 %v1028, %v1027
  %v1072 = vpack.c.b16 %v1030, %v1029
  %v1073 = vpack.c.b16 %v1032, %v1031
  %v1074 = vpack.c.b16 %v1034, %v1033
  %v1075 = vpack.c.b16 %v1036, %v1035
  %v1076 = vpack.c.b16 %v1038, %v1037
  %v1077 = vpack.c.b16 %v1040, %v1039
  %v1078 = vpack.c.b16 %v1042, %v1041
  %v1079 = vpack.c.b16 %v1044, %v1043
  %v1080 = vpack.c.b16 %v1046, %v1045
  %v1081 = vpack.c.b16 %v1048, %v1047
  %v1082 = vpack.c.b16 %v1050, %v1049
  %1115 = vmatpush.bf16.msra.mxu0 %v1058
  %1116 = vmatpush.bf16.msra.mxu0 %v1057
  %1117 = vmatpush.bf16.msra.mxu0 %v1056
  %1118 = vmatpush.bf16.msra.mxu0 %v1055
  %1119 = vmatpush.bf16.msra.mxu0 %v1054
  %1120 = vmatpush.bf16.msra.mxu0 %v1053
  %1121 = vmatpush.bf16.msra.mxu0 %v1052
  %1122 = vmatpush.bf16.msra.mxu0 %v1051
  %1123 = vmatmul.bf16.gmra.mxu0 %v667
  %v1124 = vpop.f32.mrf.mxu0
  %v1125 = vadd.f32 0.0, %v1124
  %v1126 = vpop.f32.mrf.mxu0
  %v1127 = vadd.f32 0.0, %v1126
  %1128 = vmatmul.bf16.gmra.mxu0 %v671
  %v1129 = vpop.f32.mrf.mxu0
  %v1130 = vadd.f32 0.0, %v1129
  %v1131 = vpop.f32.mrf.mxu0
  %v1132 = vadd.f32 0.0, %v1131
  %1133 = vmatmul.bf16.gmra.mxu0 %v675
  %v1134 = vpop.f32.mrf.mxu0
  %v1135 = vadd.f32 0.0, %v1134
  %v1136 = vpop.f32.mrf.mxu0
  %v1137 = vadd.f32 0.0, %v1136
  %1138 = vmatmul.bf16.gmra.mxu0 %v679
  %v1139 = vpop.f32.mrf.mxu0
  %v1140 = vadd.f32 0.0, %v1139
  %v1141 = vpop.f32.mrf.mxu0
  %v1142 = vadd.f32 0.0, %v1141
  %1143 = vmatmul.bf16.gmra.mxu0 %v683
  %v1144 = vpop.f32.mrf.mxu0
  %v1145 = vadd.f32 0.0, %v1144
  %v1146 = vpop.f32.mrf.mxu0
  %v1147 = vadd.f32 0.0, %v1146
  %1148 = vmatmul.bf16.gmra.mxu0 %v687
  %v1149 = vpop.f32.mrf.mxu0
  %v1150 = vadd.f32 0.0, %v1149
  %v1151 = vpop.f32.mrf.mxu0
  %v1152 = vadd.f32 0.0, %v1151
  %1153 = vmatmul.bf16.gmra.mxu0 %v691
  %v1154 = vpop.f32.mrf.mxu0
  %v1155 = vadd.f32 0.0, %v1154
  %v1156 = vpop.f32.mrf.mxu0
  %v1157 = vadd.f32 0.0, %v1156
  %1158 = vmatmul.bf16.gmra.mxu0 %v695
  %v1159 = vpop.f32.mrf.mxu0
  %v1160 = vadd.f32 0.0, %v1159
  %v1161 = vpop.f32.mrf.mxu0
  %v1162 = vadd.f32 0.0, %v1161
  %1163 = vmatmul.bf16.gmra.mxu0 %v699
  %v1164 = vpop.f32.mrf.mxu0
  %v1165 = vadd.f32 0.0, %v1164
  %v1166 = vpop.f32.mrf.mxu0
  %v1167 = vadd.f32 0.0, %v1166
  %1168 = vmatmul.bf16.gmra.mxu0 %v703
  %v1169 = vpop.f32.mrf.mxu0
  %v1170 = vadd.f32 0.0, %v1169
  %v1171 = vpop.f32.mrf.mxu0
  %v1172 = vadd.f32 0.0, %v1171
  %1173 = vmatmul.bf16.gmra.mxu0 %v707
  %v1174 = vpop.f32.mrf.mxu0
  %v1175 = vadd.f32 0.0, %v1174
  %v1176 = vpop.f32.mrf.mxu0
  %v1177 = vadd.f32 0.0, %v1176
  %1178 = vmatmul.bf16.gmra.mxu0 %v711
  %v1179 = vpop.f32.mrf.mxu0
  %v1180 = vadd.f32 0.0, %v1179
  %v1181 = vpop.f32.mrf.mxu0
  %v1182 = vadd.f32 0.0, %v1181
  %1183 = vmatmul.bf16.gmra.mxu0 %v715
  %v1184 = vpop.f32.mrf.mxu0
  %v1185 = vadd.f32 0.0, %v1184
  %v1186 = vpop.f32.mrf.mxu0
  %v1187 = vadd.f32 0.0, %v1186
  %1188 = vmatmul.bf16.gmra.mxu0 %v719
  %v1189 = vpop.f32.mrf.mxu0
  %v1190 = vadd.f32 0.0, %v1189
  %v1191 = vpop.f32.mrf.mxu0
  %v1192 = vadd.f32 0.0, %v1191
  %1193 = vmatmul.bf16.gmra.mxu0 %v723
  %v1194 = vpop.f32.mrf.mxu0
  %v1195 = vadd.f32 0.0, %v1194
  %v1196 = vpop.f32.mrf.mxu0
  %v1197 = vadd.f32 0.0, %v1196
  %1198 = vmatmul.bf16.gmra.mxu0 %v727
  %v1199 = vpop.f32.mrf.mxu0
  %v1200 = vadd.f32 0.0, %v1199
  %v1201 = vpop.f32.mrf.mxu0
  %v1202 = vadd.f32 0.0, %v1201
  %1203 = vmatmul.bf16.gmra.mxu0 %v731
  %v1204 = vpop.f32.mrf.mxu0
  %v1205 = vadd.f32 0.0, %v1204
  %v1206 = vpop.f32.mrf.mxu0
  %v1207 = vadd.f32 0.0, %v1206
  %1208 = vmatmul.bf16.gmra.mxu0 %v735
  %v1209 = vpop.f32.mrf.mxu0
  %v1210 = vadd.f32 0.0, %v1209
  %v1211 = vpop.f32.mrf.mxu0
  %v1212 = vadd.f32 0.0, %v1211
  %1213 = vmatmul.bf16.gmra.mxu0 %v739
  %v1214 = vpop.f32.mrf.mxu0
  %v1215 = vadd.f32 0.0, %v1214
  %v1216 = vpop.f32.mrf.mxu0
  %v1217 = vadd.f32 0.0, %v1216
  %1218 = vmatmul.bf16.gmra.mxu0 %v743
  %v1219 = vpop.f32.mrf.mxu0
  %v1220 = vadd.f32 0.0, %v1219
  %v1221 = vpop.f32.mrf.mxu0
  %v1222 = vadd.f32 0.0, %v1221
  %1223 = vmatmul.bf16.gmra.mxu0 %v747
  %v1224 = vpop.f32.mrf.mxu0
  %v1225 = vadd.f32 0.0, %v1224
  %v1226 = vpop.f32.mrf.mxu0
  %v1227 = vadd.f32 0.0, %v1226
  %1228 = vmatmul.bf16.gmra.mxu0 %v751
  %v1229 = vpop.f32.mrf.mxu0
  %v1230 = vadd.f32 0.0, %v1229
  %v1231 = vpop.f32.mrf.mxu0
  %v1232 = vadd.f32 0.0, %v1231
  %1233 = vmatmul.bf16.gmra.mxu0 %v755
  %v1234 = vpop.f32.mrf.mxu0
  %v1235 = vadd.f32 0.0, %v1234
  %v1236 = vpop.f32.mrf.mxu0
  %v1237 = vadd.f32 0.0, %v1236
  %1238 = vmatmul.bf16.gmra.mxu0 %v759
  %v1239 = vpop.f32.mrf.mxu0
  %v1240 = vadd.f32 0.0, %v1239
  %v1241 = vpop.f32.mrf.mxu0
  %v1242 = vadd.f32 0.0, %v1241
  %1243 = vmatmul.bf16.gmra.mxu0 %v763
  %v1244 = vpop.f32.mrf.mxu0
  %v1245 = vadd.f32 0.0, %v1244
  %v1246 = vpop.f32.mrf.mxu0
  %v1247 = vadd.f32 0.0, %v1246
  %1248 = vmatmul.bf16.gmra.mxu0 %v767
  %v1249 = vpop.f32.mrf.mxu0
  %v1250 = vadd.f32 0.0, %v1249
  %v1251 = vpop.f32.mrf.mxu0
  %v1252 = vadd.f32 0.0, %v1251
  %1253 = vmatmul.bf16.gmra.mxu0 %v771
  %v1254 = vpop.f32.mrf.mxu0
  %v1255 = vadd.f32 0.0, %v1254
  %v1256 = vpop.f32.mrf.mxu0
  %v1257 = vadd.f32 0.0, %v1256
  %1258 = vmatmul.bf16.gmra.mxu0 %v775
  %v1259 = vpop.f32.mrf.mxu0
  %v1260 = vadd.f32 0.0, %v1259
  %v1261 = vpop.f32.mrf.mxu0
  %v1262 = vadd.f32 0.0, %v1261
  %1263 = vmatmul.bf16.gmra.mxu0 %v779
  %v1264 = vpop.f32.mrf.mxu0
  %v1265 = vadd.f32 0.0, %v1264
  %v1266 = vpop.f32.mrf.mxu0
  %v1267 = vadd.f32 0.0, %v1266
  %1268 = vmatmul.bf16.gmra.mxu0 %v783
  %v1269 = vpop.f32.mrf.mxu0
  %v1270 = vadd.f32 0.0, %v1269
  %v1271 = vpop.f32.mrf.mxu0
  %v1272 = vadd.f32 0.0, %v1271
  %1273 = vmatmul.bf16.gmra.mxu0 %v787
  %v1274 = vpop.f32.mrf.mxu0
  %v1275 = vadd.f32 0.0, %v1274
  %v1276 = vpop.f32.mrf.mxu0
  %v1277 = vadd.f32 0.0, %v1276
  %1278 = vmatmul.bf16.gmra.mxu0 %v791
  %v1279 = vpop.f32.mrf.mxu0
  %v1280 = vadd.f32 0.0, %v1279
  %v1281 = vpop.f32.mrf.mxu0
  %v1282 = vadd.f32 0.0, %v1281
  %1283 = vdwg.mxu0
  %1284 = vmatpush.bf16.msra.mxu0 %v1066
  %1285 = vmatpush.bf16.msra.mxu0 %v1065
  %1286 = vmatpush.bf16.msra.mxu0 %v1064
  %1287 = vmatpush.bf16.msra.mxu0 %v1063
  %1288 = vmatpush.bf16.msra.mxu0 %v1062
  %1289 = vmatpush.bf16.msra.mxu0 %v1061
  %1290 = vmatpush.bf16.msra.mxu0 %v1060
  %1291 = vmatpush.bf16.msra.mxu0 %v1059
  %1292 = vmatmul.bf16.gmra.mxu0 %v668
  %v1293 = vpop.f32.mrf.mxu0
  %v1294 = vadd.f32 %v1125, %v1293
  %v1295 = vpop.f32.mrf.mxu0
  %v1296 = vadd.f32 %v1127, %v1295
  %1297 = vmatmul.bf16.gmra.mxu0 %v672
  %v1298 = vpop.f32.mrf.mxu0
  %v1299 = vadd.f32 %v1130, %v1298
  %v1300 = vpop.f32.mrf.mxu0
  %v1301 = vadd.f32 %v1132, %v1300
  %1302 = vmatmul.bf16.gmra.mxu0 %v676
  %v1303 = vpop.f32.mrf.mxu0
  %v1304 = vadd.f32 %v1135, %v1303
  %v1305 = vpop.f32.mrf.mxu0
  %v1306 = vadd.f32 %v1137, %v1305
  %1307 = vmatmul.bf16.gmra.mxu0 %v680
  %v1308 = vpop.f32.mrf.mxu0
  %v1309 = vadd.f32 %v1140, %v1308
  %v1310 = vpop.f32.mrf.mxu0
  %v1311 = vadd.f32 %v1142, %v1310
  %1312 = vmatmul.bf16.gmra.mxu0 %v684
  %v1313 = vpop.f32.mrf.mxu0
  %v1314 = vadd.f32 %v1145, %v1313
  %v1315 = vpop.f32.mrf.mxu0
  %v1316 = vadd.f32 %v1147, %v1315
  %1317 = vmatmul.bf16.gmra.mxu0 %v688
  %v1318 = vpop.f32.mrf.mxu0
  %v1319 = vadd.f32 %v1150, %v1318
  %v1320 = vpop.f32.mrf.mxu0
  %v1321 = vadd.f32 %v1152, %v1320
  %1322 = vmatmul.bf16.gmra.mxu0 %v692
  %v1323 = vpop.f32.mrf.mxu0
  %v1324 = vadd.f32 %v1155, %v1323
  %v1325 = vpop.f32.mrf.mxu0
  %v1326 = vadd.f32 %v1157, %v1325
  %1327 = vmatmul.bf16.gmra.mxu0 %v696
  %v1328 = vpop.f32.mrf.mxu0
  %v1329 = vadd.f32 %v1160, %v1328
  %v1330 = vpop.f32.mrf.mxu0
  %v1331 = vadd.f32 %v1162, %v1330
  %1332 = vmatmul.bf16.gmra.mxu0 %v700
  %v1333 = vpop.f32.mrf.mxu0
  %v1334 = vadd.f32 %v1165, %v1333
  %v1335 = vpop.f32.mrf.mxu0
  %v1336 = vadd.f32 %v1167, %v1335
  %1337 = vmatmul.bf16.gmra.mxu0 %v704
  %v1338 = vpop.f32.mrf.mxu0
  %v1339 = vadd.f32 %v1170, %v1338
  %v1340 = vpop.f32.mrf.mxu0
  %v1341 = vadd.f32 %v1172, %v1340
  %1342 = vmatmul.bf16.gmra.mxu0 %v708
  %v1343 = vpop.f32.mrf.mxu0
  %v1344 = vadd.f32 %v1175, %v1343
  %v1345 = vpop.f32.mrf.mxu0
  %v1346 = vadd.f32 %v1177, %v1345
  %1347 = vmatmul.bf16.gmra.mxu0 %v712
  %v1348 = vpop.f32.mrf.mxu0
  %v1349 = vadd.f32 %v1180, %v1348
  %v1350 = vpop.f32.mrf.mxu0
  %v1351 = vadd.f32 %v1182, %v1350
  %1352 = vmatmul.bf16.gmra.mxu0 %v716
  %v1353 = vpop.f32.mrf.mxu0
  %v1354 = vadd.f32 %v1185, %v1353
  %v1355 = vpop.f32.mrf.mxu0
  %v1356 = vadd.f32 %v1187, %v1355
  %1357 = vmatmul.bf16.gmra.mxu0 %v720
  %v1358 = vpop.f32.mrf.mxu0
  %v1359 = vadd.f32 %v1190, %v1358
  %v1360 = vpop.f32.mrf.mxu0
  %v1361 = vadd.f32 %v1192, %v1360
  %1362 = vmatmul.bf16.gmra.mxu0 %v724
  %v1363 = vpop.f32.mrf.mxu0
  %v1364 = vadd.f32 %v1195, %v1363
  %v1365 = vpop.f32.mrf.mxu0
  %v1366 = vadd.f32 %v1197, %v1365
  %1367 = vmatmul.bf16.gmra.mxu0 %v728
  %v1368 = vpop.f32.mrf.mxu0
  %v1369 = vadd.f32 %v1200, %v1368
  %v1370 = vpop.f32.mrf.mxu0
  %v1371 = vadd.f32 %v1202, %v1370
  %1372 = vmatmul.bf16.gmra.mxu0 %v732
  %v1373 = vpop.f32.mrf.mxu0
  %v1374 = vadd.f32 %v1205, %v1373
  %v1375 = vpop.f32.mrf.mxu0
  %v1376 = vadd.f32 %v1207, %v1375
  %1377 = vmatmul.bf16.gmra.mxu0 %v736
  %v1378 = vpop.f32.mrf.mxu0
  %v1379 = vadd.f32 %v1210, %v1378
  %v1380 = vpop.f32.mrf.mxu0
  %v1381 = vadd.f32 %v1212, %v1380
  %1382 = vmatmul.bf16.gmra.mxu0 %v740
  %v1383 = vpop.f32.mrf.mxu0
  %v1384 = vadd.f32 %v1215, %v1383
  %v1385 = vpop.f32.mrf.mxu0
  %v1386 = vadd.f32 %v1217, %v1385
  %1387 = vmatmul.bf16.gmra.mxu0 %v744
  %v1388 = vpop.f32.mrf.mxu0
  %v1389 = vadd.f32 %v1220, %v1388
  %v1390 = vpop.f32.mrf.mxu0
  %v1391 = vadd.f32 %v1222, %v1390
  %1392 = vmatmul.bf16.gmra.mxu0 %v748
  %v1393 = vpop.f32.mrf.mxu0
  %v1394 = vadd.f32 %v1225, %v1393
  %v1395 = vpop.f32.mrf.mxu0
  %v1396 = vadd.f32 %v1227, %v1395
  %1397 = vmatmul.bf16.gmra.mxu0 %v752
  %v1398 = vpop.f32.mrf.mxu0
  %v1399 = vadd.f32 %v1230, %v1398
  %v1400 = vpop.f32.mrf.mxu0
  %v1401 = vadd.f32 %v1232, %v1400
  %1402 = vmatmul.bf16.gmra.mxu0 %v756
  %v1403 = vpop.f32.mrf.mxu0
  %v1404 = vadd.f32 %v1235, %v1403
  %v1405 = vpop.f32.mrf.mxu0
  %v1406 = vadd.f32 %v1237, %v1405
  %1407 = vmatmul.bf16.gmra.mxu0 %v760
  %v1408 = vpop.f32.mrf.mxu0
  %v1409 = vadd.f32 %v1240, %v1408
  %v1410 = vpop.f32.mrf.mxu0
  %v1411 = vadd.f32 %v1242, %v1410
  %1412 = vmatmul.bf16.gmra.mxu0 %v764
  %v1413 = vpop.f32.mrf.mxu0
  %v1414 = vadd.f32 %v1245, %v1413
  %v1415 = vpop.f32.mrf.mxu0
  %v1416 = vadd.f32 %v1247, %v1415
  %1417 = vmatmul.bf16.gmra.mxu0 %v768
  %v1418 = vpop.f32.mrf.mxu0
  %v1419 = vadd.f32 %v1250, %v1418
  %v1420 = vpop.f32.mrf.mxu0
  %v1421 = vadd.f32 %v1252, %v1420
  %1422 = vmatmul.bf16.gmra.mxu0 %v772
  %v1423 = vpop.f32.mrf.mxu0
  %v1424 = vadd.f32 %v1255, %v1423
  %v1425 = vpop.f32.mrf.mxu0
  %v1426 = vadd.f32 %v1257, %v1425
  %1427 = vmatmul.bf16.gmra.mxu0 %v776
  %v1428 = vpop.f32.mrf.mxu0
  %v1429 = vadd.f32 %v1260, %v1428
  %v1430 = vpop.f32.mrf.mxu0
  %v1431 = vadd.f32 %v1262, %v1430
  %1432 = vmatmul.bf16.gmra.mxu0 %v780
  %v1433 = vpop.f32.mrf.mxu0
  %v1434 = vadd.f32 %v1265, %v1433
  %v1435 = vpop.f32.mrf.mxu0
  %v1436 = vadd.f32 %v1267, %v1435
  %1437 = vmatmul.bf16.gmra.mxu0 %v784
  %v1438 = vpop.f32.mrf.mxu0
  %v1439 = vadd.f32 %v1270, %v1438
  %v1440 = vpop.f32.mrf.mxu0
  %v1441 = vadd.f32 %v1272, %v1440
  %1442 = vmatmul.bf16.gmra.mxu0 %v788
  %v1443 = vpop.f32.mrf.mxu0
  %v1444 = vadd.f32 %v1275, %v1443
  %v1445 = vpop.f32.mrf.mxu0
  %v1446 = vadd.f32 %v1277, %v1445
  %1447 = vmatmul.bf16.gmra.mxu0 %v792
  %v1448 = vpop.f32.mrf.mxu0
  %v1449 = vadd.f32 %v1280, %v1448
  %v1450 = vpop.f32.mrf.mxu0
  %v1451 = vadd.f32 %v1282, %v1450
  %1452 = vdwg.mxu0
  %1453 = vmatpush.bf16.msra.mxu0 %v1074
  %1454 = vmatpush.bf16.msra.mxu0 %v1073
  %1455 = vmatpush.bf16.msra.mxu0 %v1072
  %1456 = vmatpush.bf16.msra.mxu0 %v1071
  %1457 = vmatpush.bf16.msra.mxu0 %v1070
  %1458 = vmatpush.bf16.msra.mxu0 %v1069
  %1459 = vmatpush.bf16.msra.mxu0 %v1068
  %1460 = vmatpush.bf16.msra.mxu0 %v1067
  %1461 = vmatmul.bf16.gmra.mxu0 %v669
  %v1462 = vpop.f32.mrf.mxu0
  %v1463 = vadd.f32 %v1294, %v1462
  %v1464 = vpop.f32.mrf.mxu0
  %v1465 = vadd.f32 %v1296, %v1464
  %1466 = vmatmul.bf16.gmra.mxu0 %v673
  %v1467 = vpop.f32.mrf.mxu0
  %v1468 = vadd.f32 %v1299, %v1467
  %v1469 = vpop.f32.mrf.mxu0
  %v1470 = vadd.f32 %v1301, %v1469
  %1471 = vmatmul.bf16.gmra.mxu0 %v677
  %v1472 = vpop.f32.mrf.mxu0
  %v1473 = vadd.f32 %v1304, %v1472
  %v1474 = vpop.f32.mrf.mxu0
  %v1475 = vadd.f32 %v1306, %v1474
  %1476 = vmatmul.bf16.gmra.mxu0 %v681
  %v1477 = vpop.f32.mrf.mxu0
  %v1478 = vadd.f32 %v1309, %v1477
  %v1479 = vpop.f32.mrf.mxu0
  %v1480 = vadd.f32 %v1311, %v1479
  %1481 = vmatmul.bf16.gmra.mxu0 %v685
  %v1482 = vpop.f32.mrf.mxu0
  %v1483 = vadd.f32 %v1314, %v1482
  %v1484 = vpop.f32.mrf.mxu0
  %v1485 = vadd.f32 %v1316, %v1484
  %1486 = vmatmul.bf16.gmra.mxu0 %v689
  %v1487 = vpop.f32.mrf.mxu0
  %v1488 = vadd.f32 %v1319, %v1487
  %v1489 = vpop.f32.mrf.mxu0
  %v1490 = vadd.f32 %v1321, %v1489
  %1491 = vmatmul.bf16.gmra.mxu0 %v693
  %v1492 = vpop.f32.mrf.mxu0
  %v1493 = vadd.f32 %v1324, %v1492
  %v1494 = vpop.f32.mrf.mxu0
  %v1495 = vadd.f32 %v1326, %v1494
  %1496 = vmatmul.bf16.gmra.mxu0 %v697
  %v1497 = vpop.f32.mrf.mxu0
  %v1498 = vadd.f32 %v1329, %v1497
  %v1499 = vpop.f32.mrf.mxu0
  %v1500 = vadd.f32 %v1331, %v1499
  %1501 = vmatmul.bf16.gmra.mxu0 %v701
  %v1502 = vpop.f32.mrf.mxu0
  %v1503 = vadd.f32 %v1334, %v1502
  %v1504 = vpop.f32.mrf.mxu0
  %v1505 = vadd.f32 %v1336, %v1504
  %1506 = vmatmul.bf16.gmra.mxu0 %v705
  %v1507 = vpop.f32.mrf.mxu0
  %v1508 = vadd.f32 %v1339, %v1507
  %v1509 = vpop.f32.mrf.mxu0
  %v1510 = vadd.f32 %v1341, %v1509
  %1511 = vmatmul.bf16.gmra.mxu0 %v709
  %v1512 = vpop.f32.mrf.mxu0
  %v1513 = vadd.f32 %v1344, %v1512
  %v1514 = vpop.f32.mrf.mxu0
  %v1515 = vadd.f32 %v1346, %v1514
  %1516 = vmatmul.bf16.gmra.mxu0 %v713
  %v1517 = vpop.f32.mrf.mxu0
  %v1518 = vadd.f32 %v1349, %v1517
  %v1519 = vpop.f32.mrf.mxu0
  %v1520 = vadd.f32 %v1351, %v1519
  %1521 = vmatmul.bf16.gmra.mxu0 %v717
  %v1522 = vpop.f32.mrf.mxu0
  %v1523 = vadd.f32 %v1354, %v1522
  %v1524 = vpop.f32.mrf.mxu0
  %v1525 = vadd.f32 %v1356, %v1524
  %1526 = vmatmul.bf16.gmra.mxu0 %v721
  %v1527 = vpop.f32.mrf.mxu0
  %v1528 = vadd.f32 %v1359, %v1527
  %v1529 = vpop.f32.mrf.mxu0
  %v1530 = vadd.f32 %v1361, %v1529
  %1531 = vmatmul.bf16.gmra.mxu0 %v725
  %v1532 = vpop.f32.mrf.mxu0
  %v1533 = vadd.f32 %v1364, %v1532
  %v1534 = vpop.f32.mrf.mxu0
  %v1535 = vadd.f32 %v1366, %v1534
  %1536 = vmatmul.bf16.gmra.mxu0 %v729
  %v1537 = vpop.f32.mrf.mxu0
  %v1538 = vadd.f32 %v1369, %v1537
  %v1539 = vpop.f32.mrf.mxu0
  %v1540 = vadd.f32 %v1371, %v1539
  %1541 = vmatmul.bf16.gmra.mxu0 %v733
  %v1542 = vpop.f32.mrf.mxu0
  %v1543 = vadd.f32 %v1374, %v1542
  %v1544 = vpop.f32.mrf.mxu0
  %v1545 = vadd.f32 %v1376, %v1544
  %1546 = vmatmul.bf16.gmra.mxu0 %v737
  %v1547 = vpop.f32.mrf.mxu0
  %v1548 = vadd.f32 %v1379, %v1547
  %v1549 = vpop.f32.mrf.mxu0
  %v1550 = vadd.f32 %v1381, %v1549
  %1551 = vmatmul.bf16.gmra.mxu0 %v741
  %v1552 = vpop.f32.mrf.mxu0
  %v1553 = vadd.f32 %v1384, %v1552
  %v1554 = vpop.f32.mrf.mxu0
  %v1555 = vadd.f32 %v1386, %v1554
  %1556 = vmatmul.bf16.gmra.mxu0 %v745
  %v1557 = vpop.f32.mrf.mxu0
  %v1558 = vadd.f32 %v1389, %v1557
  %v1559 = vpop.f32.mrf.mxu0
  %v1560 = vadd.f32 %v1391, %v1559
  %1561 = vmatmul.bf16.gmra.mxu0 %v749
  %v1562 = vpop.f32.mrf.mxu0
  %v1563 = vadd.f32 %v1394, %v1562
  %v1564 = vpop.f32.mrf.mxu0
  %v1565 = vadd.f32 %v1396, %v1564
  %1566 = vmatmul.bf16.gmra.mxu0 %v753
  %v1567 = vpop.f32.mrf.mxu0
  %v1568 = vadd.f32 %v1399, %v1567
  %v1569 = vpop.f32.mrf.mxu0
  %v1570 = vadd.f32 %v1401, %v1569
  %1571 = vmatmul.bf16.gmra.mxu0 %v757
  %v1572 = vpop.f32.mrf.mxu0
  %v1573 = vadd.f32 %v1404, %v1572
  %v1574 = vpop.f32.mrf.mxu0
  %v1575 = vadd.f32 %v1406, %v1574
  %1576 = vmatmul.bf16.gmra.mxu0 %v761
  %v1577 = vpop.f32.mrf.mxu0
  %v1578 = vadd.f32 %v1409, %v1577
  %v1579 = vpop.f32.mrf.mxu0
  %v1580 = vadd.f32 %v1411, %v1579
  %1581 = vmatmul.bf16.gmra.mxu0 %v765
  %v1582 = vpop.f32.mrf.mxu0
  %v1583 = vadd.f32 %v1414, %v1582
  %v1584 = vpop.f32.mrf.mxu0
  %v1585 = vadd.f32 %v1416, %v1584
  %1586 = vmatmul.bf16.gmra.mxu0 %v769
  %v1587 = vpop.f32.mrf.mxu0
  %v1588 = vadd.f32 %v1419, %v1587
  %v1589 = vpop.f32.mrf.mxu0
  %v1590 = vadd.f32 %v1421, %v1589
  %1591 = vmatmul.bf16.gmra.mxu0 %v773
  %v1592 = vpop.f32.mrf.mxu0
  %v1593 = vadd.f32 %v1424, %v1592
  %v1594 = vpop.f32.mrf.mxu0
  %v1595 = vadd.f32 %v1426, %v1594
  %1596 = vmatmul.bf16.gmra.mxu0 %v777
  %v1597 = vpop.f32.mrf.mxu0
  %v1598 = vadd.f32 %v1429, %v1597
  %v1599 = vpop.f32.mrf.mxu0
  %v1600 = vadd.f32 %v1431, %v1599
  %1601 = vmatmul.bf16.gmra.mxu0 %v781
  %v1602 = vpop.f32.mrf.mxu0
  %v1603 = vadd.f32 %v1434, %v1602
  %v1604 = vpop.f32.mrf.mxu0
  %v1605 = vadd.f32 %v1436, %v1604
  %1606 = vmatmul.bf16.gmra.mxu0 %v785
  %v1607 = vpop.f32.mrf.mxu0
  %v1608 = vadd.f32 %v1439, %v1607
  %v1609 = vpop.f32.mrf.mxu0
  %v1610 = vadd.f32 %v1441, %v1609
  %1611 = vmatmul.bf16.gmra.mxu0 %v789
  %v1612 = vpop.f32.mrf.mxu0
  %v1613 = vadd.f32 %v1444, %v1612
  %v1614 = vpop.f32.mrf.mxu0
  %v1615 = vadd.f32 %v1446, %v1614
  %1616 = vmatmul.bf16.gmra.mxu0 %v793
  %v1617 = vpop.f32.mrf.mxu0
  %v1618 = vadd.f32 %v1449, %v1617
  %v1619 = vpop.f32.mrf.mxu0
  %v1620 = vadd.f32 %v1451, %v1619
  %1621 = vdwg.mxu0
  %1622 = vmatpush.bf16.msra.mxu0 %v1082
  %1623 = vmatpush.bf16.msra.mxu0 %v1081
  %1624 = vmatpush.bf16.msra.mxu0 %v1080
  %1625 = vmatpush.bf16.msra.mxu0 %v1079
  %1626 = vmatpush.bf16.msra.mxu0 %v1078
  %1627 = vmatpush.bf16.msra.mxu0 %v1077
  %1628 = vmatpush.bf16.msra.mxu0 %v1076
  %1629 = vmatpush.bf16.msra.mxu0 %v1075
  %1630 = vmatmul.bf16.gmra.mxu0 %v670
  %v1631 = vpop.f32.mrf.mxu0
  %v1632 = vadd.f32 %v1463, %v1631
  %v1633 = vpop.f32.mrf.mxu0
  %v1634 = vadd.f32 %v1465, %v1633
  %1635 = vmatmul.bf16.gmra.mxu0 %v674
  %v1636 = vpop.f32.mrf.mxu0
  %v1637 = vadd.f32 %v1468, %v1636
  %v1638 = vpop.f32.mrf.mxu0
  %v1639 = vadd.f32 %v1470, %v1638
  %1640 = vmatmul.bf16.gmra.mxu0 %v678
  %v1641 = vpop.f32.mrf.mxu0
  %v1642 = vadd.f32 %v1473, %v1641
  %v1643 = vpop.f32.mrf.mxu0
  %v1644 = vadd.f32 %v1475, %v1643
  %1645 = vmatmul.bf16.gmra.mxu0 %v682
  %v1646 = vpop.f32.mrf.mxu0
  %v1647 = vadd.f32 %v1478, %v1646
  %v1648 = vpop.f32.mrf.mxu0
  %v1649 = vadd.f32 %v1480, %v1648
  %1650 = vmatmul.bf16.gmra.mxu0 %v686
  %v1651 = vpop.f32.mrf.mxu0
  %v1652 = vadd.f32 %v1483, %v1651
  %v1653 = vpop.f32.mrf.mxu0
  %v1654 = vadd.f32 %v1485, %v1653
  %1655 = vmatmul.bf16.gmra.mxu0 %v690
  %v1656 = vpop.f32.mrf.mxu0
  %v1657 = vadd.f32 %v1488, %v1656
  %v1658 = vpop.f32.mrf.mxu0
  %v1659 = vadd.f32 %v1490, %v1658
  %1660 = vmatmul.bf16.gmra.mxu0 %v694
  %v1661 = vpop.f32.mrf.mxu0
  %v1662 = vadd.f32 %v1493, %v1661
  %v1663 = vpop.f32.mrf.mxu0
  %v1664 = vadd.f32 %v1495, %v1663
  %1665 = vmatmul.bf16.gmra.mxu0 %v698
  %v1666 = vpop.f32.mrf.mxu0
  %v1667 = vadd.f32 %v1498, %v1666
  %v1668 = vpop.f32.mrf.mxu0
  %v1669 = vadd.f32 %v1500, %v1668
  %1670 = vmatmul.bf16.gmra.mxu0 %v702
  %v1671 = vpop.f32.mrf.mxu0
  %v1672 = vadd.f32 %v1503, %v1671
  %v1673 = vpop.f32.mrf.mxu0
  %v1674 = vadd.f32 %v1505, %v1673
  %1675 = vmatmul.bf16.gmra.mxu0 %v706
  %v1676 = vpop.f32.mrf.mxu0
  %v1677 = vadd.f32 %v1508, %v1676
  %v1678 = vpop.f32.mrf.mxu0
  %v1679 = vadd.f32 %v1510, %v1678
  %1680 = vmatmul.bf16.gmra.mxu0 %v710
  %v1681 = vpop.f32.mrf.mxu0
  %v1682 = vadd.f32 %v1513, %v1681
  %v1683 = vpop.f32.mrf.mxu0
  %v1684 = vadd.f32 %v1515, %v1683
  %1685 = vmatmul.bf16.gmra.mxu0 %v714
  %v1686 = vpop.f32.mrf.mxu0
  %v1687 = vadd.f32 %v1518, %v1686
  %v1688 = vpop.f32.mrf.mxu0
  %v1689 = vadd.f32 %v1520, %v1688
  %1690 = vmatmul.bf16.gmra.mxu0 %v718
  %v1691 = vpop.f32.mrf.mxu0
  %v1692 = vadd.f32 %v1523, %v1691
  %v1693 = vpop.f32.mrf.mxu0
  %v1694 = vadd.f32 %v1525, %v1693
  %1695 = vmatmul.bf16.gmra.mxu0 %v722
  %v1696 = vpop.f32.mrf.mxu0
  %v1697 = vadd.f32 %v1528, %v1696
  %v1698 = vpop.f32.mrf.mxu0
  %v1699 = vadd.f32 %v1530, %v1698
  %1700 = vmatmul.bf16.gmra.mxu0 %v726
  %v1701 = vpop.f32.mrf.mxu0
  %v1702 = vadd.f32 %v1533, %v1701
  %v1703 = vpop.f32.mrf.mxu0
  %v1704 = vadd.f32 %v1535, %v1703
  %1705 = vmatmul.bf16.gmra.mxu0 %v730
  %v1706 = vpop.f32.mrf.mxu0
  %v1707 = vadd.f32 %v1538, %v1706
  %v1708 = vpop.f32.mrf.mxu0
  %v1709 = vadd.f32 %v1540, %v1708
  %1710 = vmatmul.bf16.gmra.mxu0 %v734
  %v1711 = vpop.f32.mrf.mxu0
  %v1712 = vadd.f32 %v1543, %v1711
  %v1713 = vpop.f32.mrf.mxu0
  %v1714 = vadd.f32 %v1545, %v1713
  %1715 = vmatmul.bf16.gmra.mxu0 %v738
  %v1716 = vpop.f32.mrf.mxu0
  %v1717 = vadd.f32 %v1548, %v1716
  %v1718 = vpop.f32.mrf.mxu0
  %v1719 = vadd.f32 %v1550, %v1718
  %1720 = vmatmul.bf16.gmra.mxu0 %v742
  %v1721 = vpop.f32.mrf.mxu0
  %v1722 = vadd.f32 %v1553, %v1721
  %v1723 = vpop.f32.mrf.mxu0
  %v1724 = vadd.f32 %v1555, %v1723
  %1725 = vmatmul.bf16.gmra.mxu0 %v746
  %v1726 = vpop.f32.mrf.mxu0
  %v1727 = vadd.f32 %v1558, %v1726
  %v1728 = vpop.f32.mrf.mxu0
  %v1729 = vadd.f32 %v1560, %v1728
  %1730 = vmatmul.bf16.gmra.mxu0 %v750
  %v1731 = vpop.f32.mrf.mxu0
  %v1732 = vadd.f32 %v1563, %v1731
  %v1733 = vpop.f32.mrf.mxu0
  %v1734 = vadd.f32 %v1565, %v1733
  %1735 = vmatmul.bf16.gmra.mxu0 %v754
  %v1736 = vpop.f32.mrf.mxu0
  %v1737 = vadd.f32 %v1568, %v1736
  %v1738 = vpop.f32.mrf.mxu0
  %v1739 = vadd.f32 %v1570, %v1738
  %1740 = vmatmul.bf16.gmra.mxu0 %v758
  %v1741 = vpop.f32.mrf.mxu0
  %v1742 = vadd.f32 %v1573, %v1741
  %v1743 = vpop.f32.mrf.mxu0
  %v1744 = vadd.f32 %v1575, %v1743
  %1745 = vmatmul.bf16.gmra.mxu0 %v762
  %v1746 = vpop.f32.mrf.mxu0
  %v1747 = vadd.f32 %v1578, %v1746
  %v1748 = vpop.f32.mrf.mxu0
  %v1749 = vadd.f32 %v1580, %v1748
  %1750 = vmatmul.bf16.gmra.mxu0 %v766
  %v1751 = vpop.f32.mrf.mxu0
  %v1752 = vadd.f32 %v1583, %v1751
  %v1753 = vpop.f32.mrf.mxu0
  %v1754 = vadd.f32 %v1585, %v1753
  %1755 = vmatmul.bf16.gmra.mxu0 %v770
  %v1756 = vpop.f32.mrf.mxu0
  %v1757 = vadd.f32 %v1588, %v1756
  %v1758 = vpop.f32.mrf.mxu0
  %v1759 = vadd.f32 %v1590, %v1758
  %1760 = vmatmul.bf16.gmra.mxu0 %v774
  %v1761 = vpop.f32.mrf.mxu0
  %v1762 = vadd.f32 %v1593, %v1761
  %v1763 = vpop.f32.mrf.mxu0
  %v1764 = vadd.f32 %v1595, %v1763
  %1765 = vmatmul.bf16.gmra.mxu0 %v778
  %v1766 = vpop.f32.mrf.mxu0
  %v1767 = vadd.f32 %v1598, %v1766
  %v1768 = vpop.f32.mrf.mxu0
  %v1769 = vadd.f32 %v1600, %v1768
  %1770 = vmatmul.bf16.gmra.mxu0 %v782
  %v1771 = vpop.f32.mrf.mxu0
  %v1772 = vadd.f32 %v1603, %v1771
  %v1773 = vpop.f32.mrf.mxu0
  %v1774 = vadd.f32 %v1605, %v1773
  %1775 = vmatmul.bf16.gmra.mxu0 %v786
  %v1776 = vpop.f32.mrf.mxu0
  %v1777 = vadd.f32 %v1608, %v1776
  %v1778 = vpop.f32.mrf.mxu0
  %v1779 = vadd.f32 %v1610, %v1778
  %1780 = vmatmul.bf16.gmra.mxu0 %v790
  %v1781 = vpop.f32.mrf.mxu0
  %v1782 = vadd.f32 %v1613, %v1781
  %v1783 = vpop.f32.mrf.mxu0
  %v1784 = vadd.f32 %v1615, %v1783
  %1785 = vmatmul.bf16.gmra.mxu0 %v794
  %v1786 = vpop.f32.mrf.mxu0
  %v1787 = vadd.f32 %v1618, %v1786
  %v1788 = vpop.f32.mrf.mxu0
  %v1789 = vadd.f32 %v1620, %v1788
  %1790 = vdwg.mxu0
  %v1791 = vadd.f32 %v795, %v1632
  %v1792 = vadd.f32 %v796, %v1634
  %v1793 = vadd.f32 %v797, %v1637
  %v1794 = vadd.f32 %v798, %v1639
  %v1795 = vadd.f32 %v799, %v1642
  %v1796 = vadd.f32 %v800, %v1644
  %v1797 = vadd.f32 %v801, %v1647
  %v1798 = vadd.f32 %v802, %v1649
  %v1799 = vadd.f32 %v803, %v1652
  %v1800 = vadd.f32 %v804, %v1654
  %v1801 = vadd.f32 %v805, %v1657
  %v1802 = vadd.f32 %v806, %v1659
  %v1803 = vadd.f32 %v807, %v1662
  %v1804 = vadd.f32 %v808, %v1664
  %v1805 = vadd.f32 %v809, %v1667
  %v1806 = vadd.f32 %v810, %v1669
  %v1807 = vadd.f32 %v811, %v1672
  %v1808 = vadd.f32 %v812, %v1674
  %v1809 = vadd.f32 %v813, %v1677
  %v1810 = vadd.f32 %v814, %v1679
  %v1811 = vadd.f32 %v815, %v1682
  %v1812 = vadd.f32 %v816, %v1684
  %v1813 = vadd.f32 %v817, %v1687
  %v1814 = vadd.f32 %v818, %v1689
  %v1815 = vadd.f32 %v819, %v1692
  %v1816 = vadd.f32 %v820, %v1694
  %v1817 = vadd.f32 %v821, %v1697
  %v1818 = vadd.f32 %v822, %v1699
  %v1819 = vadd.f32 %v823, %v1702
  %v1820 = vadd.f32 %v824, %v1704
  %v1821 = vadd.f32 %v825, %v1707
  %v1822 = vadd.f32 %v826, %v1709
  %v1823 = vadd.f32 %v827, %v1712
  %v1824 = vadd.f32 %v828, %v1714
  %v1825 = vadd.f32 %v829, %v1717
  %v1826 = vadd.f32 %v830, %v1719
  %v1827 = vadd.f32 %v831, %v1722
  %v1828 = vadd.f32 %v832, %v1724
  %v1829 = vadd.f32 %v833, %v1727
  %v1830 = vadd.f32 %v834, %v1729
  %v1831 = vadd.f32 %v835, %v1732
  %v1832 = vadd.f32 %v836, %v1734
  %v1833 = vadd.f32 %v837, %v1737
  %v1834 = vadd.f32 %v838, %v1739
  %v1835 = vadd.f32 %v839, %v1742
  %v1836 = vadd.f32 %v840, %v1744
  %v1837 = vadd.f32 %v841, %v1747
  %v1838 = vadd.f32 %v842, %v1749
  %v1839 = vadd.f32 %v843, %v1752
  %v1840 = vadd.f32 %v844, %v1754
  %v1841 = vadd.f32 %v845, %v1757
  %v1842 = vadd.f32 %v846, %v1759
  %v1843 = vadd.f32 %v847, %v1762
  %v1844 = vadd.f32 %v848, %v1764
  %v1845 = vadd.f32 %v849, %v1767
  %v1846 = vadd.f32 %v850, %v1769
  %v1847 = vadd.f32 %v851, %v1772
  %v1848 = vadd.f32 %v852, %v1774
  %v1849 = vadd.f32 %v853, %v1777
  %v1850 = vadd.f32 %v854, %v1779
  %v1851 = vadd.f32 %v855, %v1782
  %v1852 = vadd.f32 %v856, %v1784
  %v1853 = vadd.f32 %v857, %v1787
  %v1854 = vadd.f32 %v858, %v1789
  %1855 = vst [vmem:[#allocation2] sm:$0xff] %v1791
  %1856 = vst [vmem:[#allocation2 + $0x8] sm:$0xff] %v1792
  %1857 = vst [vmem:[#allocation2 + $0x10] sm:$0xff] %v1793
  %1858 = vst [vmem:[#allocation2 + $0x18] sm:$0xff] %v1794
  %1859 = vst [vmem:[#allocation2 + $0x20] sm:$0xff] %v1795
  %1860 = vst [vmem:[#allocation2 + $0x28] sm:$0xff] %v1796
  %1861 = vst [vmem:[#allocation2 + $0x30] sm:$0xff] %v1797
  %1862 = vst [vmem:[#allocation2 + $0x38] sm:$0xff] %v1798
  %1863 = vst [vmem:[#allocation2 + $0x40] sm:$0xff] %v1799
  %1864 = vst [vmem:[#allocation2 + $0x48] sm:$0xff] %v1800
  %1865 = vst [vmem:[#allocation2 + $0x50] sm:$0xff] %v1801
  %1866 = vst [vmem:[#allocation2 + $0x58] sm:$0xff] %v1802
  %1867 = vst [vmem:[#allocation2 + $0x60] sm:$0xff] %v1803
  %1868 = vst [vmem:[#allocation2 + $0x68] sm:$0xff] %v1804
  %1869 = vst [vmem:[#allocation2 + $0x70] sm:$0xff] %v1805
  %1870 = vst [vmem:[#allocation2 + $0x78] sm:$0xff] %v1806
  %1871 = vst [vmem:[#allocation2 + $0x80] sm:$0xff] %v1807
  %1872 = vst [vmem:[#allocation2 + $0x88] sm:$0xff] %v1808
  %1873 = vst [vmem:[#allocation2 + $0x90] sm:$0xff] %v1809
  %1874 = vst [vmem:[#allocation2 + $0x98] sm:$0xff] %v1810
  %1875 = vst [vmem:[#allocation2 + $0xa0] sm:$0xff] %v1811
  %1876 = vst [vmem:[#allocation2 + $0xa8] sm:$0xff] %v1812
  %1877 = vst [vmem:[#allocation2 + $0xb0] sm:$0xff] %v1813
  %1878 = vst [vmem:[#allocation2 + $0xb8] sm:$0xff] %v1814
  %1879 = vst [vmem:[#allocation2 + $0xc0] sm:$0xff] %v1815
  %1880 = vst [vmem:[#allocation2 + $0xc8] sm:$0xff] %v1816
  %1881 = vst [vmem:[#allocation2 + $0xd0] sm:$0xff] %v1817
  %1882 = vst [vmem:[#allocation2 + $0xd8] sm:$0xff] %v1818
  %1883 = vst [vmem:[#allocation2 + $0xe0] sm:$0xff] %v1819
  %1884 = vst [vmem:[#allocation2 + $0xe8] sm:$0xff] %v1820
  %1885 = vst [vmem:[#allocation2 + $0xf0] sm:$0xff] %v1821
  %1886 = vst [vmem:[#allocation2 + $0xf8] sm:$0xff] %v1822
  %1887 = vst [vmem:[#allocation2 + $0x100] sm:$0xff] %v1823
  %1888 = vst [vmem:[#allocation2 + $0x108] sm:$0xff] %v1824
  %1889 = vst [vmem:[#allocation2 + $0x110] sm:$0xff] %v1825
  %1890 = vst [vmem:[#allocation2 + $0x118] sm:$0xff] %v1826
  %1891 = vst [vmem:[#allocation2 + $0x120] sm:$0xff] %v1827
  %1892 = vst [vmem:[#allocation2 + $0x128] sm:$0xff] %v1828
  %1893 = vst [vmem:[#allocation2 + $0x130] sm:$0xff] %v1829
  %1894 = vst [vmem:[#allocation2 + $0x138] sm:$0xff] %v1830
  %1895 = vst [vmem:[#allocation2 + $0x140] sm:$0xff] %v1831
  %1896 = vst [vmem:[#allocation2 + $0x148] sm:$0xff] %v1832
  %1897 = vst [vmem:[#allocation2 + $0x150] sm:$0xff] %v1833
  %1898 = vst [vmem:[#allocation2 + $0x158] sm:$0xff] %v1834
  %1899 = vst [vmem:[#allocation2 + $0x160] sm:$0xff] %v1835
  %1900 = vst [vmem:[#allocation2 + $0x168] sm:$0xff] %v1836
  %1901 = vst [vmem:[#allocation2 + $0x170] sm:$0xff] %v1837
  %1902 = vst [vmem:[#allocation2 + $0x178] sm:$0xff] %v1838
  %1903 = vst [vmem:[#allocation2 + $0x180] sm:$0xff] %v1839
  %1904 = vst [vmem:[#allocation2 + $0x188] sm:$0xff] %v1840
  %1905 = vst [vmem:[#allocation2 + $0x190] sm:$0xff] %v1841
  %1906 = vst [vmem:[#allocation2 + $0x198] sm:$0xff] %v1842
  %1907 = vst [vmem:[#allocation2 + $0x1a0] sm:$0xff] %v1843
  %1908 = vst [vmem:[#allocation2 + $0x1a8] sm:$0xff] %v1844
  %1909 = vst [vmem:[#allocation2 + $0x1b0] sm:$0xff] %v1845
  %1910 = vst [vmem:[#allocation2 + $0x1b8] sm:$0xff] %v1846
  %1911 = vst [vmem:[#allocation2 + $0x1c0] sm:$0xff] %v1847
  %1912 = vst [vmem:[#allocation2 + $0x1c8] sm:$0xff] %v1848
  %1913 = vst [vmem:[#allocation2 + $0x1d0] sm:$0xff] %v1849
  %1914 = vst [vmem:[#allocation2 + $0x1d8] sm:$0xff] %v1850
  %1915 = vst [vmem:[#allocation2 + $0x1e0] sm:$0xff] %v1851
  %1916 = vst [vmem:[#allocation2 + $0x1e8] sm:$0xff] %v1852
  %1917 = vst [vmem:[#allocation2 + $0x1f0] sm:$0xff] %v1853
  %1918 = vst [vmem:[#allocation2 + $0x1f8] sm:$0xff] %v1854
  // Predicated region
  $region30: #{graphsage_forward.5} parent=0 // pred_check
    %p1919 = pneg %p23
  $region31: #{graphsage_forward.5} parent=0 // pred_check_branch
    %1921 = sbr.rel (%p1919) target = $region33
  $region32: #{graphsage_forward.5} parent=0 // pred_region
    %v1922 = vld [vmem:[#allocation2] sm:$0xff]
    %v1923 = vld [vmem:[#allocation2 + $0x8] sm:$0xff]
    %v1924 = vld [vmem:[#allocation2 + $0x10] sm:$0xff]
    %v1925 = vld [vmem:[#allocation2 + $0x18] sm:$0xff]
    %v1926 = vld [vmem:[#allocation2 + $0x20] sm:$0xff]
    %v1927 = vld [vmem:[#allocation2 + $0x28] sm:$0xff]
    %v1928 = vld [vmem:[#allocation2 + $0x30] sm:$0xff]
    %v1929 = vld [vmem:[#allocation2 + $0x38] sm:$0xff]
    %v1930 = vld [vmem:[#allocation2 + $0x40] sm:$0xff]
    %v1931 = vld [vmem:[#allocation2 + $0x48] sm:$0xff]
    %v1932 = vld [vmem:[#allocation2 + $0x50] sm:$0xff]
    %v1933 = vld [vmem:[#allocation2 + $0x58] sm:$0xff]
    %v1934 = vld [vmem:[#allocation2 + $0x60] sm:$0xff]
    %v1935 = vld [vmem:[#allocation2 + $0x68] sm:$0xff]
    %v1936 = vld [vmem:[#allocation2 + $0x70] sm:$0xff]
    %v1937 = vld [vmem:[#allocation2 + $0x78] sm:$0xff]
    %v1938 = vld [vmem:[#allocation2 + $0x80] sm:$0xff]
    %v1939 = vld [vmem:[#allocation2 + $0x88] sm:$0xff]
    %v1940 = vld [vmem:[#allocation2 + $0x90] sm:$0xff]
    %v1941 = vld [vmem:[#allocation2 + $0x98] sm:$0xff]
    %v1942 = vld [vmem:[#allocation2 + $0xa0] sm:$0xff]
    %v1943 = vld [vmem:[#allocation2 + $0xa8] sm:$0xff]
    %v1944 = vld [vmem:[#allocation2 + $0xb0] sm:$0xff]
    %v1945 = vld [vmem:[#allocation2 + $0xb8] sm:$0xff]
    %v1946 = vld [vmem:[#allocation2 + $0xc0] sm:$0xff]
    %v1947 = vld [vmem:[#allocation2 + $0xc8] sm:$0xff]
    %v1948 = vld [vmem:[#allocation2 + $0xd0] sm:$0xff]
    %v1949 = vld [vmem:[#allocation2 + $0xd8] sm:$0xff]
    %v1950 = vld [vmem:[#allocation2 + $0xe0] sm:$0xff]
    %v1951 = vld [vmem:[#allocation2 + $0xe8] sm:$0xff]
    %v1952 = vld [vmem:[#allocation2 + $0xf0] sm:$0xff]
    %v1953 = vld [vmem:[#allocation2 + $0xf8] sm:$0xff]
    %v1954 = vld [vmem:[#allocation2 + $0x100] sm:$0xff]
    %v1955 = vld [vmem:[#allocation2 + $0x108] sm:$0xff]
    %v1956 = vld [vmem:[#allocation2 + $0x110] sm:$0xff]
    %v1957 = vld [vmem:[#allocation2 + $0x118] sm:$0xff]
    %v1958 = vld [vmem:[#allocation2 + $0x120] sm:$0xff]
    %v1959 = vld [vmem:[#allocation2 + $0x128] sm:$0xff]
    %v1960 = vld [vmem:[#allocation2 + $0x130] sm:$0xff]
    %v1961 = vld [vmem:[#allocation2 + $0x138] sm:$0xff]
    %v1962 = vld [vmem:[#allocation2 + $0x140] sm:$0xff]
    %v1963 = vld [vmem:[#allocation2 + $0x148] sm:$0xff]
    %v1964 = vld [vmem:[#allocation2 + $0x150] sm:$0xff]
    %v1965 = vld [vmem:[#allocation2 + $0x158] sm:$0xff]
    %v1966 = vld [vmem:[#allocation2 + $0x160] sm:$0xff]
    %v1967 = vld [vmem:[#allocation2 + $0x168] sm:$0xff]
    %v1968 = vld [vmem:[#allocation2 + $0x170] sm:$0xff]
    %v1969 = vld [vmem:[#allocation2 + $0x178] sm:$0xff]
    %v1970 = vld [vmem:[#allocation2 + $0x180] sm:$0xff]
    %v1971 = vld [vmem:[#allocation2 + $0x188] sm:$0xff]
    %v1972 = vld [vmem:[#allocation2 + $0x190] sm:$0xff]
    %v1973 = vld [vmem:[#allocation2 + $0x198] sm:$0xff]
    %v1974 = vld [vmem:[#allocation2 + $0x1a0] sm:$0xff]
    %v1975 = vld [vmem:[#allocation2 + $0x1a8] sm:$0xff]
    %v1976 = vld [vmem:[#allocation2 + $0x1b0] sm:$0xff]
    %v1977 = vld [vmem:[#allocation2 + $0x1b8] sm:$0xff]
    %v1978 = vld [vmem:[#allocation2 + $0x1c0] sm:$0xff]
    %v1979 = vld [vmem:[#allocation2 + $0x1c8] sm:$0xff]
    %v1980 = vld [vmem:[#allocation2 + $0x1d0] sm:$0xff]
    %v1981 = vld [vmem:[#allocation2 + $0x1d8] sm:$0xff]
    %v1982 = vld [vmem:[#allocation2 + $0x1e0] sm:$0xff]
    %v1983 = vld [vmem:[#allocation2 + $0x1e8] sm:$0xff]
    %v1984 = vld [vmem:[#allocation2 + $0x1f0] sm:$0xff]
    %v1985 = vld [vmem:[#allocation2 + $0x1f8] sm:$0xff]
    %v1986 = vld [vmem:[%s3] sm:$0xff]
    %v1987 = vld [vmem:[%s3 + $0x8] sm:$0xff]
    %v1988 = vld [vmem:[%s3 + $0x10] sm:$0xff]
    %v1989 = vld [vmem:[%s3 + $0x18] sm:$0xff]
    %v1990 = vld [vmem:[%s3 + $0x20] sm:$0xff]
    %v1991 = vld [vmem:[%s3 + $0x28] sm:$0xff]
    %v1992 = vld [vmem:[%s3 + $0x30] sm:$0xff]
    %v1993 = vld [vmem:[%s3 + $0x38] sm:$0xff]
    %v1994 = vld [vmem:[%s3 + $0x40] sm:$0xff]
    %v1995 = vld [vmem:[%s3 + $0x48] sm:$0xff]
    %v1996 = vld [vmem:[%s3 + $0x50] sm:$0xff]
    %v1997 = vld [vmem:[%s3 + $0x58] sm:$0xff]
    %v1998 = vld [vmem:[%s3 + $0x60] sm:$0xff]
    %v1999 = vld [vmem:[%s3 + $0x68] sm:$0xff]
    %v2000 = vld [vmem:[%s3 + $0x70] sm:$0xff]
    %v2001 = vld [vmem:[%s3 + $0x78] sm:$0xff]
    %v2002 = vld [vmem:[%s3 + $0x80] sm:$0xff]
    %v2003 = vld [vmem:[%s3 + $0x88] sm:$0xff]
    %v2004 = vld [vmem:[%s3 + $0x90] sm:$0xff]
    %v2005 = vld [vmem:[%s3 + $0x98] sm:$0xff]
    %v2006 = vld [vmem:[%s3 + $0xa0] sm:$0xff]
    %v2007 = vld [vmem:[%s3 + $0xa8] sm:$0xff]
    %v2008 = vld [vmem:[%s3 + $0xb0] sm:$0xff]
    %v2009 = vld [vmem:[%s3 + $0xb8] sm:$0xff]
    %v2010 = vld [vmem:[%s3 + $0xc0] sm:$0xff]
    %v2011 = vld [vmem:[%s3 + $0xc8] sm:$0xff]
    %v2012 = vld [vmem:[%s3 + $0xd0] sm:$0xff]
    %v2013 = vld [vmem:[%s3 + $0xd8] sm:$0xff]
    %v2014 = vld [vmem:[%s3 + $0xe0] sm:$0xff]
    %v2015 = vld [vmem:[%s3 + $0xe8] sm:$0xff]
    %v2016 = vld [vmem:[%s3 + $0xf0] sm:$0xff]
    %v2017 = vld [vmem:[%s3 + $0xf8] sm:$0xff]
    %v2018 = vld [vmem:[%s3 + $0x100] sm:$0xff]
    %v2019 = vld [vmem:[%s3 + $0x108] sm:$0xff]
    %v2020 = vld [vmem:[%s3 + $0x110] sm:$0xff]
    %v2021 = vld [vmem:[%s3 + $0x118] sm:$0xff]
    %v2022 = vld [vmem:[%s3 + $0x120] sm:$0xff]
    %v2023 = vld [vmem:[%s3 + $0x128] sm:$0xff]
    %v2024 = vld [vmem:[%s3 + $0x130] sm:$0xff]
    %v2025 = vld [vmem:[%s3 + $0x138] sm:$0xff]
    %v2026 = vld [vmem:[%s3 + $0x140] sm:$0xff]
    %v2027 = vld [vmem:[%s3 + $0x148] sm:$0xff]
    %v2028 = vld [vmem:[%s3 + $0x150] sm:$0xff]
    %v2029 = vld [vmem:[%s3 + $0x158] sm:$0xff]
    %v2030 = vld [vmem:[%s3 + $0x160] sm:$0xff]
    %v2031 = vld [vmem:[%s3 + $0x168] sm:$0xff]
    %v2032 = vld [vmem:[%s3 + $0x170] sm:$0xff]
    %v2033 = vld [vmem:[%s3 + $0x178] sm:$0xff]
    %v2034 = vld [vmem:[%s3 + $0x180] sm:$0xff]
    %v2035 = vld [vmem:[%s3 + $0x188] sm:$0xff]
    %v2036 = vld [vmem:[%s3 + $0x190] sm:$0xff]
    %v2037 = vld [vmem:[%s3 + $0x198] sm:$0xff]
    %v2038 = vld [vmem:[%s3 + $0x1a0] sm:$0xff]
    %v2039 = vld [vmem:[%s3 + $0x1a8] sm:$0xff]
    %v2040 = vld [vmem:[%s3 + $0x1b0] sm:$0xff]
    %v2041 = vld [vmem:[%s3 + $0x1b8] sm:$0xff]
    %v2042 = vld [vmem:[%s3 + $0x1c0] sm:$0xff]
    %v2043 = vld [vmem:[%s3 + $0x1c8] sm:$0xff]
    %v2044 = vld [vmem:[%s3 + $0x1d0] sm:$0xff]
    %v2045 = vld [vmem:[%s3 + $0x1d8] sm:$0xff]
    %v2046 = vld [vmem:[%s3 + $0x1e0] sm:$0xff]
    %v2047 = vld [vmem:[%s3 + $0x1e8] sm:$0xff]
    %v2048 = vld [vmem:[%s3 + $0x1f0] sm:$0xff]
    %v2049 = vld [vmem:[%s3 + $0x1f8] sm:$0xff]
    %2051 = vset.pattern.permute.xlu0 0
    %2052 = vperm.xlu0 %2051, %v1986
    %v2053 = vpop.permute.xlu0 %2052
    %2056 = vset.pattern.permute.xlu0 0
    %2057 = vperm.xlu0 %2056, %v1987
    %v2058 = vpop.permute.xlu0 %2057
    %2061 = vset.pattern.permute.xlu0 0
    %2062 = vperm.xlu0 %2061, %v1988
    %v2063 = vpop.permute.xlu0 %2062
    %2066 = vset.pattern.permute.xlu0 0
    %2067 = vperm.xlu0 %2066, %v1989
    %v2068 = vpop.permute.xlu0 %2067
    %2071 = vset.pattern.permute.xlu0 0
    %2072 = vperm.xlu0 %2071, %v1990
    %v2073 = vpop.permute.xlu0 %2072
    %2076 = vset.pattern.permute.xlu0 0
    %2077 = vperm.xlu0 %2076, %v1991
    %v2078 = vpop.permute.xlu0 %2077
    %2081 = vset.pattern.permute.xlu0 0
    %2082 = vperm.xlu0 %2081, %v1992
    %v2083 = vpop.permute.xlu0 %2082
    %2086 = vset.pattern.permute.xlu0 0
    %2087 = vperm.xlu0 %2086, %v1993
    %v2088 = vpop.permute.xlu0 %2087
    %2091 = vset.pattern.permute.xlu0 0
    %2092 = vperm.xlu0 %2091, %v1994
    %v2093 = vpop.permute.xlu0 %2092
    %2096 = vset.pattern.permute.xlu0 0
    %2097 = vperm.xlu0 %2096, %v1995
    %v2098 = vpop.permute.xlu0 %2097
    %2101 = vset.pattern.permute.xlu0 0
    %2102 = vperm.xlu0 %2101, %v1996
    %v2103 = vpop.permute.xlu0 %2102
    %2106 = vset.pattern.permute.xlu0 0
    %2107 = vperm.xlu0 %2106, %v1997
    %v2108 = vpop.permute.xlu0 %2107
    %2111 = vset.pattern.permute.xlu0 0
    %2112 = vperm.xlu0 %2111, %v1998
    %v2113 = vpop.permute.xlu0 %2112
    %2116 = vset.pattern.permute.xlu0 0
    %2117 = vperm.xlu0 %2116, %v1999
    %v2118 = vpop.permute.xlu0 %2117
    %2121 = vset.pattern.permute.xlu0 0
    %2122 = vperm.xlu0 %2121, %v2000
    %v2123 = vpop.permute.xlu0 %2122
    %2126 = vset.pattern.permute.xlu0 0
    %2127 = vperm.xlu0 %2126, %v2001
    %v2128 = vpop.permute.xlu0 %2127
    %2131 = vset.pattern.permute.xlu0 0
    %2132 = vperm.xlu0 %2131, %v2002
    %v2133 = vpop.permute.xlu0 %2132
    %2136 = vset.pattern.permute.xlu0 0
    %2137 = vperm.xlu0 %2136, %v2003
    %v2138 = vpop.permute.xlu0 %2137
    %2141 = vset.pattern.permute.xlu0 0
    %2142 = vperm.xlu0 %2141, %v2004
    %v2143 = vpop.permute.xlu0 %2142
    %2146 = vset.pattern.permute.xlu0 0
    %2147 = vperm.xlu0 %2146, %v2005
    %v2148 = vpop.permute.xlu0 %2147
    %2151 = vset.pattern.permute.xlu0 0
    %2152 = vperm.xlu0 %2151, %v2006
    %v2153 = vpop.permute.xlu0 %2152
    %2156 = vset.pattern.permute.xlu0 0
    %2157 = vperm.xlu0 %2156, %v2007
    %v2158 = vpop.permute.xlu0 %2157
    %2161 = vset.pattern.permute.xlu0 0
    %2162 = vperm.xlu0 %2161, %v2008
    %v2163 = vpop.permute.xlu0 %2162
    %2166 = vset.pattern.permute.xlu0 0
    %2167 = vperm.xlu0 %2166, %v2009
    %v2168 = vpop.permute.xlu0 %2167
    %2171 = vset.pattern.permute.xlu0 0
    %2172 = vperm.xlu0 %2171, %v2010
    %v2173 = vpop.permute.xlu0 %2172
    %2176 = vset.pattern.permute.xlu0 0
    %2177 = vperm.xlu0 %2176, %v2011
    %v2178 = vpop.permute.xlu0 %2177
    %2181 = vset.pattern.permute.xlu0 0
    %2182 = vperm.xlu0 %2181, %v2012
    %v2183 = vpop.permute.xlu0 %2182
    %2186 = vset.pattern.permute.xlu0 0
    %2187 = vperm.xlu0 %2186, %v2013
    %v2188 = vpop.permute.xlu0 %2187
    %2191 = vset.pattern.permute.xlu0 0
    %2192 = vperm.xlu0 %2191, %v2014
    %v2193 = vpop.permute.xlu0 %2192
    %2196 = vset.pattern.permute.xlu0 0
    %2197 = vperm.xlu0 %2196, %v2015
    %v2198 = vpop.permute.xlu0 %2197
    %2201 = vset.pattern.permute.xlu0 0
    %2202 = vperm.xlu0 %2201, %v2016
    %v2203 = vpop.permute.xlu0 %2202
    %2206 = vset.pattern.permute.xlu0 0
    %2207 = vperm.xlu0 %2206, %v2017
    %v2208 = vpop.permute.xlu0 %2207
    %2211 = vset.pattern.permute.xlu0 0
    %2212 = vperm.xlu0 %2211, %v2018
    %v2213 = vpop.permute.xlu0 %2212
    %2216 = vset.pattern.permute.xlu0 0
    %2217 = vperm.xlu0 %2216, %v2019
    %v2218 = vpop.permute.xlu0 %2217
    %2221 = vset.pattern.permute.xlu0 0
    %2222 = vperm.xlu0 %2221, %v2020
    %v2223 = vpop.permute.xlu0 %2222
    %2226 = vset.pattern.permute.xlu0 0
    %2227 = vperm.xlu0 %2226, %v2021
    %v2228 = vpop.permute.xlu0 %2227
    %2231 = vset.pattern.permute.xlu0 0
    %2232 = vperm.xlu0 %2231, %v2022
    %v2233 = vpop.permute.xlu0 %2232
    %2236 = vset.pattern.permute.xlu0 0
    %2237 = vperm.xlu0 %2236, %v2023
    %v2238 = vpop.permute.xlu0 %2237
    %2241 = vset.pattern.permute.xlu0 0
    %2242 = vperm.xlu0 %2241, %v2024
    %v2243 = vpop.permute.xlu0 %2242
    %2246 = vset.pattern.permute.xlu0 0
    %2247 = vperm.xlu0 %2246, %v2025
    %v2248 = vpop.permute.xlu0 %2247
    %2251 = vset.pattern.permute.xlu0 0
    %2252 = vperm.xlu0 %2251, %v2026
    %v2253 = vpop.permute.xlu0 %2252
    %2256 = vset.pattern.permute.xlu0 0
    %2257 = vperm.xlu0 %2256, %v2027
    %v2258 = vpop.permute.xlu0 %2257
    %2261 = vset.pattern.permute.xlu0 0
    %2262 = vperm.xlu0 %2261, %v2028
    %v2263 = vpop.permute.xlu0 %2262
    %2266 = vset.pattern.permute.xlu0 0
    %2267 = vperm.xlu0 %2266, %v2029
    %v2268 = vpop.permute.xlu0 %2267
    %2271 = vset.pattern.permute.xlu0 0
    %2272 = vperm.xlu0 %2271, %v2030
    %v2273 = vpop.permute.xlu0 %2272
    %2276 = vset.pattern.permute.xlu0 0
    %2277 = vperm.xlu0 %2276, %v2031
    %v2278 = vpop.permute.xlu0 %2277
    %2281 = vset.pattern.permute.xlu0 0
    %2282 = vperm.xlu0 %2281, %v2032
    %v2283 = vpop.permute.xlu0 %2282
    %2286 = vset.pattern.permute.xlu0 0
    %2287 = vperm.xlu0 %2286, %v2033
    %v2288 = vpop.permute.xlu0 %2287
    %2291 = vset.pattern.permute.xlu0 0
    %2292 = vperm.xlu0 %2291, %v2034
    %v2293 = vpop.permute.xlu0 %2292
    %2296 = vset.pattern.permute.xlu0 0
    %2297 = vperm.xlu0 %2296, %v2035
    %v2298 = vpop.permute.xlu0 %2297
    %2301 = vset.pattern.permute.xlu0 0
    %2302 = vperm.xlu0 %2301, %v2036
    %v2303 = vpop.permute.xlu0 %2302
    %2306 = vset.pattern.permute.xlu0 0
    %2307 = vperm.xlu0 %2306, %v2037
    %v2308 = vpop.permute.xlu0 %2307
    %2311 = vset.pattern.permute.xlu0 0
    %2312 = vperm.xlu0 %2311, %v2038
    %v2313 = vpop.permute.xlu0 %2312
    %2316 = vset.pattern.permute.xlu0 0
    %2317 = vperm.xlu0 %2316, %v2039
    %v2318 = vpop.permute.xlu0 %2317
    %2321 = vset.pattern.permute.xlu0 0
    %2322 = vperm.xlu0 %2321, %v2040
    %v2323 = vpop.permute.xlu0 %2322
    %2326 = vset.pattern.permute.xlu0 0
    %2327 = vperm.xlu0 %2326, %v2041
    %v2328 = vpop.permute.xlu0 %2327
    %2331 = vset.pattern.permute.xlu0 0
    %2332 = vperm.xlu0 %2331, %v2042
    %v2333 = vpop.permute.xlu0 %2332
    %2336 = vset.pattern.permute.xlu0 0
    %2337 = vperm.xlu0 %2336, %v2043
    %v2338 = vpop.permute.xlu0 %2337
    %2341 = vset.pattern.permute.xlu0 0
    %2342 = vperm.xlu0 %2341, %v2044
    %v2343 = vpop.permute.xlu0 %2342
    %2346 = vset.pattern.permute.xlu0 0
    %2347 = vperm.xlu0 %2346, %v2045
    %v2348 = vpop.permute.xlu0 %2347
    %2351 = vset.pattern.permute.xlu0 0
    %2352 = vperm.xlu0 %2351, %v2046
    %v2353 = vpop.permute.xlu0 %2352
    %2356 = vset.pattern.permute.xlu0 0
    %2357 = vperm.xlu0 %2356, %v2047
    %v2358 = vpop.permute.xlu0 %2357
    %2361 = vset.pattern.permute.xlu0 0
    %2362 = vperm.xlu0 %2361, %v2048
    %v2363 = vpop.permute.xlu0 %2362
    %2366 = vset.pattern.permute.xlu0 0
    %2367 = vperm.xlu0 %2366, %v2049
    %v2368 = vpop.permute.xlu0 %2367
    %v2370 = vmul.f32 %v1922, %v2053
    %v2371 = vmul.f32 %v1923, %v2058
    %v2372 = vmul.f32 %v1924, %v2063
    %v2373 = vmul.f32 %v1925, %v2068
    %v2374 = vmul.f32 %v1926, %v2073
    %v2375 = vmul.f32 %v1927, %v2078
    %v2376 = vmul.f32 %v1928, %v2083
    %v2377 = vmul.f32 %v1929, %v2088
    %v2378 = vmul.f32 %v1930, %v2093
    %v2379 = vmul.f32 %v1931, %v2098
    %v2380 = vmul.f32 %v1932, %v2103
    %v2381 = vmul.f32 %v1933, %v2108
    %v2382 = vmul.f32 %v1934, %v2113
    %v2383 = vmul.f32 %v1935, %v2118
    %v2384 = vmul.f32 %v1936, %v2123
    %v2385 = vmul.f32 %v1937, %v2128
    %v2386 = vmul.f32 %v1938, %v2133
    %v2387 = vmul.f32 %v1939, %v2138
    %v2388 = vmul.f32 %v1940, %v2143
    %v2389 = vmul.f32 %v1941, %v2148
    %v2390 = vmul.f32 %v1942, %v2153
    %v2391 = vmul.f32 %v1943, %v2158
    %v2392 = vmul.f32 %v1944, %v2163
    %v2393 = vmul.f32 %v1945, %v2168
    %v2394 = vmul.f32 %v1946, %v2173
    %v2395 = vmul.f32 %v1947, %v2178
    %v2396 = vmul.f32 %v1948, %v2183
    %v2397 = vmul.f32 %v1949, %v2188
    %v2398 = vmul.f32 %v1950, %v2193
    %v2399 = vmul.f32 %v1951, %v2198
    %v2400 = vmul.f32 %v1952, %v2203
    %v2401 = vmul.f32 %v1953, %v2208
    %v2402 = vmul.f32 %v1954, %v2213
    %v2403 = vmul.f32 %v1955, %v2218
    %v2404 = vmul.f32 %v1956, %v2223
    %v2405 = vmul.f32 %v1957, %v2228
    %v2406 = vmul.f32 %v1958, %v2233
    %v2407 = vmul.f32 %v1959, %v2238
    %v2408 = vmul.f32 %v1960, %v2243
    %v2409 = vmul.f32 %v1961, %v2248
    %v2410 = vmul.f32 %v1962, %v2253
    %v2411 = vmul.f32 %v1963, %v2258
    %v2412 = vmul.f32 %v1964, %v2263
    %v2413 = vmul.f32 %v1965, %v2268
    %v2414 = vmul.f32 %v1966, %v2273
    %v2415 = vmul.f32 %v1967, %v2278
    %v2416 = vmul.f32 %v1968, %v2283
    %v2417 = vmul.f32 %v1969, %v2288
    %v2418 = vmul.f32 %v1970, %v2293
    %v2419 = vmul.f32 %v1971, %v2298
    %v2420 = vmul.f32 %v1972, %v2303
    %v2421 = vmul.f32 %v1973, %v2308
    %v2422 = vmul.f32 %v1974, %v2313
    %v2423 = vmul.f32 %v1975, %v2318
    %v2424 = vmul.f32 %v1976, %v2323
    %v2425 = vmul.f32 %v1977, %v2328
    %v2426 = vmul.f32 %v1978, %v2333
    %v2427 = vmul.f32 %v1979, %v2338
    %v2428 = vmul.f32 %v1980, %v2343
    %v2429 = vmul.f32 %v1981, %v2348
    %v2430 = vmul.f32 %v1982, %v2353
    %v2431 = vmul.f32 %v1983, %v2358
    %v2432 = vmul.f32 %v1984, %v2363
    %v2433 = vmul.f32 %v1985, %v2368
    %v2434 = vpack.c.bf16 %v2370, %v2370
    %v2435 = vpack.c.bf16 %v2371, %v2371
    %v2436 = vpack.c.bf16 %v2372, %v2372
    %v2437 = vpack.c.bf16 %v2373, %v2373
    %v2438 = vpack.c.bf16 %v2374, %v2374
    %v2439 = vpack.c.bf16 %v2375, %v2375
    %v2440 = vpack.c.bf16 %v2376, %v2376
    %v2441 = vpack.c.bf16 %v2377, %v2377
    %v2442 = vpack.c.bf16 %v2378, %v2378
    %v2443 = vpack.c.bf16 %v2379, %v2379
    %v2444 = vpack.c.bf16 %v2380, %v2380
    %v2445 = vpack.c.bf16 %v2381, %v2381
    %v2446 = vpack.c.bf16 %v2382, %v2382
    %v2447 = vpack.c.bf16 %v2383, %v2383
    %v2448 = vpack.c.bf16 %v2384, %v2384
    %v2449 = vpack.c.bf16 %v2385, %v2385
    %v2450 = vpack.c.bf16 %v2386, %v2386
    %v2451 = vpack.c.bf16 %v2387, %v2387
    %v2452 = vpack.c.bf16 %v2388, %v2388
    %v2453 = vpack.c.bf16 %v2389, %v2389
    %v2454 = vpack.c.bf16 %v2390, %v2390
    %v2455 = vpack.c.bf16 %v2391, %v2391
    %v2456 = vpack.c.bf16 %v2392, %v2392
    %v2457 = vpack.c.bf16 %v2393, %v2393
    %v2458 = vpack.c.bf16 %v2394, %v2394
    %v2459 = vpack.c.bf16 %v2395, %v2395
    %v2460 = vpack.c.bf16 %v2396, %v2396
    %v2461 = vpack.c.bf16 %v2397, %v2397
    %v2462 = vpack.c.bf16 %v2398, %v2398
    %v2463 = vpack.c.bf16 %v2399, %v2399
    %v2464 = vpack.c.bf16 %v2400, %v2400
    %v2465 = vpack.c.bf16 %v2401, %v2401
    %v2466 = vpack.c.bf16 %v2402, %v2402
    %v2467 = vpack.c.bf16 %v2403, %v2403
    %v2468 = vpack.c.bf16 %v2404, %v2404
    %v2469 = vpack.c.bf16 %v2405, %v2405
    %v2470 = vpack.c.bf16 %v2406, %v2406
    %v2471 = vpack.c.bf16 %v2407, %v2407
    %v2472 = vpack.c.bf16 %v2408, %v2408
    %v2473 = vpack.c.bf16 %v2409, %v2409
    %v2474 = vpack.c.bf16 %v2410, %v2410
    %v2475 = vpack.c.bf16 %v2411, %v2411
    %v2476 = vpack.c.bf16 %v2412, %v2412
    %v2477 = vpack.c.bf16 %v2413, %v2413
    %v2478 = vpack.c.bf16 %v2414, %v2414
    %v2479 = vpack.c.bf16 %v2415, %v2415
    %v2480 = vpack.c.bf16 %v2416, %v2416
    %v2481 = vpack.c.bf16 %v2417, %v2417
    %v2482 = vpack.c.bf16 %v2418, %v2418
    %v2483 = vpack.c.bf16 %v2419, %v2419
    %v2484 = vpack.c.bf16 %v2420, %v2420
    %v2485 = vpack.c.bf16 %v2421, %v2421
    %v2486 = vpack.c.bf16 %v2422, %v2422
    %v2487 = vpack.c.bf16 %v2423, %v2423
    %v2488 = vpack.c.bf16 %v2424, %v2424
    %v2489 = vpack.c.bf16 %v2425, %v2425
    %v2490 = vpack.c.bf16 %v2426, %v2426
    %v2491 = vpack.c.bf16 %v2427, %v2427
    %v2492 = vpack.c.bf16 %v2428, %v2428
    %v2493 = vpack.c.bf16 %v2429, %v2429
    %v2494 = vpack.c.bf16 %v2430, %v2430
    %v2495 = vpack.c.bf16 %v2431, %v2431
    %v2496 = vpack.c.bf16 %v2432, %v2432
    %v2497 = vpack.c.bf16 %v2433, %v2433
    %v2498 = vld [vmem:[%s2] sm:$0xf]
    %v2499 = vld [vmem:[%s2 + $0x4] sm:$0xf]
    %v2500 = vld [vmem:[%s2 + $0x8] sm:$0xf]
    %v2501 = vld [vmem:[%s2 + $0xc] sm:$0xf]
    %v2502 = vld [vmem:[%s2 + $0x10] sm:$0xf]
    %v2503 = vld [vmem:[%s2 + $0x14] sm:$0xf]
    %v2504 = vld [vmem:[%s2 + $0x18] sm:$0xf]
    %v2505 = vld [vmem:[%s2 + $0x1c] sm:$0xf]
    %v2506 = vld [vmem:[%s2 + $0x20] sm:$0xf]
    %v2507 = vld [vmem:[%s2 + $0x24] sm:$0xf]
    %v2508 = vld [vmem:[%s2 + $0x28] sm:$0xf]
    %v2509 = vld [vmem:[%s2 + $0x2c] sm:$0xf]
    %v2510 = vld [vmem:[%s2 + $0x30] sm:$0xf]
    %v2511 = vld [vmem:[%s2 + $0x34] sm:$0xf]
    %v2512 = vld [vmem:[%s2 + $0x38] sm:$0xf]
    %v2513 = vld [vmem:[%s2 + $0x3c] sm:$0xf]
    %v2514 = vld [vmem:[%s2 + $0x40] sm:$0xf]
    %v2515 = vld [vmem:[%s2 + $0x44] sm:$0xf]
    %v2516 = vld [vmem:[%s2 + $0x48] sm:$0xf]
    %v2517 = vld [vmem:[%s2 + $0x4c] sm:$0xf]
    %v2518 = vld [vmem:[%s2 + $0x50] sm:$0xf]
    %v2519 = vld [vmem:[%s2 + $0x54] sm:$0xf]
    %v2520 = vld [vmem:[%s2 + $0x58] sm:$0xf]
    %v2521 = vld [vmem:[%s2 + $0x5c] sm:$0xf]
    %v2522 = vld [vmem:[%s2 + $0x60] sm:$0xf]
    %v2523 = vld [vmem:[%s2 + $0x64] sm:$0xf]
    %v2524 = vld [vmem:[%s2 + $0x68] sm:$0xf]
    %v2525 = vld [vmem:[%s2 + $0x6c] sm:$0xf]
    %v2526 = vld [vmem:[%s2 + $0x70] sm:$0xf]
    %v2527 = vld [vmem:[%s2 + $0x74] sm:$0xf]
    %v2528 = vld [vmem:[%s2 + $0x78] sm:$0xf]
    %v2529 = vld [vmem:[%s2 + $0x7c] sm:$0xf]
    %v2530 = vld [vmem:[%s2 + $0x80] sm:$0xf]
    %v2531 = vld [vmem:[%s2 + $0x84] sm:$0xf]
    %v2532 = vld [vmem:[%s2 + $0x88] sm:$0xf]
    %v2533 = vld [vmem:[%s2 + $0x8c] sm:$0xf]
    %v2534 = vld [vmem:[%s2 + $0x90] sm:$0xf]
    %v2535 = vld [vmem:[%s2 + $0x94] sm:$0xf]
    %v2536 = vld [vmem:[%s2 + $0x98] sm:$0xf]
    %v2537 = vld [vmem:[%s2 + $0x9c] sm:$0xf]
    %v2538 = vld [vmem:[%s2 + $0xa0] sm:$0xf]
    %v2539 = vld [vmem:[%s2 + $0xa4] sm:$0xf]
    %v2540 = vld [vmem:[%s2 + $0xa8] sm:$0xf]
    %v2541 = vld [vmem:[%s2 + $0xac] sm:$0xf]
    %v2542 = vld [vmem:[%s2 + $0xb0] sm:$0xf]
    %v2543 = vld [vmem:[%s2 + $0xb4] sm:$0xf]
    %v2544 = vld [vmem:[%s2 + $0xb8] sm:$0xf]
    %v2545 = vld [vmem:[%s2 + $0xbc] sm:$0xf]
    %v2546 = vld [vmem:[%s2 + $0xc0] sm:$0xf]
    %v2547 = vld [vmem:[%s2 + $0xc4] sm:$0xf]
    %v2548 = vld [vmem:[%s2 + $0xc8] sm:$0xf]
    %v2549 = vld [vmem:[%s2 + $0xcc] sm:$0xf]
    %v2550 = vld [vmem:[%s2 + $0xd0] sm:$0xf]
    %v2551 = vld [vmem:[%s2 + $0xd4] sm:$0xf]
    %v2552 = vld [vmem:[%s2 + $0xd8] sm:$0xf]
    %v2553 = vld [vmem:[%s2 + $0xdc] sm:$0xf]
    %v2554 = vld [vmem:[%s2 + $0xe0] sm:$0xf]
    %v2555 = vld [vmem:[%s2 + $0xe4] sm:$0xf]
    %v2556 = vld [vmem:[%s2 + $0xe8] sm:$0xf]
    %v2557 = vld [vmem:[%s2 + $0xec] sm:$0xf]
    %v2558 = vld [vmem:[%s2 + $0xf0] sm:$0xf]
    %v2559 = vld [vmem:[%s2 + $0xf4] sm:$0xf]
    %v2560 = vld [vmem:[%s2 + $0xf8] sm:$0xf]
    %v2561 = vld [vmem:[%s2 + $0xfc] sm:$0xf]
    %v2626 = vunpack.c.l.b16 %v2498
    %v2627 = vunpack.c.l.b16 %v2499
    %v2628 = vunpack.c.l.b16 %v2500
    %v2629 = vunpack.c.l.b16 %v2501
    %v2630 = vunpack.c.l.b16 %v2502
    %v2631 = vunpack.c.l.b16 %v2503
    %v2632 = vunpack.c.l.b16 %v2504
    %v2633 = vunpack.c.l.b16 %v2505
    %v2634 = vunpack.c.l.b16 %v2506
    %v2635 = vunpack.c.l.b16 %v2507
    %v2636 = vunpack.c.l.b16 %v2508
    %v2637 = vunpack.c.l.b16 %v2509
    %v2638 = vunpack.c.l.b16 %v2510
    %v2639 = vunpack.c.l.b16 %v2511
    %v2640 = vunpack.c.l.b16 %v2512
    %v2641 = vunpack.c.l.b16 %v2513
    %v2642 = vunpack.c.l.b16 %v2514
    %v2643 = vunpack.c.l.b16 %v2515
    %v2644 = vunpack.c.l.b16 %v2516
    %v2645 = vunpack.c.l.b16 %v2517
    %v2646 = vunpack.c.l.b16 %v2518
    %v2647 = vunpack.c.l.b16 %v2519
    %v2648 = vunpack.c.l.b16 %v2520
    %v2649 = vunpack.c.l.b16 %v2521
    %v2650 = vunpack.c.l.b16 %v2522
    %v2651 = vunpack.c.l.b16 %v2523
    %v2652 = vunpack.c.l.b16 %v2524
    %v2653 = vunpack.c.l.b16 %v2525
    %v2654 = vunpack.c.l.b16 %v2526
    %v2655 = vunpack.c.l.b16 %v2527
    %v2656 = vunpack.c.l.b16 %v2528
    %v2657 = vunpack.c.l.b16 %v2529
    %v2658 = vunpack.c.l.b16 %v2530
    %v2659 = vunpack.c.l.b16 %v2531
    %v2660 = vunpack.c.l.b16 %v2532
    %v2661 = vunpack.c.l.b16 %v2533
    %v2662 = vunpack.c.l.b16 %v2534
    %v2663 = vunpack.c.l.b16 %v2535
    %v2664 = vunpack.c.l.b16 %v2536
    %v2665 = vunpack.c.l.b16 %v2537
    %v2666 = vunpack.c.l.b16 %v2538
    %v2667 = vunpack.c.l.b16 %v2539
    %v2668 = vunpack.c.l.b16 %v2540
    %v2669 = vunpack.c.l.b16 %v2541
    %v2670 = vunpack.c.l.b16 %v2542
    %v2671 = vunpack.c.l.b16 %v2543
    %v2672 = vunpack.c.l.b16 %v2544
    %v2673 = vunpack.c.l.b16 %v2545
    %v2674 = vunpack.c.l.b16 %v2546
    %v2675 = vunpack.c.l.b16 %v2547
    %v2676 = vunpack.c.l.b16 %v2548
    %v2677 = vunpack.c.l.b16 %v2549
    %v2678 = vunpack.c.l.b16 %v2550
    %v2679 = vunpack.c.l.b16 %v2551
    %v2680 = vunpack.c.l.b16 %v2552
    %v2681 = vunpack.c.l.b16 %v2553
    %v2682 = vunpack.c.l.b16 %v2554
    %v2683 = vunpack.c.l.b16 %v2555
    %v2684 = vunpack.c.l.b16 %v2556
    %v2685 = vunpack.c.l.b16 %v2557
    %v2686 = vunpack.c.l.b16 %v2558
    %v2687 = vunpack.c.l.b16 %v2559
    %v2688 = vunpack.c.l.b16 %v2560
    %v2689 = vunpack.c.l.b16 %v2561
    %v2690 = vpack.c.b16 %v2627, %v2626
    %v2691 = vpack.c.b16 %v2629, %v2628
    %v2692 = vpack.c.b16 %v2631, %v2630
    %v2693 = vpack.c.b16 %v2633, %v2632
    %v2694 = vpack.c.b16 %v2635, %v2634
    %v2695 = vpack.c.b16 %v2637, %v2636
    %v2696 = vpack.c.b16 %v2639, %v2638
    %v2697 = vpack.c.b16 %v2641, %v2640
    %v2698 = vpack.c.b16 %v2643, %v2642
    %v2699 = vpack.c.b16 %v2645, %v2644
    %v2700 = vpack.c.b16 %v2647, %v2646
    %v2701 = vpack.c.b16 %v2649, %v2648
    %v2702 = vpack.c.b16 %v2651, %v2650
    %v2703 = vpack.c.b16 %v2653, %v2652
    %v2704 = vpack.c.b16 %v2655, %v2654
    %v2705 = vpack.c.b16 %v2657, %v2656
    %v2706 = vpack.c.b16 %v2659, %v2658
    %v2707 = vpack.c.b16 %v2661, %v2660
    %v2708 = vpack.c.b16 %v2663, %v2662
    %v2709 = vpack.c.b16 %v2665, %v2664
    %v2710 = vpack.c.b16 %v2667, %v2666
    %v2711 = vpack.c.b16 %v2669, %v2668
    %v2712 = vpack.c.b16 %v2671, %v2670
    %v2713 = vpack.c.b16 %v2673, %v2672
    %v2714 = vpack.c.b16 %v2675, %v2674
    %v2715 = vpack.c.b16 %v2677, %v2676
    %v2716 = vpack.c.b16 %v2679, %v2678
    %v2717 = vpack.c.b16 %v2681, %v2680
    %v2718 = vpack.c.b16 %v2683, %v2682
    %v2719 = vpack.c.b16 %v2685, %v2684
    %v2720 = vpack.c.b16 %v2687, %v2686
    %v2721 = vpack.c.b16 %v2689, %v2688
    %v2818 = vunpack.c.l.b16 %v2434
    %v2819 = vunpack.c.l.b16 %v2435
    %v2820 = vunpack.c.l.b16 %v2436
    %v2821 = vunpack.c.l.b16 %v2437
    %v2822 = vunpack.c.l.b16 %v2438
    %v2823 = vunpack.c.l.b16 %v2439
    %v2824 = vunpack.c.l.b16 %v2440
    %v2825 = vunpack.c.l.b16 %v2441
    %v2826 = vunpack.c.l.b16 %v2442
    %v2827 = vunpack.c.l.b16 %v2443
    %v2828 = vunpack.c.l.b16 %v2444
    %v2829 = vunpack.c.l.b16 %v2445
    %v2830 = vunpack.c.l.b16 %v2446
    %v2831 = vunpack.c.l.b16 %v2447
    %v2832 = vunpack.c.l.b16 %v2448
    %v2833 = vunpack.c.l.b16 %v2449
    %v2834 = vunpack.c.l.b16 %v2450
    %v2835 = vunpack.c.l.b16 %v2451
    %v2836 = vunpack.c.l.b16 %v2452
    %v2837 = vunpack.c.l.b16 %v2453
    %v2838 = vunpack.c.l.b16 %v2454
    %v2839 = vunpack.c.l.b16 %v2455
    %v2840 = vunpack.c.l.b16 %v2456
    %v2841 = vunpack.c.l.b16 %v2457
    %v2842 = vunpack.c.l.b16 %v2458
    %v2843 = vunpack.c.l.b16 %v2459
    %v2844 = vunpack.c.l.b16 %v2460
    %v2845 = vunpack.c.l.b16 %v2461
    %v2846 = vunpack.c.l.b16 %v2462
    %v2847 = vunpack.c.l.b16 %v2463
    %v2848 = vunpack.c.l.b16 %v2464
    %v2849 = vunpack.c.l.b16 %v2465
    %v2850 = vunpack.c.l.b16 %v2466
    %v2851 = vunpack.c.l.b16 %v2467
    %v2852 = vunpack.c.l.b16 %v2468
    %v2853 = vunpack.c.l.b16 %v2469
    %v2854 = vunpack.c.l.b16 %v2470
    %v2855 = vunpack.c.l.b16 %v2471
    %v2856 = vunpack.c.l.b16 %v2472
    %v2857 = vunpack.c.l.b16 %v2473
    %v2858 = vunpack.c.l.b16 %v2474
    %v2859 = vunpack.c.l.b16 %v2475
    %v2860 = vunpack.c.l.b16 %v2476
    %v2861 = vunpack.c.l.b16 %v2477
    %v2862 = vunpack.c.l.b16 %v2478
    %v2863 = vunpack.c.l.b16 %v2479
    %v2864 = vunpack.c.l.b16 %v2480
    %v2865 = vunpack.c.l.b16 %v2481
    %v2866 = vunpack.c.l.b16 %v2482
    %v2867 = vunpack.c.l.b16 %v2483
    %v2868 = vunpack.c.l.b16 %v2484
    %v2869 = vunpack.c.l.b16 %v2485
    %v2870 = vunpack.c.l.b16 %v2486
    %v2871 = vunpack.c.l.b16 %v2487
    %v2872 = vunpack.c.l.b16 %v2488
    %v2873 = vunpack.c.l.b16 %v2489
    %v2874 = vunpack.c.l.b16 %v2490
    %v2875 = vunpack.c.l.b16 %v2491
    %v2876 = vunpack.c.l.b16 %v2492
    %v2877 = vunpack.c.l.b16 %v2493
    %v2878 = vunpack.c.l.b16 %v2494
    %v2879 = vunpack.c.l.b16 %v2495
    %v2880 = vunpack.c.l.b16 %v2496
    %v2881 = vunpack.c.l.b16 %v2497
    %v2882 = vpack.c.b16 %v2819, %v2818
    %v2883 = vpack.c.b16 %v2821, %v2820
    %v2884 = vpack.c.b16 %v2823, %v2822
    %v2885 = vpack.c.b16 %v2825, %v2824
    %v2886 = vpack.c.b16 %v2827, %v2826
    %v2887 = vpack.c.b16 %v2829, %v2828
    %v2888 = vpack.c.b16 %v2831, %v2830
    %v2889 = vpack.c.b16 %v2833, %v2832
    %v2890 = vpack.c.b16 %v2835, %v2834
    %v2891 = vpack.c.b16 %v2837, %v2836
    %v2892 = vpack.c.b16 %v2839, %v2838
    %v2893 = vpack.c.b16 %v2841, %v2840
    %v2894 = vpack.c.b16 %v2843, %v2842
    %v2895 = vpack.c.b16 %v2845, %v2844
    %v2896 = vpack.c.b16 %v2847, %v2846
    %v2897 = vpack.c.b16 %v2849, %v2848
    %v2898 = vpack.c.b16 %v2851, %v2850
    %v2899 = vpack.c.b16 %v2853, %v2852
    %v2900 = vpack.c.b16 %v2855, %v2854
    %v2901 = vpack.c.b16 %v2857, %v2856
    %v2902 = vpack.c.b16 %v2859, %v2858
    %v2903 = vpack.c.b16 %v2861, %v2860
    %v2904 = vpack.c.b16 %v2863, %v2862
    %v2905 = vpack.c.b16 %v2865, %v2864
    %v2906 = vpack.c.b16 %v2867, %v2866
    %v2907 = vpack.c.b16 %v2869, %v2868
    %v2908 = vpack.c.b16 %v2871, %v2870
    %v2909 = vpack.c.b16 %v2873, %v2872
    %v2910 = vpack.c.b16 %v2875, %v2874
    %v2911 = vpack.c.b16 %v2877, %v2876
    %v2912 = vpack.c.b16 %v2879, %v2878
    %v2913 = vpack.c.b16 %v2881, %v2880
    %v2946 = vld [vmem:[%s4] sm:$0xf]
    %v2947 = vld [vmem:[%s4 + $0x4] sm:$0xf]
    %v2948 = vld [vmem:[%s4 + $0x8] sm:$0xf]
    %v2949 = vld [vmem:[%s4 + $0xc] sm:$0xf]
    %v2950 = vld [vmem:[%s4 + $0x10] sm:$0xf]
    %v2951 = vld [vmem:[%s4 + $0x14] sm:$0xf]
    %v2952 = vld [vmem:[%s4 + $0x18] sm:$0xf]
    %v2953 = vld [vmem:[%s4 + $0x1c] sm:$0xf]
    %v2954 = vld [vmem:[%s4 + $0x20] sm:$0xf]
    %v2955 = vld [vmem:[%s4 + $0x24] sm:$0xf]
    %v2956 = vld [vmem:[%s4 + $0x28] sm:$0xf]
    %v2957 = vld [vmem:[%s4 + $0x2c] sm:$0xf]
    %v2958 = vld [vmem:[%s4 + $0x30] sm:$0xf]
    %v2959 = vld [vmem:[%s4 + $0x34] sm:$0xf]
    %v2960 = vld [vmem:[%s4 + $0x38] sm:$0xf]
    %v2961 = vld [vmem:[%s4 + $0x3c] sm:$0xf]
    %v2962 = vld [vmem:[%s4 + $0x40] sm:$0xf]
    %v2963 = vld [vmem:[%s4 + $0x44] sm:$0xf]
    %v2964 = vld [vmem:[%s4 + $0x48] sm:$0xf]
    %v2965 = vld [vmem:[%s4 + $0x4c] sm:$0xf]
    %v2966 = vld [vmem:[%s4 + $0x50] sm:$0xf]
    %v2967 = vld [vmem:[%s4 + $0x54] sm:$0xf]
    %v2968 = vld [vmem:[%s4 + $0x58] sm:$0xf]
    %v2969 = vld [vmem:[%s4 + $0x5c] sm:$0xf]
    %v2970 = vld [vmem:[%s4 + $0x60] sm:$0xf]
    %v2971 = vld [vmem:[%s4 + $0x64] sm:$0xf]
    %v2972 = vld [vmem:[%s4 + $0x68] sm:$0xf]
    %v2973 = vld [vmem:[%s4 + $0x6c] sm:$0xf]
    %v2974 = vld [vmem:[%s4 + $0x70] sm:$0xf]
    %v2975 = vld [vmem:[%s4 + $0x74] sm:$0xf]
    %v2976 = vld [vmem:[%s4 + $0x78] sm:$0xf]
    %v2977 = vld [vmem:[%s4 + $0x7c] sm:$0xf]
    %v2978 = vld [vmem:[%s5] sm:$0x1]
    %v2980 = vperm.slane %v2978, 0
    %v3014 = vunpack.c.l.b16 %v2946
    %v3015 = vunpack.c.l.b16 %v2947
    %v3016 = vunpack.c.l.b16 %v2948
    %v3017 = vunpack.c.l.b16 %v2949
    %v3018 = vunpack.c.l.b16 %v2950
    %v3019 = vunpack.c.l.b16 %v2951
    %v3020 = vunpack.c.l.b16 %v2952
    %v3021 = vunpack.c.l.b16 %v2953
    %v3022 = vunpack.c.l.b16 %v2954
    %v3023 = vunpack.c.l.b16 %v2955
    %v3024 = vunpack.c.l.b16 %v2956
    %v3025 = vunpack.c.l.b16 %v2957
    %v3026 = vunpack.c.l.b16 %v2958
    %v3027 = vunpack.c.l.b16 %v2959
    %v3028 = vunpack.c.l.b16 %v2960
    %v3029 = vunpack.c.l.b16 %v2961
    %v3030 = vunpack.c.l.b16 %v2962
    %v3031 = vunpack.c.l.b16 %v2963
    %v3032 = vunpack.c.l.b16 %v2964
    %v3033 = vunpack.c.l.b16 %v2965
    %v3034 = vunpack.c.l.b16 %v2966
    %v3035 = vunpack.c.l.b16 %v2967
    %v3036 = vunpack.c.l.b16 %v2968
    %v3037 = vunpack.c.l.b16 %v2969
    %v3038 = vunpack.c.l.b16 %v2970
    %v3039 = vunpack.c.l.b16 %v2971
    %v3040 = vunpack.c.l.b16 %v2972
    %v3041 = vunpack.c.l.b16 %v2973
    %v3042 = vunpack.c.l.b16 %v2974
    %v3043 = vunpack.c.l.b16 %v2975
    %v3044 = vunpack.c.l.b16 %v2976
    %v3045 = vunpack.c.l.b16 %v2977
    %v3046 = vpack.c.b16 %v3015, %v3014
    %v3047 = vpack.c.b16 %v3017, %v3016
    %v3048 = vpack.c.b16 %v3019, %v3018
    %v3049 = vpack.c.b16 %v3021, %v3020
    %v3050 = vpack.c.b16 %v3023, %v3022
    %v3051 = vpack.c.b16 %v3025, %v3024
    %v3052 = vpack.c.b16 %v3027, %v3026
    %v3053 = vpack.c.b16 %v3029, %v3028
    %v3054 = vpack.c.b16 %v3031, %v3030
    %v3055 = vpack.c.b16 %v3033, %v3032
    %v3056 = vpack.c.b16 %v3035, %v3034
    %v3057 = vpack.c.b16 %v3037, %v3036
    %v3058 = vpack.c.b16 %v3039, %v3038
    %v3059 = vpack.c.b16 %v3041, %v3040
    %v3060 = vpack.c.b16 %v3043, %v3042
    %v3061 = vpack.c.b16 %v3045, %v3044
    %3078 = vmatpush.bf16.msra.mxu0 %v3053
    %3079 = vmatpush.bf16.msra.mxu0 %v3052
    %3080 = vmatpush.bf16.msra.mxu0 %v3051
    %3081 = vmatpush.bf16.msra.mxu0 %v3050
    %3082 = vmatpush.bf16.msra.mxu0 %v3049
    %3083 = vmatpush.bf16.msra.mxu0 %v3048
    %3084 = vmatpush.bf16.msra.mxu0 %v3047
    %3085 = vmatpush.bf16.msra.mxu0 %v3046
    %3086 = vmatmul.bf16.gmra.mxu0 %v2690
    %v3087 = vpop.f32.mrf.mxu0
    %v3088 = vadd.f32 %v2980, %v3087
    %v3089 = vpop.f32.mrf.mxu0
    %v3090 = vadd.f32 %v2980, %v3089
    %3091 = vmatmul.bf16.gmra.mxu0 %v2691
    %v3092 = vpop.f32.mrf.mxu0
    %v3093 = vadd.f32 %v2980, %v3092
    %v3094 = vpop.f32.mrf.mxu0
    %v3095 = vadd.f32 %v2980, %v3094
    %3096 = vmatmul.bf16.gmra.mxu0 %v2692
    %v3097 = vpop.f32.mrf.mxu0
    %v3098 = vadd.f32 %v2980, %v3097
    %v3099 = vpop.f32.mrf.mxu0
    %v3100 = vadd.f32 %v2980, %v3099
    %3101 = vmatmul.bf16.gmra.mxu0 %v2693
    %v3102 = vpop.f32.mrf.mxu0
    %v3103 = vadd.f32 %v2980, %v3102
    %v3104 = vpop.f32.mrf.mxu0
    %v3105 = vadd.f32 %v2980, %v3104
    %3106 = vmatmul.bf16.gmra.mxu0 %v2694
    %v3107 = vpop.f32.mrf.mxu0
    %v3108 = vadd.f32 %v2980, %v3107
    %v3109 = vpop.f32.mrf.mxu0
    %v3110 = vadd.f32 %v2980, %v3109
    %3111 = vmatmul.bf16.gmra.mxu0 %v2695
    %v3112 = vpop.f32.mrf.mxu0
    %v3113 = vadd.f32 %v2980, %v3112
    %v3114 = vpop.f32.mrf.mxu0
    %v3115 = vadd.f32 %v2980, %v3114
    %3116 = vmatmul.bf16.gmra.mxu0 %v2696
    %v3117 = vpop.f32.mrf.mxu0
    %v3118 = vadd.f32 %v2980, %v3117
    %v3119 = vpop.f32.mrf.mxu0
    %v3120 = vadd.f32 %v2980, %v3119
    %3121 = vmatmul.bf16.gmra.mxu0 %v2697
    %v3122 = vpop.f32.mrf.mxu0
    %v3123 = vadd.f32 %v2980, %v3122
    %v3124 = vpop.f32.mrf.mxu0
    %v3125 = vadd.f32 %v2980, %v3124
    %3126 = vmatmul.bf16.gmra.mxu0 %v2698
    %v3127 = vpop.f32.mrf.mxu0
    %v3128 = vadd.f32 %v2980, %v3127
    %v3129 = vpop.f32.mrf.mxu0
    %v3130 = vadd.f32 %v2980, %v3129
    %3131 = vmatmul.bf16.gmra.mxu0 %v2699
    %v3132 = vpop.f32.mrf.mxu0
    %v3133 = vadd.f32 %v2980, %v3132
    %v3134 = vpop.f32.mrf.mxu0
    %v3135 = vadd.f32 %v2980, %v3134
    %3136 = vmatmul.bf16.gmra.mxu0 %v2700
    %v3137 = vpop.f32.mrf.mxu0
    %v3138 = vadd.f32 %v2980, %v3137
    %v3139 = vpop.f32.mrf.mxu0
    %v3140 = vadd.f32 %v2980, %v3139
    %3141 = vmatmul.bf16.gmra.mxu0 %v2701
    %v3142 = vpop.f32.mrf.mxu0
    %v3143 = vadd.f32 %v2980, %v3142
    %v3144 = vpop.f32.mrf.mxu0
    %v3145 = vadd.f32 %v2980, %v3144
    %3146 = vmatmul.bf16.gmra.mxu0 %v2702
    %v3147 = vpop.f32.mrf.mxu0
    %v3148 = vadd.f32 %v2980, %v3147
    %v3149 = vpop.f32.mrf.mxu0
    %v3150 = vadd.f32 %v2980, %v3149
    %3151 = vmatmul.bf16.gmra.mxu0 %v2703
    %v3152 = vpop.f32.mrf.mxu0
    %v3153 = vadd.f32 %v2980, %v3152
    %v3154 = vpop.f32.mrf.mxu0
    %v3155 = vadd.f32 %v2980, %v3154
    %3156 = vmatmul.bf16.gmra.mxu0 %v2704
    %v3157 = vpop.f32.mrf.mxu0
    %v3158 = vadd.f32 %v2980, %v3157
    %v3159 = vpop.f32.mrf.mxu0
    %v3160 = vadd.f32 %v2980, %v3159
    %3161 = vmatmul.bf16.gmra.mxu0 %v2705
    %v3162 = vpop.f32.mrf.mxu0
    %v3163 = vadd.f32 %v2980, %v3162
    %v3164 = vpop.f32.mrf.mxu0
    %v3165 = vadd.f32 %v2980, %v3164
    %3166 = vmatmul.bf16.gmra.mxu0 %v2706
    %v3167 = vpop.f32.mrf.mxu0
    %v3168 = vadd.f32 %v2980, %v3167
    %v3169 = vpop.f32.mrf.mxu0
    %v3170 = vadd.f32 %v2980, %v3169
    %3171 = vmatmul.bf16.gmra.mxu0 %v2707
    %v3172 = vpop.f32.mrf.mxu0
    %v3173 = vadd.f32 %v2980, %v3172
    %v3174 = vpop.f32.mrf.mxu0
    %v3175 = vadd.f32 %v2980, %v3174
    %3176 = vmatmul.bf16.gmra.mxu0 %v2708
    %v3177 = vpop.f32.mrf.mxu0
    %v3178 = vadd.f32 %v2980, %v3177
    %v3179 = vpop.f32.mrf.mxu0
    %v3180 = vadd.f32 %v2980, %v3179
    %3181 = vmatmul.bf16.gmra.mxu0 %v2709
    %v3182 = vpop.f32.mrf.mxu0
    %v3183 = vadd.f32 %v2980, %v3182
    %v3184 = vpop.f32.mrf.mxu0
    %v3185 = vadd.f32 %v2980, %v3184
    %3186 = vmatmul.bf16.gmra.mxu0 %v2710
    %v3187 = vpop.f32.mrf.mxu0
    %v3188 = vadd.f32 %v2980, %v3187
    %v3189 = vpop.f32.mrf.mxu0
    %v3190 = vadd.f32 %v2980, %v3189
    %3191 = vmatmul.bf16.gmra.mxu0 %v2711
    %v3192 = vpop.f32.mrf.mxu0
    %v3193 = vadd.f32 %v2980, %v3192
    %v3194 = vpop.f32.mrf.mxu0
    %v3195 = vadd.f32 %v2980, %v3194
    %3196 = vmatmul.bf16.gmra.mxu0 %v2712
    %v3197 = vpop.f32.mrf.mxu0
    %v3198 = vadd.f32 %v2980, %v3197
    %v3199 = vpop.f32.mrf.mxu0
    %v3200 = vadd.f32 %v2980, %v3199
    %3201 = vmatmul.bf16.gmra.mxu0 %v2713
    %v3202 = vpop.f32.mrf.mxu0
    %v3203 = vadd.f32 %v2980, %v3202
    %v3204 = vpop.f32.mrf.mxu0
    %v3205 = vadd.f32 %v2980, %v3204
    %3206 = vmatmul.bf16.gmra.mxu0 %v2714
    %v3207 = vpop.f32.mrf.mxu0
    %v3208 = vadd.f32 %v2980, %v3207
    %v3209 = vpop.f32.mrf.mxu0
    %v3210 = vadd.f32 %v2980, %v3209
    %3211 = vmatmul.bf16.gmra.mxu0 %v2715
    %v3212 = vpop.f32.mrf.mxu0
    %v3213 = vadd.f32 %v2980, %v3212
    %v3214 = vpop.f32.mrf.mxu0
    %v3215 = vadd.f32 %v2980, %v3214
    %3216 = vmatmul.bf16.gmra.mxu0 %v2716
    %v3217 = vpop.f32.mrf.mxu0
    %v3218 = vadd.f32 %v2980, %v3217
    %v3219 = vpop.f32.mrf.mxu0
    %v3220 = vadd.f32 %v2980, %v3219
    %3221 = vmatmul.bf16.gmra.mxu0 %v2717
    %v3222 = vpop.f32.mrf.mxu0
    %v3223 = vadd.f32 %v2980, %v3222
    %v3224 = vpop.f32.mrf.mxu0
    %v3225 = vadd.f32 %v2980, %v3224
    %3226 = vmatmul.bf16.gmra.mxu0 %v2718
    %v3227 = vpop.f32.mrf.mxu0
    %v3228 = vadd.f32 %v2980, %v3227
    %v3229 = vpop.f32.mrf.mxu0
    %v3230 = vadd.f32 %v2980, %v3229
    %3231 = vmatmul.bf16.gmra.mxu0 %v2719
    %v3232 = vpop.f32.mrf.mxu0
    %v3233 = vadd.f32 %v2980, %v3232
    %v3234 = vpop.f32.mrf.mxu0
    %v3235 = vadd.f32 %v2980, %v3234
    %3236 = vmatmul.bf16.gmra.mxu0 %v2720
    %v3237 = vpop.f32.mrf.mxu0
    %v3238 = vadd.f32 %v2980, %v3237
    %v3239 = vpop.f32.mrf.mxu0
    %v3240 = vadd.f32 %v2980, %v3239
    %3241 = vmatmul.bf16.gmra.mxu0 %v2721
    %v3242 = vpop.f32.mrf.mxu0
    %v3243 = vadd.f32 %v2980, %v3242
    %v3244 = vpop.f32.mrf.mxu0
    %v3245 = vadd.f32 %v2980, %v3244
    %3246 = vdwg.mxu0
    %3247 = vmatpush.bf16.msra.mxu0 %v3061
    %3248 = vmatpush.bf16.msra.mxu0 %v3060
    %3249 = vmatpush.bf16.msra.mxu0 %v3059
    %3250 = vmatpush.bf16.msra.mxu0 %v3058
    %3251 = vmatpush.bf16.msra.mxu0 %v3057
    %3252 = vmatpush.bf16.msra.mxu0 %v3056
    %3253 = vmatpush.bf16.msra.mxu0 %v3055
    %3254 = vmatpush.bf16.msra.mxu0 %v3054
    %3255 = vmatmul.bf16.gmra.mxu0 %v2882
    %v3256 = vpop.f32.mrf.mxu0
    %v3257 = vadd.f32 %v3088, %v3256
    %v3258 = vpop.f32.mrf.mxu0
    %v3259 = vadd.f32 %v3090, %v3258
    %3260 = vmatmul.bf16.gmra.mxu0 %v2883
    %v3261 = vpop.f32.mrf.mxu0
    %v3262 = vadd.f32 %v3093, %v3261
    %v3263 = vpop.f32.mrf.mxu0
    %v3264 = vadd.f32 %v3095, %v3263
    %3265 = vmatmul.bf16.gmra.mxu0 %v2884
    %v3266 = vpop.f32.mrf.mxu0
    %v3267 = vadd.f32 %v3098, %v3266
    %v3268 = vpop.f32.mrf.mxu0
    %v3269 = vadd.f32 %v3100, %v3268
    %3270 = vmatmul.bf16.gmra.mxu0 %v2885
    %v3271 = vpop.f32.mrf.mxu0
    %v3272 = vadd.f32 %v3103, %v3271
    %v3273 = vpop.f32.mrf.mxu0
    %v3274 = vadd.f32 %v3105, %v3273
    %3275 = vmatmul.bf16.gmra.mxu0 %v2886
    %v3276 = vpop.f32.mrf.mxu0
    %v3277 = vadd.f32 %v3108, %v3276
    %v3278 = vpop.f32.mrf.mxu0
    %v3279 = vadd.f32 %v3110, %v3278
    %3280 = vmatmul.bf16.gmra.mxu0 %v2887
    %v3281 = vpop.f32.mrf.mxu0
    %v3282 = vadd.f32 %v3113, %v3281
    %v3283 = vpop.f32.mrf.mxu0
    %v3284 = vadd.f32 %v3115, %v3283
    %3285 = vmatmul.bf16.gmra.mxu0 %v2888
    %v3286 = vpop.f32.mrf.mxu0
    %v3287 = vadd.f32 %v3118, %v3286
    %v3288 = vpop.f32.mrf.mxu0
    %v3289 = vadd.f32 %v3120, %v3288
    %3290 = vmatmul.bf16.gmra.mxu0 %v2889
    %v3291 = vpop.f32.mrf.mxu0
    %v3292 = vadd.f32 %v3123, %v3291
    %v3293 = vpop.f32.mrf.mxu0
    %v3294 = vadd.f32 %v3125, %v3293
    %3295 = vmatmul.bf16.gmra.mxu0 %v2890
    %v3296 = vpop.f32.mrf.mxu0
    %v3297 = vadd.f32 %v3128, %v3296
    %v3298 = vpop.f32.mrf.mxu0
    %v3299 = vadd.f32 %v3130, %v3298
    %3300 = vmatmul.bf16.gmra.mxu0 %v2891
    %v3301 = vpop.f32.mrf.mxu0
    %v3302 = vadd.f32 %v3133, %v3301
    %v3303 = vpop.f32.mrf.mxu0
    %v3304 = vadd.f32 %v3135, %v3303
    %3305 = vmatmul.bf16.gmra.mxu0 %v2892
    %v3306 = vpop.f32.mrf.mxu0
    %v3307 = vadd.f32 %v3138, %v3306
    %v3308 = vpop.f32.mrf.mxu0
    %v3309 = vadd.f32 %v3140, %v3308
    %3310 = vmatmul.bf16.gmra.mxu0 %v2893
    %v3311 = vpop.f32.mrf.mxu0
    %v3312 = vadd.f32 %v3143, %v3311
    %v3313 = vpop.f32.mrf.mxu0
    %v3314 = vadd.f32 %v3145, %v3313
    %3315 = vmatmul.bf16.gmra.mxu0 %v2894
    %v3316 = vpop.f32.mrf.mxu0
    %v3317 = vadd.f32 %v3148, %v3316
    %v3318 = vpop.f32.mrf.mxu0
    %v3319 = vadd.f32 %v3150, %v3318
    %3320 = vmatmul.bf16.gmra.mxu0 %v2895
    %v3321 = vpop.f32.mrf.mxu0
    %v3322 = vadd.f32 %v3153, %v3321
    %v3323 = vpop.f32.mrf.mxu0
    %v3324 = vadd.f32 %v3155, %v3323
    %3325 = vmatmul.bf16.gmra.mxu0 %v2896
    %v3326 = vpop.f32.mrf.mxu0
    %v3327 = vadd.f32 %v3158, %v3326
    %v3328 = vpop.f32.mrf.mxu0
    %v3329 = vadd.f32 %v3160, %v3328
    %3330 = vmatmul.bf16.gmra.mxu0 %v2897
    %v3331 = vpop.f32.mrf.mxu0
    %v3332 = vadd.f32 %v3163, %v3331
    %v3333 = vpop.f32.mrf.mxu0
    %v3334 = vadd.f32 %v3165, %v3333
    %3335 = vmatmul.bf16.gmra.mxu0 %v2898
    %v3336 = vpop.f32.mrf.mxu0
    %v3337 = vadd.f32 %v3168, %v3336
    %v3338 = vpop.f32.mrf.mxu0
    %v3339 = vadd.f32 %v3170, %v3338
    %3340 = vmatmul.bf16.gmra.mxu0 %v2899
    %v3341 = vpop.f32.mrf.mxu0
    %v3342 = vadd.f32 %v3173, %v3341
    %v3343 = vpop.f32.mrf.mxu0
    %v3344 = vadd.f32 %v3175, %v3343
    %3345 = vmatmul.bf16.gmra.mxu0 %v2900
    %v3346 = vpop.f32.mrf.mxu0
    %v3347 = vadd.f32 %v3178, %v3346
    %v3348 = vpop.f32.mrf.mxu0
    %v3349 = vadd.f32 %v3180, %v3348
    %3350 = vmatmul.bf16.gmra.mxu0 %v2901
    %v3351 = vpop.f32.mrf.mxu0
    %v3352 = vadd.f32 %v3183, %v3351
    %v3353 = vpop.f32.mrf.mxu0
    %v3354 = vadd.f32 %v3185, %v3353
    %3355 = vmatmul.bf16.gmra.mxu0 %v2902
    %v3356 = vpop.f32.mrf.mxu0
    %v3357 = vadd.f32 %v3188, %v3356
    %v3358 = vpop.f32.mrf.mxu0
    %v3359 = vadd.f32 %v3190, %v3358
    %3360 = vmatmul.bf16.gmra.mxu0 %v2903
    %v3361 = vpop.f32.mrf.mxu0
    %v3362 = vadd.f32 %v3193, %v3361
    %v3363 = vpop.f32.mrf.mxu0
    %v3364 = vadd.f32 %v3195, %v3363
    %3365 = vmatmul.bf16.gmra.mxu0 %v2904
    %v3366 = vpop.f32.mrf.mxu0
    %v3367 = vadd.f32 %v3198, %v3366
    %v3368 = vpop.f32.mrf.mxu0
    %v3369 = vadd.f32 %v3200, %v3368
    %3370 = vmatmul.bf16.gmra.mxu0 %v2905
    %v3371 = vpop.f32.mrf.mxu0
    %v3372 = vadd.f32 %v3203, %v3371
    %v3373 = vpop.f32.mrf.mxu0
    %v3374 = vadd.f32 %v3205, %v3373
    %3375 = vmatmul.bf16.gmra.mxu0 %v2906
    %v3376 = vpop.f32.mrf.mxu0
    %v3377 = vadd.f32 %v3208, %v3376
    %v3378 = vpop.f32.mrf.mxu0
    %v3379 = vadd.f32 %v3210, %v3378
    %3380 = vmatmul.bf16.gmra.mxu0 %v2907
    %v3381 = vpop.f32.mrf.mxu0
    %v3382 = vadd.f32 %v3213, %v3381
    %v3383 = vpop.f32.mrf.mxu0
    %v3384 = vadd.f32 %v3215, %v3383
    %3385 = vmatmul.bf16.gmra.mxu0 %v2908
    %v3386 = vpop.f32.mrf.mxu0
    %v3387 = vadd.f32 %v3218, %v3386
    %v3388 = vpop.f32.mrf.mxu0
    %v3389 = vadd.f32 %v3220, %v3388
    %3390 = vmatmul.bf16.gmra.mxu0 %v2909
    %v3391 = vpop.f32.mrf.mxu0
    %v3392 = vadd.f32 %v3223, %v3391
    %v3393 = vpop.f32.mrf.mxu0
    %v3394 = vadd.f32 %v3225, %v3393
    %3395 = vmatmul.bf16.gmra.mxu0 %v2910
    %v3396 = vpop.f32.mrf.mxu0
    %v3397 = vadd.f32 %v3228, %v3396
    %v3398 = vpop.f32.mrf.mxu0
    %v3399 = vadd.f32 %v3230, %v3398
    %3400 = vmatmul.bf16.gmra.mxu0 %v2911
    %v3401 = vpop.f32.mrf.mxu0
    %v3402 = vadd.f32 %v3233, %v3401
    %v3403 = vpop.f32.mrf.mxu0
    %v3404 = vadd.f32 %v3235, %v3403
    %3405 = vmatmul.bf16.gmra.mxu0 %v2912
    %v3406 = vpop.f32.mrf.mxu0
    %v3407 = vadd.f32 %v3238, %v3406
    %v3408 = vpop.f32.mrf.mxu0
    %v3409 = vadd.f32 %v3240, %v3408
    %3410 = vmatmul.bf16.gmra.mxu0 %v2913
    %v3411 = vpop.f32.mrf.mxu0
    %v3412 = vadd.f32 %v3243, %v3411
    %v3413 = vpop.f32.mrf.mxu0
    %v3414 = vadd.f32 %v3245, %v3413
    %3415 = vdwg.mxu0
    %3416 = vst [vmem:[%s6] sm:$0xff] %v3257
    %3417 = vst [vmem:[%s6 + $0x8] sm:$0xff] %v3259
    %3418 = vst [vmem:[%s6 + $0x10] sm:$0xff] %v3262
    %3419 = vst [vmem:[%s6 + $0x18] sm:$0xff] %v3264
    %3420 = vst [vmem:[%s6 + $0x20] sm:$0xff] %v3267
    %3421 = vst [vmem:[%s6 + $0x28] sm:$0xff] %v3269
    %3422 = vst [vmem:[%s6 + $0x30] sm:$0xff] %v3272
    %3423 = vst [vmem:[%s6 + $0x38] sm:$0xff] %v3274
    %3424 = vst [vmem:[%s6 + $0x40] sm:$0xff] %v3277
    %3425 = vst [vmem:[%s6 + $0x48] sm:$0xff] %v3279
    %3426 = vst [vmem:[%s6 + $0x50] sm:$0xff] %v3282
    %3427 = vst [vmem:[%s6 + $0x58] sm:$0xff] %v3284
    %3428 = vst [vmem:[%s6 + $0x60] sm:$0xff] %v3287
    %3429 = vst [vmem:[%s6 + $0x68] sm:$0xff] %v3289
    %3430 = vst [vmem:[%s6 + $0x70] sm:$0xff] %v3292
    %3431 = vst [vmem:[%s6 + $0x78] sm:$0xff] %v3294
    %3432 = vst [vmem:[%s6 + $0x80] sm:$0xff] %v3297
    %3433 = vst [vmem:[%s6 + $0x88] sm:$0xff] %v3299
    %3434 = vst [vmem:[%s6 + $0x90] sm:$0xff] %v3302
    %3435 = vst [vmem:[%s6 + $0x98] sm:$0xff] %v3304
    %3436 = vst [vmem:[%s6 + $0xa0] sm:$0xff] %v3307
    %3437 = vst [vmem:[%s6 + $0xa8] sm:$0xff] %v3309
    %3438 = vst [vmem:[%s6 + $0xb0] sm:$0xff] %v3312
    %3439 = vst [vmem:[%s6 + $0xb8] sm:$0xff] %v3314
    %3440 = vst [vmem:[%s6 + $0xc0] sm:$0xff] %v3317
    %3441 = vst [vmem:[%s6 + $0xc8] sm:$0xff] %v3319
    %3442 = vst [vmem:[%s6 + $0xd0] sm:$0xff] %v3322
    %3443 = vst [vmem:[%s6 + $0xd8] sm:$0xff] %v3324
    %3444 = vst [vmem:[%s6 + $0xe0] sm:$0xff] %v3327
    %3445 = vst [vmem:[%s6 + $0xe8] sm:$0xff] %v3329
    %3446 = vst [vmem:[%s6 + $0xf0] sm:$0xff] %v3332
    %3447 = vst [vmem:[%s6 + $0xf8] sm:$0xff] %v3334
    %3448 = vst [vmem:[%s6 + $0x100] sm:$0xff] %v3337
    %3449 = vst [vmem:[%s6 + $0x108] sm:$0xff] %v3339
    %3450 = vst [vmem:[%s6 + $0x110] sm:$0xff] %v3342
    %3451 = vst [vmem:[%s6 + $0x118] sm:$0xff] %v3344
    %3452 = vst [vmem:[%s6 + $0x120] sm:$0xff] %v3347
    %3453 = vst [vmem:[%s6 + $0x128] sm:$0xff] %v3349
    %3454 = vst [vmem:[%s6 + $0x130] sm:$0xff] %v3352
    %3455 = vst [vmem:[%s6 + $0x138] sm:$0xff] %v3354
    %3456 = vst [vmem:[%s6 + $0x140] sm:$0xff] %v3357
    %3457 = vst [vmem:[%s6 + $0x148] sm:$0xff] %v3359
    %3458 = vst [vmem:[%s6 + $0x150] sm:$0xff] %v3362
    %3459 = vst [vmem:[%s6 + $0x158] sm:$0xff] %v3364
    %3460 = vst [vmem:[%s6 + $0x160] sm:$0xff] %v3367
    %3461 = vst [vmem:[%s6 + $0x168] sm:$0xff] %v3369
    %3462 = vst [vmem:[%s6 + $0x170] sm:$0xff] %v3372
    %3463 = vst [vmem:[%s6 + $0x178] sm:$0xff] %v3374
    %3464 = vst [vmem:[%s6 + $0x180] sm:$0xff] %v3377
    %3465 = vst [vmem:[%s6 + $0x188] sm:$0xff] %v3379
    %3466 = vst [vmem:[%s6 + $0x190] sm:$0xff] %v3382
    %3467 = vst [vmem:[%s6 + $0x198] sm:$0xff] %v3384
    %3468 = vst [vmem:[%s6 + $0x1a0] sm:$0xff] %v3387
    %3469 = vst [vmem:[%s6 + $0x1a8] sm:$0xff] %v3389
    %3470 = vst [vmem:[%s6 + $0x1b0] sm:$0xff] %v3392
    %3471 = vst [vmem:[%s6 + $0x1b8] sm:$0xff] %v3394
    %3472 = vst [vmem:[%s6 + $0x1c0] sm:$0xff] %v3397
    %3473 = vst [vmem:[%s6 + $0x1c8] sm:$0xff] %v3399
    %3474 = vst [vmem:[%s6 + $0x1d0] sm:$0xff] %v3402
    %3475 = vst [vmem:[%s6 + $0x1d8] sm:$0xff] %v3404
    %3476 = vst [vmem:[%s6 + $0x1e0] sm:$0xff] %v3407
    %3477 = vst [vmem:[%s6 + $0x1e8] sm:$0xff] %v3409
    %3478 = vst [vmem:[%s6 + $0x1f0] sm:$0xff] %v3412
    %3479 = vst [vmem:[%s6 + $0x1f8] sm:$0xff] %v3414
  $region33: #{graphsage_forward.5} parent=0 // pred_fallthru
    _
  // Predicated region
  $region34: #{graphsage_forward.5} parent=0 // pred_check
    _
  $region35: #{graphsage_forward.5} parent=0 // pred_check_branch
    %3481 = sbr.rel (0) target = $region37
  $region36: #{graphsage_forward.5} parent=0 // pred_region
    _
  $region37: #{graphsage_forward.5} parent=0 // pred_fallthru
    _
  // Predicated region
  $region38: #{graphsage_forward.5} parent=0 // pred_check
    _
  $region39: #{graphsage_forward.5} parent=0 // pred_check_branch
    %3483 = sbr.rel (0) target = $region41
  $region40: #{graphsage_forward.5} parent=0 // pred_region
    _
  $region41: #{graphsage_forward.5} parent=0 // pred_fallthru
    _

// kernel: graphsage_forward.3
$region0: #{graphsage_forward.3}
  #allocation0 [shape = 'u32[]', space=smem, size = 0x4, offset = 0x4, fixed_abs, tag = 'smem constant byte address 0x4 - core index']
  #allocation1 [shape = 'u32[72,128]{1,0:T(1,128)}', space=vmem, size = 0x9000, scoped, tag = 'internal scratch']
  #allocation2 [shape = 'f32[512,128]{1,0:T(8,128)}', space=vmem, size = 0x40000, scoped, tag = 'scratch operand']
  %s0 = inlined_call_operand.vmem [shape: s8[512,512], index: 0, kind: input, shape index: {}]
  %s1 = inlined_call_operand.vmem [shape: bf16[512,128], index: 1, kind: input, shape index: {}, may-alias: {1,2}]
  %s2 = inlined_call_operand.vmem [shape: bf16[512,128], index: 2, kind: input, shape index: {}, may-alias: {1,2}]
  %s3 = inlined_call_operand.vmem [shape: f32[512,1], index: 3, kind: input, shape index: {}]
  %s4 = inlined_call_operand.vmem [shape: bf16[256,128], index: 4, kind: input, shape index: {}]
  %s5 = inlined_call_operand.vmem [shape: f32[1,128], index: 5, kind: input, shape index: {}]
  %s6 = inlined_call_operand.vmem [shape: bf16[512,128], index: 6, kind: output, shape index: {}]
  %s7 = sld [smem:[#allocation0]]
  $region42: #{graphsage_forward.3} parent=0
    _
  %s9 = ssub.s32 1, %s7
  %s10 = scalar_select 0, %s9, %s7
  // Predicated region
  $region2: #{graphsage_forward.3} parent=0 // pred_check
    _
  $region3: #{graphsage_forward.3} parent=0 // pred_check_branch
    %12 = sbr.rel (0) target = $region5
  $region4: #{graphsage_forward.3} parent=0 // pred_region
    _
  $region5: #{graphsage_forward.3} parent=0 // pred_fallthru
    _
  // Predicated region
  $region6: #{graphsage_forward.3} parent=0 // pred_check
    _
  $region7: #{graphsage_forward.3} parent=0 // pred_check_branch
    %14 = sbr.rel (0) target = $region9
  $region8: #{graphsage_forward.3} parent=0 // pred_region
    _
  $region9: #{graphsage_forward.3} parent=0 // pred_fallthru
    _
  // Predicated region
  $region10: #{graphsage_forward.3} parent=0 // pred_check
    _
  $region11: #{graphsage_forward.3} parent=0 // pred_check_branch
    %16 = sbr.rel (0) target = $region13
  $region12: #{graphsage_forward.3} parent=0 // pred_region
    _
  $region13: #{graphsage_forward.3} parent=0 // pred_fallthru
    _
  // Predicated region
  $region14: #{graphsage_forward.3} parent=0 // pred_check
    _
  $region15: #{graphsage_forward.3} parent=0 // pred_check_branch
    %18 = sbr.rel (0) target = $region17
  $region16: #{graphsage_forward.3} parent=0 // pred_region
    _
  $region17: #{graphsage_forward.3} parent=0 // pred_fallthru
    _
  // Predicated region
  $region18: #{graphsage_forward.3} parent=0 // pred_check
    _
  $region19: #{graphsage_forward.3} parent=0 // pred_check_branch
    %20 = sbr.rel (0) target = $region21
  $region20: #{graphsage_forward.3} parent=0 // pred_region
    _
  $region21: #{graphsage_forward.3} parent=0 // pred_fallthru
    _
  // Predicated region
  $region22: #{graphsage_forward.3} parent=0 // pred_check
    _
  $region23: #{graphsage_forward.3} parent=0 // pred_check_branch
    %22 = sbr.rel (0) target = $region25
  $region24: #{graphsage_forward.3} parent=0 // pred_region
    _
  $region25: #{graphsage_forward.3} parent=0 // pred_fallthru
    _
  %p23 = scmp.eq.s32.totalorder 0, 0
  // Predicated region
  $region26: #{graphsage_forward.3} parent=0 // pred_check
    %p24 = pneg %p23
  $region27: #{graphsage_forward.3} parent=0 // pred_check_branch
    %26 = sbr.rel (%p24) target = $region29
  $region28: #{graphsage_forward.3} parent=0 // pred_region
    %27 = vst [vmem:[#allocation2] sm:$0xff] 0.0
    %28 = vst [vmem:[#allocation2 + $0x8] sm:$0xff] 0.0
    %29 = vst [vmem:[#allocation2 + $0x10] sm:$0xff] 0.0
    %30 = vst [vmem:[#allocation2 + $0x18] sm:$0xff] 0.0
    %31 = vst [vmem:[#allocation2 + $0x20] sm:$0xff] 0.0
    %32 = vst [vmem:[#allocation2 + $0x28] sm:$0xff] 0.0
    %33 = vst [vmem:[#allocation2 + $0x30] sm:$0xff] 0.0
    %34 = vst [vmem:[#allocation2 + $0x38] sm:$0xff] 0.0
    %35 = vst [vmem:[#allocation2 + $0x40] sm:$0xff] 0.0
    %36 = vst [vmem:[#allocation2 + $0x48] sm:$0xff] 0.0
    %37 = vst [vmem:[#allocation2 + $0x50] sm:$0xff] 0.0
    %38 = vst [vmem:[#allocation2 + $0x58] sm:$0xff] 0.0
    %39 = vst [vmem:[#allocation2 + $0x60] sm:$0xff] 0.0
    %40 = vst [vmem:[#allocation2 + $0x68] sm:$0xff] 0.0
    %41 = vst [vmem:[#allocation2 + $0x70] sm:$0xff] 0.0
    %42 = vst [vmem:[#allocation2 + $0x78] sm:$0xff] 0.0
    %43 = vst [vmem:[#allocation2 + $0x80] sm:$0xff] 0.0
    %44 = vst [vmem:[#allocation2 + $0x88] sm:$0xff] 0.0
    %45 = vst [vmem:[#allocation2 + $0x90] sm:$0xff] 0.0
    %46 = vst [vmem:[#allocation2 + $0x98] sm:$0xff] 0.0
    %47 = vst [vmem:[#allocation2 + $0xa0] sm:$0xff] 0.0
    %48 = vst [vmem:[#allocation2 + $0xa8] sm:$0xff] 0.0
    %49 = vst [vmem:[#allocation2 + $0xb0] sm:$0xff] 0.0
    %50 = vst [vmem:[#allocation2 + $0xb8] sm:$0xff] 0.0
    %51 = vst [vmem:[#allocation2 + $0xc0] sm:$0xff] 0.0
    %52 = vst [vmem:[#allocation2 + $0xc8] sm:$0xff] 0.0
    %53 = vst [vmem:[#allocation2 + $0xd0] sm:$0xff] 0.0
    %54 = vst [vmem:[#allocation2 + $0xd8] sm:$0xff] 0.0
    %55 = vst [vmem:[#allocation2 + $0xe0] sm:$0xff] 0.0
    %56 = vst [vmem:[#allocation2 + $0xe8] sm:$0xff] 0.0
    %57 = vst [vmem:[#allocation2 + $0xf0] sm:$0xff] 0.0
    %58 = vst [vmem:[#allocation2 + $0xf8] sm:$0xff] 0.0
    %59 = vst [vmem:[#allocation2 + $0x100] sm:$0xff] 0.0
    %60 = vst [vmem:[#allocation2 + $0x108] sm:$0xff] 0.0
    %61 = vst [vmem:[#allocation2 + $0x110] sm:$0xff] 0.0
    %62 = vst [vmem:[#allocation2 + $0x118] sm:$0xff] 0.0
    %63 = vst [vmem:[#allocation2 + $0x120] sm:$0xff] 0.0
    %64 = vst [vmem:[#allocation2 + $0x128] sm:$0xff] 0.0
    %65 = vst [vmem:[#allocation2 + $0x130] sm:$0xff] 0.0
    %66 = vst [vmem:[#allocation2 + $0x138] sm:$0xff] 0.0
    %67 = vst [vmem:[#allocation2 + $0x140] sm:$0xff] 0.0
    %68 = vst [vmem:[#allocation2 + $0x148] sm:$0xff] 0.0
    %69 = vst [vmem:[#allocation2 + $0x150] sm:$0xff] 0.0
    %70 = vst [vmem:[#allocation2 + $0x158] sm:$0xff] 0.0
    %71 = vst [vmem:[#allocation2 + $0x160] sm:$0xff] 0.0
    %72 = vst [vmem:[#allocation2 + $0x168] sm:$0xff] 0.0
    %73 = vst [vmem:[#allocation2 + $0x170] sm:$0xff] 0.0
    %74 = vst [vmem:[#allocation2 + $0x178] sm:$0xff] 0.0
    %75 = vst [vmem:[#allocation2 + $0x180] sm:$0xff] 0.0
    %76 = vst [vmem:[#allocation2 + $0x188] sm:$0xff] 0.0
    %77 = vst [vmem:[#allocation2 + $0x190] sm:$0xff] 0.0
    %78 = vst [vmem:[#allocation2 + $0x198] sm:$0xff] 0.0
    %79 = vst [vmem:[#allocation2 + $0x1a0] sm:$0xff] 0.0
    %80 = vst [vmem:[#allocation2 + $0x1a8] sm:$0xff] 0.0
    %81 = vst [vmem:[#allocation2 + $0x1b0] sm:$0xff] 0.0
    %82 = vst [vmem:[#allocation2 + $0x1b8] sm:$0xff] 0.0
    %83 = vst [vmem:[#allocation2 + $0x1c0] sm:$0xff] 0.0
    %84 = vst [vmem:[#allocation2 + $0x1c8] sm:$0xff] 0.0
    %85 = vst [vmem:[#allocation2 + $0x1d0] sm:$0xff] 0.0
    %86 = vst [vmem:[#allocation2 + $0x1d8] sm:$0xff] 0.0
    %87 = vst [vmem:[#allocation2 + $0x1e0] sm:$0xff] 0.0
    %88 = vst [vmem:[#allocation2 + $0x1e8] sm:$0xff] 0.0
    %89 = vst [vmem:[#allocation2 + $0x1f0] sm:$0xff] 0.0
    %90 = vst [vmem:[#allocation2 + $0x1f8] sm:$0xff] 0.0
  $region29: #{graphsage_forward.3} parent=0 // pred_fallthru
    _
  %v91 = vld [vmem:[%s0] sm:$0xff]
  %v92 = vld [vmem:[%s0 + $0x8] sm:$0xff]
  %v93 = vld [vmem:[%s0 + $0x10] sm:$0xff]
  %v94 = vld [vmem:[%s0 + $0x18] sm:$0xff]
  %v95 = vld [vmem:[%s0 + $0x20] sm:$0xff]
  %v96 = vld [vmem:[%s0 + $0x28] sm:$0xff]
  %v97 = vld [vmem:[%s0 + $0x30] sm:$0xff]
  %v98 = vld [vmem:[%s0 + $0x38] sm:$0xff]
  %v99 = vld [vmem:[%s0 + $0x40] sm:$0xff]
  %v100 = vld [vmem:[%s0 + $0x48] sm:$0xff]
  %v101 = vld [vmem:[%s0 + $0x50] sm:$0xff]
  %v102 = vld [vmem:[%s0 + $0x58] sm:$0xff]
  %v103 = vld [vmem:[%s0 + $0x60] sm:$0xff]
  %v104 = vld [vmem:[%s0 + $0x68] sm:$0xff]
  %v105 = vld [vmem:[%s0 + $0x70] sm:$0xff]
  %v106 = vld [vmem:[%s0 + $0x78] sm:$0xff]
  %v107 = vld [vmem:[%s0 + $0x80] sm:$0xff]
  %v108 = vld [vmem:[%s0 + $0x88] sm:$0xff]
  %v109 = vld [vmem:[%s0 + $0x90] sm:$0xff]
  %v110 = vld [vmem:[%s0 + $0x98] sm:$0xff]
  %v111 = vld [vmem:[%s0 + $0xa0] sm:$0xff]
  %v112 = vld [vmem:[%s0 + $0xa8] sm:$0xff]
  %v113 = vld [vmem:[%s0 + $0xb0] sm:$0xff]
  %v114 = vld [vmem:[%s0 + $0xb8] sm:$0xff]
  %v115 = vld [vmem:[%s0 + $0xc0] sm:$0xff]
  %v116 = vld [vmem:[%s0 + $0xc8] sm:$0xff]
  %v117 = vld [vmem:[%s0 + $0xd0] sm:$0xff]
  %v118 = vld [vmem:[%s0 + $0xd8] sm:$0xff]
  %v119 = vld [vmem:[%s0 + $0xe0] sm:$0xff]
  %v120 = vld [vmem:[%s0 + $0xe8] sm:$0xff]
  %v121 = vld [vmem:[%s0 + $0xf0] sm:$0xff]
  %v122 = vld [vmem:[%s0 + $0xf8] sm:$0xff]
  %v123 = vld [vmem:[%s0 + $0x100] sm:$0xff]
  %v124 = vld [vmem:[%s0 + $0x108] sm:$0xff]
  %v125 = vld [vmem:[%s0 + $0x110] sm:$0xff]
  %v126 = vld [vmem:[%s0 + $0x118] sm:$0xff]
  %v127 = vld [vmem:[%s0 + $0x120] sm:$0xff]
  %v128 = vld [vmem:[%s0 + $0x128] sm:$0xff]
  %v129 = vld [vmem:[%s0 + $0x130] sm:$0xff]
  %v130 = vld [vmem:[%s0 + $0x138] sm:$0xff]
  %v131 = vld [vmem:[%s0 + $0x140] sm:$0xff]
  %v132 = vld [vmem:[%s0 + $0x148] sm:$0xff]
  %v133 = vld [vmem:[%s0 + $0x150] sm:$0xff]
  %v134 = vld [vmem:[%s0 + $0x158] sm:$0xff]
  %v135 = vld [vmem:[%s0 + $0x160] sm:$0xff]
  %v136 = vld [vmem:[%s0 + $0x168] sm:$0xff]
  %v137 = vld [vmem:[%s0 + $0x170] sm:$0xff]
  %v138 = vld [vmem:[%s0 + $0x178] sm:$0xff]
  %v139 = vld [vmem:[%s0 + $0x180] sm:$0xff]
  %v140 = vld [vmem:[%s0 + $0x188] sm:$0xff]
  %v141 = vld [vmem:[%s0 + $0x190] sm:$0xff]
  %v142 = vld [vmem:[%s0 + $0x198] sm:$0xff]
  %v143 = vld [vmem:[%s0 + $0x1a0] sm:$0xff]
  %v144 = vld [vmem:[%s0 + $0x1a8] sm:$0xff]
  %v145 = vld [vmem:[%s0 + $0x1b0] sm:$0xff]
  %v146 = vld [vmem:[%s0 + $0x1b8] sm:$0xff]
  %v147 = vld [vmem:[%s0 + $0x1c0] sm:$0xff]
  %v148 = vld [vmem:[%s0 + $0x1c8] sm:$0xff]
  %v149 = vld [vmem:[%s0 + $0x1d0] sm:$0xff]
  %v150 = vld [vmem:[%s0 + $0x1d8] sm:$0xff]
  %v151 = vld [vmem:[%s0 + $0x1e0] sm:$0xff]
  %v152 = vld [vmem:[%s0 + $0x1e8] sm:$0xff]
  %v153 = vld [vmem:[%s0 + $0x1f0] sm:$0xff]
  %v154 = vld [vmem:[%s0 + $0x1f8] sm:$0xff]
  %v155 = vunpack.c.0.s8 %v91
  %v156 = vunpack.c.0.s8 %v92
  %v157 = vunpack.c.0.s8 %v93
  %v158 = vunpack.c.0.s8 %v94
  %v159 = vunpack.c.1.s8 %v91
  %v160 = vunpack.c.1.s8 %v92
  %v161 = vunpack.c.1.s8 %v93
  %v162 = vunpack.c.1.s8 %v94
  %v163 = vunpack.c.2.s8 %v91
  %v164 = vunpack.c.2.s8 %v92
  %v165 = vunpack.c.2.s8 %v93
  %v166 = vunpack.c.2.s8 %v94
  %v167 = vunpack.c.3.s8 %v91
  %v168 = vunpack.c.3.s8 %v92
  %v169 = vunpack.c.3.s8 %v93
  %v170 = vunpack.c.3.s8 %v94
  %v171 = vunpack.c.0.s8 %v95
  %v172 = vunpack.c.0.s8 %v96
  %v173 = vunpack.c.0.s8 %v97
  %v174 = vunpack.c.0.s8 %v98
  %v175 = vunpack.c.1.s8 %v95
  %v176 = vunpack.c.1.s8 %v96
  %v177 = vunpack.c.1.s8 %v97
  %v178 = vunpack.c.1.s8 %v98
  %v179 = vunpack.c.2.s8 %v95
  %v180 = vunpack.c.2.s8 %v96
  %v181 = vunpack.c.2.s8 %v97
  %v182 = vunpack.c.2.s8 %v98
  %v183 = vunpack.c.3.s8 %v95
  %v184 = vunpack.c.3.s8 %v96
  %v185 = vunpack.c.3.s8 %v97
  %v186 = vunpack.c.3.s8 %v98
  %v187 = vunpack.c.0.s8 %v99
  %v188 = vunpack.c.0.s8 %v100
  %v189 = vunpack.c.0.s8 %v101
  %v190 = vunpack.c.0.s8 %v102
  %v191 = vunpack.c.1.s8 %v99
  %v192 = vunpack.c.1.s8 %v100
  %v193 = vunpack.c.1.s8 %v101
  %v194 = vunpack.c.1.s8 %v102
  %v195 = vunpack.c.2.s8 %v99
  %v196 = vunpack.c.2.s8 %v100
  %v197 = vunpack.c.2.s8 %v101
  %v198 = vunpack.c.2.s8 %v102
  %v199 = vunpack.c.3.s8 %v99
  %v200 = vunpack.c.3.s8 %v100
  %v201 = vunpack.c.3.s8 %v101
  %v202 = vunpack.c.3.s8 %v102
  %v203 = vunpack.c.0.s8 %v103
  %v204 = vunpack.c.0.s8 %v104
  %v205 = vunpack.c.0.s8 %v105
  %v206 = vunpack.c.0.s8 %v106
  %v207 = vunpack.c.1.s8 %v103
  %v208 = vunpack.c.1.s8 %v104
  %v209 = vunpack.c.1.s8 %v105
  %v210 = vunpack.c.1.s8 %v106
  %v211 = vunpack.c.2.s8 %v103
  %v212 = vunpack.c.2.s8 %v104
  %v213 = vunpack.c.2.s8 %v105
  %v214 = vunpack.c.2.s8 %v106
  %v215 = vunpack.c.3.s8 %v103
  %v216 = vunpack.c.3.s8 %v104
  %v217 = vunpack.c.3.s8 %v105
  %v218 = vunpack.c.3.s8 %v106
  %v219 = vunpack.c.0.s8 %v107
  %v220 = vunpack.c.0.s8 %v108
  %v221 = vunpack.c.0.s8 %v109
  %v222 = vunpack.c.0.s8 %v110
  %v223 = vunpack.c.1.s8 %v107
  %v224 = vunpack.c.1.s8 %v108
  %v225 = vunpack.c.1.s8 %v109
  %v226 = vunpack.c.1.s8 %v110
  %v227 = vunpack.c.2.s8 %v107
  %v228 = vunpack.c.2.s8 %v108
  %v229 = vunpack.c.2.s8 %v109
  %v230 = vunpack.c.2.s8 %v110
  %v231 = vunpack.c.3.s8 %v107
  %v232 = vunpack.c.3.s8 %v108
  %v233 = vunpack.c.3.s8 %v109
  %v234 = vunpack.c.3.s8 %v110
  %v235 = vunpack.c.0.s8 %v111
  %v236 = vunpack.c.0.s8 %v112
  %v237 = vunpack.c.0.s8 %v113
  %v238 = vunpack.c.0.s8 %v114
  %v239 = vunpack.c.1.s8 %v111
  %v240 = vunpack.c.1.s8 %v112
  %v241 = vunpack.c.1.s8 %v113
  %v242 = vunpack.c.1.s8 %v114
  %v243 = vunpack.c.2.s8 %v111
  %v244 = vunpack.c.2.s8 %v112
  %v245 = vunpack.c.2.s8 %v113
  %v246 = vunpack.c.2.s8 %v114
  %v247 = vunpack.c.3.s8 %v111
  %v248 = vunpack.c.3.s8 %v112
  %v249 = vunpack.c.3.s8 %v113
  %v250 = vunpack.c.3.s8 %v114
  %v251 = vunpack.c.0.s8 %v115
  %v252 = vunpack.c.0.s8 %v116
  %v253 = vunpack.c.0.s8 %v117
  %v254 = vunpack.c.0.s8 %v118
  %v255 = vunpack.c.1.s8 %v115
  %v256 = vunpack.c.1.s8 %v116
  %v257 = vunpack.c.1.s8 %v117
  %v258 = vunpack.c.1.s8 %v118
  %v259 = vunpack.c.2.s8 %v115
  %v260 = vunpack.c.2.s8 %v116
  %v261 = vunpack.c.2.s8 %v117
  %v262 = vunpack.c.2.s8 %v118
  %v263 = vunpack.c.3.s8 %v115
  %v264 = vunpack.c.3.s8 %v116
  %v265 = vunpack.c.3.s8 %v117
  %v266 = vunpack.c.3.s8 %v118
  %v267 = vunpack.c.0.s8 %v119
  %v268 = vunpack.c.0.s8 %v120
  %v269 = vunpack.c.0.s8 %v121
  %v270 = vunpack.c.0.s8 %v122
  %v271 = vunpack.c.1.s8 %v119
  %v272 = vunpack.c.1.s8 %v120
  %v273 = vunpack.c.1.s8 %v121
  %v274 = vunpack.c.1.s8 %v122
  %v275 = vunpack.c.2.s8 %v119
  %v276 = vunpack.c.2.s8 %v120
  %v277 = vunpack.c.2.s8 %v121
  %v278 = vunpack.c.2.s8 %v122
  %v279 = vunpack.c.3.s8 %v119
  %v280 = vunpack.c.3.s8 %v120
  %v281 = vunpack.c.3.s8 %v121
  %v282 = vunpack.c.3.s8 %v122
  %v283 = vunpack.c.0.s8 %v123
  %v284 = vunpack.c.0.s8 %v124
  %v285 = vunpack.c.0.s8 %v125
  %v286 = vunpack.c.0.s8 %v126
  %v287 = vunpack.c.1.s8 %v123
  %v288 = vunpack.c.1.s8 %v124
  %v289 = vunpack.c.1.s8 %v125
  %v290 = vunpack.c.1.s8 %v126
  %v291 = vunpack.c.2.s8 %v123
  %v292 = vunpack.c.2.s8 %v124
  %v293 = vunpack.c.2.s8 %v125
  %v294 = vunpack.c.2.s8 %v126
  %v295 = vunpack.c.3.s8 %v123
  %v296 = vunpack.c.3.s8 %v124
  %v297 = vunpack.c.3.s8 %v125
  %v298 = vunpack.c.3.s8 %v126
  %v299 = vunpack.c.0.s8 %v127
  %v300 = vunpack.c.0.s8 %v128
  %v301 = vunpack.c.0.s8 %v129
  %v302 = vunpack.c.0.s8 %v130
  %v303 = vunpack.c.1.s8 %v127
  %v304 = vunpack.c.1.s8 %v128
  %v305 = vunpack.c.1.s8 %v129
  %v306 = vunpack.c.1.s8 %v130
  %v307 = vunpack.c.2.s8 %v127
  %v308 = vunpack.c.2.s8 %v128
  %v309 = vunpack.c.2.s8 %v129
  %v310 = vunpack.c.2.s8 %v130
  %v311 = vunpack.c.3.s8 %v127
  %v312 = vunpack.c.3.s8 %v128
  %v313 = vunpack.c.3.s8 %v129
  %v314 = vunpack.c.3.s8 %v130
  %v315 = vunpack.c.0.s8 %v131
  %v316 = vunpack.c.0.s8 %v132
  %v317 = vunpack.c.0.s8 %v133
  %v318 = vunpack.c.0.s8 %v134
  %v319 = vunpack.c.1.s8 %v131
  %v320 = vunpack.c.1.s8 %v132
  %v321 = vunpack.c.1.s8 %v133
  %v322 = vunpack.c.1.s8 %v134
  %v323 = vunpack.c.2.s8 %v131
  %v324 = vunpack.c.2.s8 %v132
  %v325 = vunpack.c.2.s8 %v133
  %v326 = vunpack.c.2.s8 %v134
  %v327 = vunpack.c.3.s8 %v131
  %v328 = vunpack.c.3.s8 %v132
  %v329 = vunpack.c.3.s8 %v133
  %v330 = vunpack.c.3.s8 %v134
  %v331 = vunpack.c.0.s8 %v135
  %v332 = vunpack.c.0.s8 %v136
  %v333 = vunpack.c.0.s8 %v137
  %v334 = vunpack.c.0.s8 %v138
  %v335 = vunpack.c.1.s8 %v135
  %v336 = vunpack.c.1.s8 %v136
  %v337 = vunpack.c.1.s8 %v137
  %v338 = vunpack.c.1.s8 %v138
  %v339 = vunpack.c.2.s8 %v135
  %v340 = vunpack.c.2.s8 %v136
  %v341 = vunpack.c.2.s8 %v137
  %v342 = vunpack.c.2.s8 %v138
  %v343 = vunpack.c.3.s8 %v135
  %v344 = vunpack.c.3.s8 %v136
  %v345 = vunpack.c.3.s8 %v137
  %v346 = vunpack.c.3.s8 %v138
  %v347 = vunpack.c.0.s8 %v139
  %v348 = vunpack.c.0.s8 %v140
  %v349 = vunpack.c.0.s8 %v141
  %v350 = vunpack.c.0.s8 %v142
  %v351 = vunpack.c.1.s8 %v139
  %v352 = vunpack.c.1.s8 %v140
  %v353 = vunpack.c.1.s8 %v141
  %v354 = vunpack.c.1.s8 %v142
  %v355 = vunpack.c.2.s8 %v139
  %v356 = vunpack.c.2.s8 %v140
  %v357 = vunpack.c.2.s8 %v141
  %v358 = vunpack.c.2.s8 %v142
  %v359 = vunpack.c.3.s8 %v139
  %v360 = vunpack.c.3.s8 %v140
  %v361 = vunpack.c.3.s8 %v141
  %v362 = vunpack.c.3.s8 %v142
  %v363 = vunpack.c.0.s8 %v143
  %v364 = vunpack.c.0.s8 %v144
  %v365 = vunpack.c.0.s8 %v145
  %v366 = vunpack.c.0.s8 %v146
  %v367 = vunpack.c.1.s8 %v143
  %v368 = vunpack.c.1.s8 %v144
  %v369 = vunpack.c.1.s8 %v145
  %v370 = vunpack.c.1.s8 %v146
  %v371 = vunpack.c.2.s8 %v143
  %v372 = vunpack.c.2.s8 %v144
  %v373 = vunpack.c.2.s8 %v145
  %v374 = vunpack.c.2.s8 %v146
  %v375 = vunpack.c.3.s8 %v143
  %v376 = vunpack.c.3.s8 %v144
  %v377 = vunpack.c.3.s8 %v145
  %v378 = vunpack.c.3.s8 %v146
  %v379 = vunpack.c.0.s8 %v147
  %v380 = vunpack.c.0.s8 %v148
  %v381 = vunpack.c.0.s8 %v149
  %v382 = vunpack.c.0.s8 %v150
  %v383 = vunpack.c.1.s8 %v147
  %v384 = vunpack.c.1.s8 %v148
  %v385 = vunpack.c.1.s8 %v149
  %v386 = vunpack.c.1.s8 %v150
  %v387 = vunpack.c.2.s8 %v147
  %v388 = vunpack.c.2.s8 %v148
  %v389 = vunpack.c.2.s8 %v149
  %v390 = vunpack.c.2.s8 %v150
  %v391 = vunpack.c.3.s8 %v147
  %v392 = vunpack.c.3.s8 %v148
  %v393 = vunpack.c.3.s8 %v149
  %v394 = vunpack.c.3.s8 %v150
  %v395 = vunpack.c.0.s8 %v151
  %v396 = vunpack.c.0.s8 %v152
  %v397 = vunpack.c.0.s8 %v153
  %v398 = vunpack.c.0.s8 %v154
  %v399 = vunpack.c.1.s8 %v151
  %v400 = vunpack.c.1.s8 %v152
  %v401 = vunpack.c.1.s8 %v153
  %v402 = vunpack.c.1.s8 %v154
  %v403 = vunpack.c.2.s8 %v151
  %v404 = vunpack.c.2.s8 %v152
  %v405 = vunpack.c.2.s8 %v153
  %v406 = vunpack.c.2.s8 %v154
  %v407 = vunpack.c.3.s8 %v151
  %v408 = vunpack.c.3.s8 %v152
  %v409 = vunpack.c.3.s8 %v153
  %v410 = vunpack.c.3.s8 %v154
  %v411 = vcvt.s32.f32 %v155
  %v412 = vcvt.s32.f32 %v156
  %v413 = vcvt.s32.f32 %v157
  %v414 = vcvt.s32.f32 %v158
  %v415 = vcvt.s32.f32 %v159
  %v416 = vcvt.s32.f32 %v160
  %v417 = vcvt.s32.f32 %v161
  %v418 = vcvt.s32.f32 %v162
  %v419 = vcvt.s32.f32 %v163
  %v420 = vcvt.s32.f32 %v164
  %v421 = vcvt.s32.f32 %v165
  %v422 = vcvt.s32.f32 %v166
  %v423 = vcvt.s32.f32 %v167
  %v424 = vcvt.s32.f32 %v168
  %v425 = vcvt.s32.f32 %v169
  %v426 = vcvt.s32.f32 %v170
  %v427 = vcvt.s32.f32 %v171
  %v428 = vcvt.s32.f32 %v172
  %v429 = vcvt.s32.f32 %v173
  %v430 = vcvt.s32.f32 %v174
  %v431 = vcvt.s32.f32 %v175
  %v432 = vcvt.s32.f32 %v176
  %v433 = vcvt.s32.f32 %v177
  %v434 = vcvt.s32.f32 %v178
  %v435 = vcvt.s32.f32 %v179
  %v436 = vcvt.s32.f32 %v180
  %v437 = vcvt.s32.f32 %v181
  %v438 = vcvt.s32.f32 %v182
  %v439 = vcvt.s32.f32 %v183
  %v440 = vcvt.s32.f32 %v184
  %v441 = vcvt.s32.f32 %v185
  %v442 = vcvt.s32.f32 %v186
  %v443 = vcvt.s32.f32 %v187
  %v444 = vcvt.s32.f32 %v188
  %v445 = vcvt.s32.f32 %v189
  %v446 = vcvt.s32.f32 %v190
  %v447 = vcvt.s32.f32 %v191
  %v448 = vcvt.s32.f32 %v192
  %v449 = vcvt.s32.f32 %v193
  %v450 = vcvt.s32.f32 %v194
  %v451 = vcvt.s32.f32 %v195
  %v452 = vcvt.s32.f32 %v196
  %v453 = vcvt.s32.f32 %v197
  %v454 = vcvt.s32.f32 %v198
  %v455 = vcvt.s32.f32 %v199
  %v456 = vcvt.s32.f32 %v200
  %v457 = vcvt.s32.f32 %v201
  %v458 = vcvt.s32.f32 %v202
  %v459 = vcvt.s32.f32 %v203
  %v460 = vcvt.s32.f32 %v204
  %v461 = vcvt.s32.f32 %v205
  %v462 = vcvt.s32.f32 %v206
  %v463 = vcvt.s32.f32 %v207
  %v464 = vcvt.s32.f32 %v208
  %v465 = vcvt.s32.f32 %v209
  %v466 = vcvt.s32.f32 %v210
  %v467 = vcvt.s32.f32 %v211
  %v468 = vcvt.s32.f32 %v212
  %v469 = vcvt.s32.f32 %v213
  %v470 = vcvt.s32.f32 %v214
  %v471 = vcvt.s32.f32 %v215
  %v472 = vcvt.s32.f32 %v216
  %v473 = vcvt.s32.f32 %v217
  %v474 = vcvt.s32.f32 %v218
  %v475 = vcvt.s32.f32 %v219
  %v476 = vcvt.s32.f32 %v220
  %v477 = vcvt.s32.f32 %v221
  %v478 = vcvt.s32.f32 %v222
  %v479 = vcvt.s32.f32 %v223
  %v480 = vcvt.s32.f32 %v224
  %v481 = vcvt.s32.f32 %v225
  %v482 = vcvt.s32.f32 %v226
  %v483 = vcvt.s32.f32 %v227
  %v484 = vcvt.s32.f32 %v228
  %v485 = vcvt.s32.f32 %v229
  %v486 = vcvt.s32.f32 %v230
  %v487 = vcvt.s32.f32 %v231
  %v488 = vcvt.s32.f32 %v232
  %v489 = vcvt.s32.f32 %v233
  %v490 = vcvt.s32.f32 %v234
  %v491 = vcvt.s32.f32 %v235
  %v492 = vcvt.s32.f32 %v236
  %v493 = vcvt.s32.f32 %v237
  %v494 = vcvt.s32.f32 %v238
  %v495 = vcvt.s32.f32 %v239
  %v496 = vcvt.s32.f32 %v240
  %v497 = vcvt.s32.f32 %v241
  %v498 = vcvt.s32.f32 %v242
  %v499 = vcvt.s32.f32 %v243
  %v500 = vcvt.s32.f32 %v244
  %v501 = vcvt.s32.f32 %v245
  %v502 = vcvt.s32.f32 %v246
  %v503 = vcvt.s32.f32 %v247
  %v504 = vcvt.s32.f32 %v248
  %v505 = vcvt.s32.f32 %v249
  %v506 = vcvt.s32.f32 %v250
  %v507 = vcvt.s32.f32 %v251
  %v508 = vcvt.s32.f32 %v252
  %v509 = vcvt.s32.f32 %v253
  %v510 = vcvt.s32.f32 %v254
  %v511 = vcvt.s32.f32 %v255
  %v512 = vcvt.s32.f32 %v256
  %v513 = vcvt.s32.f32 %v257
  %v514 = vcvt.s32.f32 %v258
  %v515 = vcvt.s32.f32 %v259
  %v516 = vcvt.s32.f32 %v260
  %v517 = vcvt.s32.f32 %v261
  %v518 = vcvt.s32.f32 %v262
  %v519 = vcvt.s32.f32 %v263
  %v520 = vcvt.s32.f32 %v264
  %v521 = vcvt.s32.f32 %v265
  %v522 = vcvt.s32.f32 %v266
  %v523 = vcvt.s32.f32 %v267
  %v524 = vcvt.s32.f32 %v268
  %v525 = vcvt.s32.f32 %v269
  %v526 = vcvt.s32.f32 %v270
  %v527 = vcvt.s32.f32 %v271
  %v528 = vcvt.s32.f32 %v272
  %v529 = vcvt.s32.f32 %v273
  %v530 = vcvt.s32.f32 %v274
  %v531 = vcvt.s32.f32 %v275
  %v532 = vcvt.s32.f32 %v276
  %v533 = vcvt.s32.f32 %v277
  %v534 = vcvt.s32.f32 %v278
  %v535 = vcvt.s32.f32 %v279
  %v536 = vcvt.s32.f32 %v280
  %v537 = vcvt.s32.f32 %v281
  %v538 = vcvt.s32.f32 %v282
  %v539 = vcvt.s32.f32 %v283
  %v540 = vcvt.s32.f32 %v284
  %v541 = vcvt.s32.f32 %v285
  %v542 = vcvt.s32.f32 %v286
  %v543 = vcvt.s32.f32 %v287
  %v544 = vcvt.s32.f32 %v288
  %v545 = vcvt.s32.f32 %v289
  %v546 = vcvt.s32.f32 %v290
  %v547 = vcvt.s32.f32 %v291
  %v548 = vcvt.s32.f32 %v292
  %v549 = vcvt.s32.f32 %v293
  %v550 = vcvt.s32.f32 %v294
  %v551 = vcvt.s32.f32 %v295
  %v552 = vcvt.s32.f32 %v296
  %v553 = vcvt.s32.f32 %v297
  %v554 = vcvt.s32.f32 %v298
  %v555 = vcvt.s32.f32 %v299
  %v556 = vcvt.s32.f32 %v300
  %v557 = vcvt.s32.f32 %v301
  %v558 = vcvt.s32.f32 %v302
  %v559 = vcvt.s32.f32 %v303
  %v560 = vcvt.s32.f32 %v304
  %v561 = vcvt.s32.f32 %v305
  %v562 = vcvt.s32.f32 %v306
  %v563 = vcvt.s32.f32 %v307
  %v564 = vcvt.s32.f32 %v308
  %v565 = vcvt.s32.f32 %v309
  %v566 = vcvt.s32.f32 %v310
  %v567 = vcvt.s32.f32 %v311
  %v568 = vcvt.s32.f32 %v312
  %v569 = vcvt.s32.f32 %v313
  %v570 = vcvt.s32.f32 %v314
  %v571 = vcvt.s32.f32 %v315
  %v572 = vcvt.s32.f32 %v316
  %v573 = vcvt.s32.f32 %v317
  %v574 = vcvt.s32.f32 %v318
  %v575 = vcvt.s32.f32 %v319
  %v576 = vcvt.s32.f32 %v320
  %v577 = vcvt.s32.f32 %v321
  %v578 = vcvt.s32.f32 %v322
  %v579 = vcvt.s32.f32 %v323
  %v580 = vcvt.s32.f32 %v324
  %v581 = vcvt.s32.f32 %v325
  %v582 = vcvt.s32.f32 %v326
  %v583 = vcvt.s32.f32 %v327
  %v584 = vcvt.s32.f32 %v328
  %v585 = vcvt.s32.f32 %v329
  %v586 = vcvt.s32.f32 %v330
  %v587 = vcvt.s32.f32 %v331
  %v588 = vcvt.s32.f32 %v332
  %v589 = vcvt.s32.f32 %v333
  %v590 = vcvt.s32.f32 %v334
  %v591 = vcvt.s32.f32 %v335
  %v592 = vcvt.s32.f32 %v336
  %v593 = vcvt.s32.f32 %v337
  %v594 = vcvt.s32.f32 %v338
  %v595 = vcvt.s32.f32 %v339
  %v596 = vcvt.s32.f32 %v340
  %v597 = vcvt.s32.f32 %v341
  %v598 = vcvt.s32.f32 %v342
  %v599 = vcvt.s32.f32 %v343
  %v600 = vcvt.s32.f32 %v344
  %v601 = vcvt.s32.f32 %v345
  %v602 = vcvt.s32.f32 %v346
  %v603 = vcvt.s32.f32 %v347
  %v604 = vcvt.s32.f32 %v348
  %v605 = vcvt.s32.f32 %v349
  %v606 = vcvt.s32.f32 %v350
  %v607 = vcvt.s32.f32 %v351
  %v608 = vcvt.s32.f32 %v352
  %v609 = vcvt.s32.f32 %v353
  %v610 = vcvt.s32.f32 %v354
  %v611 = vcvt.s32.f32 %v355
  %v612 = vcvt.s32.f32 %v356
  %v613 = vcvt.s32.f32 %v357
  %v614 = vcvt.s32.f32 %v358
  %v615 = vcvt.s32.f32 %v359
  %v616 = vcvt.s32.f32 %v360
  %v617 = vcvt.s32.f32 %v361
  %v618 = vcvt.s32.f32 %v362
  %v619 = vcvt.s32.f32 %v363
  %v620 = vcvt.s32.f32 %v364
  %v621 = vcvt.s32.f32 %v365
  %v622 = vcvt.s32.f32 %v366
  %v623 = vcvt.s32.f32 %v367
  %v624 = vcvt.s32.f32 %v368
  %v625 = vcvt.s32.f32 %v369
  %v626 = vcvt.s32.f32 %v370
  %v627 = vcvt.s32.f32 %v371
  %v628 = vcvt.s32.f32 %v372
  %v629 = vcvt.s32.f32 %v373
  %v630 = vcvt.s32.f32 %v374
  %v631 = vcvt.s32.f32 %v375
  %v632 = vcvt.s32.f32 %v376
  %v633 = vcvt.s32.f32 %v377
  %v634 = vcvt.s32.f32 %v378
  %v635 = vcvt.s32.f32 %v379
  %v636 = vcvt.s32.f32 %v380
  %v637 = vcvt.s32.f32 %v381
  %v638 = vcvt.s32.f32 %v382
  %v639 = vcvt.s32.f32 %v383
  %v640 = vcvt.s32.f32 %v384
  %v641 = vcvt.s32.f32 %v385
  %v642 = vcvt.s32.f32 %v386
  %v643 = vcvt.s32.f32 %v387
  %v644 = vcvt.s32.f32 %v388
  %v645 = vcvt.s32.f32 %v389
  %v646 = vcvt.s32.f32 %v390
  %v647 = vcvt.s32.f32 %v391
  %v648 = vcvt.s32.f32 %v392
  %v649 = vcvt.s32.f32 %v393
  %v650 = vcvt.s32.f32 %v394
  %v651 = vcvt.s32.f32 %v395
  %v652 = vcvt.s32.f32 %v396
  %v653 = vcvt.s32.f32 %v397
  %v654 = vcvt.s32.f32 %v398
  %v655 = vcvt.s32.f32 %v399
  %v656 = vcvt.s32.f32 %v400
  %v657 = vcvt.s32.f32 %v401
  %v658 = vcvt.s32.f32 %v402
  %v659 = vcvt.s32.f32 %v403
  %v660 = vcvt.s32.f32 %v404
  %v661 = vcvt.s32.f32 %v405
  %v662 = vcvt.s32.f32 %v406
  %v663 = vcvt.s32.f32 %v407
  %v664 = vcvt.s32.f32 %v408
  %v665 = vcvt.s32.f32 %v409
  %v666 = vcvt.s32.f32 %v410
  %v667 = vpack.c.bf16 %v415, %v411
  %v668 = vpack.c.bf16 %v416, %v412
  %v669 = vpack.c.bf16 %v417, %v413
  %v670 = vpack.c.bf16 %v418, %v414
  %v671 = vpack.c.bf16 %v423, %v419
  %v672 = vpack.c.bf16 %v424, %v420
  %v673 = vpack.c.bf16 %v425, %v421
  %v674 = vpack.c.bf16 %v426, %v422
  %v675 = vpack.c.bf16 %v431, %v427
  %v676 = vpack.c.bf16 %v432, %v428
  %v677 = vpack.c.bf16 %v433, %v429
  %v678 = vpack.c.bf16 %v434, %v430
  %v679 = vpack.c.bf16 %v439, %v435
  %v680 = vpack.c.bf16 %v440, %v436
  %v681 = vpack.c.bf16 %v441, %v437
  %v682 = vpack.c.bf16 %v442, %v438
  %v683 = vpack.c.bf16 %v447, %v443
  %v684 = vpack.c.bf16 %v448, %v444
  %v685 = vpack.c.bf16 %v449, %v445
  %v686 = vpack.c.bf16 %v450, %v446
  %v687 = vpack.c.bf16 %v455, %v451
  %v688 = vpack.c.bf16 %v456, %v452
  %v689 = vpack.c.bf16 %v457, %v453
  %v690 = vpack.c.bf16 %v458, %v454
  %v691 = vpack.c.bf16 %v463, %v459
  %v692 = vpack.c.bf16 %v464, %v460
  %v693 = vpack.c.bf16 %v465, %v461
  %v694 = vpack.c.bf16 %v466, %v462
  %v695 = vpack.c.bf16 %v471, %v467
  %v696 = vpack.c.bf16 %v472, %v468
  %v697 = vpack.c.bf16 %v473, %v469
  %v698 = vpack.c.bf16 %v474, %v470
  %v699 = vpack.c.bf16 %v479, %v475
  %v700 = vpack.c.bf16 %v480, %v476
  %v701 = vpack.c.bf16 %v481, %v477
  %v702 = vpack.c.bf16 %v482, %v478
  %v703 = vpack.c.bf16 %v487, %v483
  %v704 = vpack.c.bf16 %v488, %v484
  %v705 = vpack.c.bf16 %v489, %v485
  %v706 = vpack.c.bf16 %v490, %v486
  %v707 = vpack.c.bf16 %v495, %v491
  %v708 = vpack.c.bf16 %v496, %v492
  %v709 = vpack.c.bf16 %v497, %v493
  %v710 = vpack.c.bf16 %v498, %v494
  %v711 = vpack.c.bf16 %v503, %v499
  %v712 = vpack.c.bf16 %v504, %v500
  %v713 = vpack.c.bf16 %v505, %v501
  %v714 = vpack.c.bf16 %v506, %v502
  %v715 = vpack.c.bf16 %v511, %v507
  %v716 = vpack.c.bf16 %v512, %v508
  %v717 = vpack.c.bf16 %v513, %v509
  %v718 = vpack.c.bf16 %v514, %v510
  %v719 = vpack.c.bf16 %v519, %v515
  %v720 = vpack.c.bf16 %v520, %v516
  %v721 = vpack.c.bf16 %v521, %v517
  %v722 = vpack.c.bf16 %v522, %v518
  %v723 = vpack.c.bf16 %v527, %v523
  %v724 = vpack.c.bf16 %v528, %v524
  %v725 = vpack.c.bf16 %v529, %v525
  %v726 = vpack.c.bf16 %v530, %v526
  %v727 = vpack.c.bf16 %v535, %v531
  %v728 = vpack.c.bf16 %v536, %v532
  %v729 = vpack.c.bf16 %v537, %v533
  %v730 = vpack.c.bf16 %v538, %v534
  %v731 = vpack.c.bf16 %v543, %v539
  %v732 = vpack.c.bf16 %v544, %v540
  %v733 = vpack.c.bf16 %v545, %v541
  %v734 = vpack.c.bf16 %v546, %v542
  %v735 = vpack.c.bf16 %v551, %v547
  %v736 = vpack.c.bf16 %v552, %v548
  %v737 = vpack.c.bf16 %v553, %v549
  %v738 = vpack.c.bf16 %v554, %v550
  %v739 = vpack.c.bf16 %v559, %v555
  %v740 = vpack.c.bf16 %v560, %v556
  %v741 = vpack.c.bf16 %v561, %v557
  %v742 = vpack.c.bf16 %v562, %v558
  %v743 = vpack.c.bf16 %v567, %v563
  %v744 = vpack.c.bf16 %v568, %v564
  %v745 = vpack.c.bf16 %v569, %v565
  %v746 = vpack.c.bf16 %v570, %v566
  %v747 = vpack.c.bf16 %v575, %v571
  %v748 = vpack.c.bf16 %v576, %v572
  %v749 = vpack.c.bf16 %v577, %v573
  %v750 = vpack.c.bf16 %v578, %v574
  %v751 = vpack.c.bf16 %v583, %v579
  %v752 = vpack.c.bf16 %v584, %v580
  %v753 = vpack.c.bf16 %v585, %v581
  %v754 = vpack.c.bf16 %v586, %v582
  %v755 = vpack.c.bf16 %v591, %v587
  %v756 = vpack.c.bf16 %v592, %v588
  %v757 = vpack.c.bf16 %v593, %v589
  %v758 = vpack.c.bf16 %v594, %v590
  %v759 = vpack.c.bf16 %v599, %v595
  %v760 = vpack.c.bf16 %v600, %v596
  %v761 = vpack.c.bf16 %v601, %v597
  %v762 = vpack.c.bf16 %v602, %v598
  %v763 = vpack.c.bf16 %v607, %v603
  %v764 = vpack.c.bf16 %v608, %v604
  %v765 = vpack.c.bf16 %v609, %v605
  %v766 = vpack.c.bf16 %v610, %v606
  %v767 = vpack.c.bf16 %v615, %v611
  %v768 = vpack.c.bf16 %v616, %v612
  %v769 = vpack.c.bf16 %v617, %v613
  %v770 = vpack.c.bf16 %v618, %v614
  %v771 = vpack.c.bf16 %v623, %v619
  %v772 = vpack.c.bf16 %v624, %v620
  %v773 = vpack.c.bf16 %v625, %v621
  %v774 = vpack.c.bf16 %v626, %v622
  %v775 = vpack.c.bf16 %v631, %v627
  %v776 = vpack.c.bf16 %v632, %v628
  %v777 = vpack.c.bf16 %v633, %v629
  %v778 = vpack.c.bf16 %v634, %v630
  %v779 = vpack.c.bf16 %v639, %v635
  %v780 = vpack.c.bf16 %v640, %v636
  %v781 = vpack.c.bf16 %v641, %v637
  %v782 = vpack.c.bf16 %v642, %v638
  %v783 = vpack.c.bf16 %v647, %v643
  %v784 = vpack.c.bf16 %v648, %v644
  %v785 = vpack.c.bf16 %v649, %v645
  %v786 = vpack.c.bf16 %v650, %v646
  %v787 = vpack.c.bf16 %v655, %v651
  %v788 = vpack.c.bf16 %v656, %v652
  %v789 = vpack.c.bf16 %v657, %v653
  %v790 = vpack.c.bf16 %v658, %v654
  %v791 = vpack.c.bf16 %v663, %v659
  %v792 = vpack.c.bf16 %v664, %v660
  %v793 = vpack.c.bf16 %v665, %v661
  %v794 = vpack.c.bf16 %v666, %v662
  %v795 = vld [vmem:[#allocation2] sm:$0xff]
  %v796 = vld [vmem:[#allocation2 + $0x8] sm:$0xff]
  %v797 = vld [vmem:[#allocation2 + $0x10] sm:$0xff]
  %v798 = vld [vmem:[#allocation2 + $0x18] sm:$0xff]
  %v799 = vld [vmem:[#allocation2 + $0x20] sm:$0xff]
  %v800 = vld [vmem:[#allocation2 + $0x28] sm:$0xff]
  %v801 = vld [vmem:[#allocation2 + $0x30] sm:$0xff]
  %v802 = vld [vmem:[#allocation2 + $0x38] sm:$0xff]
  %v803 = vld [vmem:[#allocation2 + $0x40] sm:$0xff]
  %v804 = vld [vmem:[#allocation2 + $0x48] sm:$0xff]
  %v805 = vld [vmem:[#allocation2 + $0x50] sm:$0xff]
  %v806 = vld [vmem:[#allocation2 + $0x58] sm:$0xff]
  %v807 = vld [vmem:[#allocation2 + $0x60] sm:$0xff]
  %v808 = vld [vmem:[#allocation2 + $0x68] sm:$0xff]
  %v809 = vld [vmem:[#allocation2 + $0x70] sm:$0xff]
  %v810 = vld [vmem:[#allocation2 + $0x78] sm:$0xff]
  %v811 = vld [vmem:[#allocation2 + $0x80] sm:$0xff]
  %v812 = vld [vmem:[#allocation2 + $0x88] sm:$0xff]
  %v813 = vld [vmem:[#allocation2 + $0x90] sm:$0xff]
  %v814 = vld [vmem:[#allocation2 + $0x98] sm:$0xff]
  %v815 = vld [vmem:[#allocation2 + $0xa0] sm:$0xff]
  %v816 = vld [vmem:[#allocation2 + $0xa8] sm:$0xff]
  %v817 = vld [vmem:[#allocation2 + $0xb0] sm:$0xff]
  %v818 = vld [vmem:[#allocation2 + $0xb8] sm:$0xff]
  %v819 = vld [vmem:[#allocation2 + $0xc0] sm:$0xff]
  %v820 = vld [vmem:[#allocation2 + $0xc8] sm:$0xff]
  %v821 = vld [vmem:[#allocation2 + $0xd0] sm:$0xff]
  %v822 = vld [vmem:[#allocation2 + $0xd8] sm:$0xff]
  %v823 = vld [vmem:[#allocation2 + $0xe0] sm:$0xff]
  %v824 = vld [vmem:[#allocation2 + $0xe8] sm:$0xff]
  %v825 = vld [vmem:[#allocation2 + $0xf0] sm:$0xff]
  %v826 = vld [vmem:[#allocation2 + $0xf8] sm:$0xff]
  %v827 = vld [vmem:[#allocation2 + $0x100] sm:$0xff]
  %v828 = vld [vmem:[#allocation2 + $0x108] sm:$0xff]
  %v829 = vld [vmem:[#allocation2 + $0x110] sm:$0xff]
  %v830 = vld [vmem:[#allocation2 + $0x118] sm:$0xff]
  %v831 = vld [vmem:[#allocation2 + $0x120] sm:$0xff]
  %v832 = vld [vmem:[#allocation2 + $0x128] sm:$0xff]
  %v833 = vld [vmem:[#allocation2 + $0x130] sm:$0xff]
  %v834 = vld [vmem:[#allocation2 + $0x138] sm:$0xff]
  %v835 = vld [vmem:[#allocation2 + $0x140] sm:$0xff]
  %v836 = vld [vmem:[#allocation2 + $0x148] sm:$0xff]
  %v837 = vld [vmem:[#allocation2 + $0x150] sm:$0xff]
  %v838 = vld [vmem:[#allocation2 + $0x158] sm:$0xff]
  %v839 = vld [vmem:[#allocation2 + $0x160] sm:$0xff]
  %v840 = vld [vmem:[#allocation2 + $0x168] sm:$0xff]
  %v841 = vld [vmem:[#allocation2 + $0x170] sm:$0xff]
  %v842 = vld [vmem:[#allocation2 + $0x178] sm:$0xff]
  %v843 = vld [vmem:[#allocation2 + $0x180] sm:$0xff]
  %v844 = vld [vmem:[#allocation2 + $0x188] sm:$0xff]
  %v845 = vld [vmem:[#allocation2 + $0x190] sm:$0xff]
  %v846 = vld [vmem:[#allocation2 + $0x198] sm:$0xff]
  %v847 = vld [vmem:[#allocation2 + $0x1a0] sm:$0xff]
  %v848 = vld [vmem:[#allocation2 + $0x1a8] sm:$0xff]
  %v849 = vld [vmem:[#allocation2 + $0x1b0] sm:$0xff]
  %v850 = vld [vmem:[#allocation2 + $0x1b8] sm:$0xff]
  %v851 = vld [vmem:[#allocation2 + $0x1c0] sm:$0xff]
  %v852 = vld [vmem:[#allocation2 + $0x1c8] sm:$0xff]
  %v853 = vld [vmem:[#allocation2 + $0x1d0] sm:$0xff]
  %v854 = vld [vmem:[#allocation2 + $0x1d8] sm:$0xff]
  %v855 = vld [vmem:[#allocation2 + $0x1e0] sm:$0xff]
  %v856 = vld [vmem:[#allocation2 + $0x1e8] sm:$0xff]
  %v857 = vld [vmem:[#allocation2 + $0x1f0] sm:$0xff]
  %v858 = vld [vmem:[#allocation2 + $0x1f8] sm:$0xff]
  %v859 = vld [vmem:[%s1] sm:$0xf]
  %v860 = vld [vmem:[%s1 + $0x4] sm:$0xf]
  %v861 = vld [vmem:[%s1 + $0x8] sm:$0xf]
  %v862 = vld [vmem:[%s1 + $0xc] sm:$0xf]
  %v863 = vld [vmem:[%s1 + $0x10] sm:$0xf]
  %v864 = vld [vmem:[%s1 + $0x14] sm:$0xf]
  %v865 = vld [vmem:[%s1 + $0x18] sm:$0xf]
  %v866 = vld [vmem:[%s1 + $0x1c] sm:$0xf]
  %v867 = vld [vmem:[%s1 + $0x20] sm:$0xf]
  %v868 = vld [vmem:[%s1 + $0x24] sm:$0xf]
  %v869 = vld [vmem:[%s1 + $0x28] sm:$0xf]
  %v870 = vld [vmem:[%s1 + $0x2c] sm:$0xf]
  %v871 = vld [vmem:[%s1 + $0x30] sm:$0xf]
  %v872 = vld [vmem:[%s1 + $0x34] sm:$0xf]
  %v873 = vld [vmem:[%s1 + $0x38] sm:$0xf]
  %v874 = vld [vmem:[%s1 + $0x3c] sm:$0xf]
  %v875 = vld [vmem:[%s1 + $0x40] sm:$0xf]
  %v876 = vld [vmem:[%s1 + $0x44] sm:$0xf]
  %v877 = vld [vmem:[%s1 + $0x48] sm:$0xf]
  %v878 = vld [vmem:[%s1 + $0x4c] sm:$0xf]
  %v879 = vld [vmem:[%s1 + $0x50] sm:$0xf]
  %v880 = vld [vmem:[%s1 + $0x54] sm:$0xf]
  %v881 = vld [vmem:[%s1 + $0x58] sm:$0xf]
  %v882 = vld [vmem:[%s1 + $0x5c] sm:$0xf]
  %v883 = vld [vmem:[%s1 + $0x60] sm:$0xf]
  %v884 = vld [vmem:[%s1 + $0x64] sm:$0xf]
  %v885 = vld [vmem:[%s1 + $0x68] sm:$0xf]
  %v886 = vld [vmem:[%s1 + $0x6c] sm:$0xf]
  %v887 = vld [vmem:[%s1 + $0x70] sm:$0xf]
  %v888 = vld [vmem:[%s1 + $0x74] sm:$0xf]
  %v889 = vld [vmem:[%s1 + $0x78] sm:$0xf]
  %v890 = vld [vmem:[%s1 + $0x7c] sm:$0xf]
  %v891 = vld [vmem:[%s1 + $0x80] sm:$0xf]
  %v892 = vld [vmem:[%s1 + $0x84] sm:$0xf]
  %v893 = vld [vmem:[%s1 + $0x88] sm:$0xf]
  %v894 = vld [vmem:[%s1 + $0x8c] sm:$0xf]
  %v895 = vld [vmem:[%s1 + $0x90] sm:$0xf]
  %v896 = vld [vmem:[%s1 + $0x94] sm:$0xf]
  %v897 = vld [vmem:[%s1 + $0x98] sm:$0xf]
  %v898 = vld [vmem:[%s1 + $0x9c] sm:$0xf]
  %v899 = vld [vmem:[%s1 + $0xa0] sm:$0xf]
  %v900 = vld [vmem:[%s1 + $0xa4] sm:$0xf]
  %v901 = vld [vmem:[%s1 + $0xa8] sm:$0xf]
  %v902 = vld [vmem:[%s1 + $0xac] sm:$0xf]
  %v903 = vld [vmem:[%s1 + $0xb0] sm:$0xf]
  %v904 = vld [vmem:[%s1 + $0xb4] sm:$0xf]
  %v905 = vld [vmem:[%s1 + $0xb8] sm:$0xf]
  %v906 = vld [vmem:[%s1 + $0xbc] sm:$0xf]
  %v907 = vld [vmem:[%s1 + $0xc0] sm:$0xf]
  %v908 = vld [vmem:[%s1 + $0xc4] sm:$0xf]
  %v909 = vld [vmem:[%s1 + $0xc8] sm:$0xf]
  %v910 = vld [vmem:[%s1 + $0xcc] sm:$0xf]
  %v911 = vld [vmem:[%s1 + $0xd0] sm:$0xf]
  %v912 = vld [vmem:[%s1 + $0xd4] sm:$0xf]
  %v913 = vld [vmem:[%s1 + $0xd8] sm:$0xf]
  %v914 = vld [vmem:[%s1 + $0xdc] sm:$0xf]
  %v915 = vld [vmem:[%s1 + $0xe0] sm:$0xf]
  %v916 = vld [vmem:[%s1 + $0xe4] sm:$0xf]
  %v917 = vld [vmem:[%s1 + $0xe8] sm:$0xf]
  %v918 = vld [vmem:[%s1 + $0xec] sm:$0xf]
  %v919 = vld [vmem:[%s1 + $0xf0] sm:$0xf]
  %v920 = vld [vmem:[%s1 + $0xf4] sm:$0xf]
  %v921 = vld [vmem:[%s1 + $0xf8] sm:$0xf]
  %v922 = vld [vmem:[%s1 + $0xfc] sm:$0xf]
  %v987 = vunpack.c.l.b16 %v859
  %v988 = vunpack.c.l.b16 %v860
  %v989 = vunpack.c.l.b16 %v861
  %v990 = vunpack.c.l.b16 %v862
  %v991 = vunpack.c.l.b16 %v863
  %v992 = vunpack.c.l.b16 %v864
  %v993 = vunpack.c.l.b16 %v865
  %v994 = vunpack.c.l.b16 %v866
  %v995 = vunpack.c.l.b16 %v867
  %v996 = vunpack.c.l.b16 %v868
  %v997 = vunpack.c.l.b16 %v869
  %v998 = vunpack.c.l.b16 %v870
  %v999 = vunpack.c.l.b16 %v871
  %v1000 = vunpack.c.l.b16 %v872
  %v1001 = vunpack.c.l.b16 %v873
  %v1002 = vunpack.c.l.b16 %v874
  %v1003 = vunpack.c.l.b16 %v875
  %v1004 = vunpack.c.l.b16 %v876
  %v1005 = vunpack.c.l.b16 %v877
  %v1006 = vunpack.c.l.b16 %v878
  %v1007 = vunpack.c.l.b16 %v879
  %v1008 = vunpack.c.l.b16 %v880
  %v1009 = vunpack.c.l.b16 %v881
  %v1010 = vunpack.c.l.b16 %v882
  %v1011 = vunpack.c.l.b16 %v883
  %v1012 = vunpack.c.l.b16 %v884
  %v1013 = vunpack.c.l.b16 %v885
  %v1014 = vunpack.c.l.b16 %v886
  %v1015 = vunpack.c.l.b16 %v887
  %v1016 = vunpack.c.l.b16 %v888
  %v1017 = vunpack.c.l.b16 %v889
  %v1018 = vunpack.c.l.b16 %v890
  %v1019 = vunpack.c.l.b16 %v891
  %v1020 = vunpack.c.l.b16 %v892
  %v1021 = vunpack.c.l.b16 %v893
  %v1022 = vunpack.c.l.b16 %v894
  %v1023 = vunpack.c.l.b16 %v895
  %v1024 = vunpack.c.l.b16 %v896
  %v1025 = vunpack.c.l.b16 %v897
  %v1026 = vunpack.c.l.b16 %v898
  %v1027 = vunpack.c.l.b16 %v899
  %v1028 = vunpack.c.l.b16 %v900
  %v1029 = vunpack.c.l.b16 %v901
  %v1030 = vunpack.c.l.b16 %v902
  %v1031 = vunpack.c.l.b16 %v903
  %v1032 = vunpack.c.l.b16 %v904
  %v1033 = vunpack.c.l.b16 %v905
  %v1034 = vunpack.c.l.b16 %v906
  %v1035 = vunpack.c.l.b16 %v907
  %v1036 = vunpack.c.l.b16 %v908
  %v1037 = vunpack.c.l.b16 %v909
  %v1038 = vunpack.c.l.b16 %v910
  %v1039 = vunpack.c.l.b16 %v911
  %v1040 = vunpack.c.l.b16 %v912
  %v1041 = vunpack.c.l.b16 %v913
  %v1042 = vunpack.c.l.b16 %v914
  %v1043 = vunpack.c.l.b16 %v915
  %v1044 = vunpack.c.l.b16 %v916
  %v1045 = vunpack.c.l.b16 %v917
  %v1046 = vunpack.c.l.b16 %v918
  %v1047 = vunpack.c.l.b16 %v919
  %v1048 = vunpack.c.l.b16 %v920
  %v1049 = vunpack.c.l.b16 %v921
  %v1050 = vunpack.c.l.b16 %v922
  %v1051 = vpack.c.b16 %v988, %v987
  %v1052 = vpack.c.b16 %v990, %v989
  %v1053 = vpack.c.b16 %v992, %v991
  %v1054 = vpack.c.b16 %v994, %v993
  %v1055 = vpack.c.b16 %v996, %v995
  %v1056 = vpack.c.b16 %v998, %v997
  %v1057 = vpack.c.b16 %v1000, %v999
  %v1058 = vpack.c.b16 %v1002, %v1001
  %v1059 = vpack.c.b16 %v1004, %v1003
  %v1060 = vpack.c.b16 %v1006, %v1005
  %v1061 = vpack.c.b16 %v1008, %v1007
  %v1062 = vpack.c.b16 %v1010, %v1009
  %v1063 = vpack.c.b16 %v1012, %v1011
  %v1064 = vpack.c.b16 %v1014, %v1013
  %v1065 = vpack.c.b16 %v1016, %v1015
  %v1066 = vpack.c.b16 %v1018, %v1017
  %v1067 = vpack.c.b16 %v1020, %v1019
  %v1068 = vpack.c.b16 %v1022, %v1021
  %v1069 = vpack.c.b16 %v1024, %v1023
  %v1070 = vpack.c.b16 %v1026, %v1025
  %v1071 = vpack.c.b16 %v1028, %v1027
  %v1072 = vpack.c.b16 %v1030, %v1029
  %v1073 = vpack.c.b16 %v1032, %v1031
  %v1074 = vpack.c.b16 %v1034, %v1033
  %v1075 = vpack.c.b16 %v1036, %v1035
  %v1076 = vpack.c.b16 %v1038, %v1037
  %v1077 = vpack.c.b16 %v1040, %v1039
  %v1078 = vpack.c.b16 %v1042, %v1041
  %v1079 = vpack.c.b16 %v1044, %v1043
  %v1080 = vpack.c.b16 %v1046, %v1045
  %v1081 = vpack.c.b16 %v1048, %v1047
  %v1082 = vpack.c.b16 %v1050, %v1049
  %1115 = vmatpush.bf16.msra.mxu0 %v1058
  %1116 = vmatpush.bf16.msra.mxu0 %v1057
  %1117 = vmatpush.bf16.msra.mxu0 %v1056
  %1118 = vmatpush.bf16.msra.mxu0 %v1055
  %1119 = vmatpush.bf16.msra.mxu0 %v1054
  %1120 = vmatpush.bf16.msra.mxu0 %v1053
  %1121 = vmatpush.bf16.msra.mxu0 %v1052
  %1122 = vmatpush.bf16.msra.mxu0 %v1051
  %1123 = vmatmul.bf16.gmra.mxu0 %v667
  %v1124 = vpop.f32.mrf.mxu0
  %v1125 = vadd.f32 0.0, %v1124
  %v1126 = vpop.f32.mrf.mxu0
  %v1127 = vadd.f32 0.0, %v1126
  %1128 = vmatmul.bf16.gmra.mxu0 %v671
  %v1129 = vpop.f32.mrf.mxu0
  %v1130 = vadd.f32 0.0, %v1129
  %v1131 = vpop.f32.mrf.mxu0
  %v1132 = vadd.f32 0.0, %v1131
  %1133 = vmatmul.bf16.gmra.mxu0 %v675
  %v1134 = vpop.f32.mrf.mxu0
  %v1135 = vadd.f32 0.0, %v1134
  %v1136 = vpop.f32.mrf.mxu0
  %v1137 = vadd.f32 0.0, %v1136
  %1138 = vmatmul.bf16.gmra.mxu0 %v679
  %v1139 = vpop.f32.mrf.mxu0
  %v1140 = vadd.f32 0.0, %v1139
  %v1141 = vpop.f32.mrf.mxu0
  %v1142 = vadd.f32 0.0, %v1141
  %1143 = vmatmul.bf16.gmra.mxu0 %v683
  %v1144 = vpop.f32.mrf.mxu0
  %v1145 = vadd.f32 0.0, %v1144
  %v1146 = vpop.f32.mrf.mxu0
  %v1147 = vadd.f32 0.0, %v1146
  %1148 = vmatmul.bf16.gmra.mxu0 %v687
  %v1149 = vpop.f32.mrf.mxu0
  %v1150 = vadd.f32 0.0, %v1149
  %v1151 = vpop.f32.mrf.mxu0
  %v1152 = vadd.f32 0.0, %v1151
  %1153 = vmatmul.bf16.gmra.mxu0 %v691
  %v1154 = vpop.f32.mrf.mxu0
  %v1155 = vadd.f32 0.0, %v1154
  %v1156 = vpop.f32.mrf.mxu0
  %v1157 = vadd.f32 0.0, %v1156
  %1158 = vmatmul.bf16.gmra.mxu0 %v695
  %v1159 = vpop.f32.mrf.mxu0
  %v1160 = vadd.f32 0.0, %v1159
  %v1161 = vpop.f32.mrf.mxu0
  %v1162 = vadd.f32 0.0, %v1161
  %1163 = vmatmul.bf16.gmra.mxu0 %v699
  %v1164 = vpop.f32.mrf.mxu0
  %v1165 = vadd.f32 0.0, %v1164
  %v1166 = vpop.f32.mrf.mxu0
  %v1167 = vadd.f32 0.0, %v1166
  %1168 = vmatmul.bf16.gmra.mxu0 %v703
  %v1169 = vpop.f32.mrf.mxu0
  %v1170 = vadd.f32 0.0, %v1169
  %v1171 = vpop.f32.mrf.mxu0
  %v1172 = vadd.f32 0.0, %v1171
  %1173 = vmatmul.bf16.gmra.mxu0 %v707
  %v1174 = vpop.f32.mrf.mxu0
  %v1175 = vadd.f32 0.0, %v1174
  %v1176 = vpop.f32.mrf.mxu0
  %v1177 = vadd.f32 0.0, %v1176
  %1178 = vmatmul.bf16.gmra.mxu0 %v711
  %v1179 = vpop.f32.mrf.mxu0
  %v1180 = vadd.f32 0.0, %v1179
  %v1181 = vpop.f32.mrf.mxu0
  %v1182 = vadd.f32 0.0, %v1181
  %1183 = vmatmul.bf16.gmra.mxu0 %v715
  %v1184 = vpop.f32.mrf.mxu0
  %v1185 = vadd.f32 0.0, %v1184
  %v1186 = vpop.f32.mrf.mxu0
  %v1187 = vadd.f32 0.0, %v1186
  %1188 = vmatmul.bf16.gmra.mxu0 %v719
  %v1189 = vpop.f32.mrf.mxu0
  %v1190 = vadd.f32 0.0, %v1189
  %v1191 = vpop.f32.mrf.mxu0
  %v1192 = vadd.f32 0.0, %v1191
  %1193 = vmatmul.bf16.gmra.mxu0 %v723
  %v1194 = vpop.f32.mrf.mxu0
  %v1195 = vadd.f32 0.0, %v1194
  %v1196 = vpop.f32.mrf.mxu0
  %v1197 = vadd.f32 0.0, %v1196
  %1198 = vmatmul.bf16.gmra.mxu0 %v727
  %v1199 = vpop.f32.mrf.mxu0
  %v1200 = vadd.f32 0.0, %v1199
  %v1201 = vpop.f32.mrf.mxu0
  %v1202 = vadd.f32 0.0, %v1201
  %1203 = vmatmul.bf16.gmra.mxu0 %v731
  %v1204 = vpop.f32.mrf.mxu0
  %v1205 = vadd.f32 0.0, %v1204
  %v1206 = vpop.f32.mrf.mxu0
  %v1207 = vadd.f32 0.0, %v1206
  %1208 = vmatmul.bf16.gmra.mxu0 %v735
  %v1209 = vpop.f32.mrf.mxu0
  %v1210 = vadd.f32 0.0, %v1209
  %v1211 = vpop.f32.mrf.mxu0
  %v1212 = vadd.f32 0.0, %v1211
  %1213 = vmatmul.bf16.gmra.mxu0 %v739
  %v1214 = vpop.f32.mrf.mxu0
  %v1215 = vadd.f32 0.0, %v1214
  %v1216 = vpop.f32.mrf.mxu0
  %v1217 = vadd.f32 0.0, %v1216
  %1218 = vmatmul.bf16.gmra.mxu0 %v743
  %v1219 = vpop.f32.mrf.mxu0
  %v1220 = vadd.f32 0.0, %v1219
  %v1221 = vpop.f32.mrf.mxu0
  %v1222 = vadd.f32 0.0, %v1221
  %1223 = vmatmul.bf16.gmra.mxu0 %v747
  %v1224 = vpop.f32.mrf.mxu0
  %v1225 = vadd.f32 0.0, %v1224
  %v1226 = vpop.f32.mrf.mxu0
  %v1227 = vadd.f32 0.0, %v1226
  %1228 = vmatmul.bf16.gmra.mxu0 %v751
  %v1229 = vpop.f32.mrf.mxu0
  %v1230 = vadd.f32 0.0, %v1229
  %v1231 = vpop.f32.mrf.mxu0
  %v1232 = vadd.f32 0.0, %v1231
  %1233 = vmatmul.bf16.gmra.mxu0 %v755
  %v1234 = vpop.f32.mrf.mxu0
  %v1235 = vadd.f32 0.0, %v1234
  %v1236 = vpop.f32.mrf.mxu0
  %v1237 = vadd.f32 0.0, %v1236
  %1238 = vmatmul.bf16.gmra.mxu0 %v759
  %v1239 = vpop.f32.mrf.mxu0
  %v1240 = vadd.f32 0.0, %v1239
  %v1241 = vpop.f32.mrf.mxu0
  %v1242 = vadd.f32 0.0, %v1241
  %1243 = vmatmul.bf16.gmra.mxu0 %v763
  %v1244 = vpop.f32.mrf.mxu0
  %v1245 = vadd.f32 0.0, %v1244
  %v1246 = vpop.f32.mrf.mxu0
  %v1247 = vadd.f32 0.0, %v1246
  %1248 = vmatmul.bf16.gmra.mxu0 %v767
  %v1249 = vpop.f32.mrf.mxu0
  %v1250 = vadd.f32 0.0, %v1249
  %v1251 = vpop.f32.mrf.mxu0
  %v1252 = vadd.f32 0.0, %v1251
  %1253 = vmatmul.bf16.gmra.mxu0 %v771
  %v1254 = vpop.f32.mrf.mxu0
  %v1255 = vadd.f32 0.0, %v1254
  %v1256 = vpop.f32.mrf.mxu0
  %v1257 = vadd.f32 0.0, %v1256
  %1258 = vmatmul.bf16.gmra.mxu0 %v775
  %v1259 = vpop.f32.mrf.mxu0
  %v1260 = vadd.f32 0.0, %v1259
  %v1261 = vpop.f32.mrf.mxu0
  %v1262 = vadd.f32 0.0, %v1261
  %1263 = vmatmul.bf16.gmra.mxu0 %v779
  %v1264 = vpop.f32.mrf.mxu0
  %v1265 = vadd.f32 0.0, %v1264
  %v1266 = vpop.f32.mrf.mxu0
  %v1267 = vadd.f32 0.0, %v1266
  %1268 = vmatmul.bf16.gmra.mxu0 %v783
  %v1269 = vpop.f32.mrf.mxu0
  %v1270 = vadd.f32 0.0, %v1269
  %v1271 = vpop.f32.mrf.mxu0
  %v1272 = vadd.f32 0.0, %v1271
  %1273 = vmatmul.bf16.gmra.mxu0 %v787
  %v1274 = vpop.f32.mrf.mxu0
  %v1275 = vadd.f32 0.0, %v1274
  %v1276 = vpop.f32.mrf.mxu0
  %v1277 = vadd.f32 0.0, %v1276
  %1278 = vmatmul.bf16.gmra.mxu0 %v791
  %v1279 = vpop.f32.mrf.mxu0
  %v1280 = vadd.f32 0.0, %v1279
  %v1281 = vpop.f32.mrf.mxu0
  %v1282 = vadd.f32 0.0, %v1281
  %1283 = vdwg.mxu0
  %1284 = vmatpush.bf16.msra.mxu0 %v1066
  %1285 = vmatpush.bf16.msra.mxu0 %v1065
  %1286 = vmatpush.bf16.msra.mxu0 %v1064
  %1287 = vmatpush.bf16.msra.mxu0 %v1063
  %1288 = vmatpush.bf16.msra.mxu0 %v1062
  %1289 = vmatpush.bf16.msra.mxu0 %v1061
  %1290 = vmatpush.bf16.msra.mxu0 %v1060
  %1291 = vmatpush.bf16.msra.mxu0 %v1059
  %1292 = vmatmul.bf16.gmra.mxu0 %v668
  %v1293 = vpop.f32.mrf.mxu0
  %v1294 = vadd.f32 %v1125, %v1293
  %v1295 = vpop.f32.mrf.mxu0
  %v1296 = vadd.f32 %v1127, %v1295
  %1297 = vmatmul.bf16.gmra.mxu0 %v672
  %v1298 = vpop.f32.mrf.mxu0
  %v1299 = vadd.f32 %v1130, %v1298
  %v1300 = vpop.f32.mrf.mxu0
  %v1301 = vadd.f32 %v1132, %v1300
  %1302 = vmatmul.bf16.gmra.mxu0 %v676
  %v1303 = vpop.f32.mrf.mxu0
  %v1304 = vadd.f32 %v1135, %v1303
  %v1305 = vpop.f32.mrf.mxu0
  %v1306 = vadd.f32 %v1137, %v1305
  %1307 = vmatmul.bf16.gmra.mxu0 %v680
  %v1308 = vpop.f32.mrf.mxu0
  %v1309 = vadd.f32 %v1140, %v1308
  %v1310 = vpop.f32.mrf.mxu0
  %v1311 = vadd.f32 %v1142, %v1310
  %1312 = vmatmul.bf16.gmra.mxu0 %v684
  %v1313 = vpop.f32.mrf.mxu0
  %v1314 = vadd.f32 %v1145, %v1313
  %v1315 = vpop.f32.mrf.mxu0
  %v1316 = vadd.f32 %v1147, %v1315
  %1317 = vmatmul.bf16.gmra.mxu0 %v688
  %v1318 = vpop.f32.mrf.mxu0
  %v1319 = vadd.f32 %v1150, %v1318
  %v1320 = vpop.f32.mrf.mxu0
  %v1321 = vadd.f32 %v1152, %v1320
  %1322 = vmatmul.bf16.gmra.mxu0 %v692
  %v1323 = vpop.f32.mrf.mxu0
  %v1324 = vadd.f32 %v1155, %v1323
  %v1325 = vpop.f32.mrf.mxu0
  %v1326 = vadd.f32 %v1157, %v1325
  %1327 = vmatmul.bf16.gmra.mxu0 %v696
  %v1328 = vpop.f32.mrf.mxu0
  %v1329 = vadd.f32 %v1160, %v1328
  %v1330 = vpop.f32.mrf.mxu0
  %v1331 = vadd.f32 %v1162, %v1330
  %1332 = vmatmul.bf16.gmra.mxu0 %v700
  %v1333 = vpop.f32.mrf.mxu0
  %v1334 = vadd.f32 %v1165, %v1333
  %v1335 = vpop.f32.mrf.mxu0
  %v1336 = vadd.f32 %v1167, %v1335
  %1337 = vmatmul.bf16.gmra.mxu0 %v704
  %v1338 = vpop.f32.mrf.mxu0
  %v1339 = vadd.f32 %v1170, %v1338
  %v1340 = vpop.f32.mrf.mxu0
  %v1341 = vadd.f32 %v1172, %v1340
  %1342 = vmatmul.bf16.gmra.mxu0 %v708
  %v1343 = vpop.f32.mrf.mxu0
  %v1344 = vadd.f32 %v1175, %v1343
  %v1345 = vpop.f32.mrf.mxu0
  %v1346 = vadd.f32 %v1177, %v1345
  %1347 = vmatmul.bf16.gmra.mxu0 %v712
  %v1348 = vpop.f32.mrf.mxu0
  %v1349 = vadd.f32 %v1180, %v1348
  %v1350 = vpop.f32.mrf.mxu0
  %v1351 = vadd.f32 %v1182, %v1350
  %1352 = vmatmul.bf16.gmra.mxu0 %v716
  %v1353 = vpop.f32.mrf.mxu0
  %v1354 = vadd.f32 %v1185, %v1353
  %v1355 = vpop.f32.mrf.mxu0
  %v1356 = vadd.f32 %v1187, %v1355
  %1357 = vmatmul.bf16.gmra.mxu0 %v720
  %v1358 = vpop.f32.mrf.mxu0
  %v1359 = vadd.f32 %v1190, %v1358
  %v1360 = vpop.f32.mrf.mxu0
  %v1361 = vadd.f32 %v1192, %v1360
  %1362 = vmatmul.bf16.gmra.mxu0 %v724
  %v1363 = vpop.f32.mrf.mxu0
  %v1364 = vadd.f32 %v1195, %v1363
  %v1365 = vpop.f32.mrf.mxu0
  %v1366 = vadd.f32 %v1197, %v1365
  %1367 = vmatmul.bf16.gmra.mxu0 %v728
  %v1368 = vpop.f32.mrf.mxu0
  %v1369 = vadd.f32 %v1200, %v1368
  %v1370 = vpop.f32.mrf.mxu0
  %v1371 = vadd.f32 %v1202, %v1370
  %1372 = vmatmul.bf16.gmra.mxu0 %v732
  %v1373 = vpop.f32.mrf.mxu0
  %v1374 = vadd.f32 %v1205, %v1373
  %v1375 = vpop.f32.mrf.mxu0
  %v1376 = vadd.f32 %v1207, %v1375
  %1377 = vmatmul.bf16.gmra.mxu0 %v736
  %v1378 = vpop.f32.mrf.mxu0
  %v1379 = vadd.f32 %v1210, %v1378
  %v1380 = vpop.f32.mrf.mxu0
  %v1381 = vadd.f32 %v1212, %v1380
  %1382 = vmatmul.bf16.gmra.mxu0 %v740
  %v1383 = vpop.f32.mrf.mxu0
  %v1384 = vadd.f32 %v1215, %v1383
  %v1385 = vpop.f32.mrf.mxu0
  %v1386 = vadd.f32 %v1217, %v1385
  %1387 = vmatmul.bf16.gmra.mxu0 %v744
  %v1388 = vpop.f32.mrf.mxu0
  %v1389 = vadd.f32 %v1220, %v1388
  %v1390 = vpop.f32.mrf.mxu0
  %v1391 = vadd.f32 %v1222, %v1390
  %1392 = vmatmul.bf16.gmra.mxu0 %v748
  %v1393 = vpop.f32.mrf.mxu0
  %v1394 = vadd.f32 %v1225, %v1393
  %v1395 = vpop.f32.mrf.mxu0
  %v1396 = vadd.f32 %v1227, %v1395
  %1397 = vmatmul.bf16.gmra.mxu0 %v752
  %v1398 = vpop.f32.mrf.mxu0
  %v1399 = vadd.f32 %v1230, %v1398
  %v1400 = vpop.f32.mrf.mxu0
  %v1401 = vadd.f32 %v1232, %v1400
  %1402 = vmatmul.bf16.gmra.mxu0 %v756
  %v1403 = vpop.f32.mrf.mxu0
  %v1404 = vadd.f32 %v1235, %v1403
  %v1405 = vpop.f32.mrf.mxu0
  %v1406 = vadd.f32 %v1237, %v1405
  %1407 = vmatmul.bf16.gmra.mxu0 %v760
  %v1408 = vpop.f32.mrf.mxu0
  %v1409 = vadd.f32 %v1240, %v1408
  %v1410 = vpop.f32.mrf.mxu0
  %v1411 = vadd.f32 %v1242, %v1410
  %1412 = vmatmul.bf16.gmra.mxu0 %v764
  %v1413 = vpop.f32.mrf.mxu0
  %v1414 = vadd.f32 %v1245, %v1413
  %v1415 = vpop.f32.mrf.mxu0
  %v1416 = vadd.f32 %v1247, %v1415
  %1417 = vmatmul.bf16.gmra.mxu0 %v768
  %v1418 = vpop.f32.mrf.mxu0
  %v1419 = vadd.f32 %v1250, %v1418
  %v1420 = vpop.f32.mrf.mxu0
  %v1421 = vadd.f32 %v1252, %v1420
  %1422 = vmatmul.bf16.gmra.mxu0 %v772
  %v1423 = vpop.f32.mrf.mxu0
  %v1424 = vadd.f32 %v1255, %v1423
  %v1425 = vpop.f32.mrf.mxu0
  %v1426 = vadd.f32 %v1257, %v1425
  %1427 = vmatmul.bf16.gmra.mxu0 %v776
  %v1428 = vpop.f32.mrf.mxu0
  %v1429 = vadd.f32 %v1260, %v1428
  %v1430 = vpop.f32.mrf.mxu0
  %v1431 = vadd.f32 %v1262, %v1430
  %1432 = vmatmul.bf16.gmra.mxu0 %v780
  %v1433 = vpop.f32.mrf.mxu0
  %v1434 = vadd.f32 %v1265, %v1433
  %v1435 = vpop.f32.mrf.mxu0
  %v1436 = vadd.f32 %v1267, %v1435
  %1437 = vmatmul.bf16.gmra.mxu0 %v784
  %v1438 = vpop.f32.mrf.mxu0
  %v1439 = vadd.f32 %v1270, %v1438
  %v1440 = vpop.f32.mrf.mxu0
  %v1441 = vadd.f32 %v1272, %v1440
  %1442 = vmatmul.bf16.gmra.mxu0 %v788
  %v1443 = vpop.f32.mrf.mxu0
  %v1444 = vadd.f32 %v1275, %v1443
  %v1445 = vpop.f32.mrf.mxu0
  %v1446 = vadd.f32 %v1277, %v1445
  %1447 = vmatmul.bf16.gmra.mxu0 %v792
  %v1448 = vpop.f32.mrf.mxu0
  %v1449 = vadd.f32 %v1280, %v1448
  %v1450 = vpop.f32.mrf.mxu0
  %v1451 = vadd.f32 %v1282, %v1450
  %1452 = vdwg.mxu0
  %1453 = vmatpush.bf16.msra.mxu0 %v1074
  %1454 = vmatpush.bf16.msra.mxu0 %v1073
  %1455 = vmatpush.bf16.msra.mxu0 %v1072
  %1456 = vmatpush.bf16.msra.mxu0 %v1071
  %1457 = vmatpush.bf16.msra.mxu0 %v1070
  %1458 = vmatpush.bf16.msra.mxu0 %v1069
  %1459 = vmatpush.bf16.msra.mxu0 %v1068
  %1460 = vmatpush.bf16.msra.mxu0 %v1067
  %1461 = vmatmul.bf16.gmra.mxu0 %v669
  %v1462 = vpop.f32.mrf.mxu0
  %v1463 = vadd.f32 %v1294, %v1462
  %v1464 = vpop.f32.mrf.mxu0
  %v1465 = vadd.f32 %v1296, %v1464
  %1466 = vmatmul.bf16.gmra.mxu0 %v673
  %v1467 = vpop.f32.mrf.mxu0
  %v1468 = vadd.f32 %v1299, %v1467
  %v1469 = vpop.f32.mrf.mxu0
  %v1470 = vadd.f32 %v1301, %v1469
  %1471 = vmatmul.bf16.gmra.mxu0 %v677
  %v1472 = vpop.f32.mrf.mxu0
  %v1473 = vadd.f32 %v1304, %v1472
  %v1474 = vpop.f32.mrf.mxu0
  %v1475 = vadd.f32 %v1306, %v1474
  %1476 = vmatmul.bf16.gmra.mxu0 %v681
  %v1477 = vpop.f32.mrf.mxu0
  %v1478 = vadd.f32 %v1309, %v1477
  %v1479 = vpop.f32.mrf.mxu0
  %v1480 = vadd.f32 %v1311, %v1479
  %1481 = vmatmul.bf16.gmra.mxu0 %v685
  %v1482 = vpop.f32.mrf.mxu0
  %v1483 = vadd.f32 %v1314, %v1482
  %v1484 = vpop.f32.mrf.mxu0
  %v1485 = vadd.f32 %v1316, %v1484
  %1486 = vmatmul.bf16.gmra.mxu0 %v689
  %v1487 = vpop.f32.mrf.mxu0
  %v1488 = vadd.f32 %v1319, %v1487
  %v1489 = vpop.f32.mrf.mxu0
  %v1490 = vadd.f32 %v1321, %v1489
  %1491 = vmatmul.bf16.gmra.mxu0 %v693
  %v1492 = vpop.f32.mrf.mxu0
  %v1493 = vadd.f32 %v1324, %v1492
  %v1494 = vpop.f32.mrf.mxu0
  %v1495 = vadd.f32 %v1326, %v1494
  %1496 = vmatmul.bf16.gmra.mxu0 %v697
  %v1497 = vpop.f32.mrf.mxu0
  %v1498 = vadd.f32 %v1329, %v1497
  %v1499 = vpop.f32.mrf.mxu0
  %v1500 = vadd.f32 %v1331, %v1499
  %1501 = vmatmul.bf16.gmra.mxu0 %v701
  %v1502 = vpop.f32.mrf.mxu0
  %v1503 = vadd.f32 %v1334, %v1502
  %v1504 = vpop.f32.mrf.mxu0
  %v1505 = vadd.f32 %v1336, %v1504
  %1506 = vmatmul.bf16.gmra.mxu0 %v705
  %v1507 = vpop.f32.mrf.mxu0
  %v1508 = vadd.f32 %v1339, %v1507
  %v1509 = vpop.f32.mrf.mxu0
  %v1510 = vadd.f32 %v1341, %v1509
  %1511 = vmatmul.bf16.gmra.mxu0 %v709
  %v1512 = vpop.f32.mrf.mxu0
  %v1513 = vadd.f32 %v1344, %v1512
  %v1514 = vpop.f32.mrf.mxu0
  %v1515 = vadd.f32 %v1346, %v1514
  %1516 = vmatmul.bf16.gmra.mxu0 %v713
  %v1517 = vpop.f32.mrf.mxu0
  %v1518 = vadd.f32 %v1349, %v1517
  %v1519 = vpop.f32.mrf.mxu0
  %v1520 = vadd.f32 %v1351, %v1519
  %1521 = vmatmul.bf16.gmra.mxu0 %v717
  %v1522 = vpop.f32.mrf.mxu0
  %v1523 = vadd.f32 %v1354, %v1522
  %v1524 = vpop.f32.mrf.mxu0
  %v1525 = vadd.f32 %v1356, %v1524
  %1526 = vmatmul.bf16.gmra.mxu0 %v721
  %v1527 = vpop.f32.mrf.mxu0
  %v1528 = vadd.f32 %v1359, %v1527
  %v1529 = vpop.f32.mrf.mxu0
  %v1530 = vadd.f32 %v1361, %v1529
  %1531 = vmatmul.bf16.gmra.mxu0 %v725
  %v1532 = vpop.f32.mrf.mxu0
  %v1533 = vadd.f32 %v1364, %v1532
  %v1534 = vpop.f32.mrf.mxu0
  %v1535 = vadd.f32 %v1366, %v1534
  %1536 = vmatmul.bf16.gmra.mxu0 %v729
  %v1537 = vpop.f32.mrf.mxu0
  %v1538 = vadd.f32 %v1369, %v1537
  %v1539 = vpop.f32.mrf.mxu0
  %v1540 = vadd.f32 %v1371, %v1539
  %1541 = vmatmul.bf16.gmra.mxu0 %v733
  %v1542 = vpop.f32.mrf.mxu0
  %v1543 = vadd.f32 %v1374, %v1542
  %v1544 = vpop.f32.mrf.mxu0
  %v1545 = vadd.f32 %v1376, %v1544
  %1546 = vmatmul.bf16.gmra.mxu0 %v737
  %v1547 = vpop.f32.mrf.mxu0
  %v1548 = vadd.f32 %v1379, %v1547
  %v1549 = vpop.f32.mrf.mxu0
  %v1550 = vadd.f32 %v1381, %v1549
  %1551 = vmatmul.bf16.gmra.mxu0 %v741
  %v1552 = vpop.f32.mrf.mxu0
  %v1553 = vadd.f32 %v1384, %v1552
  %v1554 = vpop.f32.mrf.mxu0
  %v1555 = vadd.f32 %v1386, %v1554
  %1556 = vmatmul.bf16.gmra.mxu0 %v745
  %v1557 = vpop.f32.mrf.mxu0
  %v1558 = vadd.f32 %v1389, %v1557
  %v1559 = vpop.f32.mrf.mxu0
  %v1560 = vadd.f32 %v1391, %v1559
  %1561 = vmatmul.bf16.gmra.mxu0 %v749
  %v1562 = vpop.f32.mrf.mxu0
  %v1563 = vadd.f32 %v1394, %v1562
  %v1564 = vpop.f32.mrf.mxu0
  %v1565 = vadd.f32 %v1396, %v1564
  %1566 = vmatmul.bf16.gmra.mxu0 %v753
  %v1567 = vpop.f32.mrf.mxu0
  %v1568 = vadd.f32 %v1399, %v1567
  %v1569 = vpop.f32.mrf.mxu0
  %v1570 = vadd.f32 %v1401, %v1569
  %1571 = vmatmul.bf16.gmra.mxu0 %v757
  %v1572 = vpop.f32.mrf.mxu0
  %v1573 = vadd.f32 %v1404, %v1572
  %v1574 = vpop.f32.mrf.mxu0
  %v1575 = vadd.f32 %v1406, %v1574
  %1576 = vmatmul.bf16.gmra.mxu0 %v761
  %v1577 = vpop.f32.mrf.mxu0
  %v1578 = vadd.f32 %v1409, %v1577
  %v1579 = vpop.f32.mrf.mxu0
  %v1580 = vadd.f32 %v1411, %v1579
  %1581 = vmatmul.bf16.gmra.mxu0 %v765
  %v1582 = vpop.f32.mrf.mxu0
  %v1583 = vadd.f32 %v1414, %v1582
  %v1584 = vpop.f32.mrf.mxu0
  %v1585 = vadd.f32 %v1416, %v1584
  %1586 = vmatmul.bf16.gmra.mxu0 %v769
  %v1587 = vpop.f32.mrf.mxu0
  %v1588 = vadd.f32 %v1419, %v1587
  %v1589 = vpop.f32.mrf.mxu0
  %v1590 = vadd.f32 %v1421, %v1589
  %1591 = vmatmul.bf16.gmra.mxu0 %v773
  %v1592 = vpop.f32.mrf.mxu0
  %v1593 = vadd.f32 %v1424, %v1592
  %v1594 = vpop.f32.mrf.mxu0
  %v1595 = vadd.f32 %v1426, %v1594
  %1596 = vmatmul.bf16.gmra.mxu0 %v777
  %v1597 = vpop.f32.mrf.mxu0
  %v1598 = vadd.f32 %v1429, %v1597
  %v1599 = vpop.f32.mrf.mxu0
  %v1600 = vadd.f32 %v1431, %v1599
  %1601 = vmatmul.bf16.gmra.mxu0 %v781
  %v1602 = vpop.f32.mrf.mxu0
  %v1603 = vadd.f32 %v1434, %v1602
  %v1604 = vpop.f32.mrf.mxu0
  %v1605 = vadd.f32 %v1436, %v1604
  %1606 = vmatmul.bf16.gmra.mxu0 %v785
  %v1607 = vpop.f32.mrf.mxu0
  %v1608 = vadd.f32 %v1439, %v1607
  %v1609 = vpop.f32.mrf.mxu0
  %v1610 = vadd.f32 %v1441, %v1609
  %1611 = vmatmul.bf16.gmra.mxu0 %v789
  %v1612 = vpop.f32.mrf.mxu0
  %v1613 = vadd.f32 %v1444, %v1612
  %v1614 = vpop.f32.mrf.mxu0
  %v1615 = vadd.f32 %v1446, %v1614
  %1616 = vmatmul.bf16.gmra.mxu0 %v793
  %v1617 = vpop.f32.mrf.mxu0
  %v1618 = vadd.f32 %v1449, %v1617
  %v1619 = vpop.f32.mrf.mxu0
  %v1620 = vadd.f32 %v1451, %v1619
  %1621 = vdwg.mxu0
  %1622 = vmatpush.bf16.msra.mxu0 %v1082
  %1623 = vmatpush.bf16.msra.mxu0 %v1081
  %1624 = vmatpush.bf16.msra.mxu0 %v1080
  %1625 = vmatpush.bf16.msra.mxu0 %v1079
  %1626 = vmatpush.bf16.msra.mxu0 %v1078
  %1627 = vmatpush.bf16.msra.mxu0 %v1077
  %1628 = vmatpush.bf16.msra.mxu0 %v1076
  %1629 = vmatpush.bf16.msra.mxu0 %v1075
  %1630 = vmatmul.bf16.gmra.mxu0 %v670
  %v1631 = vpop.f32.mrf.mxu0
  %v1632 = vadd.f32 %v1463, %v1631
  %v1633 = vpop.f32.mrf.mxu0
  %v1634 = vadd.f32 %v1465, %v1633
  %1635 = vmatmul.bf16.gmra.mxu0 %v674
  %v1636 = vpop.f32.mrf.mxu0
  %v1637 = vadd.f32 %v1468, %v1636
  %v1638 = vpop.f32.mrf.mxu0
  %v1639 = vadd.f32 %v1470, %v1638
  %1640 = vmatmul.bf16.gmra.mxu0 %v678
  %v1641 = vpop.f32.mrf.mxu0
  %v1642 = vadd.f32 %v1473, %v1641
  %v1643 = vpop.f32.mrf.mxu0
  %v1644 = vadd.f32 %v1475, %v1643
  %1645 = vmatmul.bf16.gmra.mxu0 %v682
  %v1646 = vpop.f32.mrf.mxu0
  %v1647 = vadd.f32 %v1478, %v1646
  %v1648 = vpop.f32.mrf.mxu0
  %v1649 = vadd.f32 %v1480, %v1648
  %1650 = vmatmul.bf16.gmra.mxu0 %v686
  %v1651 = vpop.f32.mrf.mxu0
  %v1652 = vadd.f32 %v1483, %v1651
  %v1653 = vpop.f32.mrf.mxu0
  %v1654 = vadd.f32 %v1485, %v1653
  %1655 = vmatmul.bf16.gmra.mxu0 %v690
  %v1656 = vpop.f32.mrf.mxu0
  %v1657 = vadd.f32 %v1488, %v1656
  %v1658 = vpop.f32.mrf.mxu0
  %v1659 = vadd.f32 %v1490, %v1658
  %1660 = vmatmul.bf16.gmra.mxu0 %v694
  %v1661 = vpop.f32.mrf.mxu0
  %v1662 = vadd.f32 %v1493, %v1661
  %v1663 = vpop.f32.mrf.mxu0
  %v1664 = vadd.f32 %v1495, %v1663
  %1665 = vmatmul.bf16.gmra.mxu0 %v698
  %v1666 = vpop.f32.mrf.mxu0
  %v1667 = vadd.f32 %v1498, %v1666
  %v1668 = vpop.f32.mrf.mxu0
  %v1669 = vadd.f32 %v1500, %v1668
  %1670 = vmatmul.bf16.gmra.mxu0 %v702
  %v1671 = vpop.f32.mrf.mxu0
  %v1672 = vadd.f32 %v1503, %v1671
  %v1673 = vpop.f32.mrf.mxu0
  %v1674 = vadd.f32 %v1505, %v1673
  %1675 = vmatmul.bf16.gmra.mxu0 %v706
  %v1676 = vpop.f32.mrf.mxu0
  %v1677 = vadd.f32 %v1508, %v1676
  %v1678 = vpop.f32.mrf.mxu0
  %v1679 = vadd.f32 %v1510, %v1678
  %1680 = vmatmul.bf16.gmra.mxu0 %v710
  %v1681 = vpop.f32.mrf.mxu0
  %v1682 = vadd.f32 %v1513, %v1681
  %v1683 = vpop.f32.mrf.mxu0
  %v1684 = vadd.f32 %v1515, %v1683
  %1685 = vmatmul.bf16.gmra.mxu0 %v714
  %v1686 = vpop.f32.mrf.mxu0
  %v1687 = vadd.f32 %v1518, %v1686
  %v1688 = vpop.f32.mrf.mxu0
  %v1689 = vadd.f32 %v1520, %v1688
  %1690 = vmatmul.bf16.gmra.mxu0 %v718
  %v1691 = vpop.f32.mrf.mxu0
  %v1692 = vadd.f32 %v1523, %v1691
  %v1693 = vpop.f32.mrf.mxu0
  %v1694 = vadd.f32 %v1525, %v1693
  %1695 = vmatmul.bf16.gmra.mxu0 %v722
  %v1696 = vpop.f32.mrf.mxu0
  %v1697 = vadd.f32 %v1528, %v1696
  %v1698 = vpop.f32.mrf.mxu0
  %v1699 = vadd.f32 %v1530, %v1698
  %1700 = vmatmul.bf16.gmra.mxu0 %v726
  %v1701 = vpop.f32.mrf.mxu0
  %v1702 = vadd.f32 %v1533, %v1701
  %v1703 = vpop.f32.mrf.mxu0
  %v1704 = vadd.f32 %v1535, %v1703
  %1705 = vmatmul.bf16.gmra.mxu0 %v730
  %v1706 = vpop.f32.mrf.mxu0
  %v1707 = vadd.f32 %v1538, %v1706
  %v1708 = vpop.f32.mrf.mxu0
  %v1709 = vadd.f32 %v1540, %v1708
  %1710 = vmatmul.bf16.gmra.mxu0 %v734
  %v1711 = vpop.f32.mrf.mxu0
  %v1712 = vadd.f32 %v1543, %v1711
  %v1713 = vpop.f32.mrf.mxu0
  %v1714 = vadd.f32 %v1545, %v1713
  %1715 = vmatmul.bf16.gmra.mxu0 %v738
  %v1716 = vpop.f32.mrf.mxu0
  %v1717 = vadd.f32 %v1548, %v1716
  %v1718 = vpop.f32.mrf.mxu0
  %v1719 = vadd.f32 %v1550, %v1718
  %1720 = vmatmul.bf16.gmra.mxu0 %v742
  %v1721 = vpop.f32.mrf.mxu0
  %v1722 = vadd.f32 %v1553, %v1721
  %v1723 = vpop.f32.mrf.mxu0
  %v1724 = vadd.f32 %v1555, %v1723
  %1725 = vmatmul.bf16.gmra.mxu0 %v746
  %v1726 = vpop.f32.mrf.mxu0
  %v1727 = vadd.f32 %v1558, %v1726
  %v1728 = vpop.f32.mrf.mxu0
  %v1729 = vadd.f32 %v1560, %v1728
  %1730 = vmatmul.bf16.gmra.mxu0 %v750
  %v1731 = vpop.f32.mrf.mxu0
  %v1732 = vadd.f32 %v1563, %v1731
  %v1733 = vpop.f32.mrf.mxu0
  %v1734 = vadd.f32 %v1565, %v1733
  %1735 = vmatmul.bf16.gmra.mxu0 %v754
  %v1736 = vpop.f32.mrf.mxu0
  %v1737 = vadd.f32 %v1568, %v1736
  %v1738 = vpop.f32.mrf.mxu0
  %v1739 = vadd.f32 %v1570, %v1738
  %1740 = vmatmul.bf16.gmra.mxu0 %v758
  %v1741 = vpop.f32.mrf.mxu0
  %v1742 = vadd.f32 %v1573, %v1741
  %v1743 = vpop.f32.mrf.mxu0
  %v1744 = vadd.f32 %v1575, %v1743
  %1745 = vmatmul.bf16.gmra.mxu0 %v762
  %v1746 = vpop.f32.mrf.mxu0
  %v1747 = vadd.f32 %v1578, %v1746
  %v1748 = vpop.f32.mrf.mxu0
  %v1749 = vadd.f32 %v1580, %v1748
  %1750 = vmatmul.bf16.gmra.mxu0 %v766
  %v1751 = vpop.f32.mrf.mxu0
  %v1752 = vadd.f32 %v1583, %v1751
  %v1753 = vpop.f32.mrf.mxu0
  %v1754 = vadd.f32 %v1585, %v1753
  %1755 = vmatmul.bf16.gmra.mxu0 %v770
  %v1756 = vpop.f32.mrf.mxu0
  %v1757 = vadd.f32 %v1588, %v1756
  %v1758 = vpop.f32.mrf.mxu0
  %v1759 = vadd.f32 %v1590, %v1758
  %1760 = vmatmul.bf16.gmra.mxu0 %v774
  %v1761 = vpop.f32.mrf.mxu0
  %v1762 = vadd.f32 %v1593, %v1761
  %v1763 = vpop.f32.mrf.mxu0
  %v1764 = vadd.f32 %v1595, %v1763
  %1765 = vmatmul.bf16.gmra.mxu0 %v778
  %v1766 = vpop.f32.mrf.mxu0
  %v1767 = vadd.f32 %v1598, %v1766
  %v1768 = vpop.f32.mrf.mxu0
  %v1769 = vadd.f32 %v1600, %v1768
  %1770 = vmatmul.bf16.gmra.mxu0 %v782
  %v1771 = vpop.f32.mrf.mxu0
  %v1772 = vadd.f32 %v1603, %v1771
  %v1773 = vpop.f32.mrf.mxu0
  %v1774 = vadd.f32 %v1605, %v1773
  %1775 = vmatmul.bf16.gmra.mxu0 %v786
  %v1776 = vpop.f32.mrf.mxu0
  %v1777 = vadd.f32 %v1608, %v1776
  %v1778 = vpop.f32.mrf.mxu0
  %v1779 = vadd.f32 %v1610, %v1778
  %1780 = vmatmul.bf16.gmra.mxu0 %v790
  %v1781 = vpop.f32.mrf.mxu0
  %v1782 = vadd.f32 %v1613, %v1781
  %v1783 = vpop.f32.mrf.mxu0
  %v1784 = vadd.f32 %v1615, %v1783
  %1785 = vmatmul.bf16.gmra.mxu0 %v794
  %v1786 = vpop.f32.mrf.mxu0
  %v1787 = vadd.f32 %v1618, %v1786
  %v1788 = vpop.f32.mrf.mxu0
  %v1789 = vadd.f32 %v1620, %v1788
  %1790 = vdwg.mxu0
  %v1791 = vadd.f32 %v795, %v1632
  %v1792 = vadd.f32 %v796, %v1634
  %v1793 = vadd.f32 %v797, %v1637
  %v1794 = vadd.f32 %v798, %v1639
  %v1795 = vadd.f32 %v799, %v1642
  %v1796 = vadd.f32 %v800, %v1644
  %v1797 = vadd.f32 %v801, %v1647
  %v1798 = vadd.f32 %v802, %v1649
  %v1799 = vadd.f32 %v803, %v1652
  %v1800 = vadd.f32 %v804, %v1654
  %v1801 = vadd.f32 %v805, %v1657
  %v1802 = vadd.f32 %v806, %v1659
  %v1803 = vadd.f32 %v807, %v1662
  %v1804 = vadd.f32 %v808, %v1664
  %v1805 = vadd.f32 %v809, %v1667
  %v1806 = vadd.f32 %v810, %v1669
  %v1807 = vadd.f32 %v811, %v1672
  %v1808 = vadd.f32 %v812, %v1674
  %v1809 = vadd.f32 %v813, %v1677
  %v1810 = vadd.f32 %v814, %v1679
  %v1811 = vadd.f32 %v815, %v1682
  %v1812 = vadd.f32 %v816, %v1684
  %v1813 = vadd.f32 %v817, %v1687
  %v1814 = vadd.f32 %v818, %v1689
  %v1815 = vadd.f32 %v819, %v1692
  %v1816 = vadd.f32 %v820, %v1694
  %v1817 = vadd.f32 %v821, %v1697
  %v1818 = vadd.f32 %v822, %v1699
  %v1819 = vadd.f32 %v823, %v1702
  %v1820 = vadd.f32 %v824, %v1704
  %v1821 = vadd.f32 %v825, %v1707
  %v1822 = vadd.f32 %v826, %v1709
  %v1823 = vadd.f32 %v827, %v1712
  %v1824 = vadd.f32 %v828, %v1714
  %v1825 = vadd.f32 %v829, %v1717
  %v1826 = vadd.f32 %v830, %v1719
  %v1827 = vadd.f32 %v831, %v1722
  %v1828 = vadd.f32 %v832, %v1724
  %v1829 = vadd.f32 %v833, %v1727
  %v1830 = vadd.f32 %v834, %v1729
  %v1831 = vadd.f32 %v835, %v1732
  %v1832 = vadd.f32 %v836, %v1734
  %v1833 = vadd.f32 %v837, %v1737
  %v1834 = vadd.f32 %v838, %v1739
  %v1835 = vadd.f32 %v839, %v1742
  %v1836 = vadd.f32 %v840, %v1744
  %v1837 = vadd.f32 %v841, %v1747
  %v1838 = vadd.f32 %v842, %v1749
  %v1839 = vadd.f32 %v843, %v1752
  %v1840 = vadd.f32 %v844, %v1754
  %v1841 = vadd.f32 %v845, %v1757
  %v1842 = vadd.f32 %v846, %v1759
  %v1843 = vadd.f32 %v847, %v1762
  %v1844 = vadd.f32 %v848, %v1764
  %v1845 = vadd.f32 %v849, %v1767
  %v1846 = vadd.f32 %v850, %v1769
  %v1847 = vadd.f32 %v851, %v1772
  %v1848 = vadd.f32 %v852, %v1774
  %v1849 = vadd.f32 %v853, %v1777
  %v1850 = vadd.f32 %v854, %v1779
  %v1851 = vadd.f32 %v855, %v1782
  %v1852 = vadd.f32 %v856, %v1784
  %v1853 = vadd.f32 %v857, %v1787
  %v1854 = vadd.f32 %v858, %v1789
  %1855 = vst [vmem:[#allocation2] sm:$0xff] %v1791
  %1856 = vst [vmem:[#allocation2 + $0x8] sm:$0xff] %v1792
  %1857 = vst [vmem:[#allocation2 + $0x10] sm:$0xff] %v1793
  %1858 = vst [vmem:[#allocation2 + $0x18] sm:$0xff] %v1794
  %1859 = vst [vmem:[#allocation2 + $0x20] sm:$0xff] %v1795
  %1860 = vst [vmem:[#allocation2 + $0x28] sm:$0xff] %v1796
  %1861 = vst [vmem:[#allocation2 + $0x30] sm:$0xff] %v1797
  %1862 = vst [vmem:[#allocation2 + $0x38] sm:$0xff] %v1798
  %1863 = vst [vmem:[#allocation2 + $0x40] sm:$0xff] %v1799
  %1864 = vst [vmem:[#allocation2 + $0x48] sm:$0xff] %v1800
  %1865 = vst [vmem:[#allocation2 + $0x50] sm:$0xff] %v1801
  %1866 = vst [vmem:[#allocation2 + $0x58] sm:$0xff] %v1802
  %1867 = vst [vmem:[#allocation2 + $0x60] sm:$0xff] %v1803
  %1868 = vst [vmem:[#allocation2 + $0x68] sm:$0xff] %v1804
  %1869 = vst [vmem:[#allocation2 + $0x70] sm:$0xff] %v1805
  %1870 = vst [vmem:[#allocation2 + $0x78] sm:$0xff] %v1806
  %1871 = vst [vmem:[#allocation2 + $0x80] sm:$0xff] %v1807
  %1872 = vst [vmem:[#allocation2 + $0x88] sm:$0xff] %v1808
  %1873 = vst [vmem:[#allocation2 + $0x90] sm:$0xff] %v1809
  %1874 = vst [vmem:[#allocation2 + $0x98] sm:$0xff] %v1810
  %1875 = vst [vmem:[#allocation2 + $0xa0] sm:$0xff] %v1811
  %1876 = vst [vmem:[#allocation2 + $0xa8] sm:$0xff] %v1812
  %1877 = vst [vmem:[#allocation2 + $0xb0] sm:$0xff] %v1813
  %1878 = vst [vmem:[#allocation2 + $0xb8] sm:$0xff] %v1814
  %1879 = vst [vmem:[#allocation2 + $0xc0] sm:$0xff] %v1815
  %1880 = vst [vmem:[#allocation2 + $0xc8] sm:$0xff] %v1816
  %1881 = vst [vmem:[#allocation2 + $0xd0] sm:$0xff] %v1817
  %1882 = vst [vmem:[#allocation2 + $0xd8] sm:$0xff] %v1818
  %1883 = vst [vmem:[#allocation2 + $0xe0] sm:$0xff] %v1819
  %1884 = vst [vmem:[#allocation2 + $0xe8] sm:$0xff] %v1820
  %1885 = vst [vmem:[#allocation2 + $0xf0] sm:$0xff] %v1821
  %1886 = vst [vmem:[#allocation2 + $0xf8] sm:$0xff] %v1822
  %1887 = vst [vmem:[#allocation2 + $0x100] sm:$0xff] %v1823
  %1888 = vst [vmem:[#allocation2 + $0x108] sm:$0xff] %v1824
  %1889 = vst [vmem:[#allocation2 + $0x110] sm:$0xff] %v1825
  %1890 = vst [vmem:[#allocation2 + $0x118] sm:$0xff] %v1826
  %1891 = vst [vmem:[#allocation2 + $0x120] sm:$0xff] %v1827
  %1892 = vst [vmem:[#allocation2 + $0x128] sm:$0xff] %v1828
  %1893 = vst [vmem:[#allocation2 + $0x130] sm:$0xff] %v1829
  %1894 = vst [vmem:[#allocation2 + $0x138] sm:$0xff] %v1830
  %1895 = vst [vmem:[#allocation2 + $0x140] sm:$0xff] %v1831
  %1896 = vst [vmem:[#allocation2 + $0x148] sm:$0xff] %v1832
  %1897 = vst [vmem:[#allocation2 + $0x150] sm:$0xff] %v1833
  %1898 = vst [vmem:[#allocation2 + $0x158] sm:$0xff] %v1834
  %1899 = vst [vmem:[#allocation2 + $0x160] sm:$0xff] %v1835
  %1900 = vst [vmem:[#allocation2 + $0x168] sm:$0xff] %v1836
  %1901 = vst [vmem:[#allocation2 + $0x170] sm:$0xff] %v1837
  %1902 = vst [vmem:[#allocation2 + $0x178] sm:$0xff] %v1838
  %1903 = vst [vmem:[#allocation2 + $0x180] sm:$0xff] %v1839
  %1904 = vst [vmem:[#allocation2 + $0x188] sm:$0xff] %v1840
  %1905 = vst [vmem:[#allocation2 + $0x190] sm:$0xff] %v1841
  %1906 = vst [vmem:[#allocation2 + $0x198] sm:$0xff] %v1842
  %1907 = vst [vmem:[#allocation2 + $0x1a0] sm:$0xff] %v1843
  %1908 = vst [vmem:[#allocation2 + $0x1a8] sm:$0xff] %v1844
  %1909 = vst [vmem:[#allocation2 + $0x1b0] sm:$0xff] %v1845
  %1910 = vst [vmem:[#allocation2 + $0x1b8] sm:$0xff] %v1846
  %1911 = vst [vmem:[#allocation2 + $0x1c0] sm:$0xff] %v1847
  %1912 = vst [vmem:[#allocation2 + $0x1c8] sm:$0xff] %v1848
  %1913 = vst [vmem:[#allocation2 + $0x1d0] sm:$0xff] %v1849
  %1914 = vst [vmem:[#allocation2 + $0x1d8] sm:$0xff] %v1850
  %1915 = vst [vmem:[#allocation2 + $0x1e0] sm:$0xff] %v1851
  %1916 = vst [vmem:[#allocation2 + $0x1e8] sm:$0xff] %v1852
  %1917 = vst [vmem:[#allocation2 + $0x1f0] sm:$0xff] %v1853
  %1918 = vst [vmem:[#allocation2 + $0x1f8] sm:$0xff] %v1854
  // Predicated region
  $region30: #{graphsage_forward.3} parent=0 // pred_check
    %p1919 = pneg %p23
  $region31: #{graphsage_forward.3} parent=0 // pred_check_branch
    %1921 = sbr.rel (%p1919) target = $region33
  $region32: #{graphsage_forward.3} parent=0 // pred_region
    %v1922 = vld [vmem:[#allocation2] sm:$0xff]
    %v1923 = vld [vmem:[#allocation2 + $0x8] sm:$0xff]
    %v1924 = vld [vmem:[#allocation2 + $0x10] sm:$0xff]
    %v1925 = vld [vmem:[#allocation2 + $0x18] sm:$0xff]
    %v1926 = vld [vmem:[#allocation2 + $0x20] sm:$0xff]
    %v1927 = vld [vmem:[#allocation2 + $0x28] sm:$0xff]
    %v1928 = vld [vmem:[#allocation2 + $0x30] sm:$0xff]
    %v1929 = vld [vmem:[#allocation2 + $0x38] sm:$0xff]
    %v1930 = vld [vmem:[#allocation2 + $0x40] sm:$0xff]
    %v1931 = vld [vmem:[#allocation2 + $0x48] sm:$0xff]
    %v1932 = vld [vmem:[#allocation2 + $0x50] sm:$0xff]
    %v1933 = vld [vmem:[#allocation2 + $0x58] sm:$0xff]
    %v1934 = vld [vmem:[#allocation2 + $0x60] sm:$0xff]
    %v1935 = vld [vmem:[#allocation2 + $0x68] sm:$0xff]
    %v1936 = vld [vmem:[#allocation2 + $0x70] sm:$0xff]
    %v1937 = vld [vmem:[#allocation2 + $0x78] sm:$0xff]
    %v1938 = vld [vmem:[#allocation2 + $0x80] sm:$0xff]
    %v1939 = vld [vmem:[#allocation2 + $0x88] sm:$0xff]
    %v1940 = vld [vmem:[#allocation2 + $0x90] sm:$0xff]
    %v1941 = vld [vmem:[#allocation2 + $0x98] sm:$0xff]
    %v1942 = vld [vmem:[#allocation2 + $0xa0] sm:$0xff]
    %v1943 = vld [vmem:[#allocation2 + $0xa8] sm:$0xff]
    %v1944 = vld [vmem:[#allocation2 + $0xb0] sm:$0xff]
    %v1945 = vld [vmem:[#allocation2 + $0xb8] sm:$0xff]
    %v1946 = vld [vmem:[#allocation2 + $0xc0] sm:$0xff]
    %v1947 = vld [vmem:[#allocation2 + $0xc8] sm:$0xff]
    %v1948 = vld [vmem:[#allocation2 + $0xd0] sm:$0xff]
    %v1949 = vld [vmem:[#allocation2 + $0xd8] sm:$0xff]
    %v1950 = vld [vmem:[#allocation2 + $0xe0] sm:$0xff]
    %v1951 = vld [vmem:[#allocation2 + $0xe8] sm:$0xff]
    %v1952 = vld [vmem:[#allocation2 + $0xf0] sm:$0xff]
    %v1953 = vld [vmem:[#allocation2 + $0xf8] sm:$0xff]
    %v1954 = vld [vmem:[#allocation2 + $0x100] sm:$0xff]
    %v1955 = vld [vmem:[#allocation2 + $0x108] sm:$0xff]
    %v1956 = vld [vmem:[#allocation2 + $0x110] sm:$0xff]
    %v1957 = vld [vmem:[#allocation2 + $0x118] sm:$0xff]
    %v1958 = vld [vmem:[#allocation2 + $0x120] sm:$0xff]
    %v1959 = vld [vmem:[#allocation2 + $0x128] sm:$0xff]
    %v1960 = vld [vmem:[#allocation2 + $0x130] sm:$0xff]
    %v1961 = vld [vmem:[#allocation2 + $0x138] sm:$0xff]
    %v1962 = vld [vmem:[#allocation2 + $0x140] sm:$0xff]
    %v1963 = vld [vmem:[#allocation2 + $0x148] sm:$0xff]
    %v1964 = vld [vmem:[#allocation2 + $0x150] sm:$0xff]
    %v1965 = vld [vmem:[#allocation2 + $0x158] sm:$0xff]
    %v1966 = vld [vmem:[#allocation2 + $0x160] sm:$0xff]
    %v1967 = vld [vmem:[#allocation2 + $0x168] sm:$0xff]
    %v1968 = vld [vmem:[#allocation2 + $0x170] sm:$0xff]
    %v1969 = vld [vmem:[#allocation2 + $0x178] sm:$0xff]
    %v1970 = vld [vmem:[#allocation2 + $0x180] sm:$0xff]
    %v1971 = vld [vmem:[#allocation2 + $0x188] sm:$0xff]
    %v1972 = vld [vmem:[#allocation2 + $0x190] sm:$0xff]
    %v1973 = vld [vmem:[#allocation2 + $0x198] sm:$0xff]
    %v1974 = vld [vmem:[#allocation2 + $0x1a0] sm:$0xff]
    %v1975 = vld [vmem:[#allocation2 + $0x1a8] sm:$0xff]
    %v1976 = vld [vmem:[#allocation2 + $0x1b0] sm:$0xff]
    %v1977 = vld [vmem:[#allocation2 + $0x1b8] sm:$0xff]
    %v1978 = vld [vmem:[#allocation2 + $0x1c0] sm:$0xff]
    %v1979 = vld [vmem:[#allocation2 + $0x1c8] sm:$0xff]
    %v1980 = vld [vmem:[#allocation2 + $0x1d0] sm:$0xff]
    %v1981 = vld [vmem:[#allocation2 + $0x1d8] sm:$0xff]
    %v1982 = vld [vmem:[#allocation2 + $0x1e0] sm:$0xff]
    %v1983 = vld [vmem:[#allocation2 + $0x1e8] sm:$0xff]
    %v1984 = vld [vmem:[#allocation2 + $0x1f0] sm:$0xff]
    %v1985 = vld [vmem:[#allocation2 + $0x1f8] sm:$0xff]
    %v1986 = vld [vmem:[%s3] sm:$0xff]
    %v1987 = vld [vmem:[%s3 + $0x8] sm:$0xff]
    %v1988 = vld [vmem:[%s3 + $0x10] sm:$0xff]
    %v1989 = vld [vmem:[%s3 + $0x18] sm:$0xff]
    %v1990 = vld [vmem:[%s3 + $0x20] sm:$0xff]
    %v1991 = vld [vmem:[%s3 + $0x28] sm:$0xff]
    %v1992 = vld [vmem:[%s3 + $0x30] sm:$0xff]
    %v1993 = vld [vmem:[%s3 + $0x38] sm:$0xff]
    %v1994 = vld [vmem:[%s3 + $0x40] sm:$0xff]
    %v1995 = vld [vmem:[%s3 + $0x48] sm:$0xff]
    %v1996 = vld [vmem:[%s3 + $0x50] sm:$0xff]
    %v1997 = vld [vmem:[%s3 + $0x58] sm:$0xff]
    %v1998 = vld [vmem:[%s3 + $0x60] sm:$0xff]
    %v1999 = vld [vmem:[%s3 + $0x68] sm:$0xff]
    %v2000 = vld [vmem:[%s3 + $0x70] sm:$0xff]
    %v2001 = vld [vmem:[%s3 + $0x78] sm:$0xff]
    %v2002 = vld [vmem:[%s3 + $0x80] sm:$0xff]
    %v2003 = vld [vmem:[%s3 + $0x88] sm:$0xff]
    %v2004 = vld [vmem:[%s3 + $0x90] sm:$0xff]
    %v2005 = vld [vmem:[%s3 + $0x98] sm:$0xff]
    %v2006 = vld [vmem:[%s3 + $0xa0] sm:$0xff]
    %v2007 = vld [vmem:[%s3 + $0xa8] sm:$0xff]
    %v2008 = vld [vmem:[%s3 + $0xb0] sm:$0xff]
    %v2009 = vld [vmem:[%s3 + $0xb8] sm:$0xff]
    %v2010 = vld [vmem:[%s3 + $0xc0] sm:$0xff]
    %v2011 = vld [vmem:[%s3 + $0xc8] sm:$0xff]
    %v2012 = vld [vmem:[%s3 + $0xd0] sm:$0xff]
    %v2013 = vld [vmem:[%s3 + $0xd8] sm:$0xff]
    %v2014 = vld [vmem:[%s3 + $0xe0] sm:$0xff]
    %v2015 = vld [vmem:[%s3 + $0xe8] sm:$0xff]
    %v2016 = vld [vmem:[%s3 + $0xf0] sm:$0xff]
    %v2017 = vld [vmem:[%s3 + $0xf8] sm:$0xff]
    %v2018 = vld [vmem:[%s3 + $0x100] sm:$0xff]
    %v2019 = vld [vmem:[%s3 + $0x108] sm:$0xff]
    %v2020 = vld [vmem:[%s3 + $0x110] sm:$0xff]
    %v2021 = vld [vmem:[%s3 + $0x118] sm:$0xff]
    %v2022 = vld [vmem:[%s3 + $0x120] sm:$0xff]
    %v2023 = vld [vmem:[%s3 + $0x128] sm:$0xff]
    %v2024 = vld [vmem:[%s3 + $0x130] sm:$0xff]
    %v2025 = vld [vmem:[%s3 + $0x138] sm:$0xff]
    %v2026 = vld [vmem:[%s3 + $0x140] sm:$0xff]
    %v2027 = vld [vmem:[%s3 + $0x148] sm:$0xff]
    %v2028 = vld [vmem:[%s3 + $0x150] sm:$0xff]
    %v2029 = vld [vmem:[%s3 + $0x158] sm:$0xff]
    %v2030 = vld [vmem:[%s3 + $0x160] sm:$0xff]
    %v2031 = vld [vmem:[%s3 + $0x168] sm:$0xff]
    %v2032 = vld [vmem:[%s3 + $0x170] sm:$0xff]
    %v2033 = vld [vmem:[%s3 + $0x178] sm:$0xff]
    %v2034 = vld [vmem:[%s3 + $0x180] sm:$0xff]
    %v2035 = vld [vmem:[%s3 + $0x188] sm:$0xff]
    %v2036 = vld [vmem:[%s3 + $0x190] sm:$0xff]
    %v2037 = vld [vmem:[%s3 + $0x198] sm:$0xff]
    %v2038 = vld [vmem:[%s3 + $0x1a0] sm:$0xff]
    %v2039 = vld [vmem:[%s3 + $0x1a8] sm:$0xff]
    %v2040 = vld [vmem:[%s3 + $0x1b0] sm:$0xff]
    %v2041 = vld [vmem:[%s3 + $0x1b8] sm:$0xff]
    %v2042 = vld [vmem:[%s3 + $0x1c0] sm:$0xff]
    %v2043 = vld [vmem:[%s3 + $0x1c8] sm:$0xff]
    %v2044 = vld [vmem:[%s3 + $0x1d0] sm:$0xff]
    %v2045 = vld [vmem:[%s3 + $0x1d8] sm:$0xff]
    %v2046 = vld [vmem:[%s3 + $0x1e0] sm:$0xff]
    %v2047 = vld [vmem:[%s3 + $0x1e8] sm:$0xff]
    %v2048 = vld [vmem:[%s3 + $0x1f0] sm:$0xff]
    %v2049 = vld [vmem:[%s3 + $0x1f8] sm:$0xff]
    %2051 = vset.pattern.permute.xlu0 0
    %2052 = vperm.xlu0 %2051, %v1986
    %v2053 = vpop.permute.xlu0 %2052
    %2056 = vset.pattern.permute.xlu0 0
    %2057 = vperm.xlu0 %2056, %v1987
    %v2058 = vpop.permute.xlu0 %2057
    %2061 = vset.pattern.permute.xlu0 0
    %2062 = vperm.xlu0 %2061, %v1988
    %v2063 = vpop.permute.xlu0 %2062
    %2066 = vset.pattern.permute.xlu0 0
    %2067 = vperm.xlu0 %2066, %v1989
    %v2068 = vpop.permute.xlu0 %2067
    %2071 = vset.pattern.permute.xlu0 0
    %2072 = vperm.xlu0 %2071, %v1990
    %v2073 = vpop.permute.xlu0 %2072
    %2076 = vset.pattern.permute.xlu0 0
    %2077 = vperm.xlu0 %2076, %v1991
    %v2078 = vpop.permute.xlu0 %2077
    %2081 = vset.pattern.permute.xlu0 0
    %2082 = vperm.xlu0 %2081, %v1992
    %v2083 = vpop.permute.xlu0 %2082
    %2086 = vset.pattern.permute.xlu0 0
    %2087 = vperm.xlu0 %2086, %v1993
    %v2088 = vpop.permute.xlu0 %2087
    %2091 = vset.pattern.permute.xlu0 0
    %2092 = vperm.xlu0 %2091, %v1994
    %v2093 = vpop.permute.xlu0 %2092
    %2096 = vset.pattern.permute.xlu0 0
    %2097 = vperm.xlu0 %2096, %v1995
    %v2098 = vpop.permute.xlu0 %2097
    %2101 = vset.pattern.permute.xlu0 0
    %2102 = vperm.xlu0 %2101, %v1996
    %v2103 = vpop.permute.xlu0 %2102
    %2106 = vset.pattern.permute.xlu0 0
    %2107 = vperm.xlu0 %2106, %v1997
    %v2108 = vpop.permute.xlu0 %2107
    %2111 = vset.pattern.permute.xlu0 0
    %2112 = vperm.xlu0 %2111, %v1998
    %v2113 = vpop.permute.xlu0 %2112
    %2116 = vset.pattern.permute.xlu0 0
    %2117 = vperm.xlu0 %2116, %v1999
    %v2118 = vpop.permute.xlu0 %2117
    %2121 = vset.pattern.permute.xlu0 0
    %2122 = vperm.xlu0 %2121, %v2000
    %v2123 = vpop.permute.xlu0 %2122
    %2126 = vset.pattern.permute.xlu0 0
    %2127 = vperm.xlu0 %2126, %v2001
    %v2128 = vpop.permute.xlu0 %2127
    %2131 = vset.pattern.permute.xlu0 0
    %2132 = vperm.xlu0 %2131, %v2002
    %v2133 = vpop.permute.xlu0 %2132
    %2136 = vset.pattern.permute.xlu0 0
    %2137 = vperm.xlu0 %2136, %v2003
    %v2138 = vpop.permute.xlu0 %2137
    %2141 = vset.pattern.permute.xlu0 0
    %2142 = vperm.xlu0 %2141, %v2004
    %v2143 = vpop.permute.xlu0 %2142
    %2146 = vset.pattern.permute.xlu0 0
    %2147 = vperm.xlu0 %2146, %v2005
    %v2148 = vpop.permute.xlu0 %2147
    %2151 = vset.pattern.permute.xlu0 0
    %2152 = vperm.xlu0 %2151, %v2006
    %v2153 = vpop.permute.xlu0 %2152
    %2156 = vset.pattern.permute.xlu0 0
    %2157 = vperm.xlu0 %2156, %v2007
    %v2158 = vpop.permute.xlu0 %2157
    %2161 = vset.pattern.permute.xlu0 0
    %2162 = vperm.xlu0 %2161, %v2008
    %v2163 = vpop.permute.xlu0 %2162
    %2166 = vset.pattern.permute.xlu0 0
    %2167 = vperm.xlu0 %2166, %v2009
    %v2168 = vpop.permute.xlu0 %2167
    %2171 = vset.pattern.permute.xlu0 0
    %2172 = vperm.xlu0 %2171, %v2010
    %v2173 = vpop.permute.xlu0 %2172
    %2176 = vset.pattern.permute.xlu0 0
    %2177 = vperm.xlu0 %2176, %v2011
    %v2178 = vpop.permute.xlu0 %2177
    %2181 = vset.pattern.permute.xlu0 0
    %2182 = vperm.xlu0 %2181, %v2012
    %v2183 = vpop.permute.xlu0 %2182
    %2186 = vset.pattern.permute.xlu0 0
    %2187 = vperm.xlu0 %2186, %v2013
    %v2188 = vpop.permute.xlu0 %2187
    %2191 = vset.pattern.permute.xlu0 0
    %2192 = vperm.xlu0 %2191, %v2014
    %v2193 = vpop.permute.xlu0 %2192
    %2196 = vset.pattern.permute.xlu0 0
    %2197 = vperm.xlu0 %2196, %v2015
    %v2198 = vpop.permute.xlu0 %2197
    %2201 = vset.pattern.permute.xlu0 0
    %2202 = vperm.xlu0 %2201, %v2016
    %v2203 = vpop.permute.xlu0 %2202
    %2206 = vset.pattern.permute.xlu0 0
    %2207 = vperm.xlu0 %2206, %v2017
    %v2208 = vpop.permute.xlu0 %2207
    %2211 = vset.pattern.permute.xlu0 0
    %2212 = vperm.xlu0 %2211, %v2018
    %v2213 = vpop.permute.xlu0 %2212
    %2216 = vset.pattern.permute.xlu0 0
    %2217 = vperm.xlu0 %2216, %v2019
    %v2218 = vpop.permute.xlu0 %2217
    %2221 = vset.pattern.permute.xlu0 0
    %2222 = vperm.xlu0 %2221, %v2020
    %v2223 = vpop.permute.xlu0 %2222
    %2226 = vset.pattern.permute.xlu0 0
    %2227 = vperm.xlu0 %2226, %v2021
    %v2228 = vpop.permute.xlu0 %2227
    %2231 = vset.pattern.permute.xlu0 0
    %2232 = vperm.xlu0 %2231, %v2022
    %v2233 = vpop.permute.xlu0 %2232
    %2236 = vset.pattern.permute.xlu0 0
    %2237 = vperm.xlu0 %2236, %v2023
    %v2238 = vpop.permute.xlu0 %2237
    %2241 = vset.pattern.permute.xlu0 0
    %2242 = vperm.xlu0 %2241, %v2024
    %v2243 = vpop.permute.xlu0 %2242
    %2246 = vset.pattern.permute.xlu0 0
    %2247 = vperm.xlu0 %2246, %v2025
    %v2248 = vpop.permute.xlu0 %2247
    %2251 = vset.pattern.permute.xlu0 0
    %2252 = vperm.xlu0 %2251, %v2026
    %v2253 = vpop.permute.xlu0 %2252
    %2256 = vset.pattern.permute.xlu0 0
    %2257 = vperm.xlu0 %2256, %v2027
    %v2258 = vpop.permute.xlu0 %2257
    %2261 = vset.pattern.permute.xlu0 0
    %2262 = vperm.xlu0 %2261, %v2028
    %v2263 = vpop.permute.xlu0 %2262
    %2266 = vset.pattern.permute.xlu0 0
    %2267 = vperm.xlu0 %2266, %v2029
    %v2268 = vpop.permute.xlu0 %2267
    %2271 = vset.pattern.permute.xlu0 0
    %2272 = vperm.xlu0 %2271, %v2030
    %v2273 = vpop.permute.xlu0 %2272
    %2276 = vset.pattern.permute.xlu0 0
    %2277 = vperm.xlu0 %2276, %v2031
    %v2278 = vpop.permute.xlu0 %2277
    %2281 = vset.pattern.permute.xlu0 0
    %2282 = vperm.xlu0 %2281, %v2032
    %v2283 = vpop.permute.xlu0 %2282
    %2286 = vset.pattern.permute.xlu0 0
    %2287 = vperm.xlu0 %2286, %v2033
    %v2288 = vpop.permute.xlu0 %2287
    %2291 = vset.pattern.permute.xlu0 0
    %2292 = vperm.xlu0 %2291, %v2034
    %v2293 = vpop.permute.xlu0 %2292
    %2296 = vset.pattern.permute.xlu0 0
    %2297 = vperm.xlu0 %2296, %v2035
    %v2298 = vpop.permute.xlu0 %2297
    %2301 = vset.pattern.permute.xlu0 0
    %2302 = vperm.xlu0 %2301, %v2036
    %v2303 = vpop.permute.xlu0 %2302
    %2306 = vset.pattern.permute.xlu0 0
    %2307 = vperm.xlu0 %2306, %v2037
    %v2308 = vpop.permute.xlu0 %2307
    %2311 = vset.pattern.permute.xlu0 0
    %2312 = vperm.xlu0 %2311, %v2038
    %v2313 = vpop.permute.xlu0 %2312
    %2316 = vset.pattern.permute.xlu0 0
    %2317 = vperm.xlu0 %2316, %v2039
    %v2318 = vpop.permute.xlu0 %2317
    %2321 = vset.pattern.permute.xlu0 0
    %2322 = vperm.xlu0 %2321, %v2040
    %v2323 = vpop.permute.xlu0 %2322
    %2326 = vset.pattern.permute.xlu0 0
    %2327 = vperm.xlu0 %2326, %v2041
    %v2328 = vpop.permute.xlu0 %2327
    %2331 = vset.pattern.permute.xlu0 0
    %2332 = vperm.xlu0 %2331, %v2042
    %v2333 = vpop.permute.xlu0 %2332
    %2336 = vset.pattern.permute.xlu0 0
    %2337 = vperm.xlu0 %2336, %v2043
    %v2338 = vpop.permute.xlu0 %2337
    %2341 = vset.pattern.permute.xlu0 0
    %2342 = vperm.xlu0 %2341, %v2044
    %v2343 = vpop.permute.xlu0 %2342
    %2346 = vset.pattern.permute.xlu0 0
    %2347 = vperm.xlu0 %2346, %v2045
    %v2348 = vpop.permute.xlu0 %2347
    %2351 = vset.pattern.permute.xlu0 0
    %2352 = vperm.xlu0 %2351, %v2046
    %v2353 = vpop.permute.xlu0 %2352
    %2356 = vset.pattern.permute.xlu0 0
    %2357 = vperm.xlu0 %2356, %v2047
    %v2358 = vpop.permute.xlu0 %2357
    %2361 = vset.pattern.permute.xlu0 0
    %2362 = vperm.xlu0 %2361, %v2048
    %v2363 = vpop.permute.xlu0 %2362
    %2366 = vset.pattern.permute.xlu0 0
    %2367 = vperm.xlu0 %2366, %v2049
    %v2368 = vpop.permute.xlu0 %2367
    %v2370 = vmul.f32 %v1922, %v2053
    %v2371 = vmul.f32 %v1923, %v2058
    %v2372 = vmul.f32 %v1924, %v2063
    %v2373 = vmul.f32 %v1925, %v2068
    %v2374 = vmul.f32 %v1926, %v2073
    %v2375 = vmul.f32 %v1927, %v2078
    %v2376 = vmul.f32 %v1928, %v2083
    %v2377 = vmul.f32 %v1929, %v2088
    %v2378 = vmul.f32 %v1930, %v2093
    %v2379 = vmul.f32 %v1931, %v2098
    %v2380 = vmul.f32 %v1932, %v2103
    %v2381 = vmul.f32 %v1933, %v2108
    %v2382 = vmul.f32 %v1934, %v2113
    %v2383 = vmul.f32 %v1935, %v2118
    %v2384 = vmul.f32 %v1936, %v2123
    %v2385 = vmul.f32 %v1937, %v2128
    %v2386 = vmul.f32 %v1938, %v2133
    %v2387 = vmul.f32 %v1939, %v2138
    %v2388 = vmul.f32 %v1940, %v2143
    %v2389 = vmul.f32 %v1941, %v2148
    %v2390 = vmul.f32 %v1942, %v2153
    %v2391 = vmul.f32 %v1943, %v2158
    %v2392 = vmul.f32 %v1944, %v2163
    %v2393 = vmul.f32 %v1945, %v2168
    %v2394 = vmul.f32 %v1946, %v2173
    %v2395 = vmul.f32 %v1947, %v2178
    %v2396 = vmul.f32 %v1948, %v2183
    %v2397 = vmul.f32 %v1949, %v2188
    %v2398 = vmul.f32 %v1950, %v2193
    %v2399 = vmul.f32 %v1951, %v2198
    %v2400 = vmul.f32 %v1952, %v2203
    %v2401 = vmul.f32 %v1953, %v2208
    %v2402 = vmul.f32 %v1954, %v2213
    %v2403 = vmul.f32 %v1955, %v2218
    %v2404 = vmul.f32 %v1956, %v2223
    %v2405 = vmul.f32 %v1957, %v2228
    %v2406 = vmul.f32 %v1958, %v2233
    %v2407 = vmul.f32 %v1959, %v2238
    %v2408 = vmul.f32 %v1960, %v2243
    %v2409 = vmul.f32 %v1961, %v2248
    %v2410 = vmul.f32 %v1962, %v2253
    %v2411 = vmul.f32 %v1963, %v2258
    %v2412 = vmul.f32 %v1964, %v2263
    %v2413 = vmul.f32 %v1965, %v2268
    %v2414 = vmul.f32 %v1966, %v2273
    %v2415 = vmul.f32 %v1967, %v2278
    %v2416 = vmul.f32 %v1968, %v2283
    %v2417 = vmul.f32 %v1969, %v2288
    %v2418 = vmul.f32 %v1970, %v2293
    %v2419 = vmul.f32 %v1971, %v2298
    %v2420 = vmul.f32 %v1972, %v2303
    %v2421 = vmul.f32 %v1973, %v2308
    %v2422 = vmul.f32 %v1974, %v2313
    %v2423 = vmul.f32 %v1975, %v2318
    %v2424 = vmul.f32 %v1976, %v2323
    %v2425 = vmul.f32 %v1977, %v2328
    %v2426 = vmul.f32 %v1978, %v2333
    %v2427 = vmul.f32 %v1979, %v2338
    %v2428 = vmul.f32 %v1980, %v2343
    %v2429 = vmul.f32 %v1981, %v2348
    %v2430 = vmul.f32 %v1982, %v2353
    %v2431 = vmul.f32 %v1983, %v2358
    %v2432 = vmul.f32 %v1984, %v2363
    %v2433 = vmul.f32 %v1985, %v2368
    %v2434 = vpack.c.bf16 %v2370, %v2370
    %v2435 = vpack.c.bf16 %v2371, %v2371
    %v2436 = vpack.c.bf16 %v2372, %v2372
    %v2437 = vpack.c.bf16 %v2373, %v2373
    %v2438 = vpack.c.bf16 %v2374, %v2374
    %v2439 = vpack.c.bf16 %v2375, %v2375
    %v2440 = vpack.c.bf16 %v2376, %v2376
    %v2441 = vpack.c.bf16 %v2377, %v2377
    %v2442 = vpack.c.bf16 %v2378, %v2378
    %v2443 = vpack.c.bf16 %v2379, %v2379
    %v2444 = vpack.c.bf16 %v2380, %v2380
    %v2445 = vpack.c.bf16 %v2381, %v2381
    %v2446 = vpack.c.bf16 %v2382, %v2382
    %v2447 = vpack.c.bf16 %v2383, %v2383
    %v2448 = vpack.c.bf16 %v2384, %v2384
    %v2449 = vpack.c.bf16 %v2385, %v2385
    %v2450 = vpack.c.bf16 %v2386, %v2386
    %v2451 = vpack.c.bf16 %v2387, %v2387
    %v2452 = vpack.c.bf16 %v2388, %v2388
    %v2453 = vpack.c.bf16 %v2389, %v2389
    %v2454 = vpack.c.bf16 %v2390, %v2390
    %v2455 = vpack.c.bf16 %v2391, %v2391
    %v2456 = vpack.c.bf16 %v2392, %v2392
    %v2457 = vpack.c.bf16 %v2393, %v2393
    %v2458 = vpack.c.bf16 %v2394, %v2394
    %v2459 = vpack.c.bf16 %v2395, %v2395
    %v2460 = vpack.c.bf16 %v2396, %v2396
    %v2461 = vpack.c.bf16 %v2397, %v2397
    %v2462 = vpack.c.bf16 %v2398, %v2398
    %v2463 = vpack.c.bf16 %v2399, %v2399
    %v2464 = vpack.c.bf16 %v2400, %v2400
    %v2465 = vpack.c.bf16 %v2401, %v2401
    %v2466 = vpack.c.bf16 %v2402, %v2402
    %v2467 = vpack.c.bf16 %v2403, %v2403
    %v2468 = vpack.c.bf16 %v2404, %v2404
    %v2469 = vpack.c.bf16 %v2405, %v2405
    %v2470 = vpack.c.bf16 %v2406, %v2406
    %v2471 = vpack.c.bf16 %v2407, %v2407
    %v2472 = vpack.c.bf16 %v2408, %v2408
    %v2473 = vpack.c.bf16 %v2409, %v2409
    %v2474 = vpack.c.bf16 %v2410, %v2410
    %v2475 = vpack.c.bf16 %v2411, %v2411
    %v2476 = vpack.c.bf16 %v2412, %v2412
    %v2477 = vpack.c.bf16 %v2413, %v2413
    %v2478 = vpack.c.bf16 %v2414, %v2414
    %v2479 = vpack.c.bf16 %v2415, %v2415
    %v2480 = vpack.c.bf16 %v2416, %v2416
    %v2481 = vpack.c.bf16 %v2417, %v2417
    %v2482 = vpack.c.bf16 %v2418, %v2418
    %v2483 = vpack.c.bf16 %v2419, %v2419
    %v2484 = vpack.c.bf16 %v2420, %v2420
    %v2485 = vpack.c.bf16 %v2421, %v2421
    %v2486 = vpack.c.bf16 %v2422, %v2422
    %v2487 = vpack.c.bf16 %v2423, %v2423
    %v2488 = vpack.c.bf16 %v2424, %v2424
    %v2489 = vpack.c.bf16 %v2425, %v2425
    %v2490 = vpack.c.bf16 %v2426, %v2426
    %v2491 = vpack.c.bf16 %v2427, %v2427
    %v2492 = vpack.c.bf16 %v2428, %v2428
    %v2493 = vpack.c.bf16 %v2429, %v2429
    %v2494 = vpack.c.bf16 %v2430, %v2430
    %v2495 = vpack.c.bf16 %v2431, %v2431
    %v2496 = vpack.c.bf16 %v2432, %v2432
    %v2497 = vpack.c.bf16 %v2433, %v2433
    %v2498 = vld [vmem:[%s2] sm:$0xf]
    %v2499 = vld [vmem:[%s2 + $0x4] sm:$0xf]
    %v2500 = vld [vmem:[%s2 + $0x8] sm:$0xf]
    %v2501 = vld [vmem:[%s2 + $0xc] sm:$0xf]
    %v2502 = vld [vmem:[%s2 + $0x10] sm:$0xf]
    %v2503 = vld [vmem:[%s2 + $0x14] sm:$0xf]
    %v2504 = vld [vmem:[%s2 + $0x18] sm:$0xf]
    %v2505 = vld [vmem:[%s2 + $0x1c] sm:$0xf]
    %v2506 = vld [vmem:[%s2 + $0x20] sm:$0xf]
    %v2507 = vld [vmem:[%s2 + $0x24] sm:$0xf]
    %v2508 = vld [vmem:[%s2 + $0x28] sm:$0xf]
    %v2509 = vld [vmem:[%s2 + $0x2c] sm:$0xf]
    %v2510 = vld [vmem:[%s2 + $0x30] sm:$0xf]
    %v2511 = vld [vmem:[%s2 + $0x34] sm:$0xf]
    %v2512 = vld [vmem:[%s2 + $0x38] sm:$0xf]
    %v2513 = vld [vmem:[%s2 + $0x3c] sm:$0xf]
    %v2514 = vld [vmem:[%s2 + $0x40] sm:$0xf]
    %v2515 = vld [vmem:[%s2 + $0x44] sm:$0xf]
    %v2516 = vld [vmem:[%s2 + $0x48] sm:$0xf]
    %v2517 = vld [vmem:[%s2 + $0x4c] sm:$0xf]
    %v2518 = vld [vmem:[%s2 + $0x50] sm:$0xf]
    %v2519 = vld [vmem:[%s2 + $0x54] sm:$0xf]
    %v2520 = vld [vmem:[%s2 + $0x58] sm:$0xf]
    %v2521 = vld [vmem:[%s2 + $0x5c] sm:$0xf]
    %v2522 = vld [vmem:[%s2 + $0x60] sm:$0xf]
    %v2523 = vld [vmem:[%s2 + $0x64] sm:$0xf]
    %v2524 = vld [vmem:[%s2 + $0x68] sm:$0xf]
    %v2525 = vld [vmem:[%s2 + $0x6c] sm:$0xf]
    %v2526 = vld [vmem:[%s2 + $0x70] sm:$0xf]
    %v2527 = vld [vmem:[%s2 + $0x74] sm:$0xf]
    %v2528 = vld [vmem:[%s2 + $0x78] sm:$0xf]
    %v2529 = vld [vmem:[%s2 + $0x7c] sm:$0xf]
    %v2530 = vld [vmem:[%s2 + $0x80] sm:$0xf]
    %v2531 = vld [vmem:[%s2 + $0x84] sm:$0xf]
    %v2532 = vld [vmem:[%s2 + $0x88] sm:$0xf]
    %v2533 = vld [vmem:[%s2 + $0x8c] sm:$0xf]
    %v2534 = vld [vmem:[%s2 + $0x90] sm:$0xf]
    %v2535 = vld [vmem:[%s2 + $0x94] sm:$0xf]
    %v2536 = vld [vmem:[%s2 + $0x98] sm:$0xf]
    %v2537 = vld [vmem:[%s2 + $0x9c] sm:$0xf]
    %v2538 = vld [vmem:[%s2 + $0xa0] sm:$0xf]
    %v2539 = vld [vmem:[%s2 + $0xa4] sm:$0xf]
    %v2540 = vld [vmem:[%s2 + $0xa8] sm:$0xf]
    %v2541 = vld [vmem:[%s2 + $0xac] sm:$0xf]
    %v2542 = vld [vmem:[%s2 + $0xb0] sm:$0xf]
    %v2543 = vld [vmem:[%s2 + $0xb4] sm:$0xf]
    %v2544 = vld [vmem:[%s2 + $0xb8] sm:$0xf]
    %v2545 = vld [vmem:[%s2 + $0xbc] sm:$0xf]
    %v2546 = vld [vmem:[%s2 + $0xc0] sm:$0xf]
    %v2547 = vld [vmem:[%s2 + $0xc4] sm:$0xf]
    %v2548 = vld [vmem:[%s2 + $0xc8] sm:$0xf]
    %v2549 = vld [vmem:[%s2 + $0xcc] sm:$0xf]
    %v2550 = vld [vmem:[%s2 + $0xd0] sm:$0xf]
    %v2551 = vld [vmem:[%s2 + $0xd4] sm:$0xf]
    %v2552 = vld [vmem:[%s2 + $0xd8] sm:$0xf]
    %v2553 = vld [vmem:[%s2 + $0xdc] sm:$0xf]
    %v2554 = vld [vmem:[%s2 + $0xe0] sm:$0xf]
    %v2555 = vld [vmem:[%s2 + $0xe4] sm:$0xf]
    %v2556 = vld [vmem:[%s2 + $0xe8] sm:$0xf]
    %v2557 = vld [vmem:[%s2 + $0xec] sm:$0xf]
    %v2558 = vld [vmem:[%s2 + $0xf0] sm:$0xf]
    %v2559 = vld [vmem:[%s2 + $0xf4] sm:$0xf]
    %v2560 = vld [vmem:[%s2 + $0xf8] sm:$0xf]
    %v2561 = vld [vmem:[%s2 + $0xfc] sm:$0xf]
    %v2626 = vunpack.c.l.b16 %v2498
    %v2627 = vunpack.c.l.b16 %v2499
    %v2628 = vunpack.c.l.b16 %v2500
    %v2629 = vunpack.c.l.b16 %v2501
    %v2630 = vunpack.c.l.b16 %v2502
    %v2631 = vunpack.c.l.b16 %v2503
    %v2632 = vunpack.c.l.b16 %v2504
    %v2633 = vunpack.c.l.b16 %v2505
    %v2634 = vunpack.c.l.b16 %v2506
    %v2635 = vunpack.c.l.b16 %v2507
    %v2636 = vunpack.c.l.b16 %v2508
    %v2637 = vunpack.c.l.b16 %v2509
    %v2638 = vunpack.c.l.b16 %v2510
    %v2639 = vunpack.c.l.b16 %v2511
    %v2640 = vunpack.c.l.b16 %v2512
    %v2641 = vunpack.c.l.b16 %v2513
    %v2642 = vunpack.c.l.b16 %v2514
    %v2643 = vunpack.c.l.b16 %v2515
    %v2644 = vunpack.c.l.b16 %v2516
    %v2645 = vunpack.c.l.b16 %v2517
    %v2646 = vunpack.c.l.b16 %v2518
    %v2647 = vunpack.c.l.b16 %v2519
    %v2648 = vunpack.c.l.b16 %v2520
    %v2649 = vunpack.c.l.b16 %v2521
    %v2650 = vunpack.c.l.b16 %v2522
    %v2651 = vunpack.c.l.b16 %v2523
    %v2652 = vunpack.c.l.b16 %v2524
    %v2653 = vunpack.c.l.b16 %v2525
    %v2654 = vunpack.c.l.b16 %v2526
    %v2655 = vunpack.c.l.b16 %v2527
    %v2656 = vunpack.c.l.b16 %v2528
    %v2657 = vunpack.c.l.b16 %v2529
    %v2658 = vunpack.c.l.b16 %v2530
    %v2659 = vunpack.c.l.b16 %v2531
    %v2660 = vunpack.c.l.b16 %v2532
    %v2661 = vunpack.c.l.b16 %v2533
    %v2662 = vunpack.c.l.b16 %v2534
    %v2663 = vunpack.c.l.b16 %v2535
    %v2664 = vunpack.c.l.b16 %v2536
    %v2665 = vunpack.c.l.b16 %v2537
    %v2666 = vunpack.c.l.b16 %v2538
    %v2667 = vunpack.c.l.b16 %v2539
    %v2668 = vunpack.c.l.b16 %v2540
    %v2669 = vunpack.c.l.b16 %v2541
    %v2670 = vunpack.c.l.b16 %v2542
    %v2671 = vunpack.c.l.b16 %v2543
    %v2672 = vunpack.c.l.b16 %v2544
    %v2673 = vunpack.c.l.b16 %v2545
    %v2674 = vunpack.c.l.b16 %v2546
    %v2675 = vunpack.c.l.b16 %v2547
    %v2676 = vunpack.c.l.b16 %v2548
    %v2677 = vunpack.c.l.b16 %v2549
    %v2678 = vunpack.c.l.b16 %v2550
    %v2679 = vunpack.c.l.b16 %v2551
    %v2680 = vunpack.c.l.b16 %v2552
    %v2681 = vunpack.c.l.b16 %v2553
    %v2682 = vunpack.c.l.b16 %v2554
    %v2683 = vunpack.c.l.b16 %v2555
    %v2684 = vunpack.c.l.b16 %v2556
    %v2685 = vunpack.c.l.b16 %v2557
    %v2686 = vunpack.c.l.b16 %v2558
    %v2687 = vunpack.c.l.b16 %v2559
    %v2688 = vunpack.c.l.b16 %v2560
    %v2689 = vunpack.c.l.b16 %v2561
    %v2690 = vpack.c.b16 %v2627, %v2626
    %v2691 = vpack.c.b16 %v2629, %v2628
    %v2692 = vpack.c.b16 %v2631, %v2630
    %v2693 = vpack.c.b16 %v2633, %v2632
    %v2694 = vpack.c.b16 %v2635, %v2634
    %v2695 = vpack.c.b16 %v2637, %v2636
    %v2696 = vpack.c.b16 %v2639, %v2638
    %v2697 = vpack.c.b16 %v2641, %v2640
    %v2698 = vpack.c.b16 %v2643, %v2642
    %v2699 = vpack.c.b16 %v2645, %v2644
    %v2700 = vpack.c.b16 %v2647, %v2646
    %v2701 = vpack.c.b16 %v2649, %v2648
    %v2702 = vpack.c.b16 %v2651, %v2650
    %v2703 = vpack.c.b16 %v2653, %v2652
    %v2704 = vpack.c.b16 %v2655, %v2654
    %v2705 = vpack.c.b16 %v2657, %v2656
    %v2706 = vpack.c.b16 %v2659, %v2658
    %v2707 = vpack.c.b16 %v2661, %v2660
    %v2708 = vpack.c.b16 %v2663, %v2662
    %v2709 = vpack.c.b16 %v2665, %v2664
    %v2710 = vpack.c.b16 %v2667, %v2666
    %v2711 = vpack.c.b16 %v2669, %v2668
    %v2712 = vpack.c.b16 %v2671, %v2670
    %v2713 = vpack.c.b16 %v2673, %v2672
    %v2714 = vpack.c.b16 %v2675, %v2674
    %v2715 = vpack.c.b16 %v2677, %v2676
    %v2716 = vpack.c.b16 %v2679, %v2678
    %v2717 = vpack.c.b16 %v2681, %v2680
    %v2718 = vpack.c.b16 %v2683, %v2682
    %v2719 = vpack.c.b16 %v2685, %v2684
    %v2720 = vpack.c.b16 %v2687, %v2686
    %v2721 = vpack.c.b16 %v2689, %v2688
    %v2818 = vunpack.c.l.b16 %v2434
    %v2819 = vunpack.c.l.b16 %v2435
    %v2820 = vunpack.c.l.b16 %v2436
    %v2821 = vunpack.c.l.b16 %v2437
    %v2822 = vunpack.c.l.b16 %v2438
    %v2823 = vunpack.c.l.b16 %v2439
    %v2824 = vunpack.c.l.b16 %v2440
    %v2825 = vunpack.c.l.b16 %v2441
    %v2826 = vunpack.c.l.b16 %v2442
    %v2827 = vunpack.c.l.b16 %v2443
    %v2828 = vunpack.c.l.b16 %v2444
    %v2829 = vunpack.c.l.b16 %v2445
    %v2830 = vunpack.c.l.b16 %v2446
    %v2831 = vunpack.c.l.b16 %v2447
    %v2832 = vunpack.c.l.b16 %v2448
    %v2833 = vunpack.c.l.b16 %v2449
    %v2834 = vunpack.c.l.b16 %v2450
    %v2835 = vunpack.c.l.b16 %v2451
    %v2836 = vunpack.c.l.b16 %v2452
    %v2837 = vunpack.c.l.b16 %v2453
    %v2838 = vunpack.c.l.b16 %v2454
    %v2839 = vunpack.c.l.b16 %v2455
    %v2840 = vunpack.c.l.b16 %v2456
    %v2841 = vunpack.c.l.b16 %v2457
    %v2842 = vunpack.c.l.b16 %v2458
    %v2843 = vunpack.c.l.b16 %v2459
    %v2844 = vunpack.c.l.b16 %v2460
    %v2845 = vunpack.c.l.b16 %v2461
    %v2846 = vunpack.c.l.b16 %v2462
    %v2847 = vunpack.c.l.b16 %v2463
    %v2848 = vunpack.c.l.b16 %v2464
    %v2849 = vunpack.c.l.b16 %v2465
    %v2850 = vunpack.c.l.b16 %v2466
    %v2851 = vunpack.c.l.b16 %v2467
    %v2852 = vunpack.c.l.b16 %v2468
    %v2853 = vunpack.c.l.b16 %v2469
    %v2854 = vunpack.c.l.b16 %v2470
    %v2855 = vunpack.c.l.b16 %v2471
    %v2856 = vunpack.c.l.b16 %v2472
    %v2857 = vunpack.c.l.b16 %v2473
    %v2858 = vunpack.c.l.b16 %v2474
    %v2859 = vunpack.c.l.b16 %v2475
    %v2860 = vunpack.c.l.b16 %v2476
    %v2861 = vunpack.c.l.b16 %v2477
    %v2862 = vunpack.c.l.b16 %v2478
    %v2863 = vunpack.c.l.b16 %v2479
    %v2864 = vunpack.c.l.b16 %v2480
    %v2865 = vunpack.c.l.b16 %v2481
    %v2866 = vunpack.c.l.b16 %v2482
    %v2867 = vunpack.c.l.b16 %v2483
    %v2868 = vunpack.c.l.b16 %v2484
    %v2869 = vunpack.c.l.b16 %v2485
    %v2870 = vunpack.c.l.b16 %v2486
    %v2871 = vunpack.c.l.b16 %v2487
    %v2872 = vunpack.c.l.b16 %v2488
    %v2873 = vunpack.c.l.b16 %v2489
    %v2874 = vunpack.c.l.b16 %v2490
    %v2875 = vunpack.c.l.b16 %v2491
    %v2876 = vunpack.c.l.b16 %v2492
    %v2877 = vunpack.c.l.b16 %v2493
    %v2878 = vunpack.c.l.b16 %v2494
    %v2879 = vunpack.c.l.b16 %v2495
    %v2880 = vunpack.c.l.b16 %v2496
    %v2881 = vunpack.c.l.b16 %v2497
    %v2882 = vpack.c.b16 %v2819, %v2818
    %v2883 = vpack.c.b16 %v2821, %v2820
    %v2884 = vpack.c.b16 %v2823, %v2822
    %v2885 = vpack.c.b16 %v2825, %v2824
    %v2886 = vpack.c.b16 %v2827, %v2826
    %v2887 = vpack.c.b16 %v2829, %v2828
    %v2888 = vpack.c.b16 %v2831, %v2830
    %v2889 = vpack.c.b16 %v2833, %v2832
    %v2890 = vpack.c.b16 %v2835, %v2834
    %v2891 = vpack.c.b16 %v2837, %v2836
    %v2892 = vpack.c.b16 %v2839, %v2838
    %v2893 = vpack.c.b16 %v2841, %v2840
    %v2894 = vpack.c.b16 %v2843, %v2842
    %v2895 = vpack.c.b16 %v2845, %v2844
    %v2896 = vpack.c.b16 %v2847, %v2846
    %v2897 = vpack.c.b16 %v2849, %v2848
    %v2898 = vpack.c.b16 %v2851, %v2850
    %v2899 = vpack.c.b16 %v2853, %v2852
    %v2900 = vpack.c.b16 %v2855, %v2854
    %v2901 = vpack.c.b16 %v2857, %v2856
    %v2902 = vpack.c.b16 %v2859, %v2858
    %v2903 = vpack.c.b16 %v2861, %v2860
    %v2904 = vpack.c.b16 %v2863, %v2862
    %v2905 = vpack.c.b16 %v2865, %v2864
    %v2906 = vpack.c.b16 %v2867, %v2866
    %v2907 = vpack.c.b16 %v2869, %v2868
    %v2908 = vpack.c.b16 %v2871, %v2870
    %v2909 = vpack.c.b16 %v2873, %v2872
    %v2910 = vpack.c.b16 %v2875, %v2874
    %v2911 = vpack.c.b16 %v2877, %v2876
    %v2912 = vpack.c.b16 %v2879, %v2878
    %v2913 = vpack.c.b16 %v2881, %v2880
    %v2946 = vld [vmem:[%s4] sm:$0xf]
    %v2947 = vld [vmem:[%s4 + $0x4] sm:$0xf]
    %v2948 = vld [vmem:[%s4 + $0x8] sm:$0xf]
    %v2949 = vld [vmem:[%s4 + $0xc] sm:$0xf]
    %v2950 = vld [vmem:[%s4 + $0x10] sm:$0xf]
    %v2951 = vld [vmem:[%s4 + $0x14] sm:$0xf]
    %v2952 = vld [vmem:[%s4 + $0x18] sm:$0xf]
    %v2953 = vld [vmem:[%s4 + $0x1c] sm:$0xf]
    %v2954 = vld [vmem:[%s4 + $0x20] sm:$0xf]
    %v2955 = vld [vmem:[%s4 + $0x24] sm:$0xf]
    %v2956 = vld [vmem:[%s4 + $0x28] sm:$0xf]
    %v2957 = vld [vmem:[%s4 + $0x2c] sm:$0xf]
    %v2958 = vld [vmem:[%s4 + $0x30] sm:$0xf]
    %v2959 = vld [vmem:[%s4 + $0x34] sm:$0xf]
    %v2960 = vld [vmem:[%s4 + $0x38] sm:$0xf]
    %v2961 = vld [vmem:[%s4 + $0x3c] sm:$0xf]
    %v2962 = vld [vmem:[%s4 + $0x40] sm:$0xf]
    %v2963 = vld [vmem:[%s4 + $0x44] sm:$0xf]
    %v2964 = vld [vmem:[%s4 + $0x48] sm:$0xf]
    %v2965 = vld [vmem:[%s4 + $0x4c] sm:$0xf]
    %v2966 = vld [vmem:[%s4 + $0x50] sm:$0xf]
    %v2967 = vld [vmem:[%s4 + $0x54] sm:$0xf]
    %v2968 = vld [vmem:[%s4 + $0x58] sm:$0xf]
    %v2969 = vld [vmem:[%s4 + $0x5c] sm:$0xf]
    %v2970 = vld [vmem:[%s4 + $0x60] sm:$0xf]
    %v2971 = vld [vmem:[%s4 + $0x64] sm:$0xf]
    %v2972 = vld [vmem:[%s4 + $0x68] sm:$0xf]
    %v2973 = vld [vmem:[%s4 + $0x6c] sm:$0xf]
    %v2974 = vld [vmem:[%s4 + $0x70] sm:$0xf]
    %v2975 = vld [vmem:[%s4 + $0x74] sm:$0xf]
    %v2976 = vld [vmem:[%s4 + $0x78] sm:$0xf]
    %v2977 = vld [vmem:[%s4 + $0x7c] sm:$0xf]
    %v2978 = vld [vmem:[%s5] sm:$0x1]
    %v2980 = vperm.slane %v2978, 0
    %v3014 = vunpack.c.l.b16 %v2946
    %v3015 = vunpack.c.l.b16 %v2947
    %v3016 = vunpack.c.l.b16 %v2948
    %v3017 = vunpack.c.l.b16 %v2949
    %v3018 = vunpack.c.l.b16 %v2950
    %v3019 = vunpack.c.l.b16 %v2951
    %v3020 = vunpack.c.l.b16 %v2952
    %v3021 = vunpack.c.l.b16 %v2953
    %v3022 = vunpack.c.l.b16 %v2954
    %v3023 = vunpack.c.l.b16 %v2955
    %v3024 = vunpack.c.l.b16 %v2956
    %v3025 = vunpack.c.l.b16 %v2957
    %v3026 = vunpack.c.l.b16 %v2958
    %v3027 = vunpack.c.l.b16 %v2959
    %v3028 = vunpack.c.l.b16 %v2960
    %v3029 = vunpack.c.l.b16 %v2961
    %v3030 = vunpack.c.l.b16 %v2962
    %v3031 = vunpack.c.l.b16 %v2963
    %v3032 = vunpack.c.l.b16 %v2964
    %v3033 = vunpack.c.l.b16 %v2965
    %v3034 = vunpack.c.l.b16 %v2966
    %v3035 = vunpack.c.l.b16 %v2967
    %v3036 = vunpack.c.l.b16 %v2968
    %v3037 = vunpack.c.l.b16 %v2969
    %v3038 = vunpack.c.l.b16 %v2970
    %v3039 = vunpack.c.l.b16 %v2971
    %v3040 = vunpack.c.l.b16 %v2972
    %v3041 = vunpack.c.l.b16 %v2973
    %v3042 = vunpack.c.l.b16 %v2974
    %v3043 = vunpack.c.l.b16 %v2975
    %v3044 = vunpack.c.l.b16 %v2976
    %v3045 = vunpack.c.l.b16 %v2977
    %v3046 = vpack.c.b16 %v3015, %v3014
    %v3047 = vpack.c.b16 %v3017, %v3016
    %v3048 = vpack.c.b16 %v3019, %v3018
    %v3049 = vpack.c.b16 %v3021, %v3020
    %v3050 = vpack.c.b16 %v3023, %v3022
    %v3051 = vpack.c.b16 %v3025, %v3024
    %v3052 = vpack.c.b16 %v3027, %v3026
    %v3053 = vpack.c.b16 %v3029, %v3028
    %v3054 = vpack.c.b16 %v3031, %v3030
    %v3055 = vpack.c.b16 %v3033, %v3032
    %v3056 = vpack.c.b16 %v3035, %v3034
    %v3057 = vpack.c.b16 %v3037, %v3036
    %v3058 = vpack.c.b16 %v3039, %v3038
    %v3059 = vpack.c.b16 %v3041, %v3040
    %v3060 = vpack.c.b16 %v3043, %v3042
    %v3061 = vpack.c.b16 %v3045, %v3044
    %3078 = vmatpush.bf16.msra.mxu0 %v3053
    %3079 = vmatpush.bf16.msra.mxu0 %v3052
    %3080 = vmatpush.bf16.msra.mxu0 %v3051
    %3081 = vmatpush.bf16.msra.mxu0 %v3050
    %3082 = vmatpush.bf16.msra.mxu0 %v3049
    %3083 = vmatpush.bf16.msra.mxu0 %v3048
    %3084 = vmatpush.bf16.msra.mxu0 %v3047
    %3085 = vmatpush.bf16.msra.mxu0 %v3046
    %3086 = vmatmul.bf16.gmra.mxu0 %v2690
    %v3087 = vpop.f32.mrf.mxu0
    %v3088 = vadd.f32 %v2980, %v3087
    %v3089 = vpop.f32.mrf.mxu0
    %v3090 = vadd.f32 %v2980, %v3089
    %3091 = vmatmul.bf16.gmra.mxu0 %v2691
    %v3092 = vpop.f32.mrf.mxu0
    %v3093 = vadd.f32 %v2980, %v3092
    %v3094 = vpop.f32.mrf.mxu0
    %v3095 = vadd.f32 %v2980, %v3094
    %3096 = vmatmul.bf16.gmra.mxu0 %v2692
    %v3097 = vpop.f32.mrf.mxu0
    %v3098 = vadd.f32 %v2980, %v3097
    %v3099 = vpop.f32.mrf.mxu0
    %v3100 = vadd.f32 %v2980, %v3099
    %3101 = vmatmul.bf16.gmra.mxu0 %v2693
    %v3102 = vpop.f32.mrf.mxu0
    %v3103 = vadd.f32 %v2980, %v3102
    %v3104 = vpop.f32.mrf.mxu0
    %v3105 = vadd.f32 %v2980, %v3104
    %3106 = vmatmul.bf16.gmra.mxu0 %v2694
    %v3107 = vpop.f32.mrf.mxu0
    %v3108 = vadd.f32 %v2980, %v3107
    %v3109 = vpop.f32.mrf.mxu0
    %v3110 = vadd.f32 %v2980, %v3109
    %3111 = vmatmul.bf16.gmra.mxu0 %v2695
    %v3112 = vpop.f32.mrf.mxu0
    %v3113 = vadd.f32 %v2980, %v3112
    %v3114 = vpop.f32.mrf.mxu0
    %v3115 = vadd.f32 %v2980, %v3114
    %3116 = vmatmul.bf16.gmra.mxu0 %v2696
    %v3117 = vpop.f32.mrf.mxu0
    %v3118 = vadd.f32 %v2980, %v3117
    %v3119 = vpop.f32.mrf.mxu0
    %v3120 = vadd.f32 %v2980, %v3119
    %3121 = vmatmul.bf16.gmra.mxu0 %v2697
    %v3122 = vpop.f32.mrf.mxu0
    %v3123 = vadd.f32 %v2980, %v3122
    %v3124 = vpop.f32.mrf.mxu0
    %v3125 = vadd.f32 %v2980, %v3124
    %3126 = vmatmul.bf16.gmra.mxu0 %v2698
    %v3127 = vpop.f32.mrf.mxu0
    %v3128 = vadd.f32 %v2980, %v3127
    %v3129 = vpop.f32.mrf.mxu0
    %v3130 = vadd.f32 %v2980, %v3129
    %3131 = vmatmul.bf16.gmra.mxu0 %v2699
    %v3132 = vpop.f32.mrf.mxu0
    %v3133 = vadd.f32 %v2980, %v3132
    %v3134 = vpop.f32.mrf.mxu0
    %v3135 = vadd.f32 %v2980, %v3134
    %3136 = vmatmul.bf16.gmra.mxu0 %v2700
    %v3137 = vpop.f32.mrf.mxu0
    %v3138 = vadd.f32 %v2980, %v3137
    %v3139 = vpop.f32.mrf.mxu0
    %v3140 = vadd.f32 %v2980, %v3139
    %3141 = vmatmul.bf16.gmra.mxu0 %v2701
    %v3142 = vpop.f32.mrf.mxu0
    %v3143 = vadd.f32 %v2980, %v3142
    %v3144 = vpop.f32.mrf.mxu0
    %v3145 = vadd.f32 %v2980, %v3144
    %3146 = vmatmul.bf16.gmra.mxu0 %v2702
    %v3147 = vpop.f32.mrf.mxu0
    %v3148 = vadd.f32 %v2980, %v3147
    %v3149 = vpop.f32.mrf.mxu0
    %v3150 = vadd.f32 %v2980, %v3149
    %3151 = vmatmul.bf16.gmra.mxu0 %v2703
    %v3152 = vpop.f32.mrf.mxu0
    %v3153 = vadd.f32 %v2980, %v3152
    %v3154 = vpop.f32.mrf.mxu0
    %v3155 = vadd.f32 %v2980, %v3154
    %3156 = vmatmul.bf16.gmra.mxu0 %v2704
    %v3157 = vpop.f32.mrf.mxu0
    %v3158 = vadd.f32 %v2980, %v3157
    %v3159 = vpop.f32.mrf.mxu0
    %v3160 = vadd.f32 %v2980, %v3159
    %3161 = vmatmul.bf16.gmra.mxu0 %v2705
    %v3162 = vpop.f32.mrf.mxu0
    %v3163 = vadd.f32 %v2980, %v3162
    %v3164 = vpop.f32.mrf.mxu0
    %v3165 = vadd.f32 %v2980, %v3164
    %3166 = vmatmul.bf16.gmra.mxu0 %v2706
    %v3167 = vpop.f32.mrf.mxu0
    %v3168 = vadd.f32 %v2980, %v3167
    %v3169 = vpop.f32.mrf.mxu0
    %v3170 = vadd.f32 %v2980, %v3169
    %3171 = vmatmul.bf16.gmra.mxu0 %v2707
    %v3172 = vpop.f32.mrf.mxu0
    %v3173 = vadd.f32 %v2980, %v3172
    %v3174 = vpop.f32.mrf.mxu0
    %v3175 = vadd.f32 %v2980, %v3174
    %3176 = vmatmul.bf16.gmra.mxu0 %v2708
    %v3177 = vpop.f32.mrf.mxu0
    %v3178 = vadd.f32 %v2980, %v3177
    %v3179 = vpop.f32.mrf.mxu0
    %v3180 = vadd.f32 %v2980, %v3179
    %3181 = vmatmul.bf16.gmra.mxu0 %v2709
    %v3182 = vpop.f32.mrf.mxu0
    %v3183 = vadd.f32 %v2980, %v3182
    %v3184 = vpop.f32.mrf.mxu0
    %v3185 = vadd.f32 %v2980, %v3184
    %3186 = vmatmul.bf16.gmra.mxu0 %v2710
    %v3187 = vpop.f32.mrf.mxu0
    %v3188 = vadd.f32 %v2980, %v3187
    %v3189 = vpop.f32.mrf.mxu0
    %v3190 = vadd.f32 %v2980, %v3189
    %3191 = vmatmul.bf16.gmra.mxu0 %v2711
    %v3192 = vpop.f32.mrf.mxu0
    %v3193 = vadd.f32 %v2980, %v3192
    %v3194 = vpop.f32.mrf.mxu0
    %v3195 = vadd.f32 %v2980, %v3194
    %3196 = vmatmul.bf16.gmra.mxu0 %v2712
    %v3197 = vpop.f32.mrf.mxu0
    %v3198 = vadd.f32 %v2980, %v3197
    %v3199 = vpop.f32.mrf.mxu0
    %v3200 = vadd.f32 %v2980, %v3199
    %3201 = vmatmul.bf16.gmra.mxu0 %v2713
    %v3202 = vpop.f32.mrf.mxu0
    %v3203 = vadd.f32 %v2980, %v3202
    %v3204 = vpop.f32.mrf.mxu0
    %v3205 = vadd.f32 %v2980, %v3204
    %3206 = vmatmul.bf16.gmra.mxu0 %v2714
    %v3207 = vpop.f32.mrf.mxu0
    %v3208 = vadd.f32 %v2980, %v3207
    %v3209 = vpop.f32.mrf.mxu0
    %v3210 = vadd.f32 %v2980, %v3209
    %3211 = vmatmul.bf16.gmra.mxu0 %v2715
    %v3212 = vpop.f32.mrf.mxu0
    %v3213 = vadd.f32 %v2980, %v3212
    %v3214 = vpop.f32.mrf.mxu0
    %v3215 = vadd.f32 %v2980, %v3214
    %3216 = vmatmul.bf16.gmra.mxu0 %v2716
    %v3217 = vpop.f32.mrf.mxu0
    %v3218 = vadd.f32 %v2980, %v3217
    %v3219 = vpop.f32.mrf.mxu0
    %v3220 = vadd.f32 %v2980, %v3219
    %3221 = vmatmul.bf16.gmra.mxu0 %v2717
    %v3222 = vpop.f32.mrf.mxu0
    %v3223 = vadd.f32 %v2980, %v3222
    %v3224 = vpop.f32.mrf.mxu0
    %v3225 = vadd.f32 %v2980, %v3224
    %3226 = vmatmul.bf16.gmra.mxu0 %v2718
    %v3227 = vpop.f32.mrf.mxu0
    %v3228 = vadd.f32 %v2980, %v3227
    %v3229 = vpop.f32.mrf.mxu0
    %v3230 = vadd.f32 %v2980, %v3229
    %3231 = vmatmul.bf16.gmra.mxu0 %v2719
    %v3232 = vpop.f32.mrf.mxu0
    %v3233 = vadd.f32 %v2980, %v3232
    %v3234 = vpop.f32.mrf.mxu0
    %v3235 = vadd.f32 %v2980, %v3234
    %3236 = vmatmul.bf16.gmra.mxu0 %v2720
    %v3237 = vpop.f32.mrf.mxu0
    %v3238 = vadd.f32 %v2980, %v3237
    %v3239 = vpop.f32.mrf.mxu0
    %v3240 = vadd.f32 %v2980, %v3239
    %3241 = vmatmul.bf16.gmra.mxu0 %v2721
    %v3242 = vpop.f32.mrf.mxu0
    %v3243 = vadd.f32 %v2980, %v3242
    %v3244 = vpop.f32.mrf.mxu0
    %v3245 = vadd.f32 %v2980, %v3244
    %3246 = vdwg.mxu0
    %3247 = vmatpush.bf16.msra.mxu0 %v3061
    %3248 = vmatpush.bf16.msra.mxu0 %v3060
    %3249 = vmatpush.bf16.msra.mxu0 %v3059
    %3250 = vmatpush.bf16.msra.mxu0 %v3058
    %3251 = vmatpush.bf16.msra.mxu0 %v3057
    %3252 = vmatpush.bf16.msra.mxu0 %v3056
    %3253 = vmatpush.bf16.msra.mxu0 %v3055
    %3254 = vmatpush.bf16.msra.mxu0 %v3054
    %3255 = vmatmul.bf16.gmra.mxu0 %v2882
    %v3256 = vpop.f32.mrf.mxu0
    %v3257 = vadd.f32 %v3088, %v3256
    %v3258 = vpop.f32.mrf.mxu0
    %v3259 = vadd.f32 %v3090, %v3258
    %3260 = vmatmul.bf16.gmra.mxu0 %v2883
    %v3261 = vpop.f32.mrf.mxu0
    %v3262 = vadd.f32 %v3093, %v3261
    %v3263 = vpop.f32.mrf.mxu0
    %v3264 = vadd.f32 %v3095, %v3263
    %3265 = vmatmul.bf16.gmra.mxu0 %v2884
    %v3266 = vpop.f32.mrf.mxu0
    %v3267 = vadd.f32 %v3098, %v3266
    %v3268 = vpop.f32.mrf.mxu0
    %v3269 = vadd.f32 %v3100, %v3268
    %3270 = vmatmul.bf16.gmra.mxu0 %v2885
    %v3271 = vpop.f32.mrf.mxu0
    %v3272 = vadd.f32 %v3103, %v3271
    %v3273 = vpop.f32.mrf.mxu0
    %v3274 = vadd.f32 %v3105, %v3273
    %3275 = vmatmul.bf16.gmra.mxu0 %v2886
    %v3276 = vpop.f32.mrf.mxu0
    %v3277 = vadd.f32 %v3108, %v3276
    %v3278 = vpop.f32.mrf.mxu0
    %v3279 = vadd.f32 %v3110, %v3278
    %3280 = vmatmul.bf16.gmra.mxu0 %v2887
    %v3281 = vpop.f32.mrf.mxu0
    %v3282 = vadd.f32 %v3113, %v3281
    %v3283 = vpop.f32.mrf.mxu0
    %v3284 = vadd.f32 %v3115, %v3283
    %3285 = vmatmul.bf16.gmra.mxu0 %v2888
    %v3286 = vpop.f32.mrf.mxu0
    %v3287 = vadd.f32 %v3118, %v3286
    %v3288 = vpop.f32.mrf.mxu0
    %v3289 = vadd.f32 %v3120, %v3288
    %3290 = vmatmul.bf16.gmra.mxu0 %v2889
    %v3291 = vpop.f32.mrf.mxu0
    %v3292 = vadd.f32 %v3123, %v3291
    %v3293 = vpop.f32.mrf.mxu0
    %v3294 = vadd.f32 %v3125, %v3293
    %3295 = vmatmul.bf16.gmra.mxu0 %v2890
    %v3296 = vpop.f32.mrf.mxu0
    %v3297 = vadd.f32 %v3128, %v3296
    %v3298 = vpop.f32.mrf.mxu0
    %v3299 = vadd.f32 %v3130, %v3298
    %3300 = vmatmul.bf16.gmra.mxu0 %v2891
    %v3301 = vpop.f32.mrf.mxu0
    %v3302 = vadd.f32 %v3133, %v3301
    %v3303 = vpop.f32.mrf.mxu0
    %v3304 = vadd.f32 %v3135, %v3303
    %3305 = vmatmul.bf16.gmra.mxu0 %v2892
    %v3306 = vpop.f32.mrf.mxu0
    %v3307 = vadd.f32 %v3138, %v3306
    %v3308 = vpop.f32.mrf.mxu0
    %v3309 = vadd.f32 %v3140, %v3308
    %3310 = vmatmul.bf16.gmra.mxu0 %v2893
    %v3311 = vpop.f32.mrf.mxu0
    %v3312 = vadd.f32 %v3143, %v3311
    %v3313 = vpop.f32.mrf.mxu0
    %v3314 = vadd.f32 %v3145, %v3313
    %3315 = vmatmul.bf16.gmra.mxu0 %v2894
    %v3316 = vpop.f32.mrf.mxu0
    %v3317 = vadd.f32 %v3148, %v3316
    %v3318 = vpop.f32.mrf.mxu0
    %v3319 = vadd.f32 %v3150, %v3318
    %3320 = vmatmul.bf16.gmra.mxu0 %v2895
    %v3321 = vpop.f32.mrf.mxu0
    %v3322 = vadd.f32 %v3153, %v3321
    %v3323 = vpop.f32.mrf.mxu0
    %v3324 = vadd.f32 %v3155, %v3323
    %3325 = vmatmul.bf16.gmra.mxu0 %v2896
    %v3326 = vpop.f32.mrf.mxu0
    %v3327 = vadd.f32 %v3158, %v3326
    %v3328 = vpop.f32.mrf.mxu0
    %v3329 = vadd.f32 %v3160, %v3328
    %3330 = vmatmul.bf16.gmra.mxu0 %v2897
    %v3331 = vpop.f32.mrf.mxu0
    %v3332 = vadd.f32 %v3163, %v3331
    %v3333 = vpop.f32.mrf.mxu0
    %v3334 = vadd.f32 %v3165, %v3333
    %3335 = vmatmul.bf16.gmra.mxu0 %v2898
    %v3336 = vpop.f32.mrf.mxu0
    %v3337 = vadd.f32 %v3168, %v3336
    %v3338 = vpop.f32.mrf.mxu0
    %v3339 = vadd.f32 %v3170, %v3338
    %3340 = vmatmul.bf16.gmra.mxu0 %v2899
    %v3341 = vpop.f32.mrf.mxu0
    %v3342 = vadd.f32 %v3173, %v3341
    %v3343 = vpop.f32.mrf.mxu0
    %v3344 = vadd.f32 %v3175, %v3343
    %3345 = vmatmul.bf16.gmra.mxu0 %v2900
    %v3346 = vpop.f32.mrf.mxu0
    %v3347 = vadd.f32 %v3178, %v3346
    %v3348 = vpop.f32.mrf.mxu0
    %v3349 = vadd.f32 %v3180, %v3348
    %3350 = vmatmul.bf16.gmra.mxu0 %v2901
    %v3351 = vpop.f32.mrf.mxu0
    %v3352 = vadd.f32 %v3183, %v3351
    %v3353 = vpop.f32.mrf.mxu0
    %v3354 = vadd.f32 %v3185, %v3353
    %3355 = vmatmul.bf16.gmra.mxu0 %v2902
    %v3356 = vpop.f32.mrf.mxu0
    %v3357 = vadd.f32 %v3188, %v3356
    %v3358 = vpop.f32.mrf.mxu0
    %v3359 = vadd.f32 %v3190, %v3358
    %3360 = vmatmul.bf16.gmra.mxu0 %v2903
    %v3361 = vpop.f32.mrf.mxu0
    %v3362 = vadd.f32 %v3193, %v3361
    %v3363 = vpop.f32.mrf.mxu0
    %v3364 = vadd.f32 %v3195, %v3363
    %3365 = vmatmul.bf16.gmra.mxu0 %v2904
    %v3366 = vpop.f32.mrf.mxu0
    %v3367 = vadd.f32 %v3198, %v3366
    %v3368 = vpop.f32.mrf.mxu0
    %v3369 = vadd.f32 %v3200, %v3368
    %3370 = vmatmul.bf16.gmra.mxu0 %v2905
    %v3371 = vpop.f32.mrf.mxu0
    %v3372 = vadd.f32 %v3203, %v3371
    %v3373 = vpop.f32.mrf.mxu0
    %v3374 = vadd.f32 %v3205, %v3373
    %3375 = vmatmul.bf16.gmra.mxu0 %v2906
    %v3376 = vpop.f32.mrf.mxu0
    %v3377 = vadd.f32 %v3208, %v3376
    %v3378 = vpop.f32.mrf.mxu0
    %v3379 = vadd.f32 %v3210, %v3378
    %3380 = vmatmul.bf16.gmra.mxu0 %v2907
    %v3381 = vpop.f32.mrf.mxu0
    %v3382 = vadd.f32 %v3213, %v3381
    %v3383 = vpop.f32.mrf.mxu0
    %v3384 = vadd.f32 %v3215, %v3383
    %3385 = vmatmul.bf16.gmra.mxu0 %v2908
    %v3386 = vpop.f32.mrf.mxu0
    %v3387 = vadd.f32 %v3218, %v3386
    %v3388 = vpop.f32.mrf.mxu0
    %v3389 = vadd.f32 %v3220, %v3388
    %3390 = vmatmul.bf16.gmra.mxu0 %v2909
    %v3391 = vpop.f32.mrf.mxu0
    %v3392 = vadd.f32 %v3223, %v3391
    %v3393 = vpop.f32.mrf.mxu0
    %v3394 = vadd.f32 %v3225, %v3393
    %3395 = vmatmul.bf16.gmra.mxu0 %v2910
    %v3396 = vpop.f32.mrf.mxu0
    %v3397 = vadd.f32 %v3228, %v3396
    %v3398 = vpop.f32.mrf.mxu0
    %v3399 = vadd.f32 %v3230, %v3398
    %3400 = vmatmul.bf16.gmra.mxu0 %v2911
    %v3401 = vpop.f32.mrf.mxu0
    %v3402 = vadd.f32 %v3233, %v3401
    %v3403 = vpop.f32.mrf.mxu0
    %v3404 = vadd.f32 %v3235, %v3403
    %3405 = vmatmul.bf16.gmra.mxu0 %v2912
    %v3406 = vpop.f32.mrf.mxu0
    %v3407 = vadd.f32 %v3238, %v3406
    %v3408 = vpop.f32.mrf.mxu0
    %v3409 = vadd.f32 %v3240, %v3408
    %3410 = vmatmul.bf16.gmra.mxu0 %v2913
    %v3411 = vpop.f32.mrf.mxu0
    %v3412 = vadd.f32 %v3243, %v3411
    %v3413 = vpop.f32.mrf.mxu0
    %v3414 = vadd.f32 %v3245, %v3413
    %3415 = vdwg.mxu0
    %v3416 = vmax.f32 %v3257, 0.0
    %v3417 = vmax.f32 %v3259, 0.0
    %v3418 = vmax.f32 %v3262, 0.0
    %v3419 = vmax.f32 %v3264, 0.0
    %v3420 = vmax.f32 %v3267, 0.0
    %v3421 = vmax.f32 %v3269, 0.0
    %v3422 = vmax.f32 %v3272, 0.0
    %v3423 = vmax.f32 %v3274, 0.0
    %v3424 = vmax.f32 %v3277, 0.0
    %v3425 = vmax.f32 %v3279, 0.0
    %v3426 = vmax.f32 %v3282, 0.0
    %v3427 = vmax.f32 %v3284, 0.0
    %v3428 = vmax.f32 %v3287, 0.0
    %v3429 = vmax.f32 %v3289, 0.0
    %v3430 = vmax.f32 %v3292, 0.0
    %v3431 = vmax.f32 %v3294, 0.0
    %v3432 = vmax.f32 %v3297, 0.0
    %v3433 = vmax.f32 %v3299, 0.0
    %v3434 = vmax.f32 %v3302, 0.0
    %v3435 = vmax.f32 %v3304, 0.0
    %v3436 = vmax.f32 %v3307, 0.0
    %v3437 = vmax.f32 %v3309, 0.0
    %v3438 = vmax.f32 %v3312, 0.0
    %v3439 = vmax.f32 %v3314, 0.0
    %v3440 = vmax.f32 %v3317, 0.0
    %v3441 = vmax.f32 %v3319, 0.0
    %v3442 = vmax.f32 %v3322, 0.0
    %v3443 = vmax.f32 %v3324, 0.0
    %v3444 = vmax.f32 %v3327, 0.0
    %v3445 = vmax.f32 %v3329, 0.0
    %v3446 = vmax.f32 %v3332, 0.0
    %v3447 = vmax.f32 %v3334, 0.0
    %v3448 = vmax.f32 %v3337, 0.0
    %v3449 = vmax.f32 %v3339, 0.0
    %v3450 = vmax.f32 %v3342, 0.0
    %v3451 = vmax.f32 %v3344, 0.0
    %v3452 = vmax.f32 %v3347, 0.0
    %v3453 = vmax.f32 %v3349, 0.0
    %v3454 = vmax.f32 %v3352, 0.0
    %v3455 = vmax.f32 %v3354, 0.0
    %v3456 = vmax.f32 %v3357, 0.0
    %v3457 = vmax.f32 %v3359, 0.0
    %v3458 = vmax.f32 %v3362, 0.0
    %v3459 = vmax.f32 %v3364, 0.0
    %v3460 = vmax.f32 %v3367, 0.0
    %v3461 = vmax.f32 %v3369, 0.0
    %v3462 = vmax.f32 %v3372, 0.0
    %v3463 = vmax.f32 %v3374, 0.0
    %v3464 = vmax.f32 %v3377, 0.0
    %v3465 = vmax.f32 %v3379, 0.0
    %v3466 = vmax.f32 %v3382, 0.0
    %v3467 = vmax.f32 %v3384, 0.0
    %v3468 = vmax.f32 %v3387, 0.0
    %v3469 = vmax.f32 %v3389, 0.0
    %v3470 = vmax.f32 %v3392, 0.0
    %v3471 = vmax.f32 %v3394, 0.0
    %v3472 = vmax.f32 %v3397, 0.0
    %v3473 = vmax.f32 %v3399, 0.0
    %v3474 = vmax.f32 %v3402, 0.0
    %v3475 = vmax.f32 %v3404, 0.0
    %v3476 = vmax.f32 %v3407, 0.0
    %v3477 = vmax.f32 %v3409, 0.0
    %v3478 = vmax.f32 %v3412, 0.0
    %v3479 = vmax.f32 %v3414, 0.0
    %v3480 = vmul.f32 %v3416, %v3416
    %v3481 = vmul.f32 %v3417, %v3417
    %v3482 = vmul.f32 %v3418, %v3418
    %v3483 = vmul.f32 %v3419, %v3419
    %v3484 = vmul.f32 %v3420, %v3420
    %v3485 = vmul.f32 %v3421, %v3421
    %v3486 = vmul.f32 %v3422, %v3422
    %v3487 = vmul.f32 %v3423, %v3423
    %v3488 = vmul.f32 %v3424, %v3424
    %v3489 = vmul.f32 %v3425, %v3425
    %v3490 = vmul.f32 %v3426, %v3426
    %v3491 = vmul.f32 %v3427, %v3427
    %v3492 = vmul.f32 %v3428, %v3428
    %v3493 = vmul.f32 %v3429, %v3429
    %v3494 = vmul.f32 %v3430, %v3430
    %v3495 = vmul.f32 %v3431, %v3431
    %v3496 = vmul.f32 %v3432, %v3432
    %v3497 = vmul.f32 %v3433, %v3433
    %v3498 = vmul.f32 %v3434, %v3434
    %v3499 = vmul.f32 %v3435, %v3435
    %v3500 = vmul.f32 %v3436, %v3436
    %v3501 = vmul.f32 %v3437, %v3437
    %v3502 = vmul.f32 %v3438, %v3438
    %v3503 = vmul.f32 %v3439, %v3439
    %v3504 = vmul.f32 %v3440, %v3440
    %v3505 = vmul.f32 %v3441, %v3441
    %v3506 = vmul.f32 %v3442, %v3442
    %v3507 = vmul.f32 %v3443, %v3443
    %v3508 = vmul.f32 %v3444, %v3444
    %v3509 = vmul.f32 %v3445, %v3445
    %v3510 = vmul.f32 %v3446, %v3446
    %v3511 = vmul.f32 %v3447, %v3447
    %v3512 = vmul.f32 %v3448, %v3448
    %v3513 = vmul.f32 %v3449, %v3449
    %v3514 = vmul.f32 %v3450, %v3450
    %v3515 = vmul.f32 %v3451, %v3451
    %v3516 = vmul.f32 %v3452, %v3452
    %v3517 = vmul.f32 %v3453, %v3453
    %v3518 = vmul.f32 %v3454, %v3454
    %v3519 = vmul.f32 %v3455, %v3455
    %v3520 = vmul.f32 %v3456, %v3456
    %v3521 = vmul.f32 %v3457, %v3457
    %v3522 = vmul.f32 %v3458, %v3458
    %v3523 = vmul.f32 %v3459, %v3459
    %v3524 = vmul.f32 %v3460, %v3460
    %v3525 = vmul.f32 %v3461, %v3461
    %v3526 = vmul.f32 %v3462, %v3462
    %v3527 = vmul.f32 %v3463, %v3463
    %v3528 = vmul.f32 %v3464, %v3464
    %v3529 = vmul.f32 %v3465, %v3465
    %v3530 = vmul.f32 %v3466, %v3466
    %v3531 = vmul.f32 %v3467, %v3467
    %v3532 = vmul.f32 %v3468, %v3468
    %v3533 = vmul.f32 %v3469, %v3469
    %v3534 = vmul.f32 %v3470, %v3470
    %v3535 = vmul.f32 %v3471, %v3471
    %v3536 = vmul.f32 %v3472, %v3472
    %v3537 = vmul.f32 %v3473, %v3473
    %v3538 = vmul.f32 %v3474, %v3474
    %v3539 = vmul.f32 %v3475, %v3475
    %v3540 = vmul.f32 %v3476, %v3476
    %v3541 = vmul.f32 %v3477, %v3477
    %v3542 = vmul.f32 %v3478, %v3478
    %v3543 = vmul.f32 %v3479, %v3479
    %3544 = vadd.xlane.f32.xlu0 %v3480
    %v3545 = vpop.xlane.xlu0 %3544
    %3546 = vadd.xlane.f32.xlu0 %v3481
    %v3547 = vpop.xlane.xlu0 %3546
    %3548 = vadd.xlane.f32.xlu0 %v3482
    %v3549 = vpop.xlane.xlu0 %3548
    %3550 = vadd.xlane.f32.xlu0 %v3483
    %v3551 = vpop.xlane.xlu0 %3550
    %3552 = vadd.xlane.f32.xlu0 %v3484
    %v3553 = vpop.xlane.xlu0 %3552
    %3554 = vadd.xlane.f32.xlu0 %v3485
    %v3555 = vpop.xlane.xlu0 %3554
    %3556 = vadd.xlane.f32.xlu0 %v3486
    %v3557 = vpop.xlane.xlu0 %3556
    %3558 = vadd.xlane.f32.xlu0 %v3487
    %v3559 = vpop.xlane.xlu0 %3558
    %3560 = vadd.xlane.f32.xlu0 %v3488
    %v3561 = vpop.xlane.xlu0 %3560
    %3562 = vadd.xlane.f32.xlu0 %v3489
    %v3563 = vpop.xlane.xlu0 %3562
    %3564 = vadd.xlane.f32.xlu0 %v3490
    %v3565 = vpop.xlane.xlu0 %3564
    %3566 = vadd.xlane.f32.xlu0 %v3491
    %v3567 = vpop.xlane.xlu0 %3566
    %3568 = vadd.xlane.f32.xlu0 %v3492
    %v3569 = vpop.xlane.xlu0 %3568
    %3570 = vadd.xlane.f32.xlu0 %v3493
    %v3571 = vpop.xlane.xlu0 %3570
    %3572 = vadd.xlane.f32.xlu0 %v3494
    %v3573 = vpop.xlane.xlu0 %3572
    %3574 = vadd.xlane.f32.xlu0 %v3495
    %v3575 = vpop.xlane.xlu0 %3574
    %3576 = vadd.xlane.f32.xlu0 %v3496
    %v3577 = vpop.xlane.xlu0 %3576
    %3578 = vadd.xlane.f32.xlu0 %v3497
    %v3579 = vpop.xlane.xlu0 %3578
    %3580 = vadd.xlane.f32.xlu0 %v3498
    %v3581 = vpop.xlane.xlu0 %3580
    %3582 = vadd.xlane.f32.xlu0 %v3499
    %v3583 = vpop.xlane.xlu0 %3582
    %3584 = vadd.xlane.f32.xlu0 %v3500
    %v3585 = vpop.xlane.xlu0 %3584
    %3586 = vadd.xlane.f32.xlu0 %v3501
    %v3587 = vpop.xlane.xlu0 %3586
    %3588 = vadd.xlane.f32.xlu0 %v3502
    %v3589 = vpop.xlane.xlu0 %3588
    %3590 = vadd.xlane.f32.xlu0 %v3503
    %v3591 = vpop.xlane.xlu0 %3590
    %3592 = vadd.xlane.f32.xlu0 %v3504
    %v3593 = vpop.xlane.xlu0 %3592
    %3594 = vadd.xlane.f32.xlu0 %v3505
    %v3595 = vpop.xlane.xlu0 %3594
    %3596 = vadd.xlane.f32.xlu0 %v3506
    %v3597 = vpop.xlane.xlu0 %3596
    %3598 = vadd.xlane.f32.xlu0 %v3507
    %v3599 = vpop.xlane.xlu0 %3598
    %3600 = vadd.xlane.f32.xlu0 %v3508
    %v3601 = vpop.xlane.xlu0 %3600
    %3602 = vadd.xlane.f32.xlu0 %v3509
    %v3603 = vpop.xlane.xlu0 %3602
    %3604 = vadd.xlane.f32.xlu0 %v3510
    %v3605 = vpop.xlane.xlu0 %3604
    %3606 = vadd.xlane.f32.xlu0 %v3511
    %v3607 = vpop.xlane.xlu0 %3606
    %3608 = vadd.xlane.f32.xlu0 %v3512
    %v3609 = vpop.xlane.xlu0 %3608
    %3610 = vadd.xlane.f32.xlu0 %v3513
    %v3611 = vpop.xlane.xlu0 %3610
    %3612 = vadd.xlane.f32.xlu0 %v3514
    %v3613 = vpop.xlane.xlu0 %3612
    %3614 = vadd.xlane.f32.xlu0 %v3515
    %v3615 = vpop.xlane.xlu0 %3614
    %3616 = vadd.xlane.f32.xlu0 %v3516
    %v3617 = vpop.xlane.xlu0 %3616
    %3618 = vadd.xlane.f32.xlu0 %v3517
    %v3619 = vpop.xlane.xlu0 %3618
    %3620 = vadd.xlane.f32.xlu0 %v3518
    %v3621 = vpop.xlane.xlu0 %3620
    %3622 = vadd.xlane.f32.xlu0 %v3519
    %v3623 = vpop.xlane.xlu0 %3622
    %3624 = vadd.xlane.f32.xlu0 %v3520
    %v3625 = vpop.xlane.xlu0 %3624
    %3626 = vadd.xlane.f32.xlu0 %v3521
    %v3627 = vpop.xlane.xlu0 %3626
    %3628 = vadd.xlane.f32.xlu0 %v3522
    %v3629 = vpop.xlane.xlu0 %3628
    %3630 = vadd.xlane.f32.xlu0 %v3523
    %v3631 = vpop.xlane.xlu0 %3630
    %3632 = vadd.xlane.f32.xlu0 %v3524
    %v3633 = vpop.xlane.xlu0 %3632
    %3634 = vadd.xlane.f32.xlu0 %v3525
    %v3635 = vpop.xlane.xlu0 %3634
    %3636 = vadd.xlane.f32.xlu0 %v3526
    %v3637 = vpop.xlane.xlu0 %3636
    %3638 = vadd.xlane.f32.xlu0 %v3527
    %v3639 = vpop.xlane.xlu0 %3638
    %3640 = vadd.xlane.f32.xlu0 %v3528
    %v3641 = vpop.xlane.xlu0 %3640
    %3642 = vadd.xlane.f32.xlu0 %v3529
    %v3643 = vpop.xlane.xlu0 %3642
    %3644 = vadd.xlane.f32.xlu0 %v3530
    %v3645 = vpop.xlane.xlu0 %3644
    %3646 = vadd.xlane.f32.xlu0 %v3531
    %v3647 = vpop.xlane.xlu0 %3646
    %3648 = vadd.xlane.f32.xlu0 %v3532
    %v3649 = vpop.xlane.xlu0 %3648
    %3650 = vadd.xlane.f32.xlu0 %v3533
    %v3651 = vpop.xlane.xlu0 %3650
    %3652 = vadd.xlane.f32.xlu0 %v3534
    %v3653 = vpop.xlane.xlu0 %3652
    %3654 = vadd.xlane.f32.xlu0 %v3535
    %v3655 = vpop.xlane.xlu0 %3654
    %3656 = vadd.xlane.f32.xlu0 %v3536
    %v3657 = vpop.xlane.xlu0 %3656
    %3658 = vadd.xlane.f32.xlu0 %v3537
    %v3659 = vpop.xlane.xlu0 %3658
    %3660 = vadd.xlane.f32.xlu0 %v3538
    %v3661 = vpop.xlane.xlu0 %3660
    %3662 = vadd.xlane.f32.xlu0 %v3539
    %v3663 = vpop.xlane.xlu0 %3662
    %3664 = vadd.xlane.f32.xlu0 %v3540
    %v3665 = vpop.xlane.xlu0 %3664
    %3666 = vadd.xlane.f32.xlu0 %v3541
    %v3667 = vpop.xlane.xlu0 %3666
    %3668 = vadd.xlane.f32.xlu0 %v3542
    %v3669 = vpop.xlane.xlu0 %3668
    %3670 = vadd.xlane.f32.xlu0 %v3543
    %v3671 = vpop.xlane.xlu0 %3670
    %v3672 = vmax.f32 %v3545, 1e-24
    %v3673 = vmax.f32 %v3547, 1e-24
    %v3674 = vmax.f32 %v3549, 1e-24
    %v3675 = vmax.f32 %v3551, 1e-24
    %v3676 = vmax.f32 %v3553, 1e-24
    %v3677 = vmax.f32 %v3555, 1e-24
    %v3678 = vmax.f32 %v3557, 1e-24
    %v3679 = vmax.f32 %v3559, 1e-24
    %v3680 = vmax.f32 %v3561, 1e-24
    %v3681 = vmax.f32 %v3563, 1e-24
    %v3682 = vmax.f32 %v3565, 1e-24
    %v3683 = vmax.f32 %v3567, 1e-24
    %v3684 = vmax.f32 %v3569, 1e-24
    %v3685 = vmax.f32 %v3571, 1e-24
    %v3686 = vmax.f32 %v3573, 1e-24
    %v3687 = vmax.f32 %v3575, 1e-24
    %v3688 = vmax.f32 %v3577, 1e-24
    %v3689 = vmax.f32 %v3579, 1e-24
    %v3690 = vmax.f32 %v3581, 1e-24
    %v3691 = vmax.f32 %v3583, 1e-24
    %v3692 = vmax.f32 %v3585, 1e-24
    %v3693 = vmax.f32 %v3587, 1e-24
    %v3694 = vmax.f32 %v3589, 1e-24
    %v3695 = vmax.f32 %v3591, 1e-24
    %v3696 = vmax.f32 %v3593, 1e-24
    %v3697 = vmax.f32 %v3595, 1e-24
    %v3698 = vmax.f32 %v3597, 1e-24
    %v3699 = vmax.f32 %v3599, 1e-24
    %v3700 = vmax.f32 %v3601, 1e-24
    %v3701 = vmax.f32 %v3603, 1e-24
    %v3702 = vmax.f32 %v3605, 1e-24
    %v3703 = vmax.f32 %v3607, 1e-24
    %v3704 = vmax.f32 %v3609, 1e-24
    %v3705 = vmax.f32 %v3611, 1e-24
    %v3706 = vmax.f32 %v3613, 1e-24
    %v3707 = vmax.f32 %v3615, 1e-24
    %v3708 = vmax.f32 %v3617, 1e-24
    %v3709 = vmax.f32 %v3619, 1e-24
    %v3710 = vmax.f32 %v3621, 1e-24
    %v3711 = vmax.f32 %v3623, 1e-24
    %v3712 = vmax.f32 %v3625, 1e-24
    %v3713 = vmax.f32 %v3627, 1e-24
    %v3714 = vmax.f32 %v3629, 1e-24
    %v3715 = vmax.f32 %v3631, 1e-24
    %v3716 = vmax.f32 %v3633, 1e-24
    %v3717 = vmax.f32 %v3635, 1e-24
    %v3718 = vmax.f32 %v3637, 1e-24
    %v3719 = vmax.f32 %v3639, 1e-24
    %v3720 = vmax.f32 %v3641, 1e-24
    %v3721 = vmax.f32 %v3643, 1e-24
    %v3722 = vmax.f32 %v3645, 1e-24
    %v3723 = vmax.f32 %v3647, 1e-24
    %v3724 = vmax.f32 %v3649, 1e-24
    %v3725 = vmax.f32 %v3651, 1e-24
    %v3726 = vmax.f32 %v3653, 1e-24
    %v3727 = vmax.f32 %v3655, 1e-24
    %v3728 = vmax.f32 %v3657, 1e-24
    %v3729 = vmax.f32 %v3659, 1e-24
    %v3730 = vmax.f32 %v3661, 1e-24
    %v3731 = vmax.f32 %v3663, 1e-24
    %v3732 = vmax.f32 %v3665, 1e-24
    %v3733 = vmax.f32 %v3667, 1e-24
    %v3734 = vmax.f32 %v3669, 1e-24
    %v3735 = vmax.f32 %v3671, 1e-24
    %v3736 = vrsqrt.pop %v3672
    %v3737 = vmul.f32 %v3736, %v3672
    %v3738 = vmul.f32 %v3737, %v3736
    %v3739 = vmul.f32 0.5, %v3738
    %v3740 = vsub.f32 1.5, %v3739
    %v3741 = vmul.f32 %v3736, %v3740
    %vm3742 = vweird.f32 %v3672
    %vm3743 = vweird.f32 %v3736
    %vm3744 = vmor %vm3742, %vm3743
    %v3745 = vsel %vm3744, %v3736, %v3741
    %v3746 = vrsqrt.pop %v3673
    %v3747 = vmul.f32 %v3746, %v3673
    %v3748 = vmul.f32 %v3747, %v3746
    %v3749 = vmul.f32 0.5, %v3748
    %v3750 = vsub.f32 1.5, %v3749
    %v3751 = vmul.f32 %v3746, %v3750
    %vm3752 = vweird.f32 %v3673
    %vm3753 = vweird.f32 %v3746
    %vm3754 = vmor %vm3752, %vm3753
    %v3755 = vsel %vm3754, %v3746, %v3751
    %v3756 = vrsqrt.pop %v3674
    %v3757 = vmul.f32 %v3756, %v3674
    %v3758 = vmul.f32 %v3757, %v3756
    %v3759 = vmul.f32 0.5, %v3758
    %v3760 = vsub.f32 1.5, %v3759
    %v3761 = vmul.f32 %v3756, %v3760
    %vm3762 = vweird.f32 %v3674
    %vm3763 = vweird.f32 %v3756
    %vm3764 = vmor %vm3762, %vm3763
    %v3765 = vsel %vm3764, %v3756, %v3761
    %v3766 = vrsqrt.pop %v3675
    %v3767 = vmul.f32 %v3766, %v3675
    %v3768 = vmul.f32 %v3767, %v3766
    %v3769 = vmul.f32 0.5, %v3768
    %v3770 = vsub.f32 1.5, %v3769
    %v3771 = vmul.f32 %v3766, %v3770
    %vm3772 = vweird.f32 %v3675
    %vm3773 = vweird.f32 %v3766
    %vm3774 = vmor %vm3772, %vm3773
    %v3775 = vsel %vm3774, %v3766, %v3771
    %v3776 = vrsqrt.pop %v3676
    %v3777 = vmul.f32 %v3776, %v3676
    %v3778 = vmul.f32 %v3777, %v3776
    %v3779 = vmul.f32 0.5, %v3778
    %v3780 = vsub.f32 1.5, %v3779
    %v3781 = vmul.f32 %v3776, %v3780
    %vm3782 = vweird.f32 %v3676
    %vm3783 = vweird.f32 %v3776
    %vm3784 = vmor %vm3782, %vm3783
    %v3785 = vsel %vm3784, %v3776, %v3781
    %v3786 = vrsqrt.pop %v3677
    %v3787 = vmul.f32 %v3786, %v3677
    %v3788 = vmul.f32 %v3787, %v3786
    %v3789 = vmul.f32 0.5, %v3788
    %v3790 = vsub.f32 1.5, %v3789
    %v3791 = vmul.f32 %v3786, %v3790
    %vm3792 = vweird.f32 %v3677
    %vm3793 = vweird.f32 %v3786
    %vm3794 = vmor %vm3792, %vm3793
    %v3795 = vsel %vm3794, %v3786, %v3791
    %v3796 = vrsqrt.pop %v3678
    %v3797 = vmul.f32 %v3796, %v3678
    %v3798 = vmul.f32 %v3797, %v3796
    %v3799 = vmul.f32 0.5, %v3798
    %v3800 = vsub.f32 1.5, %v3799
    %v3801 = vmul.f32 %v3796, %v3800
    %vm3802 = vweird.f32 %v3678
    %vm3803 = vweird.f32 %v3796
    %vm3804 = vmor %vm3802, %vm3803
    %v3805 = vsel %vm3804, %v3796, %v3801
    %v3806 = vrsqrt.pop %v3679
    %v3807 = vmul.f32 %v3806, %v3679
    %v3808 = vmul.f32 %v3807, %v3806
    %v3809 = vmul.f32 0.5, %v3808
    %v3810 = vsub.f32 1.5, %v3809
    %v3811 = vmul.f32 %v3806, %v3810
    %vm3812 = vweird.f32 %v3679
    %vm3813 = vweird.f32 %v3806
    %vm3814 = vmor %vm3812, %vm3813
    %v3815 = vsel %vm3814, %v3806, %v3811
    %v3816 = vrsqrt.pop %v3680
    %v3817 = vmul.f32 %v3816, %v3680
    %v3818 = vmul.f32 %v3817, %v3816
    %v3819 = vmul.f32 0.5, %v3818
    %v3820 = vsub.f32 1.5, %v3819
    %v3821 = vmul.f32 %v3816, %v3820
    %vm3822 = vweird.f32 %v3680
    %vm3823 = vweird.f32 %v3816
    %vm3824 = vmor %vm3822, %vm3823
    %v3825 = vsel %vm3824, %v3816, %v3821
    %v3826 = vrsqrt.pop %v3681
    %v3827 = vmul.f32 %v3826, %v3681
    %v3828 = vmul.f32 %v3827, %v3826
    %v3829 = vmul.f32 0.5, %v3828
    %v3830 = vsub.f32 1.5, %v3829
    %v3831 = vmul.f32 %v3826, %v3830
    %vm3832 = vweird.f32 %v3681
    %vm3833 = vweird.f32 %v3826
    %vm3834 = vmor %vm3832, %vm3833
    %v3835 = vsel %vm3834, %v3826, %v3831
    %v3836 = vrsqrt.pop %v3682
    %v3837 = vmul.f32 %v3836, %v3682
    %v3838 = vmul.f32 %v3837, %v3836
    %v3839 = vmul.f32 0.5, %v3838
    %v3840 = vsub.f32 1.5, %v3839
    %v3841 = vmul.f32 %v3836, %v3840
    %vm3842 = vweird.f32 %v3682
    %vm3843 = vweird.f32 %v3836
    %vm3844 = vmor %vm3842, %vm3843
    %v3845 = vsel %vm3844, %v3836, %v3841
    %v3846 = vrsqrt.pop %v3683
    %v3847 = vmul.f32 %v3846, %v3683
    %v3848 = vmul.f32 %v3847, %v3846
    %v3849 = vmul.f32 0.5, %v3848
    %v3850 = vsub.f32 1.5, %v3849
    %v3851 = vmul.f32 %v3846, %v3850
    %vm3852 = vweird.f32 %v3683
    %vm3853 = vweird.f32 %v3846
    %vm3854 = vmor %vm3852, %vm3853
    %v3855 = vsel %vm3854, %v3846, %v3851
    %v3856 = vrsqrt.pop %v3684
    %v3857 = vmul.f32 %v3856, %v3684
    %v3858 = vmul.f32 %v3857, %v3856
    %v3859 = vmul.f32 0.5, %v3858
    %v3860 = vsub.f32 1.5, %v3859
    %v3861 = vmul.f32 %v3856, %v3860
    %vm3862 = vweird.f32 %v3684
    %vm3863 = vweird.f32 %v3856
    %vm3864 = vmor %vm3862, %vm3863
    %v3865 = vsel %vm3864, %v3856, %v3861
    %v3866 = vrsqrt.pop %v3685
    %v3867 = vmul.f32 %v3866, %v3685
    %v3868 = vmul.f32 %v3867, %v3866
    %v3869 = vmul.f32 0.5, %v3868
    %v3870 = vsub.f32 1.5, %v3869
    %v3871 = vmul.f32 %v3866, %v3870
    %vm3872 = vweird.f32 %v3685
    %vm3873 = vweird.f32 %v3866
    %vm3874 = vmor %vm3872, %vm3873
    %v3875 = vsel %vm3874, %v3866, %v3871
    %v3876 = vrsqrt.pop %v3686
    %v3877 = vmul.f32 %v3876, %v3686
    %v3878 = vmul.f32 %v3877, %v3876
    %v3879 = vmul.f32 0.5, %v3878
    %v3880 = vsub.f32 1.5, %v3879
    %v3881 = vmul.f32 %v3876, %v3880
    %vm3882 = vweird.f32 %v3686
    %vm3883 = vweird.f32 %v3876
    %vm3884 = vmor %vm3882, %vm3883
    %v3885 = vsel %vm3884, %v3876, %v3881
    %v3886 = vrsqrt.pop %v3687
    %v3887 = vmul.f32 %v3886, %v3687
    %v3888 = vmul.f32 %v3887, %v3886
    %v3889 = vmul.f32 0.5, %v3888
    %v3890 = vsub.f32 1.5, %v3889
    %v3891 = vmul.f32 %v3886, %v3890
    %vm3892 = vweird.f32 %v3687
    %vm3893 = vweird.f32 %v3886
    %vm3894 = vmor %vm3892, %vm3893
    %v3895 = vsel %vm3894, %v3886, %v3891
    %v3896 = vrsqrt.pop %v3688
    %v3897 = vmul.f32 %v3896, %v3688
    %v3898 = vmul.f32 %v3897, %v3896
    %v3899 = vmul.f32 0.5, %v3898
    %v3900 = vsub.f32 1.5, %v3899
    %v3901 = vmul.f32 %v3896, %v3900
    %vm3902 = vweird.f32 %v3688
    %vm3903 = vweird.f32 %v3896
    %vm3904 = vmor %vm3902, %vm3903
    %v3905 = vsel %vm3904, %v3896, %v3901
    %v3906 = vrsqrt.pop %v3689
    %v3907 = vmul.f32 %v3906, %v3689
    %v3908 = vmul.f32 %v3907, %v3906
    %v3909 = vmul.f32 0.5, %v3908
    %v3910 = vsub.f32 1.5, %v3909
    %v3911 = vmul.f32 %v3906, %v3910
    %vm3912 = vweird.f32 %v3689
    %vm3913 = vweird.f32 %v3906
    %vm3914 = vmor %vm3912, %vm3913
    %v3915 = vsel %vm3914, %v3906, %v3911
    %v3916 = vrsqrt.pop %v3690
    %v3917 = vmul.f32 %v3916, %v3690
    %v3918 = vmul.f32 %v3917, %v3916
    %v3919 = vmul.f32 0.5, %v3918
    %v3920 = vsub.f32 1.5, %v3919
    %v3921 = vmul.f32 %v3916, %v3920
    %vm3922 = vweird.f32 %v3690
    %vm3923 = vweird.f32 %v3916
    %vm3924 = vmor %vm3922, %vm3923
    %v3925 = vsel %vm3924, %v3916, %v3921
    %v3926 = vrsqrt.pop %v3691
    %v3927 = vmul.f32 %v3926, %v3691
    %v3928 = vmul.f32 %v3927, %v3926
    %v3929 = vmul.f32 0.5, %v3928
    %v3930 = vsub.f32 1.5, %v3929
    %v3931 = vmul.f32 %v3926, %v3930
    %vm3932 = vweird.f32 %v3691
    %vm3933 = vweird.f32 %v3926
    %vm3934 = vmor %vm3932, %vm3933
    %v3935 = vsel %vm3934, %v3926, %v3931
    %v3936 = vrsqrt.pop %v3692
    %v3937 = vmul.f32 %v3936, %v3692
    %v3938 = vmul.f32 %v3937, %v3936
    %v3939 = vmul.f32 0.5, %v3938
    %v3940 = vsub.f32 1.5, %v3939
    %v3941 = vmul.f32 %v3936, %v3940
    %vm3942 = vweird.f32 %v3692
    %vm3943 = vweird.f32 %v3936
    %vm3944 = vmor %vm3942, %vm3943
    %v3945 = vsel %vm3944, %v3936, %v3941
    %v3946 = vrsqrt.pop %v3693
    %v3947 = vmul.f32 %v3946, %v3693
    %v3948 = vmul.f32 %v3947, %v3946
    %v3949 = vmul.f32 0.5, %v3948
    %v3950 = vsub.f32 1.5, %v3949
    %v3951 = vmul.f32 %v3946, %v3950
    %vm3952 = vweird.f32 %v3693
    %vm3953 = vweird.f32 %v3946
    %vm3954 = vmor %vm3952, %vm3953
    %v3955 = vsel %vm3954, %v3946, %v3951
    %v3956 = vrsqrt.pop %v3694
    %v3957 = vmul.f32 %v3956, %v3694
    %v3958 = vmul.f32 %v3957, %v3956
    %v3959 = vmul.f32 0.5, %v3958
    %v3960 = vsub.f32 1.5, %v3959
    %v3961 = vmul.f32 %v3956, %v3960
    %vm3962 = vweird.f32 %v3694
    %vm3963 = vweird.f32 %v3956
    %vm3964 = vmor %vm3962, %vm3963
    %v3965 = vsel %vm3964, %v3956, %v3961
    %v3966 = vrsqrt.pop %v3695
    %v3967 = vmul.f32 %v3966, %v3695
    %v3968 = vmul.f32 %v3967, %v3966
    %v3969 = vmul.f32 0.5, %v3968
    %v3970 = vsub.f32 1.5, %v3969
    %v3971 = vmul.f32 %v3966, %v3970
    %vm3972 = vweird.f32 %v3695
    %vm3973 = vweird.f32 %v3966
    %vm3974 = vmor %vm3972, %vm3973
    %v3975 = vsel %vm3974, %v3966, %v3971
    %v3976 = vrsqrt.pop %v3696
    %v3977 = vmul.f32 %v3976, %v3696
    %v3978 = vmul.f32 %v3977, %v3976
    %v3979 = vmul.f32 0.5, %v3978
    %v3980 = vsub.f32 1.5, %v3979
    %v3981 = vmul.f32 %v3976, %v3980
    %vm3982 = vweird.f32 %v3696
    %vm3983 = vweird.f32 %v3976
    %vm3984 = vmor %vm3982, %vm3983
    %v3985 = vsel %vm3984, %v3976, %v3981
    %v3986 = vrsqrt.pop %v3697
    %v3987 = vmul.f32 %v3986, %v3697
    %v3988 = vmul.f32 %v3987, %v3986
    %v3989 = vmul.f32 0.5, %v3988
    %v3990 = vsub.f32 1.5, %v3989
    %v3991 = vmul.f32 %v3986, %v3990
    %vm3992 = vweird.f32 %v3697
    %vm3993 = vweird.f32 %v3986
    %vm3994 = vmor %vm3992, %vm3993
    %v3995 = vsel %vm3994, %v3986, %v3991
    %v3996 = vrsqrt.pop %v3698
    %v3997 = vmul.f32 %v3996, %v3698
    %v3998 = vmul.f32 %v3997, %v3996
    %v3999 = vmul.f32 0.5, %v3998
    %v4000 = vsub.f32 1.5, %v3999
    %v4001 = vmul.f32 %v3996, %v4000
    %vm4002 = vweird.f32 %v3698
    %vm4003 = vweird.f32 %v3996
    %vm4004 = vmor %vm4002, %vm4003
    %v4005 = vsel %vm4004, %v3996, %v4001
    %v4006 = vrsqrt.pop %v3699
    %v4007 = vmul.f32 %v4006, %v3699
    %v4008 = vmul.f32 %v4007, %v4006
    %v4009 = vmul.f32 0.5, %v4008
    %v4010 = vsub.f32 1.5, %v4009
    %v4011 = vmul.f32 %v4006, %v4010
    %vm4012 = vweird.f32 %v3699
    %vm4013 = vweird.f32 %v4006
    %vm4014 = vmor %vm4012, %vm4013
    %v4015 = vsel %vm4014, %v4006, %v4011
    %v4016 = vrsqrt.pop %v3700
    %v4017 = vmul.f32 %v4016, %v3700
    %v4018 = vmul.f32 %v4017, %v4016
    %v4019 = vmul.f32 0.5, %v4018
    %v4020 = vsub.f32 1.5, %v4019
    %v4021 = vmul.f32 %v4016, %v4020
    %vm4022 = vweird.f32 %v3700
    %vm4023 = vweird.f32 %v4016
    %vm4024 = vmor %vm4022, %vm4023
    %v4025 = vsel %vm4024, %v4016, %v4021
    %v4026 = vrsqrt.pop %v3701
    %v4027 = vmul.f32 %v4026, %v3701
    %v4028 = vmul.f32 %v4027, %v4026
    %v4029 = vmul.f32 0.5, %v4028
    %v4030 = vsub.f32 1.5, %v4029
    %v4031 = vmul.f32 %v4026, %v4030
    %vm4032 = vweird.f32 %v3701
    %vm4033 = vweird.f32 %v4026
    %vm4034 = vmor %vm4032, %vm4033
    %v4035 = vsel %vm4034, %v4026, %v4031
    %v4036 = vrsqrt.pop %v3702
    %v4037 = vmul.f32 %v4036, %v3702
    %v4038 = vmul.f32 %v4037, %v4036
    %v4039 = vmul.f32 0.5, %v4038
    %v4040 = vsub.f32 1.5, %v4039
    %v4041 = vmul.f32 %v4036, %v4040
    %vm4042 = vweird.f32 %v3702
    %vm4043 = vweird.f32 %v4036
    %vm4044 = vmor %vm4042, %vm4043
    %v4045 = vsel %vm4044, %v4036, %v4041
    %v4046 = vrsqrt.pop %v3703
    %v4047 = vmul.f32 %v4046, %v3703
    %v4048 = vmul.f32 %v4047, %v4046
    %v4049 = vmul.f32 0.5, %v4048
    %v4050 = vsub.f32 1.5, %v4049
    %v4051 = vmul.f32 %v4046, %v4050
    %vm4052 = vweird.f32 %v3703
    %vm4053 = vweird.f32 %v4046
    %vm4054 = vmor %vm4052, %vm4053
    %v4055 = vsel %vm4054, %v4046, %v4051
    %v4056 = vrsqrt.pop %v3704
    %v4057 = vmul.f32 %v4056, %v3704
    %v4058 = vmul.f32 %v4057, %v4056
    %v4059 = vmul.f32 0.5, %v4058
    %v4060 = vsub.f32 1.5, %v4059
    %v4061 = vmul.f32 %v4056, %v4060
    %vm4062 = vweird.f32 %v3704
    %vm4063 = vweird.f32 %v4056
    %vm4064 = vmor %vm4062, %vm4063
    %v4065 = vsel %vm4064, %v4056, %v4061
    %v4066 = vrsqrt.pop %v3705
    %v4067 = vmul.f32 %v4066, %v3705
    %v4068 = vmul.f32 %v4067, %v4066
    %v4069 = vmul.f32 0.5, %v4068
    %v4070 = vsub.f32 1.5, %v4069
    %v4071 = vmul.f32 %v4066, %v4070
    %vm4072 = vweird.f32 %v3705
    %vm4073 = vweird.f32 %v4066
    %vm4074 = vmor %vm4072, %vm4073
    %v4075 = vsel %vm4074, %v4066, %v4071
    %v4076 = vrsqrt.pop %v3706
    %v4077 = vmul.f32 %v4076, %v3706
    %v4078 = vmul.f32 %v4077, %v4076
    %v4079 = vmul.f32 0.5, %v4078
    %v4080 = vsub.f32 1.5, %v4079
    %v4081 = vmul.f32 %v4076, %v4080
    %vm4082 = vweird.f32 %v3706
    %vm4083 = vweird.f32 %v4076
    %vm4084 = vmor %vm4082, %vm4083
    %v4085 = vsel %vm4084, %v4076, %v4081
    %v4086 = vrsqrt.pop %v3707
    %v4087 = vmul.f32 %v4086, %v3707
    %v4088 = vmul.f32 %v4087, %v4086
    %v4089 = vmul.f32 0.5, %v4088
    %v4090 = vsub.f32 1.5, %v4089
    %v4091 = vmul.f32 %v4086, %v4090
    %vm4092 = vweird.f32 %v3707
    %vm4093 = vweird.f32 %v4086
    %vm4094 = vmor %vm4092, %vm4093
    %v4095 = vsel %vm4094, %v4086, %v4091
    %v4096 = vrsqrt.pop %v3708
    %v4097 = vmul.f32 %v4096, %v3708
    %v4098 = vmul.f32 %v4097, %v4096
    %v4099 = vmul.f32 0.5, %v4098
    %v4100 = vsub.f32 1.5, %v4099
    %v4101 = vmul.f32 %v4096, %v4100
    %vm4102 = vweird.f32 %v3708
    %vm4103 = vweird.f32 %v4096
    %vm4104 = vmor %vm4102, %vm4103
    %v4105 = vsel %vm4104, %v4096, %v4101
    %v4106 = vrsqrt.pop %v3709
    %v4107 = vmul.f32 %v4106, %v3709
    %v4108 = vmul.f32 %v4107, %v4106
    %v4109 = vmul.f32 0.5, %v4108
    %v4110 = vsub.f32 1.5, %v4109
    %v4111 = vmul.f32 %v4106, %v4110
    %vm4112 = vweird.f32 %v3709
    %vm4113 = vweird.f32 %v4106
    %vm4114 = vmor %vm4112, %vm4113
    %v4115 = vsel %vm4114, %v4106, %v4111
    %v4116 = vrsqrt.pop %v3710
    %v4117 = vmul.f32 %v4116, %v3710
    %v4118 = vmul.f32 %v4117, %v4116
    %v4119 = vmul.f32 0.5, %v4118
    %v4120 = vsub.f32 1.5, %v4119
    %v4121 = vmul.f32 %v4116, %v4120
    %vm4122 = vweird.f32 %v3710
    %vm4123 = vweird.f32 %v4116
    %vm4124 = vmor %vm4122, %vm4123
    %v4125 = vsel %vm4124, %v4116, %v4121
    %v4126 = vrsqrt.pop %v3711
    %v4127 = vmul.f32 %v4126, %v3711
    %v4128 = vmul.f32 %v4127, %v4126
    %v4129 = vmul.f32 0.5, %v4128
    %v4130 = vsub.f32 1.5, %v4129
    %v4131 = vmul.f32 %v4126, %v4130
    %vm4132 = vweird.f32 %v3711
    %vm4133 = vweird.f32 %v4126
    %vm4134 = vmor %vm4132, %vm4133
    %v4135 = vsel %vm4134, %v4126, %v4131
    %v4136 = vrsqrt.pop %v3712
    %v4137 = vmul.f32 %v4136, %v3712
    %v4138 = vmul.f32 %v4137, %v4136
    %v4139 = vmul.f32 0.5, %v4138
    %v4140 = vsub.f32 1.5, %v4139
    %v4141 = vmul.f32 %v4136, %v4140
    %vm4142 = vweird.f32 %v3712
    %vm4143 = vweird.f32 %v4136
    %vm4144 = vmor %vm4142, %vm4143
    %v4145 = vsel %vm4144, %v4136, %v4141
    %v4146 = vrsqrt.pop %v3713
    %v4147 = vmul.f32 %v4146, %v3713
    %v4148 = vmul.f32 %v4147, %v4146
    %v4149 = vmul.f32 0.5, %v4148
    %v4150 = vsub.f32 1.5, %v4149
    %v4151 = vmul.f32 %v4146, %v4150
    %vm4152 = vweird.f32 %v3713
    %vm4153 = vweird.f32 %v4146
    %vm4154 = vmor %vm4152, %vm4153
    %v4155 = vsel %vm4154, %v4146, %v4151
    %v4156 = vrsqrt.pop %v3714
    %v4157 = vmul.f32 %v4156, %v3714
    %v4158 = vmul.f32 %v4157, %v4156
    %v4159 = vmul.f32 0.5, %v4158
    %v4160 = vsub.f32 1.5, %v4159
    %v4161 = vmul.f32 %v4156, %v4160
    %vm4162 = vweird.f32 %v3714
    %vm4163 = vweird.f32 %v4156
    %vm4164 = vmor %vm4162, %vm4163
    %v4165 = vsel %vm4164, %v4156, %v4161
    %v4166 = vrsqrt.pop %v3715
    %v4167 = vmul.f32 %v4166, %v3715
    %v4168 = vmul.f32 %v4167, %v4166
    %v4169 = vmul.f32 0.5, %v4168
    %v4170 = vsub.f32 1.5, %v4169
    %v4171 = vmul.f32 %v4166, %v4170
    %vm4172 = vweird.f32 %v3715
    %vm4173 = vweird.f32 %v4166
    %vm4174 = vmor %vm4172, %vm4173
    %v4175 = vsel %vm4174, %v4166, %v4171
    %v4176 = vrsqrt.pop %v3716
    %v4177 = vmul.f32 %v4176, %v3716
    %v4178 = vmul.f32 %v4177, %v4176
    %v4179 = vmul.f32 0.5, %v4178
    %v4180 = vsub.f32 1.5, %v4179
    %v4181 = vmul.f32 %v4176, %v4180
    %vm4182 = vweird.f32 %v3716
    %vm4183 = vweird.f32 %v4176
    %vm4184 = vmor %vm4182, %vm4183
    %v4185 = vsel %vm4184, %v4176, %v4181
    %v4186 = vrsqrt.pop %v3717
    %v4187 = vmul.f32 %v4186, %v3717
    %v4188 = vmul.f32 %v4187, %v4186
    %v4189 = vmul.f32 0.5, %v4188
    %v4190 = vsub.f32 1.5, %v4189
    %v4191 = vmul.f32 %v4186, %v4190
    %vm4192 = vweird.f32 %v3717
    %vm4193 = vweird.f32 %v4186
    %vm4194 = vmor %vm4192, %vm4193
    %v4195 = vsel %vm4194, %v4186, %v4191
    %v4196 = vrsqrt.pop %v3718
    %v4197 = vmul.f32 %v4196, %v3718
    %v4198 = vmul.f32 %v4197, %v4196
    %v4199 = vmul.f32 0.5, %v4198
    %v4200 = vsub.f32 1.5, %v4199
    %v4201 = vmul.f32 %v4196, %v4200
    %vm4202 = vweird.f32 %v3718
    %vm4203 = vweird.f32 %v4196
    %vm4204 = vmor %vm4202, %vm4203
    %v4205 = vsel %vm4204, %v4196, %v4201
    %v4206 = vrsqrt.pop %v3719
    %v4207 = vmul.f32 %v4206, %v3719
    %v4208 = vmul.f32 %v4207, %v4206
    %v4209 = vmul.f32 0.5, %v4208
    %v4210 = vsub.f32 1.5, %v4209
    %v4211 = vmul.f32 %v4206, %v4210
    %vm4212 = vweird.f32 %v3719
    %vm4213 = vweird.f32 %v4206
    %vm4214 = vmor %vm4212, %vm4213
    %v4215 = vsel %vm4214, %v4206, %v4211
    %v4216 = vrsqrt.pop %v3720
    %v4217 = vmul.f32 %v4216, %v3720
    %v4218 = vmul.f32 %v4217, %v4216
    %v4219 = vmul.f32 0.5, %v4218
    %v4220 = vsub.f32 1.5, %v4219
    %v4221 = vmul.f32 %v4216, %v4220
    %vm4222 = vweird.f32 %v3720
    %vm4223 = vweird.f32 %v4216
    %vm4224 = vmor %vm4222, %vm4223
    %v4225 = vsel %vm4224, %v4216, %v4221
    %v4226 = vrsqrt.pop %v3721
    %v4227 = vmul.f32 %v4226, %v3721
    %v4228 = vmul.f32 %v4227, %v4226
    %v4229 = vmul.f32 0.5, %v4228
    %v4230 = vsub.f32 1.5, %v4229
    %v4231 = vmul.f32 %v4226, %v4230
    %vm4232 = vweird.f32 %v3721
    %vm4233 = vweird.f32 %v4226
    %vm4234 = vmor %vm4232, %vm4233
    %v4235 = vsel %vm4234, %v4226, %v4231
    %v4236 = vrsqrt.pop %v3722
    %v4237 = vmul.f32 %v4236, %v3722
    %v4238 = vmul.f32 %v4237, %v4236
    %v4239 = vmul.f32 0.5, %v4238
    %v4240 = vsub.f32 1.5, %v4239
    %v4241 = vmul.f32 %v4236, %v4240
    %vm4242 = vweird.f32 %v3722
    %vm4243 = vweird.f32 %v4236
    %vm4244 = vmor %vm4242, %vm4243
    %v4245 = vsel %vm4244, %v4236, %v4241
    %v4246 = vrsqrt.pop %v3723
    %v4247 = vmul.f32 %v4246, %v3723
    %v4248 = vmul.f32 %v4247, %v4246
    %v4249 = vmul.f32 0.5, %v4248
    %v4250 = vsub.f32 1.5, %v4249
    %v4251 = vmul.f32 %v4246, %v4250
    %vm4252 = vweird.f32 %v3723
    %vm4253 = vweird.f32 %v4246
    %vm4254 = vmor %vm4252, %vm4253
    %v4255 = vsel %vm4254, %v4246, %v4251
    %v4256 = vrsqrt.pop %v3724
    %v4257 = vmul.f32 %v4256, %v3724
    %v4258 = vmul.f32 %v4257, %v4256
    %v4259 = vmul.f32 0.5, %v4258
    %v4260 = vsub.f32 1.5, %v4259
    %v4261 = vmul.f32 %v4256, %v4260
    %vm4262 = vweird.f32 %v3724
    %vm4263 = vweird.f32 %v4256
    %vm4264 = vmor %vm4262, %vm4263
    %v4265 = vsel %vm4264, %v4256, %v4261
    %v4266 = vrsqrt.pop %v3725
    %v4267 = vmul.f32 %v4266, %v3725
    %v4268 = vmul.f32 %v4267, %v4266
    %v4269 = vmul.f32 0.5, %v4268
    %v4270 = vsub.f32 1.5, %v4269
    %v4271 = vmul.f32 %v4266, %v4270
    %vm4272 = vweird.f32 %v3725
    %vm4273 = vweird.f32 %v4266
    %vm4274 = vmor %vm4272, %vm4273
    %v4275 = vsel %vm4274, %v4266, %v4271
    %v4276 = vrsqrt.pop %v3726
    %v4277 = vmul.f32 %v4276, %v3726
    %v4278 = vmul.f32 %v4277, %v4276
    %v4279 = vmul.f32 0.5, %v4278
    %v4280 = vsub.f32 1.5, %v4279
    %v4281 = vmul.f32 %v4276, %v4280
    %vm4282 = vweird.f32 %v3726
    %vm4283 = vweird.f32 %v4276
    %vm4284 = vmor %vm4282, %vm4283
    %v4285 = vsel %vm4284, %v4276, %v4281
    %v4286 = vrsqrt.pop %v3727
    %v4287 = vmul.f32 %v4286, %v3727
    %v4288 = vmul.f32 %v4287, %v4286
    %v4289 = vmul.f32 0.5, %v4288
    %v4290 = vsub.f32 1.5, %v4289
    %v4291 = vmul.f32 %v4286, %v4290
    %vm4292 = vweird.f32 %v3727
    %vm4293 = vweird.f32 %v4286
    %vm4294 = vmor %vm4292, %vm4293
    %v4295 = vsel %vm4294, %v4286, %v4291
    %v4296 = vrsqrt.pop %v3728
    %v4297 = vmul.f32 %v4296, %v3728
    %v4298 = vmul.f32 %v4297, %v4296
    %v4299 = vmul.f32 0.5, %v4298
    %v4300 = vsub.f32 1.5, %v4299
    %v4301 = vmul.f32 %v4296, %v4300
    %vm4302 = vweird.f32 %v3728
    %vm4303 = vweird.f32 %v4296
    %vm4304 = vmor %vm4302, %vm4303
    %v4305 = vsel %vm4304, %v4296, %v4301
    %v4306 = vrsqrt.pop %v3729
    %v4307 = vmul.f32 %v4306, %v3729
    %v4308 = vmul.f32 %v4307, %v4306
    %v4309 = vmul.f32 0.5, %v4308
    %v4310 = vsub.f32 1.5, %v4309
    %v4311 = vmul.f32 %v4306, %v4310
    %vm4312 = vweird.f32 %v3729
    %vm4313 = vweird.f32 %v4306
    %vm4314 = vmor %vm4312, %vm4313
    %v4315 = vsel %vm4314, %v4306, %v4311
    %v4316 = vrsqrt.pop %v3730
    %v4317 = vmul.f32 %v4316, %v3730
    %v4318 = vmul.f32 %v4317, %v4316
    %v4319 = vmul.f32 0.5, %v4318
    %v4320 = vsub.f32 1.5, %v4319
    %v4321 = vmul.f32 %v4316, %v4320
    %vm4322 = vweird.f32 %v3730
    %vm4323 = vweird.f32 %v4316
    %vm4324 = vmor %vm4322, %vm4323
    %v4325 = vsel %vm4324, %v4316, %v4321
    %v4326 = vrsqrt.pop %v3731
    %v4327 = vmul.f32 %v4326, %v3731
    %v4328 = vmul.f32 %v4327, %v4326
    %v4329 = vmul.f32 0.5, %v4328
    %v4330 = vsub.f32 1.5, %v4329
    %v4331 = vmul.f32 %v4326, %v4330
    %vm4332 = vweird.f32 %v3731
    %vm4333 = vweird.f32 %v4326
    %vm4334 = vmor %vm4332, %vm4333
    %v4335 = vsel %vm4334, %v4326, %v4331
    %v4336 = vrsqrt.pop %v3732
    %v4337 = vmul.f32 %v4336, %v3732
    %v4338 = vmul.f32 %v4337, %v4336
    %v4339 = vmul.f32 0.5, %v4338
    %v4340 = vsub.f32 1.5, %v4339
    %v4341 = vmul.f32 %v4336, %v4340
    %vm4342 = vweird.f32 %v3732
    %vm4343 = vweird.f32 %v4336
    %vm4344 = vmor %vm4342, %vm4343
    %v4345 = vsel %vm4344, %v4336, %v4341
    %v4346 = vrsqrt.pop %v3733
    %v4347 = vmul.f32 %v4346, %v3733
    %v4348 = vmul.f32 %v4347, %v4346
    %v4349 = vmul.f32 0.5, %v4348
    %v4350 = vsub.f32 1.5, %v4349
    %v4351 = vmul.f32 %v4346, %v4350
    %vm4352 = vweird.f32 %v3733
    %vm4353 = vweird.f32 %v4346
    %vm4354 = vmor %vm4352, %vm4353
    %v4355 = vsel %vm4354, %v4346, %v4351
    %v4356 = vrsqrt.pop %v3734
    %v4357 = vmul.f32 %v4356, %v3734
    %v4358 = vmul.f32 %v4357, %v4356
    %v4359 = vmul.f32 0.5, %v4358
    %v4360 = vsub.f32 1.5, %v4359
    %v4361 = vmul.f32 %v4356, %v4360
    %vm4362 = vweird.f32 %v3734
    %vm4363 = vweird.f32 %v4356
    %vm4364 = vmor %vm4362, %vm4363
    %v4365 = vsel %vm4364, %v4356, %v4361
    %v4366 = vrsqrt.pop %v3735
    %v4367 = vmul.f32 %v4366, %v3735
    %v4368 = vmul.f32 %v4367, %v4366
    %v4369 = vmul.f32 0.5, %v4368
    %v4370 = vsub.f32 1.5, %v4369
    %v4371 = vmul.f32 %v4366, %v4370
    %vm4372 = vweird.f32 %v3735
    %vm4373 = vweird.f32 %v4366
    %vm4374 = vmor %vm4372, %vm4373
    %v4375 = vsel %vm4374, %v4366, %v4371
    %v4376 = vmul.f32 %v3416, %v3745
    %v4377 = vmul.f32 %v3417, %v3755
    %v4378 = vmul.f32 %v3418, %v3765
    %v4379 = vmul.f32 %v3419, %v3775
    %v4380 = vmul.f32 %v3420, %v3785
    %v4381 = vmul.f32 %v3421, %v3795
    %v4382 = vmul.f32 %v3422, %v3805
    %v4383 = vmul.f32 %v3423, %v3815
    %v4384 = vmul.f32 %v3424, %v3825
    %v4385 = vmul.f32 %v3425, %v3835
    %v4386 = vmul.f32 %v3426, %v3845
    %v4387 = vmul.f32 %v3427, %v3855
    %v4388 = vmul.f32 %v3428, %v3865
    %v4389 = vmul.f32 %v3429, %v3875
    %v4390 = vmul.f32 %v3430, %v3885
    %v4391 = vmul.f32 %v3431, %v3895
    %v4392 = vmul.f32 %v3432, %v3905
    %v4393 = vmul.f32 %v3433, %v3915
    %v4394 = vmul.f32 %v3434, %v3925
    %v4395 = vmul.f32 %v3435, %v3935
    %v4396 = vmul.f32 %v3436, %v3945
    %v4397 = vmul.f32 %v3437, %v3955
    %v4398 = vmul.f32 %v3438, %v3965
    %v4399 = vmul.f32 %v3439, %v3975
    %v4400 = vmul.f32 %v3440, %v3985
    %v4401 = vmul.f32 %v3441, %v3995
    %v4402 = vmul.f32 %v3442, %v4005
    %v4403 = vmul.f32 %v3443, %v4015
    %v4404 = vmul.f32 %v3444, %v4025
    %v4405 = vmul.f32 %v3445, %v4035
    %v4406 = vmul.f32 %v3446, %v4045
    %v4407 = vmul.f32 %v3447, %v4055
    %v4408 = vmul.f32 %v3448, %v4065
    %v4409 = vmul.f32 %v3449, %v4075
    %v4410 = vmul.f32 %v3450, %v4085
    %v4411 = vmul.f32 %v3451, %v4095
    %v4412 = vmul.f32 %v3452, %v4105
    %v4413 = vmul.f32 %v3453, %v4115
    %v4414 = vmul.f32 %v3454, %v4125
    %v4415 = vmul.f32 %v3455, %v4135
    %v4416 = vmul.f32 %v3456, %v4145
    %v4417 = vmul.f32 %v3457, %v4155
    %v4418 = vmul.f32 %v3458, %v4165
    %v4419 = vmul.f32 %v3459, %v4175
    %v4420 = vmul.f32 %v3460, %v4185
    %v4421 = vmul.f32 %v3461, %v4195
    %v4422 = vmul.f32 %v3462, %v4205
    %v4423 = vmul.f32 %v3463, %v4215
    %v4424 = vmul.f32 %v3464, %v4225
    %v4425 = vmul.f32 %v3465, %v4235
    %v4426 = vmul.f32 %v3466, %v4245
    %v4427 = vmul.f32 %v3467, %v4255
    %v4428 = vmul.f32 %v3468, %v4265
    %v4429 = vmul.f32 %v3469, %v4275
    %v4430 = vmul.f32 %v3470, %v4285
    %v4431 = vmul.f32 %v3471, %v4295
    %v4432 = vmul.f32 %v3472, %v4305
    %v4433 = vmul.f32 %v3473, %v4315
    %v4434 = vmul.f32 %v3474, %v4325
    %v4435 = vmul.f32 %v3475, %v4335
    %v4436 = vmul.f32 %v3476, %v4345
    %v4437 = vmul.f32 %v3477, %v4355
    %v4438 = vmul.f32 %v3478, %v4365
    %v4439 = vmul.f32 %v3479, %v4375
    %v4440 = vpack.c.bf16 %v4376, %v4376
    %v4441 = vpack.c.bf16 %v4377, %v4377
    %v4442 = vpack.c.bf16 %v4378, %v4378
    %v4443 = vpack.c.bf16 %v4379, %v4379
    %v4444 = vpack.c.bf16 %v4380, %v4380
    %v4445 = vpack.c.bf16 %v4381, %v4381
    %v4446 = vpack.c.bf16 %v4382, %v4382
    %v4447 = vpack.c.bf16 %v4383, %v4383
    %v4448 = vpack.c.bf16 %v4384, %v4384
    %v4449 = vpack.c.bf16 %v4385, %v4385
    %v4450 = vpack.c.bf16 %v4386, %v4386
    %v4451 = vpack.c.bf16 %v4387, %v4387
    %v4452 = vpack.c.bf16 %v4388, %v4388
    %v4453 = vpack.c.bf16 %v4389, %v4389
    %v4454 = vpack.c.bf16 %v4390, %v4390
    %v4455 = vpack.c.bf16 %v4391, %v4391
    %v4456 = vpack.c.bf16 %v4392, %v4392
    %v4457 = vpack.c.bf16 %v4393, %v4393
    %v4458 = vpack.c.bf16 %v4394, %v4394
    %v4459 = vpack.c.bf16 %v4395, %v4395
    %v4460 = vpack.c.bf16 %v4396, %v4396
    %v4461 = vpack.c.bf16 %v4397, %v4397
    %v4462 = vpack.c.bf16 %v4398, %v4398
    %v4463 = vpack.c.bf16 %v4399, %v4399
    %v4464 = vpack.c.bf16 %v4400, %v4400
    %v4465 = vpack.c.bf16 %v4401, %v4401
    %v4466 = vpack.c.bf16 %v4402, %v4402
    %v4467 = vpack.c.bf16 %v4403, %v4403
    %v4468 = vpack.c.bf16 %v4404, %v4404
    %v4469 = vpack.c.bf16 %v4405, %v4405
    %v4470 = vpack.c.bf16 %v4406, %v4406
    %v4471 = vpack.c.bf16 %v4407, %v4407
    %v4472 = vpack.c.bf16 %v4408, %v4408
    %v4473 = vpack.c.bf16 %v4409, %v4409
    %v4474 = vpack.c.bf16 %v4410, %v4410
    %v4475 = vpack.c.bf16 %v4411, %v4411
    %v4476 = vpack.c.bf16 %v4412, %v4412
    %v4477 = vpack.c.bf16 %v4413, %v4413
    %v4478 = vpack.c.bf16 %v4414, %v4414
    %v4479 = vpack.c.bf16 %v4415, %v4415
    %v4480 = vpack.c.bf16 %v4416, %v4416
    %v4481 = vpack.c.bf16 %v4417, %v4417
    %v4482 = vpack.c.bf16 %v4418, %v4418
    %v4483 = vpack.c.bf16 %v4419, %v4419
    %v4484 = vpack.c.bf16 %v4420, %v4420
    %v4485 = vpack.c.bf16 %v4421, %v4421
    %v4486 = vpack.c.bf16 %v4422, %v4422
    %v4487 = vpack.c.bf16 %v4423, %v4423
    %v4488 = vpack.c.bf16 %v4424, %v4424
    %v4489 = vpack.c.bf16 %v4425, %v4425
    %v4490 = vpack.c.bf16 %v4426, %v4426
    %v4491 = vpack.c.bf16 %v4427, %v4427
    %v4492 = vpack.c.bf16 %v4428, %v4428
    %v4493 = vpack.c.bf16 %v4429, %v4429
    %v4494 = vpack.c.bf16 %v4430, %v4430
    %v4495 = vpack.c.bf16 %v4431, %v4431
    %v4496 = vpack.c.bf16 %v4432, %v4432
    %v4497 = vpack.c.bf16 %v4433, %v4433
    %v4498 = vpack.c.bf16 %v4434, %v4434
    %v4499 = vpack.c.bf16 %v4435, %v4435
    %v4500 = vpack.c.bf16 %v4436, %v4436
    %v4501 = vpack.c.bf16 %v4437, %v4437
    %v4502 = vpack.c.bf16 %v4438, %v4438
    %v4503 = vpack.c.bf16 %v4439, %v4439
    %4504 = vst [vmem:[%s6] sm:$0xf] %v4440
    %4505 = vst [vmem:[%s6 + $0x4] sm:$0xf] %v4441
    %4506 = vst [vmem:[%s6 + $0x8] sm:$0xf] %v4442
    %4507 = vst [vmem:[%s6 + $0xc] sm:$0xf] %v4443
    %4508 = vst [vmem:[%s6 + $0x10] sm:$0xf] %v4444
    %4509 = vst [vmem:[%s6 + $0x14] sm:$0xf] %v4445
    %4510 = vst [vmem:[%s6 + $0x18] sm:$0xf] %v4446
    %4511 = vst [vmem:[%s6 + $0x1c] sm:$0xf] %v4447
    %4512 = vst [vmem:[%s6 + $0x20] sm:$0xf] %v4448
    %4513 = vst [vmem:[%s6 + $0x24] sm:$0xf] %v4449
    %4514 = vst [vmem:[%s6 + $0x28] sm:$0xf] %v4450
    %4515 = vst [vmem:[%s6 + $0x2c] sm:$0xf] %v4451
    %4516 = vst [vmem:[%s6 + $0x30] sm:$0xf] %v4452
    %4517 = vst [vmem:[%s6 + $0x34] sm:$0xf] %v4453
    %4518 = vst [vmem:[%s6 + $0x38] sm:$0xf] %v4454
    %4519 = vst [vmem:[%s6 + $0x3c] sm:$0xf] %v4455
    %4520 = vst [vmem:[%s6 + $0x40] sm:$0xf] %v4456
    %4521 = vst [vmem:[%s6 + $0x44] sm:$0xf] %v4457
    %4522 = vst [vmem:[%s6 + $0x48] sm:$0xf] %v4458
    %4523 = vst [vmem:[%s6 + $0x4c] sm:$0xf] %v4459
    %4524 = vst [vmem:[%s6 + $0x50] sm:$0xf] %v4460
    %4525 = vst [vmem:[%s6 + $0x54] sm:$0xf] %v4461
    %4526 = vst [vmem:[%s6 + $0x58] sm:$0xf] %v4462
    %4527 = vst [vmem:[%s6 + $0x5c] sm:$0xf] %v4463
    %4528 = vst [vmem:[%s6 + $0x60] sm:$0xf] %v4464
    %4529 = vst [vmem:[%s6 + $0x64] sm:$0xf] %v4465
    %4530 = vst [vmem:[%s6 + $0x68] sm:$0xf] %v4466
    %4531 = vst [vmem:[%s6 + $0x6c] sm:$0xf] %v4467
    %4532 = vst [vmem:[%s6 + $0x70] sm:$0xf] %v4468
    %4533 = vst [vmem:[%s6 + $0x74] sm:$0xf] %v4469
    %4534 = vst [vmem:[%s6 + $0x78] sm:$0xf] %v4470
    %4535 = vst [vmem:[%s6 + $0x7c] sm:$0xf] %v4471
    %4536 = vst [vmem:[%s6 + $0x80] sm:$0xf] %v4472
    %4537 = vst [vmem:[%s6 + $0x84] sm:$0xf] %v4473
    %4538 = vst [vmem:[%s6 + $0x88] sm:$0xf] %v4474
    %4539 = vst [vmem:[%s6 + $0x8c] sm:$0xf] %v4475
    %4540 = vst [vmem:[%s6 + $0x90] sm:$0xf] %v4476
    %4541 = vst [vmem:[%s6 + $0x94] sm:$0xf] %v4477
    %4542 = vst [vmem:[%s6 + $0x98] sm:$0xf] %v4478
    %4543 = vst [vmem:[%s6 + $0x9c] sm:$0xf] %v4479
    %4544 = vst [vmem:[%s6 + $0xa0] sm:$0xf] %v4480
    %4545 = vst [vmem:[%s6 + $0xa4] sm:$0xf] %v4481
    %4546 = vst [vmem:[%s6 + $0xa8] sm:$0xf] %v4482
    %4547 = vst [vmem:[%s6 + $0xac] sm:$0xf] %v4483
    %4548 = vst [vmem:[%s6 + $0xb0] sm:$0xf] %v4484
    %4549 = vst [vmem:[%s6 + $0xb4] sm:$0xf] %v4485
    %4550 = vst [vmem:[%s6 + $0xb8] sm:$0xf] %v4486
    %4551 = vst [vmem:[%s6 + $0xbc] sm:$0xf] %v4487
    %4552 = vst [vmem:[%s6 + $0xc0] sm:$0xf] %v4488
    %4553 = vst [vmem:[%s6 + $0xc4] sm:$0xf] %v4489
    %4554 = vst [vmem:[%s6 + $0xc8] sm:$0xf] %v4490
    %4555 = vst [vmem:[%s6 + $0xcc] sm:$0xf] %v4491
    %4556 = vst [vmem:[%s6 + $0xd0] sm:$0xf] %v4492
    %4557 = vst [vmem:[%s6 + $0xd4] sm:$0xf] %v4493
    %4558 = vst [vmem:[%s6 + $0xd8] sm:$0xf] %v4494
    %4559 = vst [vmem:[%s6 + $0xdc] sm:$0xf] %v4495
    %4560 = vst [vmem:[%s6 + $0xe0] sm:$0xf] %v4496
    %4561 = vst [vmem:[%s6 + $0xe4] sm:$0xf] %v4497
    %4562 = vst [vmem:[%s6 + $0xe8] sm:$0xf] %v4498
    %4563 = vst [vmem:[%s6 + $0xec] sm:$0xf] %v4499
    %4564 = vst [vmem:[%s6 + $0xf0] sm:$0xf] %v4500
    %4565 = vst [vmem:[%s6 + $0xf4] sm:$0xf] %v4501
    %4566 = vst [vmem:[%s6 + $0xf8] sm:$0xf] %v4502
    %4567 = vst [vmem:[%s6 + $0xfc] sm:$0xf] %v4503
  $region33: #{graphsage_forward.3} parent=0 // pred_fallthru
    _
  // Predicated region
  $region34: #{graphsage_forward.3} parent=0 // pred_check
    _
  $region35: #{graphsage_forward.3} parent=0 // pred_check_branch
    %4569 = sbr.rel (0) target = $region37
  $region36: #{graphsage_forward.3} parent=0 // pred_region
    _
  $region37: #{graphsage_forward.3} parent=0 // pred_fallthru
    _
  // Predicated region
  $region38: #{graphsage_forward.3} parent=0 // pred_check
    _
  $region39: #{graphsage_forward.3} parent=0 // pred_check_branch
    %4571 = sbr.rel (0) target = $region41
  $region40: #{graphsage_forward.3} parent=0 // pred_region
    _
  $region41: #{graphsage_forward.3} parent=0 // pred_fallthru
    _

</llo_original>
